<compile_context>
chip_gen: v7x
topology: tpu7x:2x2x1
jax: 0.10.0
libtpu: 0.0.40
codegen_flags: <defaults>
</compile_context>

<pallas_src>
import functools

import numpy as np
import jax
import jax.numpy as jnp
from jax import lax
from jax.experimental import pallas as pl
from jax.experimental.pallas import tpu as pltpu


# Static architecture config (kept OUT of the jitted params pytree so strides /
# shortcut choices stay Python ints -- this was the bug in the previous version).
BLOCK_CFG = ((16, 16, 2), (16, 32, 2), (32, 32, 2), (32, 64, 2))  # (cin, cout, stride)
STEM_CH = 16
EMBED_DIM = 64


def _row_tile(ho):
    for cand in (28, 16, 14, 8, 7, 4, 2, 1):
        if ho % cand == 0:
            return cand
    return 1


# ----------------------------------------------------------------------------
# Pallas kernel: fused 3x3 conv + BatchNorm(affine) + PReLU, NHCW layout.
# ----------------------------------------------------------------------------
def _conv3x3_kernel(x_ref, w_ref, ep_ref, o_ref, *,
                    stride, tr, ho, wo, cout, concat_path):
    # x_ref : (1, Hp, Cin, Wp) bf16  -- spatially pre-padded input image,
    #                                   parity-regrouped along H and W if stride==2
    # w_ref : (Cout, 9*Cin) bf16     (concat_path)  or (9, Cout, Cin) bf16
    # ep_ref: (Cout, 3) f32          columns = [scale, shift, prelu_alpha]
    # o_ref : (1, tr, Cout, Wo) bf16
    r = pl.program_id(1)
    row0 = r * tr
    scale = ep_ref[:, 0:1]
    shift = ep_ref[:, 1:2]
    alpha = ep_ref[:, 2:3]
    if concat_path:
        wmat = w_ref[...]                               # (Cout, 9*Cin)
    else:
        wtaps = [w_ref[i] for i in range(9)]            # 9 x (Cout, Cin)

    @pl.loop(0, tr)
    def _row(t):
        out_row = row0 + t

        def tap(di, dj):
            if stride == 1:
                rs = out_row + di
                cs = dj
            else:  # stride == 2: input was regrouped even-rows/cols first.
                rs = (di % 2) * (ho + 1) + out_row + (di // 2)
                cs = (dj % 2) * (wo + 1) + (dj // 2)
            return x_ref[0, rs, :, pl.ds(cs, wo)]       # (Cin, Wo)

        if concat_path:
            # Cin % 16 == 0 -> tile-aligned sublane concat, single MXU dot.
            patch = jnp.concatenate(
                [tap(di, dj) for di in range(3) for dj in range(3)], axis=0)
            acc = jnp.dot(wmat, patch, preferred_element_type=jnp.float32)
        else:
            # Small / ragged Cin (stem, Cin=3): 9 accumulating dots.
            acc = jnp.zeros((cout, wo), jnp.float32)
            for di in range(3):
                for dj in range(3):
                    acc = acc + jnp.dot(wtaps[di * 3 + dj], tap(di, dj),
                                        preferred_element_type=jnp.float32)
        # Fused epilogue: folded-BN affine + PReLU, in f32, store bf16.
        y = acc * scale + shift
        y = jnp.where(y > 0.0, y, alpha * y)
        o_ref[0, t, :, :] = y.astype(o_ref.dtype)


def conv3x3_bn_prelu(x, w, scale, shift, alpha, *, stride):
    """Fused Conv2d(3x3, pad=1, bias=False) + BN(affine) + PReLU.

    x: (B, H, Cin, W) NHCW; w: (Cout, Cin, 3, 3) torch layout;
    scale/shift/alpha: (Cout,) f32.  Returns (B, Ho, Cout, Wo) bf16.
    """
    assert stride in (1, 2)
    B, H, Cin, W = x.shape
    Cout = w.shape[0]
    assert w.shape[1] == Cin
    if stride == 2:
        assert H % 2 == 0 and W % 2 == 0
    Ho = (H - 1) // stride + 1
    Wo = (W - 1) // stride + 1

    # One cheap spatial zero-pad in HBM (pad value is in the conv-input domain,
    # matching PyTorch's pad-after-BN semantics because BN is applied upstream).
    xp = jnp.pad(x.astype(jnp.bfloat16), ((0, 0), (1, 1), (0, 0), (1, 1)))
    if stride == 2:
        # Regroup rows / cols by parity so every in-kernel tap read is a plain
        # contiguous slice (no strided loads inside the kernel).
        xp = jnp.concatenate([xp[:, 0::2], xp[:, 1::2]], axis=1)
        xp = jnp.concatenate([xp[:, :, :, 0::2], xp[:, :, :, 1::2]], axis=3)
    Hp, Wp = xp.shape[1], xp.shape[3]

    concat_path = (Cin % 16 == 0)
    if concat_path:
        w_op = jnp.transpose(w, (0, 2, 3, 1)).reshape(Cout, 9 * Cin)
        w_spec = pl.BlockSpec((Cout, 9 * Cin), lambda b, r: (0, 0))
    else:
        w_op = jnp.transpose(w, (2, 3, 0, 1)).reshape(9, Cout, Cin)
        w_spec = pl.BlockSpec((9, Cout, Cin), lambda b, r: (0, 0, 0))
    w_op = w_op.astype(jnp.bfloat16)
    ep = jnp.stack([scale, shift, alpha], axis=1).astype(jnp.float32)  # (Cout, 3)

    tr = _row_tile(Ho)
    kernel = functools.partial(_conv3x3_kernel, stride=stride, tr=tr,
                               ho=Ho, wo=Wo, cout=Cout, concat_path=concat_path)
    return pl.pallas_call(
        kernel,
        out_shape=jax.ShapeDtypeStruct((B, Ho, Cout, Wo), jnp.bfloat16),
        grid_spec=pltpu.PrefetchScalarGridSpec(
            num_scalar_prefetch=0,
            grid=(B, Ho // tr),
            in_specs=[
                pl.BlockSpec((1, Hp, Cin, Wp), lambda b, r: (b, 0, 0, 0)),
                w_spec,
                pl.BlockSpec((Cout, 3), lambda b, r: (0, 0)),
            ],
            out_specs=pl.BlockSpec((1, tr, Cout, Wo), lambda b, r: (b, r, 0, 0))),
        compiler_params=pltpu.CompilerParams(
            dimension_semantics=("parallel", "parallel")),
    )(xp, w_op, ep)


# ----------------------------------------------------------------------------
# Glue helpers (folded BN, adaptive pool matrices, tiny jnp ops).
# ----------------------------------------------------------------------------
def _bn_scale_shift(bn, eps=1e-5):
    scale = bn["gamma"] * lax.rsqrt(bn["var"] + eps)
    shift = bn["beta"] - bn["mean"] * scale
    return scale, shift


def _pool_matrix(in_size, out_size):
    P = np.zeros((out_size, in_size), np.float32)
    for i in range(out_size):
        s = (i * in_size) // out_size
        e = -((-(i + 1) * in_size) // out_size)  # ceil
        P[i, s:e] = 1.0 / (e - s)
    return jnp.asarray(P)


def adaptive_avg_pool_nhcw(x, out_hw):
    """torch.nn.AdaptiveAvgPool2d semantics on NHCW, as two small contractions."""
    B, H, C, W = x.shape
    OH, OW = out_hw
    Ph = _pool_matrix(H, OH)
    Pw = _pool_matrix(W, OW)
    y = jnp.einsum('oh,bhcw->bocw', Ph, x)
    y = jnp.einsum('pw,bocw->bocp', Pw, y)
    return y


def bottleneck_ir_se(x, blk, cin, cout, stride):
    """bottleneck_IR_SE block, NHCW bf16 in/out."""
    # --- shortcut path ---
    if cin == cout:
        shortcut = x[:, ::stride, :, ::stride].astype(jnp.float32)  # MaxPool2d(1, s)
    else:
        xs = x[:, ::stride, :, ::stride].astype(jnp.float32)
        w1 = blk["shortcut_w"][:, :, 0, 0]                          # (Cout, Cin)
        sc = jnp.einsum('bhcw,oc->bhow', xs, w1)                    # tiny 1x1 conv
        s, b = _bn_scale_shift(blk["shortcut_bn"])
        shortcut = sc * s[None, None, :, None] + b[None, None, :, None]
    # --- residual path: BN1 -> conv3x3(s1)+PReLU -> conv3x3(s)+BN2 -> SE ---
    s1, b1 = _bn_scale_shift(blk["bn1"])
    r = x.astype(jnp.float32) * s1[None, None, :, None] + b1[None, None, :, None]
    ones = jnp.ones((cout,), jnp.float32)
    zeros = jnp.zeros((cout,), jnp.float32)
    r = conv3x3_bn_prelu(r, blk["conv1"], ones, zeros, blk["prelu"], stride=1)
    s2, b2 = _bn_scale_shift(blk["bn2"])
    r = conv3x3_bn_prelu(r, blk["conv2"], s2, b2, ones, stride=stride)
    # --- SE module (B<=2: plain jnp per perf review) ---
    rf = r.astype(jnp.float32)
    pooled = jnp.mean(rf, axis=(1, 3))                              # (B, Cout)
    h = jnp.maximum(pooled @ blk["se_w1"][:, :, 0, 0].T, 0.0)
    g = jax.nn.sigmoid(h @ blk["se_w2"][:, :, 0, 0].T)
    rf = rf * g[:, None, :, None]
    return (rf + shortcut).astype(jnp.bfloat16)


# ----------------------------------------------------------------------------
# Deterministic synthetic parameter init (shapes follow the module structure).
# ----------------------------------------------------------------------------
def _init_bn(key, c):
    k1, k2, k3, k4 = jax.random.split(key, 4)
    return dict(
        gamma=1.0 + 0.1 * jax.random.normal(k1, (c,), jnp.float32),
        beta=0.1 * jax.random.normal(k2, (c,), jnp.float32),
        mean=0.1 * jax.random.normal(k3, (c,), jnp.float32),
        var=1.0 + 0.1 * jnp.abs(jax.random.normal(k4, (c,), jnp.float32)),
    )


def _init_conv(key, cout, cin, k):
    fan_in = cin * k * k
    return jax.random.normal(key, (cout, cin, k, k), jnp.float32) / np.sqrt(fan_in)


def init_params(key):
    keys = iter(jax.random.split(key, 64))
    nk = lambda: next(keys)
    params = {}
    params["input"] = dict(conv=_init_conv(nk(), STEM_CH, 3, 3),
                           bn=_init_bn(nk(), STEM_CH),
                           prelu=jnp.full((STEM_CH,), 0.25, jnp.float32))
    blocks = []
    for cin, cout, _stride in BLOCK_CFG:
        cmid = max(cout // 16, 1)  # SEModule(depth, 16)
        blk = dict(
            bn1=_init_bn(nk(), cin),
            conv1=_init_conv(nk(), cout, cin, 3),
            prelu=jnp.full((cout,), 0.25, jnp.float32),
            conv2=_init_conv(nk(), cout, cout, 3),
            bn2=_init_bn(nk(), cout),
            se_w1=_init_conv(nk(), cmid, cout, 1),
            se_w2=_init_conv(nk(), cout, cmid, 1),
        )
        if cin != cout:
            blk["shortcut_w"] = _init_conv(nk(), cout, cin, 1)
            blk["shortcut_bn"] = _init_bn(nk(), cout)
        blocks.append(blk)
    params["blocks"] = blocks
    c_last = BLOCK_CFG[-1][1]
    params["output"] = dict(
        bn2d=_init_bn(nk(), c_last),
        linear_w=0.02 * jax.random.normal(nk(), (EMBED_DIM, c_last * 7 * 7), jnp.float32),
        linear_b=0.01 * jax.random.normal(nk(), (EMBED_DIM,), jnp.float32),
        bn1d=_init_bn(nk(), EMBED_DIM),
    )
    return params


# ----------------------------------------------------------------------------
# Backbone + IDLoss.forward (feature extraction path).
# ----------------------------------------------------------------------------
def backbone_forward(p, x):
    """x: NHCW (B, 112, 3, 112) f32 -> l2-normalized embedding (B, EMBED_DIM)."""
    s, b = _bn_scale_shift(p["input"]["bn"])
    x = conv3x3_bn_prelu(x, p["input"]["conv"], s, b, p["input"]["prelu"], stride=1)
    for blk, (cin, cout, stride) in zip(p["blocks"], BLOCK_CFG):
        x = bottleneck_ir_se(x, blk, cin, cout, stride)
    # Output head is tiny (M = batch <= 2): f32 jnp per perf review.
    x = x.astype(jnp.float32)
    s, b = _bn_scale_shift(p["output"]["bn2d"])
    x = x * s[None, None, :, None] + b[None, None, :, None]
    # Dropout(0.6) is identity in eval mode.
    B, H, C, W = x.shape
    x = jnp.transpose(x, (0, 2, 1, 3)).reshape(B, C * H * W)   # NCHW flatten order
    x = x @ p["output"]["linear_w"].T + p["output"]["linear_b"][None, :]
    s, b = _bn_scale_shift(p["output"]["bn1d"])
    x = x * s + b
    ss = jnp.sum(x * x, axis=1, keepdims=True)                 # ArcFace l2_norm
    return x * lax.rsqrt(jnp.maximum(ss, 1e-20))


def id_loss_forward(params, y_nchw, cropped=False):
    """IDLoss.forward(y): resize -> crop -> face_pool -> facenet -> features."""
    y = y_nchw.astype(jnp.float32)
    B, C, H, W = y.shape
    if not cropped:
        if W != 256:
            # torchvision Resize([256, 256]).
            # TODO(synk): jax.image.resize bilinear has no antialias (differs
            #             from recent torchvision defaults when downscaling).
            y = jax.image.resize(y, (B, C, 256, 256), method="bilinear")
        y = y[:, :, 35:223, 32:220]                    # crop -> (B, 3, 188, 188)
    x = jnp.transpose(y, (0, 2, 1, 3))                 # NCHW -> NHCW internal
    x = adaptive_avg_pool_nhcw(x, (112, 112))          # face_pool
    return backbone_forward(params, x)


if __name__ == "__main__":
    key = jax.random.PRNGKey(0)
    pkey, xkey = jax.random.split(key)
    params = init_params(pkey)
    y = jax.random.normal(xkey, (2, 3, 64, 64), jnp.float32)  # small input; resized to 256
    fwd = jax.jit(id_loss_forward)
    feats = jax.block_until_ready(fwd(params, y))
    assert feats.shape == (2, EMBED_DIM)
    assert bool(jnp.all(jnp.isfinite(feats)))
    # features are l2-normalized
    norms = jnp.sqrt(jnp.sum(feats * feats, axis=1))
    assert bool(jnp.all(jnp.abs(norms - 1.0) < 1e-3))
    print("KERNEL_OK")
</pallas_src>

<mosaic_0001>
module attributes {stable_mosaic.version = 11 : i64} {
  func.func @_conv3x3_kernel(%arg0: i32, %arg1: i32, %arg2: memref<1x114x3x114xbf16, #tpu.memory_space<vmem>>, %arg3: memref<9x16x3xbf16, #tpu.memory_space<vmem>>, %arg4: memref<16x3xf32, #tpu.memory_space<vmem>>, %arg5: memref<1x28x16x112xbf16, #tpu.memory_space<vmem>>) attributes {dimension_semantics = [#tpu.dimension_semantics<parallel>, #tpu.dimension_semantics<parallel>], iteration_bounds = array<i64: 2, 4>, scalar_prefetch = 0 : i64, scratch_operands = 0 : i64, tpu.core_type = #tpu.core_type<tc>, window_params = [{transform_indices = @transform_0, window_bounds = array<i64: 1, 114, 3, 114>}, {pipeline_mode = #tpu.pipeline_mode<synchronous>, transform_indices = @transform_1, window_bounds = array<i64: 9, 16, 3>}, {pipeline_mode = #tpu.pipeline_mode<synchronous>, transform_indices = @transform_2, window_bounds = array<i64: 16, 3>}, {transform_indices = @transform_3, window_bounds = array<i64: 1, 28, 16, 112>}]} {
    %c28_i32 = arith.constant 28 : i32
    %0 = arith.muli %arg1, %c28_i32 : i32
    %c0 = arith.constant 0 : index
    %c0_0 = arith.constant 0 : index
    %1 = vector.load %arg4[%c0, %c0_0] : memref<16x3xf32, #tpu.memory_space<vmem>>, vector<16x1xf32>
    %c0_1 = arith.constant 0 : index
    %c1 = arith.constant 1 : index
    %2 = vector.load %arg4[%c0_1, %c1] : memref<16x3xf32, #tpu.memory_space<vmem>>, vector<16x1xf32>
    %c0_2 = arith.constant 0 : index
    %c2 = arith.constant 2 : index
    %3 = vector.load %arg4[%c0_2, %c2] : memref<16x3xf32, #tpu.memory_space<vmem>>, vector<16x1xf32>
    %c0_3 = arith.constant 0 : index
    %c0_4 = arith.constant 0 : index
    %c0_5 = arith.constant 0 : index
    %4 = vector.load %arg3[%c0_3, %c0_4, %c0_5] : memref<9x16x3xbf16, #tpu.memory_space<vmem>>, vector<1x16x3xbf16>
    %5 = vector.shape_cast %4 : vector<1x16x3xbf16> to vector<16x3xbf16>
    %c1_6 = arith.constant 1 : index
    %c0_7 = arith.constant 0 : index
    %c0_8 = arith.constant 0 : index
    %6 = vector.load %arg3[%c1_6, %c0_7, %c0_8] : memref<9x16x3xbf16, #tpu.memory_space<vmem>>, vector<1x16x3xbf16>
    %7 = vector.shape_cast %6 : vector<1x16x3xbf16> to vector<16x3xbf16>
    %c2_9 = arith.constant 2 : index
    %c0_10 = arith.constant 0 : index
    %c0_11 = arith.constant 0 : index
    %8 = vector.load %arg3[%c2_9, %c0_10, %c0_11] : memref<9x16x3xbf16, #tpu.memory_space<vmem>>, vector<1x16x3xbf16>
    %9 = vector.shape_cast %8 : vector<1x16x3xbf16> to vector<16x3xbf16>
    %c3 = arith.constant 3 : index
    %c0_12 = arith.constant 0 : index
    %c0_13 = arith.constant 0 : index
    %10 = vector.load %arg3[%c3, %c0_12, %c0_13] : memref<9x16x3xbf16, #tpu.memory_space<vmem>>, vector<1x16x3xbf16>
    %11 = vector.shape_cast %10 : vector<1x16x3xbf16> to vector<16x3xbf16>
    %c4 = arith.constant 4 : index
    %c0_14 = arith.constant 0 : index
    %c0_15 = arith.constant 0 : index
    %12 = vector.load %arg3[%c4, %c0_14, %c0_15] : memref<9x16x3xbf16, #tpu.memory_space<vmem>>, vector<1x16x3xbf16>
    %13 = vector.shape_cast %12 : vector<1x16x3xbf16> to vector<16x3xbf16>
    %c5 = arith.constant 5 : index
    %c0_16 = arith.constant 0 : index
    %c0_17 = arith.constant 0 : index
    %14 = vector.load %arg3[%c5, %c0_16, %c0_17] : memref<9x16x3xbf16, #tpu.memory_space<vmem>>, vector<1x16x3xbf16>
    %15 = vector.shape_cast %14 : vector<1x16x3xbf16> to vector<16x3xbf16>
    %c6 = arith.constant 6 : index
    %c0_18 = arith.constant 0 : index
    %c0_19 = arith.constant 0 : index
    %16 = vector.load %arg3[%c6, %c0_18, %c0_19] : memref<9x16x3xbf16, #tpu.memory_space<vmem>>, vector<1x16x3xbf16>
    %17 = vector.shape_cast %16 : vector<1x16x3xbf16> to vector<16x3xbf16>
    %c7 = arith.constant 7 : index
    %c0_20 = arith.constant 0 : index
    %c0_21 = arith.constant 0 : index
    %18 = vector.load %arg3[%c7, %c0_20, %c0_21] : memref<9x16x3xbf16, #tpu.memory_space<vmem>>, vector<1x16x3xbf16>
    %19 = vector.shape_cast %18 : vector<1x16x3xbf16> to vector<16x3xbf16>
    %c8 = arith.constant 8 : index
    %c0_22 = arith.constant 0 : index
    %c0_23 = arith.constant 0 : index
    %20 = vector.load %arg3[%c8, %c0_22, %c0_23] : memref<9x16x3xbf16, #tpu.memory_space<vmem>>, vector<1x16x3xbf16>
    %21 = vector.shape_cast %20 : vector<1x16x3xbf16> to vector<16x3xbf16>
    %c0_i32 = arith.constant 0 : i32
    %c28_i32_24 = arith.constant 28 : i32
    %22 = arith.addi %c0_i32, %c28_i32_24 : i32
    %c1_i32 = arith.constant 1 : i32
    scf.for %arg6 = %c0_i32 to %22 step %c1_i32  : i32 {
      %c1_i32_26 = arith.constant 1 : i32
      %23 = arith.muli %arg6, %c1_i32_26 : i32
      %c0_i32_27 = arith.constant 0 : i32
      %24 = arith.addi %c0_i32_27, %23 : i32
      %25 = arith.addi %0, %24 : i32
      %cst = arith.constant 0.000000e+00 : f32
      %26 = vector.broadcast %cst : f32 to vector<16x112xf32>
      %c0_i32_28 = arith.constant 0 : i32
      %27 = arith.addi %25, %c0_i32_28 : i32
      %c0_29 = arith.constant 0 : index
      %28 = arith.index_cast %27 : i32 to index
      %c0_30 = arith.constant 0 : index
      %c0_31 = arith.constant 0 : index
      %29 = vector.load %arg2[%c0_29, %28, %c0_30, %c0_31] : memref<1x114x3x114xbf16, #tpu.memory_space<vmem>>, vector<1x1x3x112xbf16>
      %30 = vector.shape_cast %29 : vector<1x1x3x112xbf16> to vector<3x112xbf16>
      %cst_32 = arith.constant dense<0.000000e+00> : vector<16x112xf32>
      %31 = tpu.matmul %5, %30, %cst_32 {dimension_numbers = #tpu.dot_dimension_numbers<[1], [0], [0], [1], [0, 0, 1, 1], [], []>} : vector<16x3xbf16>, vector<3x112xbf16>, vector<16x112xf32> -> vector<16x112xf32>
      %32 = arith.addf %26, %31 : vector<16x112xf32>
      %c0_i32_33 = arith.constant 0 : i32
      %33 = arith.addi %25, %c0_i32_33 : i32
      %c0_34 = arith.constant 0 : index
      %34 = arith.index_cast %33 : i32 to index
      %c0_35 = arith.constant 0 : index
      %c1_36 = arith.constant 1 : index
      %35 = vector.load %arg2[%c0_34, %34, %c0_35, %c1_36] : memref<1x114x3x114xbf16, #tpu.memory_space<vmem>>, vector<1x1x3x112xbf16>
      %36 = vector.shape_cast %35 : vector<1x1x3x112xbf16> to vector<3x112xbf16>
      %cst_37 = arith.constant dense<0.000000e+00> : vector<16x112xf32>
      %37 = tpu.matmul %7, %36, %cst_37 {dimension_numbers = #tpu.dot_dimension_numbers<[1], [0], [0], [1], [0, 0, 1, 1], [], []>} : vector<16x3xbf16>, vector<3x112xbf16>, vector<16x112xf32> -> vector<16x112xf32>
      %38 = arith.addf %32, %37 : vector<16x112xf32>
      %c0_i32_38 = arith.constant 0 : i32
      %39 = arith.addi %25, %c0_i32_38 : i32
      %c0_39 = arith.constant 0 : index
      %40 = arith.index_cast %39 : i32 to index
      %c0_40 = arith.constant 0 : index
      %c2_41 = arith.constant 2 : index
      %41 = vector.load %arg2[%c0_39, %40, %c0_40, %c2_41] : memref<1x114x3x114xbf16, #tpu.memory_space<vmem>>, vector<1x1x3x112xbf16>
      %42 = vector.shape_cast %41 : vector<1x1x3x112xbf16> to vector<3x112xbf16>
      %cst_42 = arith.constant dense<0.000000e+00> : vector<16x112xf32>
      %43 = tpu.matmul %9, %42, %cst_42 {dimension_numbers = #tpu.dot_dimension_numbers<[1], [0], [0], [1], [0, 0, 1, 1], [], []>} : vector<16x3xbf16>, vector<3x112xbf16>, vector<16x112xf32> -> vector<16x112xf32>
      %44 = arith.addf %38, %43 : vector<16x112xf32>
      %c1_i32_43 = arith.constant 1 : i32
      %45 = arith.addi %25, %c1_i32_43 : i32
      %c0_44 = arith.constant 0 : index
      %46 = arith.index_cast %45 : i32 to index
      %c0_45 = arith.constant 0 : index
      %c0_46 = arith.constant 0 : index
      %47 = vector.load %arg2[%c0_44, %46, %c0_45, %c0_46] : memref<1x114x3x114xbf16, #tpu.memory_space<vmem>>, vector<1x1x3x112xbf16>
      %48 = vector.shape_cast %47 : vector<1x1x3x112xbf16> to vector<3x112xbf16>
      %cst_47 = arith.constant dense<0.000000e+00> : vector<16x112xf32>
      %49 = tpu.matmul %11, %48, %cst_47 {dimension_numbers = #tpu.dot_dimension_numbers<[1], [0], [0], [1], [0, 0, 1, 1], [], []>} : vector<16x3xbf16>, vector<3x112xbf16>, vector<16x112xf32> -> vector<16x112xf32>
      %50 = arith.addf %44, %49 : vector<16x112xf32>
      %c1_i32_48 = arith.constant 1 : i32
      %51 = arith.addi %25, %c1_i32_48 : i32
      %c0_49 = arith.constant 0 : index
      %52 = arith.index_cast %51 : i32 to index
      %c0_50 = arith.constant 0 : index
      %c1_51 = arith.constant 1 : index
      %53 = vector.load %arg2[%c0_49, %52, %c0_50, %c1_51] : memref<1x114x3x114xbf16, #tpu.memory_space<vmem>>, vector<1x1x3x112xbf16>
      %54 = vector.shape_cast %53 : vector<1x1x3x112xbf16> to vector<3x112xbf16>
      %cst_52 = arith.constant dense<0.000000e+00> : vector<16x112xf32>
      %55 = tpu.matmul %13, %54, %cst_52 {dimension_numbers = #tpu.dot_dimension_numbers<[1], [0], [0], [1], [0, 0, 1, 1], [], []>} : vector<16x3xbf16>, vector<3x112xbf16>, vector<16x112xf32> -> vector<16x112xf32>
      %56 = arith.addf %50, %55 : vector<16x112xf32>
      %c1_i32_53 = arith.constant 1 : i32
      %57 = arith.addi %25, %c1_i32_53 : i32
      %c0_54 = arith.constant 0 : index
      %58 = arith.index_cast %57 : i32 to index
      %c0_55 = arith.constant 0 : index
      %c2_56 = arith.constant 2 : index
      %59 = vector.load %arg2[%c0_54, %58, %c0_55, %c2_56] : memref<1x114x3x114xbf16, #tpu.memory_space<vmem>>, vector<1x1x3x112xbf16>
      %60 = vector.shape_cast %59 : vector<1x1x3x112xbf16> to vector<3x112xbf16>
      %cst_57 = arith.constant dense<0.000000e+00> : vector<16x112xf32>
      %61 = tpu.matmul %15, %60, %cst_57 {dimension_numbers = #tpu.dot_dimension_numbers<[1], [0], [0], [1], [0, 0, 1, 1], [], []>} : vector<16x3xbf16>, vector<3x112xbf16>, vector<16x112xf32> -> vector<16x112xf32>
      %62 = arith.addf %56, %61 : vector<16x112xf32>
      %c2_i32 = arith.constant 2 : i32
      %63 = arith.addi %25, %c2_i32 : i32
      %c0_58 = arith.constant 0 : index
      %64 = arith.index_cast %63 : i32 to index
      %c0_59 = arith.constant 0 : index
      %c0_60 = arith.constant 0 : index
      %65 = vector.load %arg2[%c0_58, %64, %c0_59, %c0_60] : memref<1x114x3x114xbf16, #tpu.memory_space<vmem>>, vector<1x1x3x112xbf16>
      %66 = vector.shape_cast %65 : vector<1x1x3x112xbf16> to vector<3x112xbf16>
      %cst_61 = arith.constant dense<0.000000e+00> : vector<16x112xf32>
      %67 = tpu.matmul %17, %66, %cst_61 {dimension_numbers = #tpu.dot_dimension_numbers<[1], [0], [0], [1], [0, 0, 1, 1], [], []>} : vector<16x3xbf16>, vector<3x112xbf16>, vector<16x112xf32> -> vector<16x112xf32>
      %68 = arith.addf %62, %67 : vector<16x112xf32>
      %c2_i32_62 = arith.constant 2 : i32
      %69 = arith.addi %25, %c2_i32_62 : i32
      %c0_63 = arith.constant 0 : index
      %70 = arith.index_cast %69 : i32 to index
      %c0_64 = arith.constant 0 : index
      %c1_65 = arith.constant 1 : index
      %71 = vector.load %arg2[%c0_63, %70, %c0_64, %c1_65] : memref<1x114x3x114xbf16, #tpu.memory_space<vmem>>, vector<1x1x3x112xbf16>
      %72 = vector.shape_cast %71 : vector<1x1x3x112xbf16> to vector<3x112xbf16>
      %cst_66 = arith.constant dense<0.000000e+00> : vector<16x112xf32>
      %73 = tpu.matmul %19, %72, %cst_66 {dimension_numbers = #tpu.dot_dimension_numbers<[1], [0], [0], [1], [0, 0, 1, 1], [], []>} : vector<16x3xbf16>, vector<3x112xbf16>, vector<16x112xf32> -> vector<16x112xf32>
      %74 = arith.addf %68, %73 : vector<16x112xf32>
      %c2_i32_67 = arith.constant 2 : i32
      %75 = arith.addi %25, %c2_i32_67 : i32
      %c0_68 = arith.constant 0 : index
      %76 = arith.index_cast %75 : i32 to index
      %c0_69 = arith.constant 0 : index
      %c2_70 = arith.constant 2 : index
      %77 = vector.load %arg2[%c0_68, %76, %c0_69, %c2_70] : memref<1x114x3x114xbf16, #tpu.memory_space<vmem>>, vector<1x1x3x112xbf16>
      %78 = vector.shape_cast %77 : vector<1x1x3x112xbf16> to vector<3x112xbf16>
      %cst_71 = arith.constant dense<0.000000e+00> : vector<16x112xf32>
      %79 = tpu.matmul %21, %78, %cst_71 {dimension_numbers = #tpu.dot_dimension_numbers<[1], [0], [0], [1], [0, 0, 1, 1], [], []>} : vector<16x3xbf16>, vector<3x112xbf16>, vector<16x112xf32> -> vector<16x112xf32>
      %80 = arith.addf %74, %79 : vector<16x112xf32>
      %81 = vector.broadcast %1 : vector<16x1xf32> to vector<16x112xf32>
      %82 = arith.mulf %80, %81 : vector<16x112xf32>
      %83 = vector.broadcast %2 : vector<16x1xf32> to vector<16x112xf32>
      %84 = arith.addf %82, %83 : vector<16x112xf32>
      %cst_72 = arith.constant 0.000000e+00 : f32
      %85 = vector.broadcast %cst_72 : f32 to vector<16x112xf32>
      %86 = arith.cmpf ogt, %84, %85 : vector<16x112xf32>
      %87 = vector.broadcast %3 : vector<16x1xf32> to vector<16x112xf32>
      %88 = arith.mulf %87, %84 : vector<16x112xf32>
      %89 = arith.select %86, %84, %88 : vector<16x112xi1>, vector<16x112xf32>
      %90 = arith.truncf %89 : vector<16x112xf32> to vector<16x112xbf16>
      %c0_73 = arith.constant 0 : index
      %91 = arith.index_cast %24 : i32 to index
      %c0_74 = arith.constant 0 : index
      %c0_75 = arith.constant 0 : index
      %92 = vector.load %arg5[%c0_73, %91, %c0_74, %c0_75] : memref<1x28x16x112xbf16, #tpu.memory_space<vmem>>, vector<1x1x16x112xbf16>
      %93 = vector.shape_cast %92 : vector<1x1x16x112xbf16> to vector<16x112xbf16>
      %94 = vector.shape_cast %90 : vector<16x112xbf16> to vector<1x1x16x112xbf16>
      tpu.vector_store %arg5[%c0_73, %91, %c0_74, %c0_75], %94 {strides = array<i32>} : memref<1x28x16x112xbf16, #tpu.memory_space<vmem>>, vector<1x1x16x112xbf16>,
    }
    %c28_i32_25 = arith.constant 28 : i32
    return
  }
  func.func @transform_0(%arg0: i32, %arg1: i32) -> (i32, i32, i32, i32) {
    %c0_i32 = arith.constant 0 : i32
    %c0_i32_0 = arith.constant 0 : i32
    %c0_i32_1 = arith.constant 0 : i32
    %c0_i32_2 = arith.constant 0 : i32
    return %arg0, %c0_i32, %c0_i32_0, %c0_i32_1 : i32, i32, i32, i32
  }
  func.func @transform_1(%arg0: i32, %arg1: i32) -> (i32, i32, i32) {
    %c0_i32 = arith.constant 0 : i32
    %c0_i32_0 = arith.constant 0 : i32
    %c0_i32_1 = arith.constant 0 : i32
    %c0_i32_2 = arith.constant 0 : i32
    return %c0_i32, %c0_i32_0, %c0_i32_1 : i32, i32, i32
  }
  func.func @transform_2(%arg0: i32, %arg1: i32) -> (i32, i32) {
    %c0_i32 = arith.constant 0 : i32
    %c0_i32_0 = arith.constant 0 : i32
    %c0_i32_1 = arith.constant 0 : i32
    return %c0_i32, %c0_i32_0 : i32, i32
  }
  func.func @transform_3(%arg0: i32, %arg1: i32) -> (i32, i32, i32, i32) {
    %c0_i32 = arith.constant 0 : i32
    %c0_i32_0 = arith.constant 0 : i32
    %c0_i32_1 = arith.constant 0 : i32
    return %arg0, %arg1, %c0_i32, %c0_i32_0 : i32, i32, i32, i32
  }
}

module attributes {stable_mosaic.version = 11 : i64} {
  func.func @_conv3x3_kernel(%arg0: i32, %arg1: i32, %arg2: memref<1x114x16x114xbf16, #tpu.memory_space<vmem>>, %arg3: memref<16x144xbf16, #tpu.memory_space<vmem>>, %arg4: memref<16x3xf32, #tpu.memory_space<vmem>>, %arg5: memref<1x28x16x112xbf16, #tpu.memory_space<vmem>>) attributes {dimension_semantics = [#tpu.dimension_semantics<parallel>, #tpu.dimension_semantics<parallel>], iteration_bounds = array<i64: 2, 4>, scalar_prefetch = 0 : i64, scratch_operands = 0 : i64, tpu.core_type = #tpu.core_type<tc>, window_params = [{transform_indices = @transform_0, window_bounds = array<i64: 1, 114, 16, 114>}, {pipeline_mode = #tpu.pipeline_mode<synchronous>, transform_indices = @transform_1, window_bounds = array<i64: 16, 144>}, {pipeline_mode = #tpu.pipeline_mode<synchronous>, transform_indices = @transform_2, window_bounds = array<i64: 16, 3>}, {transform_indices = @transform_3, window_bounds = array<i64: 1, 28, 16, 112>}]} {
    %c28_i32 = arith.constant 28 : i32
    %0 = arith.muli %arg1, %c28_i32 : i32
    %c0 = arith.constant 0 : index
    %c0_0 = arith.constant 0 : index
    %1 = vector.load %arg4[%c0, %c0_0] : memref<16x3xf32, #tpu.memory_space<vmem>>, vector<16x1xf32>
    %c0_1 = arith.constant 0 : index
    %c1 = arith.constant 1 : index
    %2 = vector.load %arg4[%c0_1, %c1] : memref<16x3xf32, #tpu.memory_space<vmem>>, vector<16x1xf32>
    %c0_2 = arith.constant 0 : index
    %c2 = arith.constant 2 : index
    %3 = vector.load %arg4[%c0_2, %c2] : memref<16x3xf32, #tpu.memory_space<vmem>>, vector<16x1xf32>
    %c0_3 = arith.constant 0 : index
    %c0_4 = arith.constant 0 : index
    %4 = vector.load %arg3[%c0_3, %c0_4] : memref<16x144xbf16, #tpu.memory_space<vmem>>, vector<16x144xbf16>
    %c0_i32 = arith.constant 0 : i32
    %c28_i32_5 = arith.constant 28 : i32
    %5 = arith.addi %c0_i32, %c28_i32_5 : i32
    %c1_i32 = arith.constant 1 : i32
    scf.for %arg6 = %c0_i32 to %5 step %c1_i32  : i32 {
      %c1_i32_7 = arith.constant 1 : i32
      %6 = arith.muli %arg6, %c1_i32_7 : i32
      %c0_i32_8 = arith.constant 0 : i32
      %7 = arith.addi %c0_i32_8, %6 : i32
      %8 = arith.addi %0, %7 : i32
      %c0_i32_9 = arith.constant 0 : i32
      %9 = arith.addi %8, %c0_i32_9 : i32
      %c0_10 = arith.constant 0 : index
      %10 = arith.index_cast %9 : i32 to index
      %c0_11 = arith.constant 0 : index
      %c0_12 = arith.constant 0 : index
      %11 = vector.load %arg2[%c0_10, %10, %c0_11, %c0_12] : memref<1x114x16x114xbf16, #tpu.memory_space<vmem>>, vector<1x1x16x112xbf16>
      %12 = vector.shape_cast %11 : vector<1x1x16x112xbf16> to vector<16x112xbf16>
      %c0_i32_13 = arith.constant 0 : i32
      %13 = arith.addi %8, %c0_i32_13 : i32
      %c0_14 = arith.constant 0 : index
      %14 = arith.index_cast %13 : i32 to index
      %c0_15 = arith.constant 0 : index
      %c1_16 = arith.constant 1 : index
      %15 = vector.load %arg2[%c0_14, %14, %c0_15, %c1_16] : memref<1x114x16x114xbf16, #tpu.memory_space<vmem>>, vector<1x1x16x112xbf16>
      %16 = vector.shape_cast %15 : vector<1x1x16x112xbf16> to vector<16x112xbf16>
      %c0_i32_17 = arith.constant 0 : i32
      %17 = arith.addi %8, %c0_i32_17 : i32
      %c0_18 = arith.constant 0 : index
      %18 = arith.index_cast %17 : i32 to index
      %c0_19 = arith.constant 0 : index
      %c2_20 = arith.constant 2 : index
      %19 = vector.load %arg2[%c0_18, %18, %c0_19, %c2_20] : memref<1x114x16x114xbf16, #tpu.memory_space<vmem>>, vector<1x1x16x112xbf16>
      %20 = vector.shape_cast %19 : vector<1x1x16x112xbf16> to vector<16x112xbf16>
      %c1_i32_21 = arith.constant 1 : i32
      %21 = arith.addi %8, %c1_i32_21 : i32
      %c0_22 = arith.constant 0 : index
      %22 = arith.index_cast %21 : i32 to index
      %c0_23 = arith.constant 0 : index
      %c0_24 = arith.constant 0 : index
      %23 = vector.load %arg2[%c0_22, %22, %c0_23, %c0_24] : memref<1x114x16x114xbf16, #tpu.memory_space<vmem>>, vector<1x1x16x112xbf16>
      %24 = vector.shape_cast %23 : vector<1x1x16x112xbf16> to vector<16x112xbf16>
      %c1_i32_25 = arith.constant 1 : i32
      %25 = arith.addi %8, %c1_i32_25 : i32
      %c0_26 = arith.constant 0 : index
      %26 = arith.index_cast %25 : i32 to index
      %c0_27 = arith.constant 0 : index
      %c1_28 = arith.constant 1 : index
      %27 = vector.load %arg2[%c0_26, %26, %c0_27, %c1_28] : memref<1x114x16x114xbf16, #tpu.memory_space<vmem>>, vector<1x1x16x112xbf16>
      %28 = vector.shape_cast %27 : vector<1x1x16x112xbf16> to vector<16x112xbf16>
      %c1_i32_29 = arith.constant 1 : i32
      %29 = arith.addi %8, %c1_i32_29 : i32
      %c0_30 = arith.constant 0 : index
      %30 = arith.index_cast %29 : i32 to index
      %c0_31 = arith.constant 0 : index
      %c2_32 = arith.constant 2 : index
      %31 = vector.load %arg2[%c0_30, %30, %c0_31, %c2_32] : memref<1x114x16x114xbf16, #tpu.memory_space<vmem>>, vector<1x1x16x112xbf16>
      %32 = vector.shape_cast %31 : vector<1x1x16x112xbf16> to vector<16x112xbf16>
      %c2_i32 = arith.constant 2 : i32
      %33 = arith.addi %8, %c2_i32 : i32
      %c0_33 = arith.constant 0 : index
      %34 = arith.index_cast %33 : i32 to index
      %c0_34 = arith.constant 0 : index
      %c0_35 = arith.constant 0 : index
      %35 = vector.load %arg2[%c0_33, %34, %c0_34, %c0_35] : memref<1x114x16x114xbf16, #tpu.memory_space<vmem>>, vector<1x1x16x112xbf16>
      %36 = vector.shape_cast %35 : vector<1x1x16x112xbf16> to vector<16x112xbf16>
      %c2_i32_36 = arith.constant 2 : i32
      %37 = arith.addi %8, %c2_i32_36 : i32
      %c0_37 = arith.constant 0 : index
      %38 = arith.index_cast %37 : i32 to index
      %c0_38 = arith.constant 0 : index
      %c1_39 = arith.constant 1 : index
      %39 = vector.load %arg2[%c0_37, %38, %c0_38, %c1_39] : memref<1x114x16x114xbf16, #tpu.memory_space<vmem>>, vector<1x1x16x112xbf16>
      %40 = vector.shape_cast %39 : vector<1x1x16x112xbf16> to vector<16x112xbf16>
      %c2_i32_40 = arith.constant 2 : i32
      %41 = arith.addi %8, %c2_i32_40 : i32
      %c0_41 = arith.constant 0 : index
      %42 = arith.index_cast %41 : i32 to index
      %c0_42 = arith.constant 0 : index
      %c2_43 = arith.constant 2 : index
      %43 = vector.load %arg2[%c0_41, %42, %c0_42, %c2_43] : memref<1x114x16x114xbf16, #tpu.memory_space<vmem>>, vector<1x1x16x112xbf16>
      %44 = vector.shape_cast %43 : vector<1x1x16x112xbf16> to vector<16x112xbf16>
      %45 = tpu.concatenate %12, %16, %20, %24, %28, %32, %36, %40, %44 in 0 : vector<16x112xbf16>, vector<16x112xbf16>, vector<16x112xbf16>, vector<16x112xbf16>, vector<16x112xbf16>, vector<16x112xbf16>, vector<16x112xbf16>, vector<16x112xbf16>, vector<16x112xbf16> -> vector<144x112xbf16>
      %cst = arith.constant dense<0.000000e+00> : vector<16x112xf32>
      %46 = tpu.matmul %4, %45, %cst {dimension_numbers = #tpu.dot_dimension_numbers<[1], [0], [0], [1], [0, 0, 1, 1], [], []>} : vector<16x144xbf16>, vector<144x112xbf16>, vector<16x112xf32> -> vector<16x112xf32>
      %47 = vector.broadcast %1 : vector<16x1xf32> to vector<16x112xf32>
      %48 = arith.mulf %46, %47 : vector<16x112xf32>
      %49 = vector.broadcast %2 : vector<16x1xf32> to vector<16x112xf32>
      %50 = arith.addf %48, %49 : vector<16x112xf32>
      %cst_44 = arith.constant 0.000000e+00 : f32
      %51 = vector.broadcast %cst_44 : f32 to vector<16x112xf32>
      %52 = arith.cmpf ogt, %50, %51 : vector<16x112xf32>
      %53 = vector.broadcast %3 : vector<16x1xf32> to vector<16x112xf32>
      %54 = arith.mulf %53, %50 : vector<16x112xf32>
      %55 = arith.select %52, %50, %54 : vector<16x112xi1>, vector<16x112xf32>
      %56 = arith.truncf %55 : vector<16x112xf32> to vector<16x112xbf16>
      %c0_45 = arith.constant 0 : index
      %57 = arith.index_cast %7 : i32 to index
      %c0_46 = arith.constant 0 : index
      %c0_47 = arith.constant 0 : index
      %58 = vector.load %arg5[%c0_45, %57, %c0_46, %c0_47] : memref<1x28x16x112xbf16, #tpu.memory_space<vmem>>, vector<1x1x16x112xbf16>
      %59 = vector.shape_cast %58 : vector<1x1x16x112xbf16> to vector<16x112xbf16>
      %60 = vector.shape_cast %56 : vector<16x112xbf16> to vector<1x1x16x112xbf16>
      tpu.vector_store %arg5[%c0_45, %57, %c0_46, %c0_47], %60 {strides = array<i32>} : memref<1x28x16x112xbf16, #tpu.memory_space<vmem>>, vector<1x1x16x112xbf16>,
    }
    %c28_i32_6 = arith.constant 28 : i32
    return
  }
  func.func @transform_0(%arg0: i32, %arg1: i32) -> (i32, i32, i32, i32) {
    %c0_i32 = arith.constant 0 : i32
    %c0_i32_0 = arith.constant 0 : i32
    %c0_i32_1 = arith.constant 0 : i32
    %c0_i32_2 = arith.constant 0 : i32
    return %arg0, %c0_i32, %c0_i32_0, %c0_i32_1 : i32, i32, i32, i32
  }
  func.func @transform_1(%arg0: i32, %arg1: i32) -> (i32, i32) {
    %c0_i32 = arith.constant 0 : i32
    %c0_i32_0 = arith.constant 0 : i32
    %c0_i32_1 = arith.constant 0 : i32
    return %c0_i32, %c0_i32_0 : i32, i32
  }
  func.func @transform_2(%arg0: i32, %arg1: i32) -> (i32, i32) {
    %c0_i32 = arith.constant 0 : i32
    %c0_i32_0 = arith.constant 0 : i32
    %c0_i32_1 = arith.constant 0 : i32
    return %c0_i32, %c0_i32_0 : i32, i32
  }
  func.func @transform_3(%arg0: i32, %arg1: i32) -> (i32, i32, i32, i32) {
    %c0_i32 = arith.constant 0 : i32
    %c0_i32_0 = arith.constant 0 : i32
    %c0_i32_1 = arith.constant 0 : i32
    return %arg0, %arg1, %c0_i32, %c0_i32_0 : i32, i32, i32, i32
  }
}

module attributes {stable_mosaic.version = 11 : i64} {
  func.func @_conv3x3_kernel(%arg0: i32, %arg1: i32, %arg2: memref<1x114x16x114xbf16, #tpu.memory_space<vmem>>, %arg3: memref<16x144xbf16, #tpu.memory_space<vmem>>, %arg4: memref<16x3xf32, #tpu.memory_space<vmem>>, %arg5: memref<1x28x16x56xbf16, #tpu.memory_space<vmem>>) attributes {dimension_semantics = [#tpu.dimension_semantics<parallel>, #tpu.dimension_semantics<parallel>], iteration_bounds = array<i64: 2, 2>, scalar_prefetch = 0 : i64, scratch_operands = 0 : i64, tpu.core_type = #tpu.core_type<tc>, window_params = [{transform_indices = @transform_0, window_bounds = array<i64: 1, 114, 16, 114>}, {pipeline_mode = #tpu.pipeline_mode<synchronous>, transform_indices = @transform_1, window_bounds = array<i64: 16, 144>}, {pipeline_mode = #tpu.pipeline_mode<synchronous>, transform_indices = @transform_2, window_bounds = array<i64: 16, 3>}, {transform_indices = @transform_3, window_bounds = array<i64: 1, 28, 16, 56>}]} {
    %c28_i32 = arith.constant 28 : i32
    %0 = arith.muli %arg1, %c28_i32 : i32
    %c0 = arith.constant 0 : index
    %c0_0 = arith.constant 0 : index
    %1 = vector.load %arg4[%c0, %c0_0] : memref<16x3xf32, #tpu.memory_space<vmem>>, vector<16x1xf32>
    %c0_1 = arith.constant 0 : index
    %c1 = arith.constant 1 : index
    %2 = vector.load %arg4[%c0_1, %c1] : memref<16x3xf32, #tpu.memory_space<vmem>>, vector<16x1xf32>
    %c0_2 = arith.constant 0 : index
    %c2 = arith.constant 2 : index
    %3 = vector.load %arg4[%c0_2, %c2] : memref<16x3xf32, #tpu.memory_space<vmem>>, vector<16x1xf32>
    %c0_3 = arith.constant 0 : index
    %c0_4 = arith.constant 0 : index
    %4 = vector.load %arg3[%c0_3, %c0_4] : memref<16x144xbf16, #tpu.memory_space<vmem>>, vector<16x144xbf16>
    %c0_i32 = arith.constant 0 : i32
    %c28_i32_5 = arith.constant 28 : i32
    %5 = arith.addi %c0_i32, %c28_i32_5 : i32
    %c1_i32 = arith.constant 1 : i32
    scf.for %arg6 = %c0_i32 to %5 step %c1_i32  : i32 {
      %c1_i32_7 = arith.constant 1 : i32
      %6 = arith.muli %arg6, %c1_i32_7 : i32
      %c0_i32_8 = arith.constant 0 : i32
      %7 = arith.addi %c0_i32_8, %6 : i32
      %8 = arith.addi %0, %7 : i32
      %c0_i32_9 = arith.constant 0 : i32
      %9 = arith.addi %c0_i32_9, %8 : i32
      %c0_i32_10 = arith.constant 0 : i32
      %10 = arith.addi %9, %c0_i32_10 : i32
      %c0_11 = arith.constant 0 : index
      %11 = arith.index_cast %10 : i32 to index
      %c0_12 = arith.constant 0 : index
      %c0_13 = arith.constant 0 : index
      %12 = vector.load %arg2[%c0_11, %11, %c0_12, %c0_13] : memref<1x114x16x114xbf16, #tpu.memory_space<vmem>>, vector<1x1x16x56xbf16>
      %13 = vector.shape_cast %12 : vector<1x1x16x56xbf16> to vector<16x56xbf16>
      %c0_i32_14 = arith.constant 0 : i32
      %14 = arith.addi %c0_i32_14, %8 : i32
      %c0_i32_15 = arith.constant 0 : i32
      %15 = arith.addi %14, %c0_i32_15 : i32
      %c0_16 = arith.constant 0 : index
      %16 = arith.index_cast %15 : i32 to index
      %c0_17 = arith.constant 0 : index
      %c57 = arith.constant 57 : index
      %17 = vector.load %arg2[%c0_16, %16, %c0_17, %c57] : memref<1x114x16x114xbf16, #tpu.memory_space<vmem>>, vector<1x1x16x56xbf16>
      %18 = vector.shape_cast %17 : vector<1x1x16x56xbf16> to vector<16x56xbf16>
      %c0_i32_18 = arith.constant 0 : i32
      %19 = arith.addi %c0_i32_18, %8 : i32
      %c0_i32_19 = arith.constant 0 : i32
      %20 = arith.addi %19, %c0_i32_19 : i32
      %c0_20 = arith.constant 0 : index
      %21 = arith.index_cast %20 : i32 to index
      %c0_21 = arith.constant 0 : index
      %c1_22 = arith.constant 1 : index
      %22 = vector.load %arg2[%c0_20, %21, %c0_21, %c1_22] : memref<1x114x16x114xbf16, #tpu.memory_space<vmem>>, vector<1x1x16x56xbf16>
      %23 = vector.shape_cast %22 : vector<1x1x16x56xbf16> to vector<16x56xbf16>
      %c57_i32 = arith.constant 57 : i32
      %24 = arith.addi %c57_i32, %8 : i32
      %c0_i32_23 = arith.constant 0 : i32
      %25 = arith.addi %24, %c0_i32_23 : i32
      %c0_24 = arith.constant 0 : index
      %26 = arith.index_cast %25 : i32 to index
      %c0_25 = arith.constant 0 : index
      %c0_26 = arith.constant 0 : index
      %27 = vector.load %arg2[%c0_24, %26, %c0_25, %c0_26] : memref<1x114x16x114xbf16, #tpu.memory_space<vmem>>, vector<1x1x16x56xbf16>
      %28 = vector.shape_cast %27 : vector<1x1x16x56xbf16> to vector<16x56xbf16>
      %c57_i32_27 = arith.constant 57 : i32
      %29 = arith.addi %c57_i32_27, %8 : i32
      %c0_i32_28 = arith.constant 0 : i32
      %30 = arith.addi %29, %c0_i32_28 : i32
      %c0_29 = arith.constant 0 : index
      %31 = arith.index_cast %30 : i32 to index
      %c0_30 = arith.constant 0 : index
      %c57_31 = arith.constant 57 : index
      %32 = vector.load %arg2[%c0_29, %31, %c0_30, %c57_31] : memref<1x114x16x114xbf16, #tpu.memory_space<vmem>>, vector<1x1x16x56xbf16>
      %33 = vector.shape_cast %32 : vector<1x1x16x56xbf16> to vector<16x56xbf16>
      %c57_i32_32 = arith.constant 57 : i32
      %34 = arith.addi %c57_i32_32, %8 : i32
      %c0_i32_33 = arith.constant 0 : i32
      %35 = arith.addi %34, %c0_i32_33 : i32
      %c0_34 = arith.constant 0 : index
      %36 = arith.index_cast %35 : i32 to index
      %c0_35 = arith.constant 0 : index
      %c1_36 = arith.constant 1 : index
      %37 = vector.load %arg2[%c0_34, %36, %c0_35, %c1_36] : memref<1x114x16x114xbf16, #tpu.memory_space<vmem>>, vector<1x1x16x56xbf16>
      %38 = vector.shape_cast %37 : vector<1x1x16x56xbf16> to vector<16x56xbf16>
      %c0_i32_37 = arith.constant 0 : i32
      %39 = arith.addi %c0_i32_37, %8 : i32
      %c1_i32_38 = arith.constant 1 : i32
      %40 = arith.addi %39, %c1_i32_38 : i32
      %c0_39 = arith.constant 0 : index
      %41 = arith.index_cast %40 : i32 to index
      %c0_40 = arith.constant 0 : index
      %c0_41 = arith.constant 0 : index
      %42 = vector.load %arg2[%c0_39, %41, %c0_40, %c0_41] : memref<1x114x16x114xbf16, #tpu.memory_space<vmem>>, vector<1x1x16x56xbf16>
      %43 = vector.shape_cast %42 : vector<1x1x16x56xbf16> to vector<16x56xbf16>
      %c0_i32_42 = arith.constant 0 : i32
      %44 = arith.addi %c0_i32_42, %8 : i32
      %c1_i32_43 = arith.constant 1 : i32
      %45 = arith.addi %44, %c1_i32_43 : i32
      %c0_44 = arith.constant 0 : index
      %46 = arith.index_cast %45 : i32 to index
      %c0_45 = arith.constant 0 : index
      %c57_46 = arith.constant 57 : index
      %47 = vector.load %arg2[%c0_44, %46, %c0_45, %c57_46] : memref<1x114x16x114xbf16, #tpu.memory_space<vmem>>, vector<1x1x16x56xbf16>
      %48 = vector.shape_cast %47 : vector<1x1x16x56xbf16> to vector<16x56xbf16>
      %c0_i32_47 = arith.constant 0 : i32
      %49 = arith.addi %c0_i32_47, %8 : i32
      %c1_i32_48 = arith.constant 1 : i32
      %50 = arith.addi %49, %c1_i32_48 : i32
      %c0_49 = arith.constant 0 : index
      %51 = arith.index_cast %50 : i32 to index
      %c0_50 = arith.constant 0 : index
      %c1_51 = arith.constant 1 : index
      %52 = vector.load %arg2[%c0_49, %51, %c0_50, %c1_51] : memref<1x114x16x114xbf16, #tpu.memory_space<vmem>>, vector<1x1x16x56xbf16>
      %53 = vector.shape_cast %52 : vector<1x1x16x56xbf16> to vector<16x56xbf16>
      %54 = tpu.concatenate %13, %18, %23, %28, %33, %38, %43, %48, %53 in 0 : vector<16x56xbf16>, vector<16x56xbf16>, vector<16x56xbf16>, vector<16x56xbf16>, vector<16x56xbf16>, vector<16x56xbf16>, vector<16x56xbf16>, vector<16x56xbf16>, vector<16x56xbf16> -> vector<144x56xbf16>
      %cst = arith.constant dense<0.000000e+00> : vector<16x56xf32>
      %55 = tpu.matmul %4, %54, %cst {dimension_numbers = #tpu.dot_dimension_numbers<[1], [0], [0], [1], [0, 0, 1, 1], [], []>} : vector<16x144xbf16>, vector<144x56xbf16>, vector<16x56xf32> -> vector<16x56xf32>
      %56 = vector.broadcast %1 : vector<16x1xf32> to vector<16x56xf32>
      %57 = arith.mulf %55, %56 : vector<16x56xf32>
      %58 = vector.broadcast %2 : vector<16x1xf32> to vector<16x56xf32>
      %59 = arith.addf %57, %58 : vector<16x56xf32>
      %cst_52 = arith.constant 0.000000e+00 : f32
      %60 = vector.broadcast %cst_52 : f32 to vector<16x56xf32>
      %61 = arith.cmpf ogt, %59, %60 : vector<16x56xf32>
      %62 = vector.broadcast %3 : vector<16x1xf32> to vector<16x56xf32>
      %63 = arith.mulf %62, %59 : vector<16x56xf32>
      %64 = arith.select %61, %59, %63 : vector<16x56xi1>, vector<16x56xf32>
      %65 = arith.truncf %64 : vector<16x56xf32> to vector<16x56xbf16>
      %c0_53 = arith.constant 0 : index
      %66 = arith.index_cast %7 : i32 to index
      %c0_54 = arith.constant 0 : index
      %c0_55 = arith.constant 0 : index
      %67 = vector.load %arg5[%c0_53, %66, %c0_54, %c0_55] : memref<1x28x16x56xbf16, #tpu.memory_space<vmem>>, vector<1x1x16x56xbf16>
      %68 = vector.shape_cast %67 : vector<1x1x16x56xbf16> to vector<16x56xbf16>
      %69 = vector.shape_cast %65 : vector<16x56xbf16> to vector<1x1x16x56xbf16>
      tpu.vector_store %arg5[%c0_53, %66, %c0_54, %c0_55], %69 {strides = array<i32>} : memref<1x28x16x56xbf16, #tpu.memory_space<vmem>>, vector<1x1x16x56xbf16>,
    }
    %c28_i32_6 = arith.constant 28 : i32
    return
  }
  func.func @transform_0(%arg0: i32, %arg1: i32) -> (i32, i32, i32, i32) {
    %c0_i32 = arith.constant 0 : i32
    %c0_i32_0 = arith.constant 0 : i32
    %c0_i32_1 = arith.constant 0 : i32
    %c0_i32_2 = arith.constant 0 : i32
    return %arg0, %c0_i32, %c0_i32_0, %c0_i32_1 : i32, i32, i32, i32
  }
  func.func @transform_1(%arg0: i32, %arg1: i32) -> (i32, i32) {
    %c0_i32 = arith.constant 0 : i32
    %c0_i32_0 = arith.constant 0 : i32
    %c0_i32_1 = arith.constant 0 : i32
    return %c0_i32, %c0_i32_0 : i32, i32
  }
  func.func @transform_2(%arg0: i32, %arg1: i32) -> (i32, i32) {
    %c0_i32 = arith.constant 0 : i32
    %c0_i32_0 = arith.constant 0 : i32
    %c0_i32_1 = arith.constant 0 : i32
    return %c0_i32, %c0_i32_0 : i32, i32
  }
  func.func @transform_3(%arg0: i32, %arg1: i32) -> (i32, i32, i32, i32) {
    %c0_i32 = arith.constant 0 : i32
    %c0_i32_0 = arith.constant 0 : i32
    %c0_i32_1 = arith.constant 0 : i32
    return %arg0, %arg1, %c0_i32, %c0_i32_0 : i32, i32, i32, i32
  }
}

module attributes {stable_mosaic.version = 11 : i64} {
  func.func @_conv3x3_kernel(%arg0: i32, %arg1: i32, %arg2: memref<1x58x16x58xbf16, #tpu.memory_space<vmem>>, %arg3: memref<32x144xbf16, #tpu.memory_space<vmem>>, %arg4: memref<32x3xf32, #tpu.memory_space<vmem>>, %arg5: memref<1x28x32x56xbf16, #tpu.memory_space<vmem>>) attributes {dimension_semantics = [#tpu.dimension_semantics<parallel>, #tpu.dimension_semantics<parallel>], iteration_bounds = array<i64: 2, 2>, scalar_prefetch = 0 : i64, scratch_operands = 0 : i64, tpu.core_type = #tpu.core_type<tc>, window_params = [{transform_indices = @transform_0, window_bounds = array<i64: 1, 58, 16, 58>}, {pipeline_mode = #tpu.pipeline_mode<synchronous>, transform_indices = @transform_1, window_bounds = array<i64: 32, 144>}, {pipeline_mode = #tpu.pipeline_mode<synchronous>, transform_indices = @transform_2, window_bounds = array<i64: 32, 3>}, {transform_indices = @transform_3, window_bounds = array<i64: 1, 28, 32, 56>}]} {
    %c28_i32 = arith.constant 28 : i32
    %0 = arith.muli %arg1, %c28_i32 : i32
    %c0 = arith.constant 0 : index
    %c0_0 = arith.constant 0 : index
    %1 = vector.load %arg4[%c0, %c0_0] : memref<32x3xf32, #tpu.memory_space<vmem>>, vector<32x1xf32>
    %c0_1 = arith.constant 0 : index
    %c1 = arith.constant 1 : index
    %2 = vector.load %arg4[%c0_1, %c1] : memref<32x3xf32, #tpu.memory_space<vmem>>, vector<32x1xf32>
    %c0_2 = arith.constant 0 : index
    %c2 = arith.constant 2 : index
    %3 = vector.load %arg4[%c0_2, %c2] : memref<32x3xf32, #tpu.memory_space<vmem>>, vector<32x1xf32>
    %c0_3 = arith.constant 0 : index
    %c0_4 = arith.constant 0 : index
    %4 = vector.load %arg3[%c0_3, %c0_4] : memref<32x144xbf16, #tpu.memory_space<vmem>>, vector<32x144xbf16>
    %c0_i32 = arith.constant 0 : i32
    %c28_i32_5 = arith.constant 28 : i32
    %5 = arith.addi %c0_i32, %c28_i32_5 : i32
    %c1_i32 = arith.constant 1 : i32
    scf.for %arg6 = %c0_i32 to %5 step %c1_i32  : i32 {
      %c1_i32_7 = arith.constant 1 : i32
      %6 = arith.muli %arg6, %c1_i32_7 : i32
      %c0_i32_8 = arith.constant 0 : i32
      %7 = arith.addi %c0_i32_8, %6 : i32
      %8 = arith.addi %0, %7 : i32
      %c0_i32_9 = arith.constant 0 : i32
      %9 = arith.addi %8, %c0_i32_9 : i32
      %c0_10 = arith.constant 0 : index
      %10 = arith.index_cast %9 : i32 to index
      %c0_11 = arith.constant 0 : index
      %c0_12 = arith.constant 0 : index
      %11 = vector.load %arg2[%c0_10, %10, %c0_11, %c0_12] : memref<1x58x16x58xbf16, #tpu.memory_space<vmem>>, vector<1x1x16x56xbf16>
      %12 = vector.shape_cast %11 : vector<1x1x16x56xbf16> to vector<16x56xbf16>
      %c0_i32_13 = arith.constant 0 : i32
      %13 = arith.addi %8, %c0_i32_13 : i32
      %c0_14 = arith.constant 0 : index
      %14 = arith.index_cast %13 : i32 to index
      %c0_15 = arith.constant 0 : index
      %c1_16 = arith.constant 1 : index
      %15 = vector.load %arg2[%c0_14, %14, %c0_15, %c1_16] : memref<1x58x16x58xbf16, #tpu.memory_space<vmem>>, vector<1x1x16x56xbf16>
      %16 = vector.shape_cast %15 : vector<1x1x16x56xbf16> to vector<16x56xbf16>
      %c0_i32_17 = arith.constant 0 : i32
      %17 = arith.addi %8, %c0_i32_17 : i32
      %c0_18 = arith.constant 0 : index
      %18 = arith.index_cast %17 : i32 to index
      %c0_19 = arith.constant 0 : index
      %c2_20 = arith.constant 2 : index
      %19 = vector.load %arg2[%c0_18, %18, %c0_19, %c2_20] : memref<1x58x16x58xbf16, #tpu.memory_space<vmem>>, vector<1x1x16x56xbf16>
      %20 = vector.shape_cast %19 : vector<1x1x16x56xbf16> to vector<16x56xbf16>
      %c1_i32_21 = arith.constant 1 : i32
      %21 = arith.addi %8, %c1_i32_21 : i32
      %c0_22 = arith.constant 0 : index
      %22 = arith.index_cast %21 : i32 to index
      %c0_23 = arith.constant 0 : index
      %c0_24 = arith.constant 0 : index
      %23 = vector.load %arg2[%c0_22, %22, %c0_23, %c0_24] : memref<1x58x16x58xbf16, #tpu.memory_space<vmem>>, vector<1x1x16x56xbf16>
      %24 = vector.shape_cast %23 : vector<1x1x16x56xbf16> to vector<16x56xbf16>
      %c1_i32_25 = arith.constant 1 : i32
      %25 = arith.addi %8, %c1_i32_25 : i32
      %c0_26 = arith.constant 0 : index
      %26 = arith.index_cast %25 : i32 to index
      %c0_27 = arith.constant 0 : index
      %c1_28 = arith.constant 1 : index
      %27 = vector.load %arg2[%c0_26, %26, %c0_27, %c1_28] : memref<1x58x16x58xbf16, #tpu.memory_space<vmem>>, vector<1x1x16x56xbf16>
      %28 = vector.shape_cast %27 : vector<1x1x16x56xbf16> to vector<16x56xbf16>
      %c1_i32_29 = arith.constant 1 : i32
      %29 = arith.addi %8, %c1_i32_29 : i32
      %c0_30 = arith.constant 0 : index
      %30 = arith.index_cast %29 : i32 to index
      %c0_31 = arith.constant 0 : index
      %c2_32 = arith.constant 2 : index
      %31 = vector.load %arg2[%c0_30, %30, %c0_31, %c2_32] : memref<1x58x16x58xbf16, #tpu.memory_space<vmem>>, vector<1x1x16x56xbf16>
      %32 = vector.shape_cast %31 : vector<1x1x16x56xbf16> to vector<16x56xbf16>
      %c2_i32 = arith.constant 2 : i32
      %33 = arith.addi %8, %c2_i32 : i32
      %c0_33 = arith.constant 0 : index
      %34 = arith.index_cast %33 : i32 to index
      %c0_34 = arith.constant 0 : index
      %c0_35 = arith.constant 0 : index
      %35 = vector.load %arg2[%c0_33, %34, %c0_34, %c0_35] : memref<1x58x16x58xbf16, #tpu.memory_space<vmem>>, vector<1x1x16x56xbf16>
      %36 = vector.shape_cast %35 : vector<1x1x16x56xbf16> to vector<16x56xbf16>
      %c2_i32_36 = arith.constant 2 : i32
      %37 = arith.addi %8, %c2_i32_36 : i32
      %c0_37 = arith.constant 0 : index
      %38 = arith.index_cast %37 : i32 to index
      %c0_38 = arith.constant 0 : index
      %c1_39 = arith.constant 1 : index
      %39 = vector.load %arg2[%c0_37, %38, %c0_38, %c1_39] : memref<1x58x16x58xbf16, #tpu.memory_space<vmem>>, vector<1x1x16x56xbf16>
      %40 = vector.shape_cast %39 : vector<1x1x16x56xbf16> to vector<16x56xbf16>
      %c2_i32_40 = arith.constant 2 : i32
      %41 = arith.addi %8, %c2_i32_40 : i32
      %c0_41 = arith.constant 0 : index
      %42 = arith.index_cast %41 : i32 to index
      %c0_42 = arith.constant 0 : index
      %c2_43 = arith.constant 2 : index
      %43 = vector.load %arg2[%c0_41, %42, %c0_42, %c2_43] : memref<1x58x16x58xbf16, #tpu.memory_space<vmem>>, vector<1x1x16x56xbf16>
      %44 = vector.shape_cast %43 : vector<1x1x16x56xbf16> to vector<16x56xbf16>
      %45 = tpu.concatenate %12, %16, %20, %24, %28, %32, %36, %40, %44 in 0 : vector<16x56xbf16>, vector<16x56xbf16>, vector<16x56xbf16>, vector<16x56xbf16>, vector<16x56xbf16>, vector<16x56xbf16>, vector<16x56xbf16>, vector<16x56xbf16>, vector<16x56xbf16> -> vector<144x56xbf16>
      %cst = arith.constant dense<0.000000e+00> : vector<32x56xf32>
      %46 = tpu.matmul %4, %45, %cst {dimension_numbers = #tpu.dot_dimension_numbers<[1], [0], [0], [1], [0, 0, 1, 1], [], []>} : vector<32x144xbf16>, vector<144x56xbf16>, vector<32x56xf32> -> vector<32x56xf32>
      %47 = vector.broadcast %1 : vector<32x1xf32> to vector<32x56xf32>
      %48 = arith.mulf %46, %47 : vector<32x56xf32>
      %49 = vector.broadcast %2 : vector<32x1xf32> to vector<32x56xf32>
      %50 = arith.addf %48, %49 : vector<32x56xf32>
      %cst_44 = arith.constant 0.000000e+00 : f32
      %51 = vector.broadcast %cst_44 : f32 to vector<32x56xf32>
      %52 = arith.cmpf ogt, %50, %51 : vector<32x56xf32>
      %53 = vector.broadcast %3 : vector<32x1xf32> to vector<32x56xf32>
      %54 = arith.mulf %53, %50 : vector<32x56xf32>
      %55 = arith.select %52, %50, %54 : vector<32x56xi1>, vector<32x56xf32>
      %56 = arith.truncf %55 : vector<32x56xf32> to vector<32x56xbf16>
      %c0_45 = arith.constant 0 : index
      %57 = arith.index_cast %7 : i32 to index
      %c0_46 = arith.constant 0 : index
      %c0_47 = arith.constant 0 : index
      %58 = vector.load %arg5[%c0_45, %57, %c0_46, %c0_47] : memref<1x28x32x56xbf16, #tpu.memory_space<vmem>>, vector<1x1x32x56xbf16>
      %59 = vector.shape_cast %58 : vector<1x1x32x56xbf16> to vector<32x56xbf16>
      %60 = vector.shape_cast %56 : vector<32x56xbf16> to vector<1x1x32x56xbf16>
      tpu.vector_store %arg5[%c0_45, %57, %c0_46, %c0_47], %60 {strides = array<i32>} : memref<1x28x32x56xbf16, #tpu.memory_space<vmem>>, vector<1x1x32x56xbf16>,
    }
    %c28_i32_6 = arith.constant 28 : i32
    return
  }
  func.func @transform_0(%arg0: i32, %arg1: i32) -> (i32, i32, i32, i32) {
    %c0_i32 = arith.constant 0 : i32
    %c0_i32_0 = arith.constant 0 : i32
    %c0_i32_1 = arith.constant 0 : i32
    %c0_i32_2 = arith.constant 0 : i32
    return %arg0, %c0_i32, %c0_i32_0, %c0_i32_1 : i32, i32, i32, i32
  }
  func.func @transform_1(%arg0: i32, %arg1: i32) -> (i32, i32) {
    %c0_i32 = arith.constant 0 : i32
    %c0_i32_0 = arith.constant 0 : i32
    %c0_i32_1 = arith.constant 0 : i32
    return %c0_i32, %c0_i32_0 : i32, i32
  }
  func.func @transform_2(%arg0: i32, %arg1: i32) -> (i32, i32) {
    %c0_i32 = arith.constant 0 : i32
    %c0_i32_0 = arith.constant 0 : i32
    %c0_i32_1 = arith.constant 0 : i32
    return %c0_i32, %c0_i32_0 : i32, i32
  }
  func.func @transform_3(%arg0: i32, %arg1: i32) -> (i32, i32, i32, i32) {
    %c0_i32 = arith.constant 0 : i32
    %c0_i32_0 = arith.constant 0 : i32
    %c0_i32_1 = arith.constant 0 : i32
    return %arg0, %arg1, %c0_i32, %c0_i32_0 : i32, i32, i32, i32
  }
}

module attributes {stable_mosaic.version = 11 : i64} {
  func.func @_conv3x3_kernel(%arg0: i32, %arg1: i32, %arg2: memref<1x58x32x58xbf16, #tpu.memory_space<vmem>>, %arg3: memref<32x288xbf16, #tpu.memory_space<vmem>>, %arg4: memref<32x3xf32, #tpu.memory_space<vmem>>, %arg5: memref<1x28x32x28xbf16, #tpu.memory_space<vmem>>) attributes {dimension_semantics = [#tpu.dimension_semantics<parallel>, #tpu.dimension_semantics<parallel>], iteration_bounds = array<i64: 2, 1>, scalar_prefetch = 0 : i64, scratch_operands = 0 : i64, tpu.core_type = #tpu.core_type<tc>, window_params = [{transform_indices = @transform_0, window_bounds = array<i64: 1, 58, 32, 58>}, {pipeline_mode = #tpu.pipeline_mode<synchronous>, transform_indices = @transform_1, window_bounds = array<i64: 32, 288>}, {pipeline_mode = #tpu.pipeline_mode<synchronous>, transform_indices = @transform_2, window_bounds = array<i64: 32, 3>}, {transform_indices = @transform_3, window_bounds = array<i64: 1, 28, 32, 28>}]} {
    %c28_i32 = arith.constant 28 : i32
    %0 = arith.muli %arg1, %c28_i32 : i32
    %c0 = arith.constant 0 : index
    %c0_0 = arith.constant 0 : index
    %1 = vector.load %arg4[%c0, %c0_0] : memref<32x3xf32, #tpu.memory_space<vmem>>, vector<32x1xf32>
    %c0_1 = arith.constant 0 : index
    %c1 = arith.constant 1 : index
    %2 = vector.load %arg4[%c0_1, %c1] : memref<32x3xf32, #tpu.memory_space<vmem>>, vector<32x1xf32>
    %c0_2 = arith.constant 0 : index
    %c2 = arith.constant 2 : index
    %3 = vector.load %arg4[%c0_2, %c2] : memref<32x3xf32, #tpu.memory_space<vmem>>, vector<32x1xf32>
    %c0_3 = arith.constant 0 : index
    %c0_4 = arith.constant 0 : index
    %4 = vector.load %arg3[%c0_3, %c0_4] : memref<32x288xbf16, #tpu.memory_space<vmem>>, vector<32x288xbf16>
    %c0_i32 = arith.constant 0 : i32
    %c28_i32_5 = arith.constant 28 : i32
    %5 = arith.addi %c0_i32, %c28_i32_5 : i32
    %c1_i32 = arith.constant 1 : i32
    scf.for %arg6 = %c0_i32 to %5 step %c1_i32  : i32 {
      %c1_i32_7 = arith.constant 1 : i32
      %6 = arith.muli %arg6, %c1_i32_7 : i32
      %c0_i32_8 = arith.constant 0 : i32
      %7 = arith.addi %c0_i32_8, %6 : i32
      %8 = arith.addi %0, %7 : i32
      %c0_i32_9 = arith.constant 0 : i32
      %9 = arith.addi %c0_i32_9, %8 : i32
      %c0_i32_10 = arith.constant 0 : i32
      %10 = arith.addi %9, %c0_i32_10 : i32
      %c0_11 = arith.constant 0 : index
      %11 = arith.index_cast %10 : i32 to index
      %c0_12 = arith.constant 0 : index
      %c0_13 = arith.constant 0 : index
      %12 = vector.load %arg2[%c0_11, %11, %c0_12, %c0_13] : memref<1x58x32x58xbf16, #tpu.memory_space<vmem>>, vector<1x1x32x28xbf16>
      %13 = vector.shape_cast %12 : vector<1x1x32x28xbf16> to vector<32x28xbf16>
      %c0_i32_14 = arith.constant 0 : i32
      %14 = arith.addi %c0_i32_14, %8 : i32
      %c0_i32_15 = arith.constant 0 : i32
      %15 = arith.addi %14, %c0_i32_15 : i32
      %c0_16 = arith.constant 0 : index
      %16 = arith.index_cast %15 : i32 to index
      %c0_17 = arith.constant 0 : index
      %c29 = arith.constant 29 : index
      %17 = vector.load %arg2[%c0_16, %16, %c0_17, %c29] : memref<1x58x32x58xbf16, #tpu.memory_space<vmem>>, vector<1x1x32x28xbf16>
      %18 = vector.shape_cast %17 : vector<1x1x32x28xbf16> to vector<32x28xbf16>
      %c0_i32_18 = arith.constant 0 : i32
      %19 = arith.addi %c0_i32_18, %8 : i32
      %c0_i32_19 = arith.constant 0 : i32
      %20 = arith.addi %19, %c0_i32_19 : i32
      %c0_20 = arith.constant 0 : index
      %21 = arith.index_cast %20 : i32 to index
      %c0_21 = arith.constant 0 : index
      %c1_22 = arith.constant 1 : index
      %22 = vector.load %arg2[%c0_20, %21, %c0_21, %c1_22] : memref<1x58x32x58xbf16, #tpu.memory_space<vmem>>, vector<1x1x32x28xbf16>
      %23 = vector.shape_cast %22 : vector<1x1x32x28xbf16> to vector<32x28xbf16>
      %c29_i32 = arith.constant 29 : i32
      %24 = arith.addi %c29_i32, %8 : i32
      %c0_i32_23 = arith.constant 0 : i32
      %25 = arith.addi %24, %c0_i32_23 : i32
      %c0_24 = arith.constant 0 : index
      %26 = arith.index_cast %25 : i32 to index
      %c0_25 = arith.constant 0 : index
      %c0_26 = arith.constant 0 : index
      %27 = vector.load %arg2[%c0_24, %26, %c0_25, %c0_26] : memref<1x58x32x58xbf16, #tpu.memory_space<vmem>>, vector<1x1x32x28xbf16>
      %28 = vector.shape_cast %27 : vector<1x1x32x28xbf16> to vector<32x28xbf16>
      %c29_i32_27 = arith.constant 29 : i32
      %29 = arith.addi %c29_i32_27, %8 : i32
      %c0_i32_28 = arith.constant 0 : i32
      %30 = arith.addi %29, %c0_i32_28 : i32
      %c0_29 = arith.constant 0 : index
      %31 = arith.index_cast %30 : i32 to index
      %c0_30 = arith.constant 0 : index
      %c29_31 = arith.constant 29 : index
      %32 = vector.load %arg2[%c0_29, %31, %c0_30, %c29_31] : memref<1x58x32x58xbf16, #tpu.memory_space<vmem>>, vector<1x1x32x28xbf16>
      %33 = vector.shape_cast %32 : vector<1x1x32x28xbf16> to vector<32x28xbf16>
      %c29_i32_32 = arith.constant 29 : i32
      %34 = arith.addi %c29_i32_32, %8 : i32
      %c0_i32_33 = arith.constant 0 : i32
      %35 = arith.addi %34, %c0_i32_33 : i32
      %c0_34 = arith.constant 0 : index
      %36 = arith.index_cast %35 : i32 to index
      %c0_35 = arith.constant 0 : index
      %c1_36 = arith.constant 1 : index
      %37 = vector.load %arg2[%c0_34, %36, %c0_35, %c1_36] : memref<1x58x32x58xbf16, #tpu.memory_space<vmem>>, vector<1x1x32x28xbf16>
      %38 = vector.shape_cast %37 : vector<1x1x32x28xbf16> to vector<32x28xbf16>
      %c0_i32_37 = arith.constant 0 : i32
      %39 = arith.addi %c0_i32_37, %8 : i32
      %c1_i32_38 = arith.constant 1 : i32
      %40 = arith.addi %39, %c1_i32_38 : i32
      %c0_39 = arith.constant 0 : index
      %41 = arith.index_cast %40 : i32 to index
      %c0_40 = arith.constant 0 : index
      %c0_41 = arith.constant 0 : index
      %42 = vector.load %arg2[%c0_39, %41, %c0_40, %c0_41] : memref<1x58x32x58xbf16, #tpu.memory_space<vmem>>, vector<1x1x32x28xbf16>
      %43 = vector.shape_cast %42 : vector<1x1x32x28xbf16> to vector<32x28xbf16>
      %c0_i32_42 = arith.constant 0 : i32
      %44 = arith.addi %c0_i32_42, %8 : i32
      %c1_i32_43 = arith.constant 1 : i32
      %45 = arith.addi %44, %c1_i32_43 : i32
      %c0_44 = arith.constant 0 : index
      %46 = arith.index_cast %45 : i32 to index
      %c0_45 = arith.constant 0 : index
      %c29_46 = arith.constant 29 : index
      %47 = vector.load %arg2[%c0_44, %46, %c0_45, %c29_46] : memref<1x58x32x58xbf16, #tpu.memory_space<vmem>>, vector<1x1x32x28xbf16>
      %48 = vector.shape_cast %47 : vector<1x1x32x28xbf16> to vector<32x28xbf16>
      %c0_i32_47 = arith.constant 0 : i32
      %49 = arith.addi %c0_i32_47, %8 : i32
      %c1_i32_48 = arith.constant 1 : i32
      %50 = arith.addi %49, %c1_i32_48 : i32
      %c0_49 = arith.constant 0 : index
      %51 = arith.index_cast %50 : i32 to index
      %c0_50 = arith.constant 0 : index
      %c1_51 = arith.constant 1 : index
      %52 = vector.load %arg2[%c0_49, %51, %c0_50, %c1_51] : memref<1x58x32x58xbf16, #tpu.memory_space<vmem>>, vector<1x1x32x28xbf16>
      %53 = vector.shape_cast %52 : vector<1x1x32x28xbf16> to vector<32x28xbf16>
      %54 = tpu.concatenate %13, %18, %23, %28, %33, %38, %43, %48, %53 in 0 : vector<32x28xbf16>, vector<32x28xbf16>, vector<32x28xbf16>, vector<32x28xbf16>, vector<32x28xbf16>, vector<32x28xbf16>, vector<32x28xbf16>, vector<32x28xbf16>, vector<32x28xbf16> -> vector<288x28xbf16>
      %cst = arith.constant dense<0.000000e+00> : vector<32x28xf32>
      %55 = tpu.matmul %4, %54, %cst {dimension_numbers = #tpu.dot_dimension_numbers<[1], [0], [0], [1], [0, 0, 1, 1], [], []>} : vector<32x288xbf16>, vector<288x28xbf16>, vector<32x28xf32> -> vector<32x28xf32>
      %56 = vector.broadcast %1 : vector<32x1xf32> to vector<32x28xf32>
      %57 = arith.mulf %55, %56 : vector<32x28xf32>
      %58 = vector.broadcast %2 : vector<32x1xf32> to vector<32x28xf32>
      %59 = arith.addf %57, %58 : vector<32x28xf32>
      %cst_52 = arith.constant 0.000000e+00 : f32
      %60 = vector.broadcast %cst_52 : f32 to vector<32x28xf32>
      %61 = arith.cmpf ogt, %59, %60 : vector<32x28xf32>
      %62 = vector.broadcast %3 : vector<32x1xf32> to vector<32x28xf32>
      %63 = arith.mulf %62, %59 : vector<32x28xf32>
      %64 = arith.select %61, %59, %63 : vector<32x28xi1>, vector<32x28xf32>
      %65 = arith.truncf %64 : vector<32x28xf32> to vector<32x28xbf16>
      %c0_53 = arith.constant 0 : index
      %66 = arith.index_cast %7 : i32 to index
      %c0_54 = arith.constant 0 : index
      %c0_55 = arith.constant 0 : index
      %67 = vector.load %arg5[%c0_53, %66, %c0_54, %c0_55] : memref<1x28x32x28xbf16, #tpu.memory_space<vmem>>, vector<1x1x32x28xbf16>
      %68 = vector.shape_cast %67 : vector<1x1x32x28xbf16> to vector<32x28xbf16>
      %69 = vector.shape_cast %65 : vector<32x28xbf16> to vector<1x1x32x28xbf16>
      tpu.vector_store %arg5[%c0_53, %66, %c0_54, %c0_55], %69 {strides = array<i32>} : memref<1x28x32x28xbf16, #tpu.memory_space<vmem>>, vector<1x1x32x28xbf16>,
    }
    %c28_i32_6 = arith.constant 28 : i32
    return
  }
  func.func @transform_0(%arg0: i32, %arg1: i32) -> (i32, i32, i32, i32) {
    %c0_i32 = arith.constant 0 : i32
    %c0_i32_0 = arith.constant 0 : i32
    %c0_i32_1 = arith.constant 0 : i32
    %c0_i32_2 = arith.constant 0 : i32
    return %arg0, %c0_i32, %c0_i32_0, %c0_i32_1 : i32, i32, i32, i32
  }
  func.func @transform_1(%arg0: i32, %arg1: i32) -> (i32, i32) {
    %c0_i32 = arith.constant 0 : i32
    %c0_i32_0 = arith.constant 0 : i32
    %c0_i32_1 = arith.constant 0 : i32
    return %c0_i32, %c0_i32_0 : i32, i32
  }
  func.func @transform_2(%arg0: i32, %arg1: i32) -> (i32, i32) {
    %c0_i32 = arith.constant 0 : i32
    %c0_i32_0 = arith.constant 0 : i32
    %c0_i32_1 = arith.constant 0 : i32
    return %c0_i32, %c0_i32_0 : i32, i32
  }
  func.func @transform_3(%arg0: i32, %arg1: i32) -> (i32, i32, i32, i32) {
    %c0_i32 = arith.constant 0 : i32
    %c0_i32_0 = arith.constant 0 : i32
    %c0_i32_1 = arith.constant 0 : i32
    return %arg0, %arg1, %c0_i32, %c0_i32_0 : i32, i32, i32, i32
  }
}

module attributes {stable_mosaic.version = 11 : i64} {
  func.func @_conv3x3_kernel(%arg0: i32, %arg1: i32, %arg2: memref<1x30x32x30xbf16, #tpu.memory_space<vmem>>, %arg3: memref<32x288xbf16, #tpu.memory_space<vmem>>, %arg4: memref<32x3xf32, #tpu.memory_space<vmem>>, %arg5: memref<1x28x32x28xbf16, #tpu.memory_space<vmem>>) attributes {dimension_semantics = [#tpu.dimension_semantics<parallel>, #tpu.dimension_semantics<parallel>], iteration_bounds = array<i64: 2, 1>, scalar_prefetch = 0 : i64, scratch_operands = 0 : i64, tpu.core_type = #tpu.core_type<tc>, window_params = [{transform_indices = @transform_0, window_bounds = array<i64: 1, 30, 32, 30>}, {pipeline_mode = #tpu.pipeline_mode<synchronous>, transform_indices = @transform_1, window_bounds = array<i64: 32, 288>}, {pipeline_mode = #tpu.pipeline_mode<synchronous>, transform_indices = @transform_2, window_bounds = array<i64: 32, 3>}, {transform_indices = @transform_3, window_bounds = array<i64: 1, 28, 32, 28>}]} {
    %c28_i32 = arith.constant 28 : i32
    %0 = arith.muli %arg1, %c28_i32 : i32
    %c0 = arith.constant 0 : index
    %c0_0 = arith.constant 0 : index
    %1 = vector.load %arg4[%c0, %c0_0] : memref<32x3xf32, #tpu.memory_space<vmem>>, vector<32x1xf32>
    %c0_1 = arith.constant 0 : index
    %c1 = arith.constant 1 : index
    %2 = vector.load %arg4[%c0_1, %c1] : memref<32x3xf32, #tpu.memory_space<vmem>>, vector<32x1xf32>
    %c0_2 = arith.constant 0 : index
    %c2 = arith.constant 2 : index
    %3 = vector.load %arg4[%c0_2, %c2] : memref<32x3xf32, #tpu.memory_space<vmem>>, vector<32x1xf32>
    %c0_3 = arith.constant 0 : index
    %c0_4 = arith.constant 0 : index
    %4 = vector.load %arg3[%c0_3, %c0_4] : memref<32x288xbf16, #tpu.memory_space<vmem>>, vector<32x288xbf16>
    %c0_i32 = arith.constant 0 : i32
    %c28_i32_5 = arith.constant 28 : i32
    %5 = arith.addi %c0_i32, %c28_i32_5 : i32
    %c1_i32 = arith.constant 1 : i32
    scf.for %arg6 = %c0_i32 to %5 step %c1_i32  : i32 {
      %c1_i32_7 = arith.constant 1 : i32
      %6 = arith.muli %arg6, %c1_i32_7 : i32
      %c0_i32_8 = arith.constant 0 : i32
      %7 = arith.addi %c0_i32_8, %6 : i32
      %8 = arith.addi %0, %7 : i32
      %c0_i32_9 = arith.constant 0 : i32
      %9 = arith.addi %8, %c0_i32_9 : i32
      %c0_10 = arith.constant 0 : index
      %10 = arith.index_cast %9 : i32 to index
      %c0_11 = arith.constant 0 : index
      %c0_12 = arith.constant 0 : index
      %11 = vector.load %arg2[%c0_10, %10, %c0_11, %c0_12] : memref<1x30x32x30xbf16, #tpu.memory_space<vmem>>, vector<1x1x32x28xbf16>
      %12 = vector.shape_cast %11 : vector<1x1x32x28xbf16> to vector<32x28xbf16>
      %c0_i32_13 = arith.constant 0 : i32
      %13 = arith.addi %8, %c0_i32_13 : i32
      %c0_14 = arith.constant 0 : index
      %14 = arith.index_cast %13 : i32 to index
      %c0_15 = arith.constant 0 : index
      %c1_16 = arith.constant 1 : index
      %15 = vector.load %arg2[%c0_14, %14, %c0_15, %c1_16] : memref<1x30x32x30xbf16, #tpu.memory_space<vmem>>, vector<1x1x32x28xbf16>
      %16 = vector.shape_cast %15 : vector<1x1x32x28xbf16> to vector<32x28xbf16>
      %c0_i32_17 = arith.constant 0 : i32
      %17 = arith.addi %8, %c0_i32_17 : i32
      %c0_18 = arith.constant 0 : index
      %18 = arith.index_cast %17 : i32 to index
      %c0_19 = arith.constant 0 : index
      %c2_20 = arith.constant 2 : index
      %19 = vector.load %arg2[%c0_18, %18, %c0_19, %c2_20] : memref<1x30x32x30xbf16, #tpu.memory_space<vmem>>, vector<1x1x32x28xbf16>
      %20 = vector.shape_cast %19 : vector<1x1x32x28xbf16> to vector<32x28xbf16>
      %c1_i32_21 = arith.constant 1 : i32
      %21 = arith.addi %8, %c1_i32_21 : i32
      %c0_22 = arith.constant 0 : index
      %22 = arith.index_cast %21 : i32 to index
      %c0_23 = arith.constant 0 : index
      %c0_24 = arith.constant 0 : index
      %23 = vector.load %arg2[%c0_22, %22, %c0_23, %c0_24] : memref<1x30x32x30xbf16, #tpu.memory_space<vmem>>, vector<1x1x32x28xbf16>
      %24 = vector.shape_cast %23 : vector<1x1x32x28xbf16> to vector<32x28xbf16>
      %c1_i32_25 = arith.constant 1 : i32
      %25 = arith.addi %8, %c1_i32_25 : i32
      %c0_26 = arith.constant 0 : index
      %26 = arith.index_cast %25 : i32 to index
      %c0_27 = arith.constant 0 : index
      %c1_28 = arith.constant 1 : index
      %27 = vector.load %arg2[%c0_26, %26, %c0_27, %c1_28] : memref<1x30x32x30xbf16, #tpu.memory_space<vmem>>, vector<1x1x32x28xbf16>
      %28 = vector.shape_cast %27 : vector<1x1x32x28xbf16> to vector<32x28xbf16>
      %c1_i32_29 = arith.constant 1 : i32
      %29 = arith.addi %8, %c1_i32_29 : i32
      %c0_30 = arith.constant 0 : index
      %30 = arith.index_cast %29 : i32 to index
      %c0_31 = arith.constant 0 : index
      %c2_32 = arith.constant 2 : index
      %31 = vector.load %arg2[%c0_30, %30, %c0_31, %c2_32] : memref<1x30x32x30xbf16, #tpu.memory_space<vmem>>, vector<1x1x32x28xbf16>
      %32 = vector.shape_cast %31 : vector<1x1x32x28xbf16> to vector<32x28xbf16>
      %c2_i32 = arith.constant 2 : i32
      %33 = arith.addi %8, %c2_i32 : i32
      %c0_33 = arith.constant 0 : index
      %34 = arith.index_cast %33 : i32 to index
      %c0_34 = arith.constant 0 : index
      %c0_35 = arith.constant 0 : index
      %35 = vector.load %arg2[%c0_33, %34, %c0_34, %c0_35] : memref<1x30x32x30xbf16, #tpu.memory_space<vmem>>, vector<1x1x32x28xbf16>
      %36 = vector.shape_cast %35 : vector<1x1x32x28xbf16> to vector<32x28xbf16>
      %c2_i32_36 = arith.constant 2 : i32
      %37 = arith.addi %8, %c2_i32_36 : i32
      %c0_37 = arith.constant 0 : index
      %38 = arith.index_cast %37 : i32 to index
      %c0_38 = arith.constant 0 : index
      %c1_39 = arith.constant 1 : index
      %39 = vector.load %arg2[%c0_37, %38, %c0_38, %c1_39] : memref<1x30x32x30xbf16, #tpu.memory_space<vmem>>, vector<1x1x32x28xbf16>
      %40 = vector.shape_cast %39 : vector<1x1x32x28xbf16> to vector<32x28xbf16>
      %c2_i32_40 = arith.constant 2 : i32
      %41 = arith.addi %8, %c2_i32_40 : i32
      %c0_41 = arith.constant 0 : index
      %42 = arith.index_cast %41 : i32 to index
      %c0_42 = arith.constant 0 : index
      %c2_43 = arith.constant 2 : index
      %43 = vector.load %arg2[%c0_41, %42, %c0_42, %c2_43] : memref<1x30x32x30xbf16, #tpu.memory_space<vmem>>, vector<1x1x32x28xbf16>
      %44 = vector.shape_cast %43 : vector<1x1x32x28xbf16> to vector<32x28xbf16>
      %45 = tpu.concatenate %12, %16, %20, %24, %28, %32, %36, %40, %44 in 0 : vector<32x28xbf16>, vector<32x28xbf16>, vector<32x28xbf16>, vector<32x28xbf16>, vector<32x28xbf16>, vector<32x28xbf16>, vector<32x28xbf16>, vector<32x28xbf16>, vector<32x28xbf16> -> vector<288x28xbf16>
      %cst = arith.constant dense<0.000000e+00> : vector<32x28xf32>
      %46 = tpu.matmul %4, %45, %cst {dimension_numbers = #tpu.dot_dimension_numbers<[1], [0], [0], [1], [0, 0, 1, 1], [], []>} : vector<32x288xbf16>, vector<288x28xbf16>, vector<32x28xf32> -> vector<32x28xf32>
      %47 = vector.broadcast %1 : vector<32x1xf32> to vector<32x28xf32>
      %48 = arith.mulf %46, %47 : vector<32x28xf32>
      %49 = vector.broadcast %2 : vector<32x1xf32> to vector<32x28xf32>
      %50 = arith.addf %48, %49 : vector<32x28xf32>
      %cst_44 = arith.constant 0.000000e+00 : f32
      %51 = vector.broadcast %cst_44 : f32 to vector<32x28xf32>
      %52 = arith.cmpf ogt, %50, %51 : vector<32x28xf32>
      %53 = vector.broadcast %3 : vector<32x1xf32> to vector<32x28xf32>
      %54 = arith.mulf %53, %50 : vector<32x28xf32>
      %55 = arith.select %52, %50, %54 : vector<32x28xi1>, vector<32x28xf32>
      %56 = arith.truncf %55 : vector<32x28xf32> to vector<32x28xbf16>
      %c0_45 = arith.constant 0 : index
      %57 = arith.index_cast %7 : i32 to index
      %c0_46 = arith.constant 0 : index
      %c0_47 = arith.constant 0 : index
      %58 = vector.load %arg5[%c0_45, %57, %c0_46, %c0_47] : memref<1x28x32x28xbf16, #tpu.memory_space<vmem>>, vector<1x1x32x28xbf16>
      %59 = vector.shape_cast %58 : vector<1x1x32x28xbf16> to vector<32x28xbf16>
      %60 = vector.shape_cast %56 : vector<32x28xbf16> to vector<1x1x32x28xbf16>
      tpu.vector_store %arg5[%c0_45, %57, %c0_46, %c0_47], %60 {strides = array<i32>} : memref<1x28x32x28xbf16, #tpu.memory_space<vmem>>, vector<1x1x32x28xbf16>,
    }
    %c28_i32_6 = arith.constant 28 : i32
    return
  }
  func.func @transform_0(%arg0: i32, %arg1: i32) -> (i32, i32, i32, i32) {
    %c0_i32 = arith.constant 0 : i32
    %c0_i32_0 = arith.constant 0 : i32
    %c0_i32_1 = arith.constant 0 : i32
    %c0_i32_2 = arith.constant 0 : i32
    return %arg0, %c0_i32, %c0_i32_0, %c0_i32_1 : i32, i32, i32, i32
  }
  func.func @transform_1(%arg0: i32, %arg1: i32) -> (i32, i32) {
    %c0_i32 = arith.constant 0 : i32
    %c0_i32_0 = arith.constant 0 : i32
    %c0_i32_1 = arith.constant 0 : i32
    return %c0_i32, %c0_i32_0 : i32, i32
  }
  func.func @transform_2(%arg0: i32, %arg1: i32) -> (i32, i32) {
    %c0_i32 = arith.constant 0 : i32
    %c0_i32_0 = arith.constant 0 : i32
    %c0_i32_1 = arith.constant 0 : i32
    return %c0_i32, %c0_i32_0 : i32, i32
  }
  func.func @transform_3(%arg0: i32, %arg1: i32) -> (i32, i32, i32, i32) {
    %c0_i32 = arith.constant 0 : i32
    %c0_i32_0 = arith.constant 0 : i32
    %c0_i32_1 = arith.constant 0 : i32
    return %arg0, %arg1, %c0_i32, %c0_i32_0 : i32, i32, i32, i32
  }
}

module attributes {stable_mosaic.version = 11 : i64} {
  func.func @_conv3x3_kernel(%arg0: i32, %arg1: i32, %arg2: memref<1x30x32x30xbf16, #tpu.memory_space<vmem>>, %arg3: memref<32x288xbf16, #tpu.memory_space<vmem>>, %arg4: memref<32x3xf32, #tpu.memory_space<vmem>>, %arg5: memref<1x14x32x14xbf16, #tpu.memory_space<vmem>>) attributes {dimension_semantics = [#tpu.dimension_semantics<parallel>, #tpu.dimension_semantics<parallel>], iteration_bounds = array<i64: 2, 1>, scalar_prefetch = 0 : i64, scratch_operands = 0 : i64, tpu.core_type = #tpu.core_type<tc>, window_params = [{transform_indices = @transform_0, window_bounds = array<i64: 1, 30, 32, 30>}, {pipeline_mode = #tpu.pipeline_mode<synchronous>, transform_indices = @transform_1, window_bounds = array<i64: 32, 288>}, {pipeline_mode = #tpu.pipeline_mode<synchronous>, transform_indices = @transform_2, window_bounds = array<i64: 32, 3>}, {transform_indices = @transform_3, window_bounds = array<i64: 1, 14, 32, 14>}]} {
    %c14_i32 = arith.constant 14 : i32
    %0 = arith.muli %arg1, %c14_i32 : i32
    %c0 = arith.constant 0 : index
    %c0_0 = arith.constant 0 : index
    %1 = vector.load %arg4[%c0, %c0_0] : memref<32x3xf32, #tpu.memory_space<vmem>>, vector<32x1xf32>
    %c0_1 = arith.constant 0 : index
    %c1 = arith.constant 1 : index
    %2 = vector.load %arg4[%c0_1, %c1] : memref<32x3xf32, #tpu.memory_space<vmem>>, vector<32x1xf32>
    %c0_2 = arith.constant 0 : index
    %c2 = arith.constant 2 : index
    %3 = vector.load %arg4[%c0_2, %c2] : memref<32x3xf32, #tpu.memory_space<vmem>>, vector<32x1xf32>
    %c0_3 = arith.constant 0 : index
    %c0_4 = arith.constant 0 : index
    %4 = vector.load %arg3[%c0_3, %c0_4] : memref<32x288xbf16, #tpu.memory_space<vmem>>, vector<32x288xbf16>
    %c0_i32 = arith.constant 0 : i32
    %c14_i32_5 = arith.constant 14 : i32
    %5 = arith.addi %c0_i32, %c14_i32_5 : i32
    %c1_i32 = arith.constant 1 : i32
    scf.for %arg6 = %c0_i32 to %5 step %c1_i32  : i32 {
      %c1_i32_7 = arith.constant 1 : i32
      %6 = arith.muli %arg6, %c1_i32_7 : i32
      %c0_i32_8 = arith.constant 0 : i32
      %7 = arith.addi %c0_i32_8, %6 : i32
      %8 = arith.addi %0, %7 : i32
      %c0_i32_9 = arith.constant 0 : i32
      %9 = arith.addi %c0_i32_9, %8 : i32
      %c0_i32_10 = arith.constant 0 : i32
      %10 = arith.addi %9, %c0_i32_10 : i32
      %c0_11 = arith.constant 0 : index
      %11 = arith.index_cast %10 : i32 to index
      %c0_12 = arith.constant 0 : index
      %c0_13 = arith.constant 0 : index
      %12 = vector.load %arg2[%c0_11, %11, %c0_12, %c0_13] : memref<1x30x32x30xbf16, #tpu.memory_space<vmem>>, vector<1x1x32x14xbf16>
      %13 = vector.shape_cast %12 : vector<1x1x32x14xbf16> to vector<32x14xbf16>
      %c0_i32_14 = arith.constant 0 : i32
      %14 = arith.addi %c0_i32_14, %8 : i32
      %c0_i32_15 = arith.constant 0 : i32
      %15 = arith.addi %14, %c0_i32_15 : i32
      %c0_16 = arith.constant 0 : index
      %16 = arith.index_cast %15 : i32 to index
      %c0_17 = arith.constant 0 : index
      %c15 = arith.constant 15 : index
      %17 = vector.load %arg2[%c0_16, %16, %c0_17, %c15] : memref<1x30x32x30xbf16, #tpu.memory_space<vmem>>, vector<1x1x32x14xbf16>
      %18 = vector.shape_cast %17 : vector<1x1x32x14xbf16> to vector<32x14xbf16>
      %c0_i32_18 = arith.constant 0 : i32
      %19 = arith.addi %c0_i32_18, %8 : i32
      %c0_i32_19 = arith.constant 0 : i32
      %20 = arith.addi %19, %c0_i32_19 : i32
      %c0_20 = arith.constant 0 : index
      %21 = arith.index_cast %20 : i32 to index
      %c0_21 = arith.constant 0 : index
      %c1_22 = arith.constant 1 : index
      %22 = vector.load %arg2[%c0_20, %21, %c0_21, %c1_22] : memref<1x30x32x30xbf16, #tpu.memory_space<vmem>>, vector<1x1x32x14xbf16>
      %23 = vector.shape_cast %22 : vector<1x1x32x14xbf16> to vector<32x14xbf16>
      %c15_i32 = arith.constant 15 : i32
      %24 = arith.addi %c15_i32, %8 : i32
      %c0_i32_23 = arith.constant 0 : i32
      %25 = arith.addi %24, %c0_i32_23 : i32
      %c0_24 = arith.constant 0 : index
      %26 = arith.index_cast %25 : i32 to index
      %c0_25 = arith.constant 0 : index
      %c0_26 = arith.constant 0 : index
      %27 = vector.load %arg2[%c0_24, %26, %c0_25, %c0_26] : memref<1x30x32x30xbf16, #tpu.memory_space<vmem>>, vector<1x1x32x14xbf16>
      %28 = vector.shape_cast %27 : vector<1x1x32x14xbf16> to vector<32x14xbf16>
      %c15_i32_27 = arith.constant 15 : i32
      %29 = arith.addi %c15_i32_27, %8 : i32
      %c0_i32_28 = arith.constant 0 : i32
      %30 = arith.addi %29, %c0_i32_28 : i32
      %c0_29 = arith.constant 0 : index
      %31 = arith.index_cast %30 : i32 to index
      %c0_30 = arith.constant 0 : index
      %c15_31 = arith.constant 15 : index
      %32 = vector.load %arg2[%c0_29, %31, %c0_30, %c15_31] : memref<1x30x32x30xbf16, #tpu.memory_space<vmem>>, vector<1x1x32x14xbf16>
      %33 = vector.shape_cast %32 : vector<1x1x32x14xbf16> to vector<32x14xbf16>
      %c15_i32_32 = arith.constant 15 : i32
      %34 = arith.addi %c15_i32_32, %8 : i32
      %c0_i32_33 = arith.constant 0 : i32
      %35 = arith.addi %34, %c0_i32_33 : i32
      %c0_34 = arith.constant 0 : index
      %36 = arith.index_cast %35 : i32 to index
      %c0_35 = arith.constant 0 : index
      %c1_36 = arith.constant 1 : index
      %37 = vector.load %arg2[%c0_34, %36, %c0_35, %c1_36] : memref<1x30x32x30xbf16, #tpu.memory_space<vmem>>, vector<1x1x32x14xbf16>
      %38 = vector.shape_cast %37 : vector<1x1x32x14xbf16> to vector<32x14xbf16>
      %c0_i32_37 = arith.constant 0 : i32
      %39 = arith.addi %c0_i32_37, %8 : i32
      %c1_i32_38 = arith.constant 1 : i32
      %40 = arith.addi %39, %c1_i32_38 : i32
      %c0_39 = arith.constant 0 : index
      %41 = arith.index_cast %40 : i32 to index
      %c0_40 = arith.constant 0 : index
      %c0_41 = arith.constant 0 : index
      %42 = vector.load %arg2[%c0_39, %41, %c0_40, %c0_41] : memref<1x30x32x30xbf16, #tpu.memory_space<vmem>>, vector<1x1x32x14xbf16>
      %43 = vector.shape_cast %42 : vector<1x1x32x14xbf16> to vector<32x14xbf16>
      %c0_i32_42 = arith.constant 0 : i32
      %44 = arith.addi %c0_i32_42, %8 : i32
      %c1_i32_43 = arith.constant 1 : i32
      %45 = arith.addi %44, %c1_i32_43 : i32
      %c0_44 = arith.constant 0 : index
      %46 = arith.index_cast %45 : i32 to index
      %c0_45 = arith.constant 0 : index
      %c15_46 = arith.constant 15 : index
      %47 = vector.load %arg2[%c0_44, %46, %c0_45, %c15_46] : memref<1x30x32x30xbf16, #tpu.memory_space<vmem>>, vector<1x1x32x14xbf16>
      %48 = vector.shape_cast %47 : vector<1x1x32x14xbf16> to vector<32x14xbf16>
      %c0_i32_47 = arith.constant 0 : i32
      %49 = arith.addi %c0_i32_47, %8 : i32
      %c1_i32_48 = arith.constant 1 : i32
      %50 = arith.addi %49, %c1_i32_48 : i32
      %c0_49 = arith.constant 0 : index
      %51 = arith.index_cast %50 : i32 to index
      %c0_50 = arith.constant 0 : index
      %c1_51 = arith.constant 1 : index
      %52 = vector.load %arg2[%c0_49, %51, %c0_50, %c1_51] : memref<1x30x32x30xbf16, #tpu.memory_space<vmem>>, vector<1x1x32x14xbf16>
      %53 = vector.shape_cast %52 : vector<1x1x32x14xbf16> to vector<32x14xbf16>
      %54 = tpu.concatenate %13, %18, %23, %28, %33, %38, %43, %48, %53 in 0 : vector<32x14xbf16>, vector<32x14xbf16>, vector<32x14xbf16>, vector<32x14xbf16>, vector<32x14xbf16>, vector<32x14xbf16>, vector<32x14xbf16>, vector<32x14xbf16>, vector<32x14xbf16> -> vector<288x14xbf16>
      %cst = arith.constant dense<0.000000e+00> : vector<32x14xf32>
      %55 = tpu.matmul %4, %54, %cst {dimension_numbers = #tpu.dot_dimension_numbers<[1], [0], [0], [1], [0, 0, 1, 1], [], []>} : vector<32x288xbf16>, vector<288x14xbf16>, vector<32x14xf32> -> vector<32x14xf32>
      %56 = vector.broadcast %1 : vector<32x1xf32> to vector<32x14xf32>
      %57 = arith.mulf %55, %56 : vector<32x14xf32>
      %58 = vector.broadcast %2 : vector<32x1xf32> to vector<32x14xf32>
      %59 = arith.addf %57, %58 : vector<32x14xf32>
      %cst_52 = arith.constant 0.000000e+00 : f32
      %60 = vector.broadcast %cst_52 : f32 to vector<32x14xf32>
      %61 = arith.cmpf ogt, %59, %60 : vector<32x14xf32>
      %62 = vector.broadcast %3 : vector<32x1xf32> to vector<32x14xf32>
      %63 = arith.mulf %62, %59 : vector<32x14xf32>
      %64 = arith.select %61, %59, %63 : vector<32x14xi1>, vector<32x14xf32>
      %65 = arith.truncf %64 : vector<32x14xf32> to vector<32x14xbf16>
      %c0_53 = arith.constant 0 : index
      %66 = arith.index_cast %7 : i32 to index
      %c0_54 = arith.constant 0 : index
      %c0_55 = arith.constant 0 : index
      %67 = vector.load %arg5[%c0_53, %66, %c0_54, %c0_55] : memref<1x14x32x14xbf16, #tpu.memory_space<vmem>>, vector<1x1x32x14xbf16>
      %68 = vector.shape_cast %67 : vector<1x1x32x14xbf16> to vector<32x14xbf16>
      %69 = vector.shape_cast %65 : vector<32x14xbf16> to vector<1x1x32x14xbf16>
      tpu.vector_store %arg5[%c0_53, %66, %c0_54, %c0_55], %69 {strides = array<i32>} : memref<1x14x32x14xbf16, #tpu.memory_space<vmem>>, vector<1x1x32x14xbf16>,
    }
    %c14_i32_6 = arith.constant 14 : i32
    return
  }
  func.func @transform_0(%arg0: i32, %arg1: i32) -> (i32, i32, i32, i32) {
    %c0_i32 = arith.constant 0 : i32
    %c0_i32_0 = arith.constant 0 : i32
    %c0_i32_1 = arith.constant 0 : i32
    %c0_i32_2 = arith.constant 0 : i32
    return %arg0, %c0_i32, %c0_i32_0, %c0_i32_1 : i32, i32, i32, i32
  }
  func.func @transform_1(%arg0: i32, %arg1: i32) -> (i32, i32) {
    %c0_i32 = arith.constant 0 : i32
    %c0_i32_0 = arith.constant 0 : i32
    %c0_i32_1 = arith.constant 0 : i32
    return %c0_i32, %c0_i32_0 : i32, i32
  }
  func.func @transform_2(%arg0: i32, %arg1: i32) -> (i32, i32) {
    %c0_i32 = arith.constant 0 : i32
    %c0_i32_0 = arith.constant 0 : i32
    %c0_i32_1 = arith.constant 0 : i32
    return %c0_i32, %c0_i32_0 : i32, i32
  }
  func.func @transform_3(%arg0: i32, %arg1: i32) -> (i32, i32, i32, i32) {
    %c0_i32 = arith.constant 0 : i32
    %c0_i32_0 = arith.constant 0 : i32
    %c0_i32_1 = arith.constant 0 : i32
    return %arg0, %arg1, %c0_i32, %c0_i32_0 : i32, i32, i32, i32
  }
}

module attributes {stable_mosaic.version = 11 : i64} {
  func.func @_conv3x3_kernel(%arg0: i32, %arg1: i32, %arg2: memref<1x16x32x16xbf16, #tpu.memory_space<vmem>>, %arg3: memref<64x288xbf16, #tpu.memory_space<vmem>>, %arg4: memref<64x3xf32, #tpu.memory_space<vmem>>, %arg5: memref<1x14x64x14xbf16, #tpu.memory_space<vmem>>) attributes {dimension_semantics = [#tpu.dimension_semantics<parallel>, #tpu.dimension_semantics<parallel>], iteration_bounds = array<i64: 2, 1>, scalar_prefetch = 0 : i64, scratch_operands = 0 : i64, tpu.core_type = #tpu.core_type<tc>, window_params = [{transform_indices = @transform_0, window_bounds = array<i64: 1, 16, 32, 16>}, {pipeline_mode = #tpu.pipeline_mode<synchronous>, transform_indices = @transform_1, window_bounds = array<i64: 64, 288>}, {pipeline_mode = #tpu.pipeline_mode<synchronous>, transform_indices = @transform_2, window_bounds = array<i64: 64, 3>}, {transform_indices = @transform_3, window_bounds = array<i64: 1, 14, 64, 14>}]} {
    %c14_i32 = arith.constant 14 : i32
    %0 = arith.muli %arg1, %c14_i32 : i32
    %c0 = arith.constant 0 : index
    %c0_0 = arith.constant 0 : index
    %1 = vector.load %arg4[%c0, %c0_0] : memref<64x3xf32, #tpu.memory_space<vmem>>, vector<64x1xf32>
    %c0_1 = arith.constant 0 : index
    %c1 = arith.constant 1 : index
    %2 = vector.load %arg4[%c0_1, %c1] : memref<64x3xf32, #tpu.memory_space<vmem>>, vector<64x1xf32>
    %c0_2 = arith.constant 0 : index
    %c2 = arith.constant 2 : index
    %3 = vector.load %arg4[%c0_2, %c2] : memref<64x3xf32, #tpu.memory_space<vmem>>, vector<64x1xf32>
    %c0_3 = arith.constant 0 : index
    %c0_4 = arith.constant 0 : index
    %4 = vector.load %arg3[%c0_3, %c0_4] : memref<64x288xbf16, #tpu.memory_space<vmem>>, vector<64x288xbf16>
    %c0_i32 = arith.constant 0 : i32
    %c14_i32_5 = arith.constant 14 : i32
    %5 = arith.addi %c0_i32, %c14_i32_5 : i32
    %c1_i32 = arith.constant 1 : i32
    scf.for %arg6 = %c0_i32 to %5 step %c1_i32  : i32 {
      %c1_i32_7 = arith.constant 1 : i32
      %6 = arith.muli %arg6, %c1_i32_7 : i32
      %c0_i32_8 = arith.constant 0 : i32
      %7 = arith.addi %c0_i32_8, %6 : i32
      %8 = arith.addi %0, %7 : i32
      %c0_i32_9 = arith.constant 0 : i32
      %9 = arith.addi %8, %c0_i32_9 : i32
      %c0_10 = arith.constant 0 : index
      %10 = arith.index_cast %9 : i32 to index
      %c0_11 = arith.constant 0 : index
      %c0_12 = arith.constant 0 : index
      %11 = vector.load %arg2[%c0_10, %10, %c0_11, %c0_12] : memref<1x16x32x16xbf16, #tpu.memory_space<vmem>>, vector<1x1x32x14xbf16>
      %12 = vector.shape_cast %11 : vector<1x1x32x14xbf16> to vector<32x14xbf16>
      %c0_i32_13 = arith.constant 0 : i32
      %13 = arith.addi %8, %c0_i32_13 : i32
      %c0_14 = arith.constant 0 : index
      %14 = arith.index_cast %13 : i32 to index
      %c0_15 = arith.constant 0 : index
      %c1_16 = arith.constant 1 : index
      %15 = vector.load %arg2[%c0_14, %14, %c0_15, %c1_16] : memref<1x16x32x16xbf16, #tpu.memory_space<vmem>>, vector<1x1x32x14xbf16>
      %16 = vector.shape_cast %15 : vector<1x1x32x14xbf16> to vector<32x14xbf16>
      %c0_i32_17 = arith.constant 0 : i32
      %17 = arith.addi %8, %c0_i32_17 : i32
      %c0_18 = arith.constant 0 : index
      %18 = arith.index_cast %17 : i32 to index
      %c0_19 = arith.constant 0 : index
      %c2_20 = arith.constant 2 : index
      %19 = vector.load %arg2[%c0_18, %18, %c0_19, %c2_20] : memref<1x16x32x16xbf16, #tpu.memory_space<vmem>>, vector<1x1x32x14xbf16>
      %20 = vector.shape_cast %19 : vector<1x1x32x14xbf16> to vector<32x14xbf16>
      %c1_i32_21 = arith.constant 1 : i32
      %21 = arith.addi %8, %c1_i32_21 : i32
      %c0_22 = arith.constant 0 : index
      %22 = arith.index_cast %21 : i32 to index
      %c0_23 = arith.constant 0 : index
      %c0_24 = arith.constant 0 : index
      %23 = vector.load %arg2[%c0_22, %22, %c0_23, %c0_24] : memref<1x16x32x16xbf16, #tpu.memory_space<vmem>>, vector<1x1x32x14xbf16>
      %24 = vector.shape_cast %23 : vector<1x1x32x14xbf16> to vector<32x14xbf16>
      %c1_i32_25 = arith.constant 1 : i32
      %25 = arith.addi %8, %c1_i32_25 : i32
      %c0_26 = arith.constant 0 : index
      %26 = arith.index_cast %25 : i32 to index
      %c0_27 = arith.constant 0 : index
      %c1_28 = arith.constant 1 : index
      %27 = vector.load %arg2[%c0_26, %26, %c0_27, %c1_28] : memref<1x16x32x16xbf16, #tpu.memory_space<vmem>>, vector<1x1x32x14xbf16>
      %28 = vector.shape_cast %27 : vector<1x1x32x14xbf16> to vector<32x14xbf16>
      %c1_i32_29 = arith.constant 1 : i32
      %29 = arith.addi %8, %c1_i32_29 : i32
      %c0_30 = arith.constant 0 : index
      %30 = arith.index_cast %29 : i32 to index
      %c0_31 = arith.constant 0 : index
      %c2_32 = arith.constant 2 : index
      %31 = vector.load %arg2[%c0_30, %30, %c0_31, %c2_32] : memref<1x16x32x16xbf16, #tpu.memory_space<vmem>>, vector<1x1x32x14xbf16>
      %32 = vector.shape_cast %31 : vector<1x1x32x14xbf16> to vector<32x14xbf16>
      %c2_i32 = arith.constant 2 : i32
      %33 = arith.addi %8, %c2_i32 : i32
      %c0_33 = arith.constant 0 : index
      %34 = arith.index_cast %33 : i32 to index
      %c0_34 = arith.constant 0 : index
      %c0_35 = arith.constant 0 : index
      %35 = vector.load %arg2[%c0_33, %34, %c0_34, %c0_35] : memref<1x16x32x16xbf16, #tpu.memory_space<vmem>>, vector<1x1x32x14xbf16>
      %36 = vector.shape_cast %35 : vector<1x1x32x14xbf16> to vector<32x14xbf16>
      %c2_i32_36 = arith.constant 2 : i32
      %37 = arith.addi %8, %c2_i32_36 : i32
      %c0_37 = arith.constant 0 : index
      %38 = arith.index_cast %37 : i32 to index
      %c0_38 = arith.constant 0 : index
      %c1_39 = arith.constant 1 : index
      %39 = vector.load %arg2[%c0_37, %38, %c0_38, %c1_39] : memref<1x16x32x16xbf16, #tpu.memory_space<vmem>>, vector<1x1x32x14xbf16>
      %40 = vector.shape_cast %39 : vector<1x1x32x14xbf16> to vector<32x14xbf16>
      %c2_i32_40 = arith.constant 2 : i32
      %41 = arith.addi %8, %c2_i32_40 : i32
      %c0_41 = arith.constant 0 : index
      %42 = arith.index_cast %41 : i32 to index
      %c0_42 = arith.constant 0 : index
      %c2_43 = arith.constant 2 : index
      %43 = vector.load %arg2[%c0_41, %42, %c0_42, %c2_43] : memref<1x16x32x16xbf16, #tpu.memory_space<vmem>>, vector<1x1x32x14xbf16>
      %44 = vector.shape_cast %43 : vector<1x1x32x14xbf16> to vector<32x14xbf16>
      %45 = tpu.concatenate %12, %16, %20, %24, %28, %32, %36, %40, %44 in 0 : vector<32x14xbf16>, vector<32x14xbf16>, vector<32x14xbf16>, vector<32x14xbf16>, vector<32x14xbf16>, vector<32x14xbf16>, vector<32x14xbf16>, vector<32x14xbf16>, vector<32x14xbf16> -> vector<288x14xbf16>
      %cst = arith.constant dense<0.000000e+00> : vector<64x14xf32>
      %46 = tpu.matmul %4, %45, %cst {dimension_numbers = #tpu.dot_dimension_numbers<[1], [0], [0], [1], [0, 0, 1, 1], [], []>} : vector<64x288xbf16>, vector<288x14xbf16>, vector<64x14xf32> -> vector<64x14xf32>
      %47 = vector.broadcast %1 : vector<64x1xf32> to vector<64x14xf32>
      %48 = arith.mulf %46, %47 : vector<64x14xf32>
      %49 = vector.broadcast %2 : vector<64x1xf32> to vector<64x14xf32>
      %50 = arith.addf %48, %49 : vector<64x14xf32>
      %cst_44 = arith.constant 0.000000e+00 : f32
      %51 = vector.broadcast %cst_44 : f32 to vector<64x14xf32>
      %52 = arith.cmpf ogt, %50, %51 : vector<64x14xf32>
      %53 = vector.broadcast %3 : vector<64x1xf32> to vector<64x14xf32>
      %54 = arith.mulf %53, %50 : vector<64x14xf32>
      %55 = arith.select %52, %50, %54 : vector<64x14xi1>, vector<64x14xf32>
      %56 = arith.truncf %55 : vector<64x14xf32> to vector<64x14xbf16>
      %c0_45 = arith.constant 0 : index
      %57 = arith.index_cast %7 : i32 to index
      %c0_46 = arith.constant 0 : index
      %c0_47 = arith.constant 0 : index
      %58 = vector.load %arg5[%c0_45, %57, %c0_46, %c0_47] : memref<1x14x64x14xbf16, #tpu.memory_space<vmem>>, vector<1x1x64x14xbf16>
      %59 = vector.shape_cast %58 : vector<1x1x64x14xbf16> to vector<64x14xbf16>
      %60 = vector.shape_cast %56 : vector<64x14xbf16> to vector<1x1x64x14xbf16>
      tpu.vector_store %arg5[%c0_45, %57, %c0_46, %c0_47], %60 {strides = array<i32>} : memref<1x14x64x14xbf16, #tpu.memory_space<vmem>>, vector<1x1x64x14xbf16>,
    }
    %c14_i32_6 = arith.constant 14 : i32
    return
  }
  func.func @transform_0(%arg0: i32, %arg1: i32) -> (i32, i32, i32, i32) {
    %c0_i32 = arith.constant 0 : i32
    %c0_i32_0 = arith.constant 0 : i32
    %c0_i32_1 = arith.constant 0 : i32
    %c0_i32_2 = arith.constant 0 : i32
    return %arg0, %c0_i32, %c0_i32_0, %c0_i32_1 : i32, i32, i32, i32
  }
  func.func @transform_1(%arg0: i32, %arg1: i32) -> (i32, i32) {
    %c0_i32 = arith.constant 0 : i32
    %c0_i32_0 = arith.constant 0 : i32
    %c0_i32_1 = arith.constant 0 : i32
    return %c0_i32, %c0_i32_0 : i32, i32
  }
  func.func @transform_2(%arg0: i32, %arg1: i32) -> (i32, i32) {
    %c0_i32 = arith.constant 0 : i32
    %c0_i32_0 = arith.constant 0 : i32
    %c0_i32_1 = arith.constant 0 : i32
    return %c0_i32, %c0_i32_0 : i32, i32
  }
  func.func @transform_3(%arg0: i32, %arg1: i32) -> (i32, i32, i32, i32) {
    %c0_i32 = arith.constant 0 : i32
    %c0_i32_0 = arith.constant 0 : i32
    %c0_i32_1 = arith.constant 0 : i32
    return %arg0, %arg1, %c0_i32, %c0_i32_0 : i32, i32, i32, i32
  }
}

module attributes {stable_mosaic.version = 11 : i64} {
  func.func @_conv3x3_kernel(%arg0: i32, %arg1: i32, %arg2: memref<1x16x64x16xbf16, #tpu.memory_space<vmem>>, %arg3: memref<64x576xbf16, #tpu.memory_space<vmem>>, %arg4: memref<64x3xf32, #tpu.memory_space<vmem>>, %arg5: memref<1x7x64x7xbf16, #tpu.memory_space<vmem>>) attributes {dimension_semantics = [#tpu.dimension_semantics<parallel>, #tpu.dimension_semantics<parallel>], iteration_bounds = array<i64: 2, 1>, scalar_prefetch = 0 : i64, scratch_operands = 0 : i64, tpu.core_type = #tpu.core_type<tc>, window_params = [{transform_indices = @transform_0, window_bounds = array<i64: 1, 16, 64, 16>}, {pipeline_mode = #tpu.pipeline_mode<synchronous>, transform_indices = @transform_1, window_bounds = array<i64: 64, 576>}, {pipeline_mode = #tpu.pipeline_mode<synchronous>, transform_indices = @transform_2, window_bounds = array<i64: 64, 3>}, {transform_indices = @transform_3, window_bounds = array<i64: 1, 7, 64, 7>}]} {
    %c7_i32 = arith.constant 7 : i32
    %0 = arith.muli %arg1, %c7_i32 : i32
    %c0 = arith.constant 0 : index
    %c0_0 = arith.constant 0 : index
    %1 = vector.load %arg4[%c0, %c0_0] : memref<64x3xf32, #tpu.memory_space<vmem>>, vector<64x1xf32>
    %c0_1 = arith.constant 0 : index
    %c1 = arith.constant 1 : index
    %2 = vector.load %arg4[%c0_1, %c1] : memref<64x3xf32, #tpu.memory_space<vmem>>, vector<64x1xf32>
    %c0_2 = arith.constant 0 : index
    %c2 = arith.constant 2 : index
    %3 = vector.load %arg4[%c0_2, %c2] : memref<64x3xf32, #tpu.memory_space<vmem>>, vector<64x1xf32>
    %c0_3 = arith.constant 0 : index
    %c0_4 = arith.constant 0 : index
    %4 = vector.load %arg3[%c0_3, %c0_4] : memref<64x576xbf16, #tpu.memory_space<vmem>>, vector<64x576xbf16>
    %c0_i32 = arith.constant 0 : i32
    %c7_i32_5 = arith.constant 7 : i32
    %5 = arith.addi %c0_i32, %c7_i32_5 : i32
    %c1_i32 = arith.constant 1 : i32
    scf.for %arg6 = %c0_i32 to %5 step %c1_i32  : i32 {
      %c1_i32_7 = arith.constant 1 : i32
      %6 = arith.muli %arg6, %c1_i32_7 : i32
      %c0_i32_8 = arith.constant 0 : i32
      %7 = arith.addi %c0_i32_8, %6 : i32
      %8 = arith.addi %0, %7 : i32
      %c0_i32_9 = arith.constant 0 : i32
      %9 = arith.addi %c0_i32_9, %8 : i32
      %c0_i32_10 = arith.constant 0 : i32
      %10 = arith.addi %9, %c0_i32_10 : i32
      %c0_11 = arith.constant 0 : index
      %11 = arith.index_cast %10 : i32 to index
      %c0_12 = arith.constant 0 : index
      %c0_13 = arith.constant 0 : index
      %12 = vector.load %arg2[%c0_11, %11, %c0_12, %c0_13] : memref<1x16x64x16xbf16, #tpu.memory_space<vmem>>, vector<1x1x64x7xbf16>
      %13 = vector.shape_cast %12 : vector<1x1x64x7xbf16> to vector<64x7xbf16>
      %c0_i32_14 = arith.constant 0 : i32
      %14 = arith.addi %c0_i32_14, %8 : i32
      %c0_i32_15 = arith.constant 0 : i32
      %15 = arith.addi %14, %c0_i32_15 : i32
      %c0_16 = arith.constant 0 : index
      %16 = arith.index_cast %15 : i32 to index
      %c0_17 = arith.constant 0 : index
      %c8 = arith.constant 8 : index
      %17 = vector.load %arg2[%c0_16, %16, %c0_17, %c8] : memref<1x16x64x16xbf16, #tpu.memory_space<vmem>>, vector<1x1x64x7xbf16>
      %18 = vector.shape_cast %17 : vector<1x1x64x7xbf16> to vector<64x7xbf16>
      %c0_i32_18 = arith.constant 0 : i32
      %19 = arith.addi %c0_i32_18, %8 : i32
      %c0_i32_19 = arith.constant 0 : i32
      %20 = arith.addi %19, %c0_i32_19 : i32
      %c0_20 = arith.constant 0 : index
      %21 = arith.index_cast %20 : i32 to index
      %c0_21 = arith.constant 0 : index
      %c1_22 = arith.constant 1 : index
      %22 = vector.load %arg2[%c0_20, %21, %c0_21, %c1_22] : memref<1x16x64x16xbf16, #tpu.memory_space<vmem>>, vector<1x1x64x7xbf16>
      %23 = vector.shape_cast %22 : vector<1x1x64x7xbf16> to vector<64x7xbf16>
      %c8_i32 = arith.constant 8 : i32
      %24 = arith.addi %c8_i32, %8 : i32
      %c0_i32_23 = arith.constant 0 : i32
      %25 = arith.addi %24, %c0_i32_23 : i32
      %c0_24 = arith.constant 0 : index
      %26 = arith.index_cast %25 : i32 to index
      %c0_25 = arith.constant 0 : index
      %c0_26 = arith.constant 0 : index
      %27 = vector.load %arg2[%c0_24, %26, %c0_25, %c0_26] : memref<1x16x64x16xbf16, #tpu.memory_space<vmem>>, vector<1x1x64x7xbf16>
      %28 = vector.shape_cast %27 : vector<1x1x64x7xbf16> to vector<64x7xbf16>
      %c8_i32_27 = arith.constant 8 : i32
      %29 = arith.addi %c8_i32_27, %8 : i32
      %c0_i32_28 = arith.constant 0 : i32
      %30 = arith.addi %29, %c0_i32_28 : i32
      %c0_29 = arith.constant 0 : index
      %31 = arith.index_cast %30 : i32 to index
      %c0_30 = arith.constant 0 : index
      %c8_31 = arith.constant 8 : index
      %32 = vector.load %arg2[%c0_29, %31, %c0_30, %c8_31] : memref<1x16x64x16xbf16, #tpu.memory_space<vmem>>, vector<1x1x64x7xbf16>
      %33 = vector.shape_cast %32 : vector<1x1x64x7xbf16> to vector<64x7xbf16>
      %c8_i32_32 = arith.constant 8 : i32
      %34 = arith.addi %c8_i32_32, %8 : i32
      %c0_i32_33 = arith.constant 0 : i32
      %35 = arith.addi %34, %c0_i32_33 : i32
      %c0_34 = arith.constant 0 : index
      %36 = arith.index_cast %35 : i32 to index
      %c0_35 = arith.constant 0 : index
      %c1_36 = arith.constant 1 : index
      %37 = vector.load %arg2[%c0_34, %36, %c0_35, %c1_36] : memref<1x16x64x16xbf16, #tpu.memory_space<vmem>>, vector<1x1x64x7xbf16>
      %38 = vector.shape_cast %37 : vector<1x1x64x7xbf16> to vector<64x7xbf16>
      %c0_i32_37 = arith.constant 0 : i32
      %39 = arith.addi %c0_i32_37, %8 : i32
      %c1_i32_38 = arith.constant 1 : i32
      %40 = arith.addi %39, %c1_i32_38 : i32
      %c0_39 = arith.constant 0 : index
      %41 = arith.index_cast %40 : i32 to index
      %c0_40 = arith.constant 0 : index
      %c0_41 = arith.constant 0 : index
      %42 = vector.load %arg2[%c0_39, %41, %c0_40, %c0_41] : memref<1x16x64x16xbf16, #tpu.memory_space<vmem>>, vector<1x1x64x7xbf16>
      %43 = vector.shape_cast %42 : vector<1x1x64x7xbf16> to vector<64x7xbf16>
      %c0_i32_42 = arith.constant 0 : i32
      %44 = arith.addi %c0_i32_42, %8 : i32
      %c1_i32_43 = arith.constant 1 : i32
      %45 = arith.addi %44, %c1_i32_43 : i32
      %c0_44 = arith.constant 0 : index
      %46 = arith.index_cast %45 : i32 to index
      %c0_45 = arith.constant 0 : index
      %c8_46 = arith.constant 8 : index
      %47 = vector.load %arg2[%c0_44, %46, %c0_45, %c8_46] : memref<1x16x64x16xbf16, #tpu.memory_space<vmem>>, vector<1x1x64x7xbf16>
      %48 = vector.shape_cast %47 : vector<1x1x64x7xbf16> to vector<64x7xbf16>
      %c0_i32_47 = arith.constant 0 : i32
      %49 = arith.addi %c0_i32_47, %8 : i32
      %c1_i32_48 = arith.constant 1 : i32
      %50 = arith.addi %49, %c1_i32_48 : i32
      %c0_49 = arith.constant 0 : index
      %51 = arith.index_cast %50 : i32 to index
      %c0_50 = arith.constant 0 : index
      %c1_51 = arith.constant 1 : index
      %52 = vector.load %arg2[%c0_49, %51, %c0_50, %c1_51] : memref<1x16x64x16xbf16, #tpu.memory_space<vmem>>, vector<1x1x64x7xbf16>
      %53 = vector.shape_cast %52 : vector<1x1x64x7xbf16> to vector<64x7xbf16>
      %54 = tpu.concatenate %13, %18, %23, %28, %33, %38, %43, %48, %53 in 0 : vector<64x7xbf16>, vector<64x7xbf16>, vector<64x7xbf16>, vector<64x7xbf16>, vector<64x7xbf16>, vector<64x7xbf16>, vector<64x7xbf16>, vector<64x7xbf16>, vector<64x7xbf16> -> vector<576x7xbf16>
      %cst = arith.constant dense<0.000000e+00> : vector<64x7xf32>
      %55 = tpu.matmul %4, %54, %cst {dimension_numbers = #tpu.dot_dimension_numbers<[1], [0], [0], [1], [0, 0, 1, 1], [], []>} : vector<64x576xbf16>, vector<576x7xbf16>, vector<64x7xf32> -> vector<64x7xf32>
      %56 = vector.broadcast %1 : vector<64x1xf32> to vector<64x7xf32>
      %57 = arith.mulf %55, %56 : vector<64x7xf32>
      %58 = vector.broadcast %2 : vector<64x1xf32> to vector<64x7xf32>
      %59 = arith.addf %57, %58 : vector<64x7xf32>
      %cst_52 = arith.constant 0.000000e+00 : f32
      %60 = vector.broadcast %cst_52 : f32 to vector<64x7xf32>
      %61 = arith.cmpf ogt, %59, %60 : vector<64x7xf32>
      %62 = vector.broadcast %3 : vector<64x1xf32> to vector<64x7xf32>
      %63 = arith.mulf %62, %59 : vector<64x7xf32>
      %64 = arith.select %61, %59, %63 : vector<64x7xi1>, vector<64x7xf32>
      %65 = arith.truncf %64 : vector<64x7xf32> to vector<64x7xbf16>
      %c0_53 = arith.constant 0 : index
      %66 = arith.index_cast %7 : i32 to index
      %c0_54 = arith.constant 0 : index
      %c0_55 = arith.constant 0 : index
      %67 = vector.load %arg5[%c0_53, %66, %c0_54, %c0_55] : memref<1x7x64x7xbf16, #tpu.memory_space<vmem>>, vector<1x1x64x7xbf16>
      %68 = vector.shape_cast %67 : vector<1x1x64x7xbf16> to vector<64x7xbf16>
      %69 = vector.shape_cast %65 : vector<64x7xbf16> to vector<1x1x64x7xbf16>
      tpu.vector_store %arg5[%c0_53, %66, %c0_54, %c0_55], %69 {strides = array<i32>} : memref<1x7x64x7xbf16, #tpu.memory_space<vmem>>, vector<1x1x64x7xbf16>,
    }
    %c7_i32_6 = arith.constant 7 : i32
    return
  }
  func.func @transform_0(%arg0: i32, %arg1: i32) -> (i32, i32, i32, i32) {
    %c0_i32 = arith.constant 0 : i32
    %c0_i32_0 = arith.constant 0 : i32
    %c0_i32_1 = arith.constant 0 : i32
    %c0_i32_2 = arith.constant 0 : i32
    return %arg0, %c0_i32, %c0_i32_0, %c0_i32_1 : i32, i32, i32, i32
  }
  func.func @transform_1(%arg0: i32, %arg1: i32) -> (i32, i32) {
    %c0_i32 = arith.constant 0 : i32
    %c0_i32_0 = arith.constant 0 : i32
    %c0_i32_1 = arith.constant 0 : i32
    return %c0_i32, %c0_i32_0 : i32, i32
  }
  func.func @transform_2(%arg0: i32, %arg1: i32) -> (i32, i32) {
    %c0_i32 = arith.constant 0 : i32
    %c0_i32_0 = arith.constant 0 : i32
    %c0_i32_1 = arith.constant 0 : i32
    return %c0_i32, %c0_i32_0 : i32, i32
  }
  func.func @transform_3(%arg0: i32, %arg1: i32) -> (i32, i32, i32, i32) {
    %c0_i32 = arith.constant 0 : i32
    %c0_i32_0 = arith.constant 0 : i32
    %c0_i32_1 = arith.constant 0 : i32
    return %arg0, %arg1, %c0_i32, %c0_i32_0 : i32, i32, i32, i32
  }
}

</mosaic_0001>

<llo_original>
// kernel: id_loss_forward.9
$region0: #{id_loss_forward.9}
  #allocation0 [shape = 'u32[]', space=smem, size = 0x4, offset = 0x4, fixed_abs, tag = 'smem constant byte address 0x4 - core index']
  #allocation1 [shape = 'u32[144,128]{1,0:T(1,128)}', space=vmem, size = 0x12000, scoped, tag = 'internal scratch']
  %s0 = inlined_call_operand.vmem [shape: bf16[2,114,3,114], index: 0, kind: input, shape index: {}]
  %s1 = inlined_call_operand.vmem [shape: bf16[9,16,3], index: 1, kind: input, shape index: {}]
  %s2 = inlined_call_operand.vmem [shape: f32[16,3], index: 2, kind: input, shape index: {}]
  %s3 = inlined_call_operand.vmem [shape: bf16[2,112,16,112], index: 3, kind: output, shape index: {}]
  %s4 = sld [smem:[#allocation0]]
  $region52: #{id_loss_forward.9} parent=0
    _
  %s6 = ssub.s32 1, %s4
  %s7 = scalar_select 0, %s6, %s4
  loop: start=0, step=1, limit=10
  $region2: #{id_loss_forward.9} parent=0 // loop_pre_header
    _
  $region3: #{id_loss_forward.9} parent=0 // loop_header
    %s9 = sphi 0, %s13
    %p10 = scmp.ge.s32.totalorder %s9, 10
    %s16 = sphi 0, %s28
    %s17 = sphi 0, %s24
    %s18 = sphi 0, %s16
    %s19 = sphi 0, %s17
    %s20 = sphi 0, %s18
    %s21 = sphi 0, %s19
    %s31 = sphi 0, %s33
    %s34 = sphi 0, %s31
    %s35 = sphi 0, %s34
    %s51 = sphi 0, %s35
    %s55 = sphi 0, %s55
    %s57 = sphi 0, %s55
    %s58 = sphi 0, %s57
    %s72 = sphi 0, %s58
    %s76 = sphi 0, %s76
    %s78 = sphi 0, %s76
    %s79 = sphi 0, %s78
    %s93 = sphi 0, %s79
    %s101 = sphi 0, %s103
    %s104 = sphi 0, %s101
    %s105 = sphi 0, %s104
    %s121 = sphi 0, %s105
  $region4: #{id_loss_forward.9} parent=0 // loop_header_branch
    %12 = sbr.rel (%p10) target = $region8
  $region5: #{id_loss_forward.9} parent=0 // loop_body
    %s14 = ssub.s32 %s9, 1
    %s15 = ssub.s32 %s9, 2
    %s22 = sadd.s32 1, %s17
    %p23 = scmp.ge.s32.totalorder %s22, 4
    %s24 = scalar_select %p23, 0, %s22
    %s25 = sadd.s32 1, %s16
    %s26 = scalar_select %p23, %s25, %s16
    %p27 = scmp.ge.s32.totalorder %s26, 2
    %s28 = scalar_select %p27, 0, %s26
    %s29 = ssub.s32 %s16, %s28
    %p30 = scmp.eq.s32.totalorder %s29, 0
    %s32 = sadd.s32 %s31, 1
    %s33 = scalar_select %p30, %s31, %s32
    %p36 = pneg %p30
    %p37 = scmp.eq.s32.totalorder %s9, 7
    %p38 = por %p36, %p37
    %p39 = scmp.ne.s32.totalorder %s31, %s34
    %p40 = scmp.eq.s32.totalorder %s9, 0
    %p41 = por %p39, %p40
    %p42 = scmp.ne.s32.totalorder %s31, %s34
    %p43 = scmp.eq.s32.totalorder %s14, 7
    %p44 = por %p42, %p43
    %p45 = scmp.ne.s32.totalorder %s34, %s35
    %p46 = scmp.eq.s32.totalorder %s14, 0
    %p47 = por %p45, %p46
    %p48 = scmp.ne.s32.totalorder %s34, %s35
    %p49 = scmp.eq.s32.totalorder %s15, 7
    %p50 = por %p48, %p49
    %p52 = scmp.ne.s32.totalorder %s35, %s51
    %p53 = scmp.eq.s32.totalorder %s15, 0
    %p54 = por %p52, %p53
    %s56 = sadd.s32 %s55, 1
    %p59 = scmp.eq.s32.totalorder %s9, 7
    %p60 = scmp.ne.s32.totalorder %s55, %s57
    %p61 = scmp.eq.s32.totalorder %s9, 0
    %p62 = por %p60, %p61
    %p63 = scmp.ne.s32.totalorder %s55, %s57
    %p64 = scmp.eq.s32.totalorder %s14, 7
    %p65 = por %p63, %p64
    %p66 = scmp.ne.s32.totalorder %s57, %s58
    %p67 = scmp.eq.s32.totalorder %s14, 0
    %p68 = por %p66, %p67
    %p69 = scmp.ne.s32.totalorder %s57, %s58
    %p70 = scmp.eq.s32.totalorder %s15, 7
    %p71 = por %p69, %p70
    %p73 = scmp.ne.s32.totalorder %s58, %s72
    %p74 = scmp.eq.s32.totalorder %s15, 0
    %p75 = por %p73, %p74
    %s77 = sadd.s32 %s76, 1
    %p80 = scmp.eq.s32.totalorder %s9, 7
    %p81 = scmp.ne.s32.totalorder %s76, %s78
    %p82 = scmp.eq.s32.totalorder %s9, 0
    %p83 = por %p81, %p82
    %p84 = scmp.ne.s32.totalorder %s76, %s78
    %p85 = scmp.eq.s32.totalorder %s14, 7
    %p86 = por %p84, %p85
    %p87 = scmp.ne.s32.totalorder %s78, %s79
    %p88 = scmp.eq.s32.totalorder %s14, 0
    %p89 = por %p87, %p88
    %p90 = scmp.ne.s32.totalorder %s78, %s79
    %p91 = scmp.eq.s32.totalorder %s15, 7
    %p92 = por %p90, %p91
    %p94 = scmp.ne.s32.totalorder %s79, %s93
    %p95 = scmp.eq.s32.totalorder %s15, 0
    %p96 = por %p94, %p95
    %s97 = ssub.s32 %s16, %s28
    %s98 = ssub.s32 %s17, %s24
    %s99 = sor.u32 %s97, %s98
    %p100 = scmp.eq.s32.totalorder %s99, 0
    %s102 = sadd.s32 %s101, 1
    %s103 = scalar_select %p100, %s101, %s102
    %p106 = pneg %p100
    %p107 = scmp.eq.s32.totalorder %s9, 7
    %p108 = por %p106, %p107
    %p109 = scmp.ne.s32.totalorder %s101, %s104
    %p110 = scmp.eq.s32.totalorder %s9, 0
    %p111 = por %p109, %p110
    %p112 = scmp.ne.s32.totalorder %s101, %s104
    %p113 = scmp.eq.s32.totalorder %s14, 7
    %p114 = por %p112, %p113
    %p115 = scmp.ne.s32.totalorder %s104, %s105
    %p116 = scmp.eq.s32.totalorder %s14, 0
    %p117 = por %p115, %p116
    %p118 = scmp.ne.s32.totalorder %s104, %s105
    %p119 = scmp.eq.s32.totalorder %s15, 7
    %p120 = por %p118, %p119
    %p122 = scmp.ne.s32.totalorder %s105, %s121
    %p123 = scmp.eq.s32.totalorder %s15, 0
    %p124 = por %p122, %p123
    %p125 = scmp.le.s32.totalorder 1, %s9
    %p126 = scmp.lt.s32.totalorder %s9, 9
    %p127 = pnand %p125, %p126
    %p128 = pneg %p127
    // Predicated region
    $region9: #{id_loss_forward.9} parent=5 // pred_check
      _
    $region10: #{id_loss_forward.9} parent=5 // pred_check_branch
      %130 = sbr.rel (%p127) target = $region12
    $region11: #{id_loss_forward.9} parent=5 // pred_region
      %s131 = ssub.s32 %s9, 1
      // Predicated region
      $region13: #{id_loss_forward.9} parent=11 // pred_check
        %p132 = pneg %p68
      $region14: #{id_loss_forward.9} parent=11 // pred_check_branch
        %134 = sbr.rel (%p132) target = $region16
      $region15: #{id_loss_forward.9} parent=11 // pred_region
        _
      $region16: #{id_loss_forward.9} parent=11 // pred_fallthru
        _
      // Predicated region
      $region17: #{id_loss_forward.9} parent=11 // pred_check
        %p135 = pneg %p89
      $region18: #{id_loss_forward.9} parent=11 // pred_check_branch
        %137 = sbr.rel (%p135) target = $region20
      $region19: #{id_loss_forward.9} parent=11 // pred_region
        _
      $region20: #{id_loss_forward.9} parent=11 // pred_fallthru
        _
    $region12: #{id_loss_forward.9} parent=5 // pred_fallthru
      _
    %p138 = scmp.lt.s32.totalorder %s9, 8
    // Predicated region
    $region21: #{id_loss_forward.9} parent=5 // pred_check
      %p139 = pneg %p138
    $region22: #{id_loss_forward.9} parent=5 // pred_check_branch
      %141 = sbr.rel (%p139) target = $region24
    $region23: #{id_loss_forward.9} parent=5 // pred_region
      // Predicated region
      $region25: #{id_loss_forward.9} parent=23 // pred_check
        %p142 = pneg %p41
      $region26: #{id_loss_forward.9} parent=23 // pred_check_branch
        %144 = sbr.rel (%p142) target = $region28
      $region27: #{id_loss_forward.9} parent=23 // pred_region
        %p145 = scmp.lt.s32.totalorder %s16, 1
        %s146 = scalar_select %p145, %s16, 1
        %s147 = smul.addr %s146, 114
        %s148 = smul.addr %s147, 2
        %s149 = scalar_lea.vmem %s0, %s148
      $region28: #{id_loss_forward.9} parent=23 // pred_fallthru
        _
    $region24: #{id_loss_forward.9} parent=5 // pred_fallthru
      _
    %p150 = scmp.le.s32.totalorder 1, %s9
    %p151 = scmp.lt.s32.totalorder %s9, 9
    %p152 = pnand %p150, %p151
    %p153 = pneg %p152
    // Predicated region
    $region29: #{id_loss_forward.9} parent=5 // pred_check
      _
    $region30: #{id_loss_forward.9} parent=5 // pred_check_branch
      %155 = sbr.rel (%p152) target = $region32
    $region31: #{id_loss_forward.9} parent=5 // pred_region
      %s156 = ssub.s32 %s9, 1
      %p157 = scmp.lt.s32.totalorder %s18, 1
      %s158 = scalar_select %p157, %s18, 1
      %s159 = smul.addr %s158, 114
      %s160 = smul.addr %s159, 2
      %s161 = scalar_lea.vmem %s0, %s160
      %p162 = pneg %p47
      %p163 = pneg %p44
      %p164 = pneg %p68
      %p165 = pneg %p65
      %p166 = pneg %p89
      %p167 = pneg %p86
      %p168 = pneg %p117
      %p169 = pneg %p114
      %s170 = smul.u32 28, %s19
      %p171 = scmp.lt.s32.totalorder %s18, 1
      %s172 = scalar_select %p171, %s18, 1
      %p173 = scmp.lt.s32.totalorder %s170, 111
      %s174 = scalar_select %p173, %s170, 111
      %s175 = smul.addr %s174, 2
      %s176 = smul.addr %s172, 224
      %s177 = sadd.s32 %s175, %s176
      %s178 = smul.addr %s177, 4
      %s179 = scalar_lea.vmem %s3, %s178
      %p180 = scmp.lt.s32.totalorder %s18, 1
      %s181 = scalar_select %p180, %s18, 1
      %s182 = smul.addr %s181, 114
      %s183 = smul.addr %s182, 2
      %s184 = scalar_lea.vmem %s0, %s183
      %s185 = smul.u32 28, %s19
      %p186 = scmp.lt.s32.totalorder %s18, 1
      %s187 = scalar_select %p186, %s18, 1
      %p188 = scmp.lt.s32.totalorder %s185, 111
      %s189 = scalar_select %p188, %s185, 111
      %s190 = smul.addr %s189, 2
      %s191 = smul.addr %s187, 224
      %s192 = sadd.s32 %s190, %s191
      %s193 = smul.addr %s192, 4
      %s194 = scalar_lea.vmem %s3, %s193
      %s195 = smul.u32 28, %s19
      %s197 = smul.u32 %s19, 28
      %v198 = vld [vmem:[%s2] sm:$0xff]
      %v199 = vld [vmem:[%s2 + $0x8] sm:$0xff]
      %v200 = vld [vmem:[%s1] sm:$0xf]
      %v201 = vld [vmem:[%s1 + $0x4] sm:$0xf]
      %s202 = scalar_lea.vmem %s1, 8
      %v203 = vld [vmem:[%s202] sm:$0xf]
      %v204 = vld [vmem:[%s202 + $0x4] sm:$0xf]
      %s205 = scalar_lea.vmem %s1, 16
      %v206 = vld [vmem:[%s205] sm:$0xf]
      %v207 = vld [vmem:[%s205 + $0x4] sm:$0xf]
      %s208 = scalar_lea.vmem %s1, 24
      %v209 = vld [vmem:[%s208] sm:$0xf]
      %v210 = vld [vmem:[%s208 + $0x4] sm:$0xf]
      %s211 = scalar_lea.vmem %s1, 32
      %v212 = vld [vmem:[%s211] sm:$0xf]
      %v213 = vld [vmem:[%s211 + $0x4] sm:$0xf]
      %s214 = scalar_lea.vmem %s1, 40
      %v215 = vld [vmem:[%s214] sm:$0xf]
      %v216 = vld [vmem:[%s214 + $0x4] sm:$0xf]
      %s217 = scalar_lea.vmem %s1, 48
      %v218 = vld [vmem:[%s217] sm:$0xf]
      %v219 = vld [vmem:[%s217 + $0x4] sm:$0xf]
      %s220 = scalar_lea.vmem %s1, 56
      %v221 = vld [vmem:[%s220] sm:$0xf]
      %v222 = vld [vmem:[%s220 + $0x4] sm:$0xf]
      %s223 = scalar_lea.vmem %s1, 64
      %v224 = vld [vmem:[%s223] sm:$0xf]
      %v225 = vld [vmem:[%s223 + $0x4] sm:$0xf]
      loop: start=0, step=1, limit=28
      $region33: #{id_loss_forward.9} parent=31 // loop_pre_header
        _
      $region34: #{id_loss_forward.9} parent=31 // loop_header
        %s227 = sphi 0, %s231
        %p228 = scmp.ge.s32.totalorder %s227, 28
      $region35: #{id_loss_forward.9} parent=31 // loop_header_branch
        %230 = sbr.rel (%p228) target = $region39
      $region36: #{id_loss_forward.9} parent=31 // loop_body
        %s232 = sadd.s32 %s197, %s227
        %s233 = smul.addr %s232, 2
        %s234 = scalar_lea.vmem %s184, %s233
        %v235 = vld [vmem:[%s234] sm:$0x3]
        %v238 = vunpack.c.l.b16 %v203
        %v239 = vunpack.c.l.b16 %v204
        %v240 = vpack.c.b16 %v239, %v238
        %v243 = vunpack.c.l.s4 1983009808
        %v244 = vunpack.c.0.s8 %v243
        %v245 = vlaneseq
        %v246 = vshrl.u32 %v245, 7
        %v247 = vsub.s32 %v244, %v246
        %v248 = vrot.slane %v235, %v247
        %249 = vrot.lane.b32.xlu0 %v248, 127
        %v250 = vpop.permute.xlu0 %249
        %vm251 = vcmask 23552
        %v253 = vsel %vm251, %v240, 0
        %vm255 = vcmask 1040384
        %vm256 = vcmask 1041408
        %v257 = vsel %vm255, 4294967295, 65535
        %v258 = vsel %vm256, %v257, 0
        %v260 = vand.u32 %v250, %v258
        %262 = vmatprep.subr.bf16.mxu0 0
        %263 = vmatpush1.bf16.msra.mxu0 %v260
        %264 = vmatprep.subr.bf16.mxu0 0
        %265 = vmatpush1.bf16.msra.mxu0 0
        %266 = vmatprep.subr.bf16.mxu0 0
        %267 = vmatpush1.bf16.msra.mxu0 0
        %268 = vmatprep.subr.bf16.mxu0 0
        %269 = vmatpush1.bf16.msra.mxu0 0
        %270 = vmatprep.subr.bf16.mxu0 0
        %271 = vmatpush1.bf16.msra.mxu0 0
        %272 = vmatprep.subr.bf16.mxu0 0
        %273 = vmatpush1.bf16.msra.mxu0 0
        %274 = vmatprep.subr.bf16.mxu0 0
        %275 = vmatpush1.bf16.msra.mxu0 0
        %276 = vmatprep.subr.bf16.mxu0 0
        %277 = vmatpush1.bf16.msra.mxu0 0
        %278 = vmatprep.subr.bf16.mxu0 0
        %279 = vmatpush1.bf16.msra.mxu0 0
        %280 = vmatprep.subr.bf16.mxu0 0
        %281 = vmatpush1.bf16.msra.mxu0 0
        %282 = vmatprep.subr.bf16.mxu0 0
        %283 = vmatpush1.bf16.msra.mxu0 0
        %284 = vmatprep.subr.bf16.mxu0 0
        %285 = vmatpush1.bf16.msra.mxu0 0
        %286 = vmatprep.subr.bf16.mxu0 0
        %287 = vmatpush1.bf16.msra.mxu0 0
        %288 = vmatprep.subr.bf16.mxu0 0
        %289 = vmatpush1.bf16.msra.mxu0 0
        %290 = vmatprep.subr.bf16.mxu0 0
        %291 = vmatpush1.bf16.msra.mxu0 0
        %292 = vmatprep.subr.bf16.mxu0 0
        %293 = vmatpush1.bf16.msra.mxu0 0
        %294 = vmatprep.mubr.bf16.mxu0 0
        %295 = vmatmul.mubr.bf16.gmra.mrb[0].mxu0 %v253
        %v296 = vpop.f32.mrb[0].mxu0
        %v297 = vadd.f32 0.0, %v296
        %v298 = vpop.f32.mrb[0].mxu0
        %v299 = vpop.f32.mrb[0].mxu0
        %v300 = vadd.f32 0.0, %v299
        %v301 = vpop.f32.mrb[0].mxu0
        %302 = vdwg.mxu0
        %v305 = vunpack.c.l.b16 %v200
        %v306 = vunpack.c.l.b16 %v201
        %v307 = vpack.c.b16 %v306, %v305
        %v309 = vsel %vm251, %v307, 0
        %v312 = vand.u32 %v235, %v258
        %314 = vmatprep.subr.bf16.mxu0 0
        %315 = vmatpush1.bf16.msra.mxu0 %v312
        %316 = vmatprep.subr.bf16.mxu0 0
        %317 = vmatpush1.bf16.msra.mxu0 0
        %318 = vmatprep.subr.bf16.mxu0 0
        %319 = vmatpush1.bf16.msra.mxu0 0
        %320 = vmatprep.subr.bf16.mxu0 0
        %321 = vmatpush1.bf16.msra.mxu0 0
        %322 = vmatprep.subr.bf16.mxu0 0
        %323 = vmatpush1.bf16.msra.mxu0 0
        %324 = vmatprep.subr.bf16.mxu0 0
        %325 = vmatpush1.bf16.msra.mxu0 0
        %326 = vmatprep.subr.bf16.mxu0 0
        %327 = vmatpush1.bf16.msra.mxu0 0
        %328 = vmatprep.subr.bf16.mxu0 0
        %329 = vmatpush1.bf16.msra.mxu0 0
        %330 = vmatprep.subr.bf16.mxu0 0
        %331 = vmatpush1.bf16.msra.mxu0 0
        %332 = vmatprep.subr.bf16.mxu0 0
        %333 = vmatpush1.bf16.msra.mxu0 0
        %334 = vmatprep.subr.bf16.mxu0 0
        %335 = vmatpush1.bf16.msra.mxu0 0
        %336 = vmatprep.subr.bf16.mxu0 0
        %337 = vmatpush1.bf16.msra.mxu0 0
        %338 = vmatprep.subr.bf16.mxu0 0
        %339 = vmatpush1.bf16.msra.mxu0 0
        %340 = vmatprep.subr.bf16.mxu0 0
        %341 = vmatpush1.bf16.msra.mxu0 0
        %342 = vmatprep.subr.bf16.mxu0 0
        %343 = vmatpush1.bf16.msra.mxu0 0
        %344 = vmatprep.subr.bf16.mxu0 0
        %345 = vmatpush1.bf16.msra.mxu0 0
        %346 = vmatprep.mubr.bf16.mxu0 0
        %347 = vmatmul.mubr.bf16.gmra.mrb[0].mxu0 %v309
        %v348 = vpop.f32.mrb[0].mxu0
        %v349 = vadd.f32 %v297, %v348
        %v350 = vpop.f32.mrb[0].mxu0
        %v351 = vpop.f32.mrb[0].mxu0
        %v352 = vadd.f32 %v300, %v351
        %v353 = vpop.f32.mrb[0].mxu0
        %354 = vdwg.mxu0
        %v355 = vld [vmem:[%s234] sm:$0x3]
        %v358 = vunpack.c.l.b16 %v206
        %v359 = vunpack.c.l.b16 %v207
        %v360 = vpack.c.b16 %v359, %v358
        %v363 = vunpack.c.l.s4 1983009808
        %v364 = vunpack.c.0.s8 %v363
        %v365 = vlaneseq
        %v366 = vshrl.u32 %v365, 7
        %v367 = vsub.s32 %v364, %v366
        %v368 = vrot.slane %v355, %v367
        %369 = vrot.lane.b32.xlu0 %v368, 126
        %v370 = vpop.permute.xlu0 %369
        %v372 = vsel %vm251, %v360, 0
        %v375 = vand.u32 %v370, %v258
        %377 = vmatprep.subr.bf16.mxu0 0
        %378 = vmatpush1.bf16.msra.mxu0 %v375
        %379 = vmatprep.subr.bf16.mxu0 0
        %380 = vmatpush1.bf16.msra.mxu0 0
        %381 = vmatprep.subr.bf16.mxu0 0
        %382 = vmatpush1.bf16.msra.mxu0 0
        %383 = vmatprep.subr.bf16.mxu0 0
        %384 = vmatpush1.bf16.msra.mxu0 0
        %385 = vmatprep.subr.bf16.mxu0 0
        %386 = vmatpush1.bf16.msra.mxu0 0
        %387 = vmatprep.subr.bf16.mxu0 0
        %388 = vmatpush1.bf16.msra.mxu0 0
        %389 = vmatprep.subr.bf16.mxu0 0
        %390 = vmatpush1.bf16.msra.mxu0 0
        %391 = vmatprep.subr.bf16.mxu0 0
        %392 = vmatpush1.bf16.msra.mxu0 0
        %393 = vmatprep.subr.bf16.mxu0 0
        %394 = vmatpush1.bf16.msra.mxu0 0
        %395 = vmatprep.subr.bf16.mxu0 0
        %396 = vmatpush1.bf16.msra.mxu0 0
        %397 = vmatprep.subr.bf16.mxu0 0
        %398 = vmatpush1.bf16.msra.mxu0 0
        %399 = vmatprep.subr.bf16.mxu0 0
        %400 = vmatpush1.bf16.msra.mxu0 0
        %401 = vmatprep.subr.bf16.mxu0 0
        %402 = vmatpush1.bf16.msra.mxu0 0
        %403 = vmatprep.subr.bf16.mxu0 0
        %404 = vmatpush1.bf16.msra.mxu0 0
        %405 = vmatprep.subr.bf16.mxu0 0
        %406 = vmatpush1.bf16.msra.mxu0 0
        %407 = vmatprep.subr.bf16.mxu0 0
        %408 = vmatpush1.bf16.msra.mxu0 0
        %409 = vmatprep.mubr.bf16.mxu0 0
        %410 = vmatmul.mubr.bf16.gmra.mrb[0].mxu0 %v372
        %v411 = vpop.f32.mrb[0].mxu0
        %v412 = vadd.f32 0.0, %v411
        %v413 = vpop.f32.mrb[0].mxu0
        %v414 = vpop.f32.mrb[0].mxu0
        %v415 = vadd.f32 0.0, %v414
        %v416 = vpop.f32.mrb[0].mxu0
        %417 = vdwg.mxu0
        %v418 = vadd.f32 %v349, %v412
        %v419 = vadd.f32 %v352, %v415
        %s420 = sadd.s32 %s232, 1
        %s421 = smul.addr %s420, 2
        %s422 = scalar_lea.vmem %s184, %s421
        %v423 = vld [vmem:[%s422] sm:$0x3]
        %v426 = vunpack.c.l.b16 %v209
        %v427 = vunpack.c.l.b16 %v210
        %v428 = vpack.c.b16 %v427, %v426
        %v430 = vsel %vm251, %v428, 0
        %v433 = vand.u32 %v423, %v258
        %435 = vmatprep.subr.bf16.mxu0 0
        %436 = vmatpush1.bf16.msra.mxu0 %v433
        %437 = vmatprep.subr.bf16.mxu0 0
        %438 = vmatpush1.bf16.msra.mxu0 0
        %439 = vmatprep.subr.bf16.mxu0 0
        %440 = vmatpush1.bf16.msra.mxu0 0
        %441 = vmatprep.subr.bf16.mxu0 0
        %442 = vmatpush1.bf16.msra.mxu0 0
        %443 = vmatprep.subr.bf16.mxu0 0
        %444 = vmatpush1.bf16.msra.mxu0 0
        %445 = vmatprep.subr.bf16.mxu0 0
        %446 = vmatpush1.bf16.msra.mxu0 0
        %447 = vmatprep.subr.bf16.mxu0 0
        %448 = vmatpush1.bf16.msra.mxu0 0
        %449 = vmatprep.subr.bf16.mxu0 0
        %450 = vmatpush1.bf16.msra.mxu0 0
        %451 = vmatprep.subr.bf16.mxu0 0
        %452 = vmatpush1.bf16.msra.mxu0 0
        %453 = vmatprep.subr.bf16.mxu0 0
        %454 = vmatpush1.bf16.msra.mxu0 0
        %455 = vmatprep.subr.bf16.mxu0 0
        %456 = vmatpush1.bf16.msra.mxu0 0
        %457 = vmatprep.subr.bf16.mxu0 0
        %458 = vmatpush1.bf16.msra.mxu0 0
        %459 = vmatprep.subr.bf16.mxu0 0
        %460 = vmatpush1.bf16.msra.mxu0 0
        %461 = vmatprep.subr.bf16.mxu0 0
        %462 = vmatpush1.bf16.msra.mxu0 0
        %463 = vmatprep.subr.bf16.mxu0 0
        %464 = vmatpush1.bf16.msra.mxu0 0
        %465 = vmatprep.subr.bf16.mxu0 0
        %466 = vmatpush1.bf16.msra.mxu0 0
        %467 = vmatprep.mubr.bf16.mxu0 0
        %468 = vmatmul.mubr.bf16.gmra.mrb[0].mxu0 %v430
        %v469 = vpop.f32.mrb[0].mxu0
        %v470 = vadd.f32 0.0, %v469
        %v471 = vpop.f32.mrb[0].mxu0
        %v472 = vpop.f32.mrb[0].mxu0
        %v473 = vadd.f32 0.0, %v472
        %v474 = vpop.f32.mrb[0].mxu0
        %475 = vdwg.mxu0
        %v476 = vadd.f32 %v418, %v470
        %v477 = vadd.f32 %v419, %v473
        %v480 = vunpack.c.l.b16 %v212
        %v481 = vunpack.c.l.b16 %v213
        %v482 = vpack.c.b16 %v481, %v480
        %v485 = vunpack.c.l.s4 1983009808
        %v486 = vunpack.c.0.s8 %v485
        %v487 = vlaneseq
        %v488 = vshrl.u32 %v487, 7
        %v489 = vsub.s32 %v486, %v488
        %v490 = vrot.slane %v423, %v489
        %491 = vrot.lane.b32.xlu0 %v490, 127
        %v492 = vpop.permute.xlu0 %491
        %v494 = vsel %vm251, %v482, 0
        %v497 = vand.u32 %v492, %v258
        %499 = vmatprep.subr.bf16.mxu0 0
        %500 = vmatpush1.bf16.msra.mxu0 %v497
        %501 = vmatprep.subr.bf16.mxu0 0
        %502 = vmatpush1.bf16.msra.mxu0 0
        %503 = vmatprep.subr.bf16.mxu0 0
        %504 = vmatpush1.bf16.msra.mxu0 0
        %505 = vmatprep.subr.bf16.mxu0 0
        %506 = vmatpush1.bf16.msra.mxu0 0
        %507 = vmatprep.subr.bf16.mxu0 0
        %508 = vmatpush1.bf16.msra.mxu0 0
        %509 = vmatprep.subr.bf16.mxu0 0
        %510 = vmatpush1.bf16.msra.mxu0 0
        %511 = vmatprep.subr.bf16.mxu0 0
        %512 = vmatpush1.bf16.msra.mxu0 0
        %513 = vmatprep.subr.bf16.mxu0 0
        %514 = vmatpush1.bf16.msra.mxu0 0
        %515 = vmatprep.subr.bf16.mxu0 0
        %516 = vmatpush1.bf16.msra.mxu0 0
        %517 = vmatprep.subr.bf16.mxu0 0
        %518 = vmatpush1.bf16.msra.mxu0 0
        %519 = vmatprep.subr.bf16.mxu0 0
        %520 = vmatpush1.bf16.msra.mxu0 0
        %521 = vmatprep.subr.bf16.mxu0 0
        %522 = vmatpush1.bf16.msra.mxu0 0
        %523 = vmatprep.subr.bf16.mxu0 0
        %524 = vmatpush1.bf16.msra.mxu0 0
        %525 = vmatprep.subr.bf16.mxu0 0
        %526 = vmatpush1.bf16.msra.mxu0 0
        %527 = vmatprep.subr.bf16.mxu0 0
        %528 = vmatpush1.bf16.msra.mxu0 0
        %529 = vmatprep.subr.bf16.mxu0 0
        %530 = vmatpush1.bf16.msra.mxu0 0
        %531 = vmatprep.mubr.bf16.mxu0 0
        %532 = vmatmul.mubr.bf16.gmra.mrb[0].mxu0 %v494
        %v533 = vpop.f32.mrb[0].mxu0
        %v534 = vadd.f32 0.0, %v533
        %v535 = vpop.f32.mrb[0].mxu0
        %v536 = vpop.f32.mrb[0].mxu0
        %v537 = vadd.f32 0.0, %v536
        %v538 = vpop.f32.mrb[0].mxu0
        %539 = vdwg.mxu0
        %v540 = vadd.f32 %v476, %v534
        %v541 = vadd.f32 %v477, %v537
        %v542 = vld [vmem:[%s422] sm:$0x3]
        %v545 = vunpack.c.l.b16 %v215
        %v546 = vunpack.c.l.b16 %v216
        %v547 = vpack.c.b16 %v546, %v545
        %v550 = vunpack.c.l.s4 1983009808
        %v551 = vunpack.c.0.s8 %v550
        %v552 = vlaneseq
        %v553 = vshrl.u32 %v552, 7
        %v554 = vsub.s32 %v551, %v553
        %v555 = vrot.slane %v542, %v554
        %556 = vrot.lane.b32.xlu0 %v555, 126
        %v557 = vpop.permute.xlu0 %556
        %v559 = vsel %vm251, %v547, 0
        %v562 = vand.u32 %v557, %v258
        %564 = vmatprep.subr.bf16.mxu0 0
        %565 = vmatpush1.bf16.msra.mxu0 %v562
        %566 = vmatprep.subr.bf16.mxu0 0
        %567 = vmatpush1.bf16.msra.mxu0 0
        %568 = vmatprep.subr.bf16.mxu0 0
        %569 = vmatpush1.bf16.msra.mxu0 0
        %570 = vmatprep.subr.bf16.mxu0 0
        %571 = vmatpush1.bf16.msra.mxu0 0
        %572 = vmatprep.subr.bf16.mxu0 0
        %573 = vmatpush1.bf16.msra.mxu0 0
        %574 = vmatprep.subr.bf16.mxu0 0
        %575 = vmatpush1.bf16.msra.mxu0 0
        %576 = vmatprep.subr.bf16.mxu0 0
        %577 = vmatpush1.bf16.msra.mxu0 0
        %578 = vmatprep.subr.bf16.mxu0 0
        %579 = vmatpush1.bf16.msra.mxu0 0
        %580 = vmatprep.subr.bf16.mxu0 0
        %581 = vmatpush1.bf16.msra.mxu0 0
        %582 = vmatprep.subr.bf16.mxu0 0
        %583 = vmatpush1.bf16.msra.mxu0 0
        %584 = vmatprep.subr.bf16.mxu0 0
        %585 = vmatpush1.bf16.msra.mxu0 0
        %586 = vmatprep.subr.bf16.mxu0 0
        %587 = vmatpush1.bf16.msra.mxu0 0
        %588 = vmatprep.subr.bf16.mxu0 0
        %589 = vmatpush1.bf16.msra.mxu0 0
        %590 = vmatprep.subr.bf16.mxu0 0
        %591 = vmatpush1.bf16.msra.mxu0 0
        %592 = vmatprep.subr.bf16.mxu0 0
        %593 = vmatpush1.bf16.msra.mxu0 0
        %594 = vmatprep.subr.bf16.mxu0 0
        %595 = vmatpush1.bf16.msra.mxu0 0
        %596 = vmatprep.mubr.bf16.mxu0 0
        %597 = vmatmul.mubr.bf16.gmra.mrb[0].mxu0 %v559
        %v598 = vpop.f32.mrb[0].mxu0
        %v599 = vadd.f32 0.0, %v598
        %v600 = vpop.f32.mrb[0].mxu0
        %v601 = vpop.f32.mrb[0].mxu0
        %v602 = vadd.f32 0.0, %v601
        %v603 = vpop.f32.mrb[0].mxu0
        %604 = vdwg.mxu0
        %v605 = vadd.f32 %v540, %v599
        %v606 = vadd.f32 %v541, %v602
        %s607 = sadd.s32 %s232, 2
        %s608 = smul.addr %s607, 2
        %s609 = scalar_lea.vmem %s184, %s608
        %v610 = vld [vmem:[%s609] sm:$0x3]
        %v613 = vunpack.c.l.b16 %v218
        %v614 = vunpack.c.l.b16 %v219
        %v615 = vpack.c.b16 %v614, %v613
        %v617 = vsel %vm251, %v615, 0
        %v620 = vand.u32 %v610, %v258
        %622 = vmatprep.subr.bf16.mxu0 0
        %623 = vmatpush1.bf16.msra.mxu0 %v620
        %624 = vmatprep.subr.bf16.mxu0 0
        %625 = vmatpush1.bf16.msra.mxu0 0
        %626 = vmatprep.subr.bf16.mxu0 0
        %627 = vmatpush1.bf16.msra.mxu0 0
        %628 = vmatprep.subr.bf16.mxu0 0
        %629 = vmatpush1.bf16.msra.mxu0 0
        %630 = vmatprep.subr.bf16.mxu0 0
        %631 = vmatpush1.bf16.msra.mxu0 0
        %632 = vmatprep.subr.bf16.mxu0 0
        %633 = vmatpush1.bf16.msra.mxu0 0
        %634 = vmatprep.subr.bf16.mxu0 0
        %635 = vmatpush1.bf16.msra.mxu0 0
        %636 = vmatprep.subr.bf16.mxu0 0
        %637 = vmatpush1.bf16.msra.mxu0 0
        %638 = vmatprep.subr.bf16.mxu0 0
        %639 = vmatpush1.bf16.msra.mxu0 0
        %640 = vmatprep.subr.bf16.mxu0 0
        %641 = vmatpush1.bf16.msra.mxu0 0
        %642 = vmatprep.subr.bf16.mxu0 0
        %643 = vmatpush1.bf16.msra.mxu0 0
        %644 = vmatprep.subr.bf16.mxu0 0
        %645 = vmatpush1.bf16.msra.mxu0 0
        %646 = vmatprep.subr.bf16.mxu0 0
        %647 = vmatpush1.bf16.msra.mxu0 0
        %648 = vmatprep.subr.bf16.mxu0 0
        %649 = vmatpush1.bf16.msra.mxu0 0
        %650 = vmatprep.subr.bf16.mxu0 0
        %651 = vmatpush1.bf16.msra.mxu0 0
        %652 = vmatprep.subr.bf16.mxu0 0
        %653 = vmatpush1.bf16.msra.mxu0 0
        %654 = vmatprep.mubr.bf16.mxu0 0
        %655 = vmatmul.mubr.bf16.gmra.mrb[0].mxu0 %v617
        %v656 = vpop.f32.mrb[0].mxu0
        %v657 = vadd.f32 0.0, %v656
        %v658 = vpop.f32.mrb[0].mxu0
        %v659 = vpop.f32.mrb[0].mxu0
        %v660 = vadd.f32 0.0, %v659
        %v661 = vpop.f32.mrb[0].mxu0
        %662 = vdwg.mxu0
        %v663 = vadd.f32 %v605, %v657
        %v664 = vadd.f32 %v606, %v660
        %v667 = vunpack.c.l.b16 %v221
        %v668 = vunpack.c.l.b16 %v222
        %v669 = vpack.c.b16 %v668, %v667
        %v672 = vunpack.c.l.s4 1983009808
        %v673 = vunpack.c.0.s8 %v672
        %v674 = vlaneseq
        %v675 = vshrl.u32 %v674, 7
        %v676 = vsub.s32 %v673, %v675
        %v677 = vrot.slane %v610, %v676
        %678 = vrot.lane.b32.xlu0 %v677, 127
        %v679 = vpop.permute.xlu0 %678
        %v681 = vsel %vm251, %v669, 0
        %v684 = vand.u32 %v679, %v258
        %686 = vmatprep.subr.bf16.mxu0 0
        %687 = vmatpush1.bf16.msra.mxu0 %v684
        %688 = vmatprep.subr.bf16.mxu0 0
        %689 = vmatpush1.bf16.msra.mxu0 0
        %690 = vmatprep.subr.bf16.mxu0 0
        %691 = vmatpush1.bf16.msra.mxu0 0
        %692 = vmatprep.subr.bf16.mxu0 0
        %693 = vmatpush1.bf16.msra.mxu0 0
        %694 = vmatprep.subr.bf16.mxu0 0
        %695 = vmatpush1.bf16.msra.mxu0 0
        %696 = vmatprep.subr.bf16.mxu0 0
        %697 = vmatpush1.bf16.msra.mxu0 0
        %698 = vmatprep.subr.bf16.mxu0 0
        %699 = vmatpush1.bf16.msra.mxu0 0
        %700 = vmatprep.subr.bf16.mxu0 0
        %701 = vmatpush1.bf16.msra.mxu0 0
        %702 = vmatprep.subr.bf16.mxu0 0
        %703 = vmatpush1.bf16.msra.mxu0 0
        %704 = vmatprep.subr.bf16.mxu0 0
        %705 = vmatpush1.bf16.msra.mxu0 0
        %706 = vmatprep.subr.bf16.mxu0 0
        %707 = vmatpush1.bf16.msra.mxu0 0
        %708 = vmatprep.subr.bf16.mxu0 0
        %709 = vmatpush1.bf16.msra.mxu0 0
        %710 = vmatprep.subr.bf16.mxu0 0
        %711 = vmatpush1.bf16.msra.mxu0 0
        %712 = vmatprep.subr.bf16.mxu0 0
        %713 = vmatpush1.bf16.msra.mxu0 0
        %714 = vmatprep.subr.bf16.mxu0 0
        %715 = vmatpush1.bf16.msra.mxu0 0
        %716 = vmatprep.subr.bf16.mxu0 0
        %717 = vmatpush1.bf16.msra.mxu0 0
        %718 = vmatprep.mubr.bf16.mxu0 0
        %719 = vmatmul.mubr.bf16.gmra.mrb[0].mxu0 %v681
        %v720 = vpop.f32.mrb[0].mxu0
        %v721 = vadd.f32 0.0, %v720
        %v722 = vpop.f32.mrb[0].mxu0
        %v723 = vpop.f32.mrb[0].mxu0
        %v724 = vadd.f32 0.0, %v723
        %v725 = vpop.f32.mrb[0].mxu0
        %726 = vdwg.mxu0
        %v727 = vadd.f32 %v663, %v721
        %v728 = vadd.f32 %v664, %v724
        %v729 = vld [vmem:[%s609] sm:$0x3]
        %v732 = vunpack.c.l.b16 %v224
        %v733 = vunpack.c.l.b16 %v225
        %v734 = vpack.c.b16 %v733, %v732
        %v737 = vunpack.c.l.s4 1983009808
        %v738 = vunpack.c.0.s8 %v737
        %v739 = vlaneseq
        %v740 = vshrl.u32 %v739, 7
        %v741 = vsub.s32 %v738, %v740
        %v742 = vrot.slane %v729, %v741
        %743 = vrot.lane.b32.xlu0 %v742, 126
        %v744 = vpop.permute.xlu0 %743
        %v746 = vsel %vm251, %v734, 0
        %v749 = vand.u32 %v744, %v258
        %751 = vmatprep.subr.bf16.mxu0 0
        %752 = vmatpush1.bf16.msra.mxu0 %v749
        %753 = vmatprep.subr.bf16.mxu0 0
        %754 = vmatpush1.bf16.msra.mxu0 0
        %755 = vmatprep.subr.bf16.mxu0 0
        %756 = vmatpush1.bf16.msra.mxu0 0
        %757 = vmatprep.subr.bf16.mxu0 0
        %758 = vmatpush1.bf16.msra.mxu0 0
        %759 = vmatprep.subr.bf16.mxu0 0
        %760 = vmatpush1.bf16.msra.mxu0 0
        %761 = vmatprep.subr.bf16.mxu0 0
        %762 = vmatpush1.bf16.msra.mxu0 0
        %763 = vmatprep.subr.bf16.mxu0 0
        %764 = vmatpush1.bf16.msra.mxu0 0
        %765 = vmatprep.subr.bf16.mxu0 0
        %766 = vmatpush1.bf16.msra.mxu0 0
        %767 = vmatprep.subr.bf16.mxu0 0
        %768 = vmatpush1.bf16.msra.mxu0 0
        %769 = vmatprep.subr.bf16.mxu0 0
        %770 = vmatpush1.bf16.msra.mxu0 0
        %771 = vmatprep.subr.bf16.mxu0 0
        %772 = vmatpush1.bf16.msra.mxu0 0
        %773 = vmatprep.subr.bf16.mxu0 0
        %774 = vmatpush1.bf16.msra.mxu0 0
        %775 = vmatprep.subr.bf16.mxu0 0
        %776 = vmatpush1.bf16.msra.mxu0 0
        %777 = vmatprep.subr.bf16.mxu0 0
        %778 = vmatpush1.bf16.msra.mxu0 0
        %779 = vmatprep.subr.bf16.mxu0 0
        %780 = vmatpush1.bf16.msra.mxu0 0
        %781 = vmatprep.subr.bf16.mxu0 0
        %782 = vmatpush1.bf16.msra.mxu0 0
        %783 = vmatprep.mubr.bf16.mxu0 0
        %784 = vmatmul.mubr.bf16.gmra.mrb[0].mxu0 %v746
        %v785 = vpop.f32.mrb[0].mxu0
        %v786 = vadd.f32 0.0, %v785
        %v787 = vpop.f32.mrb[0].mxu0
        %v788 = vpop.f32.mrb[0].mxu0
        %v789 = vadd.f32 0.0, %v788
        %v790 = vpop.f32.mrb[0].mxu0
        %791 = vdwg.mxu0
        %v792 = vadd.f32 %v727, %v786
        %v793 = vadd.f32 %v728, %v789
        %795 = vset.pattern.permute.xlu0 0
        %796 = vperm.xlu0 %795, %v198
        %v797 = vpop.permute.xlu0 %796
        %800 = vset.pattern.permute.xlu0 0
        %801 = vperm.xlu0 %800, %v199
        %v802 = vpop.permute.xlu0 %801
        %v804 = vmul.f32 %v792, %v797
        %v805 = vmul.f32 %v793, %v802
        %806 = vset.pattern.permute.xlu0 1
        %807 = vperm.xlu0 %806, %v198
        %v808 = vpop.permute.xlu0 %807
        %810 = vset.pattern.permute.xlu0 1
        %811 = vperm.xlu0 %810, %v199
        %v812 = vpop.permute.xlu0 %811
        %v814 = vadd.f32 %v804, %v808
        %v815 = vadd.f32 %v805, %v812
        %vm816 = vcmp.gt.f32.partialorder %v814, 0.0
        %vm817 = vcmp.gt.f32.partialorder %v815, 0.0
        %818 = vset.pattern.permute.xlu0 2
        %819 = vperm.xlu0 %818, %v198
        %v820 = vpop.permute.xlu0 %819
        %822 = vset.pattern.permute.xlu0 2
        %823 = vperm.xlu0 %822, %v199
        %v824 = vpop.permute.xlu0 %823
        %v826 = vmul.f32 %v820, %v814
        %v827 = vmul.f32 %v824, %v815
        %v828 = vsel %vm816, %v814, %v826
        %v829 = vsel %vm817, %v815, %v827
        %v830 = vpack.c.bf16 %v829, %v828
        %v832 = vunpack.c.l.b16 %v830
        %v833 = vunpack.c.h.b16 %v830
        %v834 = vpack.c.b16 %v832, %v832
        %v835 = vpack.c.b16 %v833, %v833
        %s838 = smul.u32 %s227, 2
        %s839 = smul.addr %s838, 4
        %s840 = scalar_lea.vmem %s194, %s839
        %vm841 = vcmask 912384
        %842 = vst.msk [vmem:[%s840] sm:$0xf] %vm841, %v834
        %843 = vst.msk [vmem:[%s840 + $0x4] sm:$0xf] %vm841, %v835
      $region37: #{id_loss_forward.9} parent=31 // loop_footer
        %s231 = sadd.s32 1, %s227
      $region38: #{id_loss_forward.9} parent=31 // loop_footer_branch
        %226 = sbr.rel target = $region34
      $region39: #{id_loss_forward.9} parent=31 // loop_exit
        _
      %s844 = smul.u32 28, %s19
      %p845 = scmp.lt.s32.totalorder %s18, 1
      %s846 = scalar_select %p845, %s18, 1
      %p847 = scmp.lt.s32.totalorder %s844, 111
      %s848 = scalar_select %p847, %s844, 111
      %s849 = smul.addr %s848, 2
      %s850 = smul.addr %s846, 224
      %s851 = sadd.s32 %s849, %s850
      %s852 = smul.addr %s851, 4
      %s853 = scalar_lea.vmem %s3, %s852
      // Predicated region
      $region40: #{id_loss_forward.9} parent=31 // pred_check
        %p854 = pneg %p114
      $region41: #{id_loss_forward.9} parent=31 // pred_check_branch
        %856 = sbr.rel (%p854) target = $region43
      $region42: #{id_loss_forward.9} parent=31 // pred_region
        %s857 = smul.u32 28, %s19
      $region43: #{id_loss_forward.9} parent=31 // pred_fallthru
        _
    $region32: #{id_loss_forward.9} parent=5 // pred_fallthru
      _
    %p858 = scmp.le.s32.totalorder 2, %s9
    // Predicated region
    $region44: #{id_loss_forward.9} parent=5 // pred_check
      %p859 = pneg %p858
    $region45: #{id_loss_forward.9} parent=5 // pred_check_branch
      %861 = sbr.rel (%p859) target = $region47
    $region46: #{id_loss_forward.9} parent=5 // pred_region
      %s862 = ssub.s32 %s9, 2
      // Predicated region
      $region48: #{id_loss_forward.9} parent=46 // pred_check
        %p863 = pneg %p120
      $region49: #{id_loss_forward.9} parent=46 // pred_check_branch
        %865 = sbr.rel (%p863) target = $region51
      $region50: #{id_loss_forward.9} parent=46 // pred_region
        %s866 = smul.u32 28, %s21
        %p867 = scmp.lt.s32.totalorder %s20, 1
        %s868 = scalar_select %p867, %s20, 1
        %p869 = scmp.lt.s32.totalorder %s866, 111
        %s870 = scalar_select %p869, %s866, 111
        %s871 = smul.addr %s870, 2
        %s872 = smul.addr %s868, 224
        %s873 = sadd.s32 %s871, %s872
        %s874 = smul.addr %s873, 4
        %s875 = scalar_lea.vmem %s3, %s874
      $region51: #{id_loss_forward.9} parent=46 // pred_fallthru
        _
    $region47: #{id_loss_forward.9} parent=5 // pred_fallthru
      _
  $region6: #{id_loss_forward.9} parent=0 // loop_footer
    %s13 = sadd.s32 1, %s9
  $region7: #{id_loss_forward.9} parent=0 // loop_footer_branch
    %8 = sbr.rel target = $region3
  $region8: #{id_loss_forward.9} parent=0 // loop_exit
    _

// kernel: id_loss_forward.10
$region0: #{id_loss_forward.10}
  #allocation0 [shape = 'u32[]', space=smem, size = 0x4, offset = 0x4, fixed_abs, tag = 'smem constant byte address 0x4 - core index']
  #allocation1 [shape = 'u32[144,128]{1,0:T(1,128)}', space=vmem, size = 0x12000, scoped, tag = 'internal scratch']
  %s0 = inlined_call_operand.vmem [shape: bf16[2,114,16,114], index: 0, kind: input, shape index: {}]
  %s1 = inlined_call_operand.vmem [shape: bf16[16,144], index: 1, kind: input, shape index: {}]
  %s2 = inlined_call_operand.vmem [shape: f32[16,3], index: 2, kind: input, shape index: {}]
  %s3 = inlined_call_operand.vmem [shape: bf16[2,112,16,112], index: 3, kind: output, shape index: {}]
  %s4 = sld [smem:[#allocation0]]
  $region52: #{id_loss_forward.10} parent=0
    _
  %s6 = ssub.s32 1, %s4
  %s7 = scalar_select 0, %s6, %s4
  loop: start=0, step=1, limit=10
  $region2: #{id_loss_forward.10} parent=0 // loop_pre_header
    _
  $region3: #{id_loss_forward.10} parent=0 // loop_header
    %s9 = sphi 0, %s13
    %p10 = scmp.ge.s32.totalorder %s9, 10
    %s16 = sphi 0, %s28
    %s17 = sphi 0, %s24
    %s18 = sphi 0, %s16
    %s19 = sphi 0, %s17
    %s20 = sphi 0, %s18
    %s21 = sphi 0, %s19
    %s31 = sphi 0, %s33
    %s34 = sphi 0, %s31
    %s35 = sphi 0, %s34
    %s51 = sphi 0, %s35
    %s55 = sphi 0, %s55
    %s57 = sphi 0, %s55
    %s58 = sphi 0, %s57
    %s72 = sphi 0, %s58
    %s76 = sphi 0, %s76
    %s78 = sphi 0, %s76
    %s79 = sphi 0, %s78
    %s93 = sphi 0, %s79
    %s101 = sphi 0, %s103
    %s104 = sphi 0, %s101
    %s105 = sphi 0, %s104
    %s121 = sphi 0, %s105
  $region4: #{id_loss_forward.10} parent=0 // loop_header_branch
    %12 = sbr.rel (%p10) target = $region8
  $region5: #{id_loss_forward.10} parent=0 // loop_body
    %s14 = ssub.s32 %s9, 1
    %s15 = ssub.s32 %s9, 2
    %s22 = sadd.s32 1, %s17
    %p23 = scmp.ge.s32.totalorder %s22, 4
    %s24 = scalar_select %p23, 0, %s22
    %s25 = sadd.s32 1, %s16
    %s26 = scalar_select %p23, %s25, %s16
    %p27 = scmp.ge.s32.totalorder %s26, 2
    %s28 = scalar_select %p27, 0, %s26
    %s29 = ssub.s32 %s16, %s28
    %p30 = scmp.eq.s32.totalorder %s29, 0
    %s32 = sadd.s32 %s31, 1
    %s33 = scalar_select %p30, %s31, %s32
    %p36 = pneg %p30
    %p37 = scmp.eq.s32.totalorder %s9, 7
    %p38 = por %p36, %p37
    %p39 = scmp.ne.s32.totalorder %s31, %s34
    %p40 = scmp.eq.s32.totalorder %s9, 0
    %p41 = por %p39, %p40
    %p42 = scmp.ne.s32.totalorder %s31, %s34
    %p43 = scmp.eq.s32.totalorder %s14, 7
    %p44 = por %p42, %p43
    %p45 = scmp.ne.s32.totalorder %s34, %s35
    %p46 = scmp.eq.s32.totalorder %s14, 0
    %p47 = por %p45, %p46
    %p48 = scmp.ne.s32.totalorder %s34, %s35
    %p49 = scmp.eq.s32.totalorder %s15, 7
    %p50 = por %p48, %p49
    %p52 = scmp.ne.s32.totalorder %s35, %s51
    %p53 = scmp.eq.s32.totalorder %s15, 0
    %p54 = por %p52, %p53
    %s56 = sadd.s32 %s55, 1
    %p59 = scmp.eq.s32.totalorder %s9, 7
    %p60 = scmp.ne.s32.totalorder %s55, %s57
    %p61 = scmp.eq.s32.totalorder %s9, 0
    %p62 = por %p60, %p61
    %p63 = scmp.ne.s32.totalorder %s55, %s57
    %p64 = scmp.eq.s32.totalorder %s14, 7
    %p65 = por %p63, %p64
    %p66 = scmp.ne.s32.totalorder %s57, %s58
    %p67 = scmp.eq.s32.totalorder %s14, 0
    %p68 = por %p66, %p67
    %p69 = scmp.ne.s32.totalorder %s57, %s58
    %p70 = scmp.eq.s32.totalorder %s15, 7
    %p71 = por %p69, %p70
    %p73 = scmp.ne.s32.totalorder %s58, %s72
    %p74 = scmp.eq.s32.totalorder %s15, 0
    %p75 = por %p73, %p74
    %s77 = sadd.s32 %s76, 1
    %p80 = scmp.eq.s32.totalorder %s9, 7
    %p81 = scmp.ne.s32.totalorder %s76, %s78
    %p82 = scmp.eq.s32.totalorder %s9, 0
    %p83 = por %p81, %p82
    %p84 = scmp.ne.s32.totalorder %s76, %s78
    %p85 = scmp.eq.s32.totalorder %s14, 7
    %p86 = por %p84, %p85
    %p87 = scmp.ne.s32.totalorder %s78, %s79
    %p88 = scmp.eq.s32.totalorder %s14, 0
    %p89 = por %p87, %p88
    %p90 = scmp.ne.s32.totalorder %s78, %s79
    %p91 = scmp.eq.s32.totalorder %s15, 7
    %p92 = por %p90, %p91
    %p94 = scmp.ne.s32.totalorder %s79, %s93
    %p95 = scmp.eq.s32.totalorder %s15, 0
    %p96 = por %p94, %p95
    %s97 = ssub.s32 %s16, %s28
    %s98 = ssub.s32 %s17, %s24
    %s99 = sor.u32 %s97, %s98
    %p100 = scmp.eq.s32.totalorder %s99, 0
    %s102 = sadd.s32 %s101, 1
    %s103 = scalar_select %p100, %s101, %s102
    %p106 = pneg %p100
    %p107 = scmp.eq.s32.totalorder %s9, 7
    %p108 = por %p106, %p107
    %p109 = scmp.ne.s32.totalorder %s101, %s104
    %p110 = scmp.eq.s32.totalorder %s9, 0
    %p111 = por %p109, %p110
    %p112 = scmp.ne.s32.totalorder %s101, %s104
    %p113 = scmp.eq.s32.totalorder %s14, 7
    %p114 = por %p112, %p113
    %p115 = scmp.ne.s32.totalorder %s104, %s105
    %p116 = scmp.eq.s32.totalorder %s14, 0
    %p117 = por %p115, %p116
    %p118 = scmp.ne.s32.totalorder %s104, %s105
    %p119 = scmp.eq.s32.totalorder %s15, 7
    %p120 = por %p118, %p119
    %p122 = scmp.ne.s32.totalorder %s105, %s121
    %p123 = scmp.eq.s32.totalorder %s15, 0
    %p124 = por %p122, %p123
    %p125 = scmp.le.s32.totalorder 1, %s9
    %p126 = scmp.lt.s32.totalorder %s9, 9
    %p127 = pnand %p125, %p126
    %p128 = pneg %p127
    // Predicated region
    $region9: #{id_loss_forward.10} parent=5 // pred_check
      _
    $region10: #{id_loss_forward.10} parent=5 // pred_check_branch
      %130 = sbr.rel (%p127) target = $region12
    $region11: #{id_loss_forward.10} parent=5 // pred_region
      %s131 = ssub.s32 %s9, 1
      // Predicated region
      $region13: #{id_loss_forward.10} parent=11 // pred_check
        %p132 = pneg %p68
      $region14: #{id_loss_forward.10} parent=11 // pred_check_branch
        %134 = sbr.rel (%p132) target = $region16
      $region15: #{id_loss_forward.10} parent=11 // pred_region
        _
      $region16: #{id_loss_forward.10} parent=11 // pred_fallthru
        _
      // Predicated region
      $region17: #{id_loss_forward.10} parent=11 // pred_check
        %p135 = pneg %p89
      $region18: #{id_loss_forward.10} parent=11 // pred_check_branch
        %137 = sbr.rel (%p135) target = $region20
      $region19: #{id_loss_forward.10} parent=11 // pred_region
        _
      $region20: #{id_loss_forward.10} parent=11 // pred_fallthru
        _
    $region12: #{id_loss_forward.10} parent=5 // pred_fallthru
      _
    %p138 = scmp.lt.s32.totalorder %s9, 8
    // Predicated region
    $region21: #{id_loss_forward.10} parent=5 // pred_check
      %p139 = pneg %p138
    $region22: #{id_loss_forward.10} parent=5 // pred_check_branch
      %141 = sbr.rel (%p139) target = $region24
    $region23: #{id_loss_forward.10} parent=5 // pred_region
      // Predicated region
      $region25: #{id_loss_forward.10} parent=23 // pred_check
        %p142 = pneg %p41
      $region26: #{id_loss_forward.10} parent=23 // pred_check_branch
        %144 = sbr.rel (%p142) target = $region28
      $region27: #{id_loss_forward.10} parent=23 // pred_region
        %p145 = scmp.lt.s32.totalorder %s16, 1
        %s146 = scalar_select %p145, %s16, 1
        %s147 = smul.addr %s146, 228
        %s148 = smul.addr %s147, 4
        %s149 = scalar_lea.vmem %s0, %s148
      $region28: #{id_loss_forward.10} parent=23 // pred_fallthru
        _
    $region24: #{id_loss_forward.10} parent=5 // pred_fallthru
      _
    %p150 = scmp.le.s32.totalorder 1, %s9
    %p151 = scmp.lt.s32.totalorder %s9, 9
    %p152 = pnand %p150, %p151
    %p153 = pneg %p152
    // Predicated region
    $region29: #{id_loss_forward.10} parent=5 // pred_check
      _
    $region30: #{id_loss_forward.10} parent=5 // pred_check_branch
      %155 = sbr.rel (%p152) target = $region32
    $region31: #{id_loss_forward.10} parent=5 // pred_region
      %s156 = ssub.s32 %s9, 1
      %p157 = scmp.lt.s32.totalorder %s18, 1
      %s158 = scalar_select %p157, %s18, 1
      %s159 = smul.addr %s158, 228
      %s160 = smul.addr %s159, 4
      %s161 = scalar_lea.vmem %s0, %s160
      %p162 = pneg %p47
      %p163 = pneg %p44
      %p164 = pneg %p68
      %p165 = pneg %p65
      %p166 = pneg %p89
      %p167 = pneg %p86
      %p168 = pneg %p117
      %p169 = pneg %p114
      %s170 = smul.u32 28, %s19
      %p171 = scmp.lt.s32.totalorder %s18, 1
      %s172 = scalar_select %p171, %s18, 1
      %p173 = scmp.lt.s32.totalorder %s170, 111
      %s174 = scalar_select %p173, %s170, 111
      %s175 = smul.addr %s174, 2
      %s176 = smul.addr %s172, 224
      %s177 = sadd.s32 %s175, %s176
      %s178 = smul.addr %s177, 4
      %s179 = scalar_lea.vmem %s3, %s178
      %p180 = scmp.lt.s32.totalorder %s18, 1
      %s181 = scalar_select %p180, %s18, 1
      %s182 = smul.addr %s181, 228
      %s183 = smul.addr %s182, 4
      %s184 = scalar_lea.vmem %s0, %s183
      %s185 = smul.u32 28, %s19
      %p186 = scmp.lt.s32.totalorder %s18, 1
      %s187 = scalar_select %p186, %s18, 1
      %p188 = scmp.lt.s32.totalorder %s185, 111
      %s189 = scalar_select %p188, %s185, 111
      %s190 = smul.addr %s189, 2
      %s191 = smul.addr %s187, 224
      %s192 = sadd.s32 %s190, %s191
      %s193 = smul.addr %s192, 4
      %s194 = scalar_lea.vmem %s3, %s193
      %s195 = smul.u32 28, %s19
      %s197 = smul.u32 %s19, 28
      %v198 = vld [vmem:[%s2] sm:$0xff]
      %v199 = vld [vmem:[%s2 + $0x8] sm:$0xff]
      %v200 = vld [vmem:[%s1] sm:$0xff]
      %v201 = vld [vmem:[%s1 + $0x8] sm:$0xff]
      loop: start=0, step=1, limit=28
      $region33: #{id_loss_forward.10} parent=31 // loop_pre_header
        _
      $region34: #{id_loss_forward.10} parent=31 // loop_header
        %s203 = sphi 0, %s207
        %p204 = scmp.ge.s32.totalorder %s203, 28
      $region35: #{id_loss_forward.10} parent=31 // loop_header_branch
        %206 = sbr.rel (%p204) target = $region39
      $region36: #{id_loss_forward.10} parent=31 // loop_body
        %s208 = sadd.s32 %s197, %s203
        %s209 = smul.u32 %s208, 2
        %s210 = smul.addr %s209, 4
        %s211 = scalar_lea.vmem %s184, %s210
        %v212 = vld [vmem:[%s211] sm:$0xf]
        %v213 = vld [vmem:[%s211 + $0x4] sm:$0xf]
        %s214 = sadd.s32 %s208, 1
        %s215 = smul.u32 %s214, 2
        %s216 = smul.addr %s215, 4
        %s217 = scalar_lea.vmem %s184, %s216
        %v218 = vld [vmem:[%s217] sm:$0xf]
        %v219 = vld [vmem:[%s217 + $0x4] sm:$0xf]
        %s220 = sadd.s32 %s208, 2
        %s221 = smul.u32 %s220, 2
        %s222 = smul.addr %s221, 4
        %s223 = scalar_lea.vmem %s184, %s222
        %v224 = vld [vmem:[%s223] sm:$0xf]
        %v225 = vld [vmem:[%s223 + $0x4] sm:$0xf]
        %v228 = vunpack.c.l.b16 %v212
        %v229 = vunpack.c.l.b16 %v213
        %v230 = vpack.c.b16 %v229, %v228
        %232 = vrot.lane.b32.xlu0 %v230, 127
        %v233 = vpop.permute.xlu0 %232
        %235 = vrot.lane.b32.xlu0 %v230, 126
        %v236 = vpop.permute.xlu0 %235
        %v240 = vunpack.c.l.b16 %v218
        %v241 = vunpack.c.l.b16 %v219
        %v242 = vpack.c.b16 %v241, %v240
        %244 = vrot.lane.b32.xlu0 %v242, 127
        %v245 = vpop.permute.xlu0 %244
        %247 = vrot.lane.b32.xlu0 %v242, 126
        %v248 = vpop.permute.xlu0 %247
        %v252 = vunpack.c.l.b16 %v224
        %v253 = vunpack.c.l.b16 %v225
        %v254 = vpack.c.b16 %v253, %v252
        %256 = vrot.lane.b32.xlu0 %v254, 127
        %v257 = vpop.permute.xlu0 %256
        %259 = vrot.lane.b32.xlu0 %v254, 126
        %v260 = vpop.permute.xlu0 %259
        %v264 = vunpack.c.l.b16 %v200
        %v265 = vunpack.c.h.b16 %v200
        %v266 = vunpack.c.l.b16 %v201
        %v267 = vunpack.c.h.b16 %v201
        %v268 = vpack.c.b16 %v266, %v264
        %v269 = vpack.c.b16 %v267, %v265
        %vm271 = vcmask 130048
        %v273 = vsel %vm271, %v269, 0
        %275 = vmatprep.subr.bf16.mxu0 0
        %276 = vmatpush1.bf16.msra.mxu0 %v230
        %277 = vmatprep.subr.bf16.mxu0 0
        %278 = vmatpush1.bf16.msra.mxu0 %v233
        %279 = vmatprep.subr.bf16.mxu0 0
        %280 = vmatpush1.bf16.msra.mxu0 %v236
        %281 = vmatprep.subr.bf16.mxu0 0
        %282 = vmatpush1.bf16.msra.mxu0 %v242
        %283 = vmatprep.subr.bf16.mxu0 0
        %284 = vmatpush1.bf16.msra.mxu0 %v245
        %285 = vmatprep.subr.bf16.mxu0 0
        %286 = vmatpush1.bf16.msra.mxu0 %v248
        %287 = vmatprep.subr.bf16.mxu0 0
        %288 = vmatpush1.bf16.msra.mxu0 %v254
        %289 = vmatprep.subr.bf16.mxu0 0
        %290 = vmatpush1.bf16.msra.mxu0 %v257
        %291 = vmatprep.subr.bf16.mxu0 0
        %292 = vmatpush1.bf16.msra.mxu0 %v260
        %293 = vmatprep.subr.bf16.mxu0 0
        %294 = vmatpush1.bf16.msra.mxu0 0
        %295 = vmatprep.subr.bf16.mxu0 0
        %296 = vmatpush1.bf16.msra.mxu0 0
        %297 = vmatprep.subr.bf16.mxu0 0
        %298 = vmatpush1.bf16.msra.mxu0 0
        %299 = vmatprep.subr.bf16.mxu0 0
        %300 = vmatpush1.bf16.msra.mxu0 0
        %301 = vmatprep.subr.bf16.mxu0 0
        %302 = vmatpush1.bf16.msra.mxu0 0
        %303 = vmatprep.subr.bf16.mxu0 0
        %304 = vmatpush1.bf16.msra.mxu0 0
        %305 = vmatprep.subr.bf16.mxu0 0
        %306 = vmatpush1.bf16.msra.mxu0 0
        %307 = vmatprep.mubr.bf16.mxu0 %v273
        %308 = vmatmul.mubr.bf16.gmra.mrb[0].mxu0 %v268
        %v309 = vpop.f32.mrb[0].mxu0
        %v310 = vadd.f32 0.0, %v309
        %v311 = vpop.f32.mrb[0].mxu0
        %v312 = vpop.f32.mrb[0].mxu0
        %v313 = vadd.f32 0.0, %v312
        %v314 = vpop.f32.mrb[0].mxu0
        %315 = vdwg.mxu0
        %317 = vset.pattern.permute.xlu0 0
        %318 = vperm.xlu0 %317, %v198
        %v319 = vpop.permute.xlu0 %318
        %322 = vset.pattern.permute.xlu0 0
        %323 = vperm.xlu0 %322, %v199
        %v324 = vpop.permute.xlu0 %323
        %v326 = vmul.f32 %v310, %v319
        %v327 = vmul.f32 %v313, %v324
        %328 = vset.pattern.permute.xlu0 1
        %329 = vperm.xlu0 %328, %v198
        %v330 = vpop.permute.xlu0 %329
        %332 = vset.pattern.permute.xlu0 1
        %333 = vperm.xlu0 %332, %v199
        %v334 = vpop.permute.xlu0 %333
        %v336 = vadd.f32 %v326, %v330
        %v337 = vadd.f32 %v327, %v334
        %vm338 = vcmp.gt.f32.partialorder %v336, 0.0
        %vm339 = vcmp.gt.f32.partialorder %v337, 0.0
        %340 = vset.pattern.permute.xlu0 2
        %341 = vperm.xlu0 %340, %v198
        %v342 = vpop.permute.xlu0 %341
        %344 = vset.pattern.permute.xlu0 2
        %345 = vperm.xlu0 %344, %v199
        %v346 = vpop.permute.xlu0 %345
        %v348 = vmul.f32 %v342, %v336
        %v349 = vmul.f32 %v346, %v337
        %v350 = vsel %vm338, %v336, %v348
        %v351 = vsel %vm339, %v337, %v349
        %v352 = vpack.c.bf16 %v351, %v350
        %v354 = vunpack.c.l.b16 %v352
        %v355 = vunpack.c.h.b16 %v352
        %v356 = vpack.c.b16 %v354, %v354
        %v357 = vpack.c.b16 %v355, %v355
        %s360 = smul.u32 %s203, 2
        %s361 = smul.addr %s360, 4
        %s362 = scalar_lea.vmem %s194, %s361
        %vm363 = vcmask 912384
        %364 = vst.msk [vmem:[%s362] sm:$0xf] %vm363, %v356
        %365 = vst.msk [vmem:[%s362 + $0x4] sm:$0xf] %vm363, %v357
      $region37: #{id_loss_forward.10} parent=31 // loop_footer
        %s207 = sadd.s32 1, %s203
      $region38: #{id_loss_forward.10} parent=31 // loop_footer_branch
        %202 = sbr.rel target = $region34
      $region39: #{id_loss_forward.10} parent=31 // loop_exit
        _
      %s366 = smul.u32 28, %s19
      %p367 = scmp.lt.s32.totalorder %s18, 1
      %s368 = scalar_select %p367, %s18, 1
      %p369 = scmp.lt.s32.totalorder %s366, 111
      %s370 = scalar_select %p369, %s366, 111
      %s371 = smul.addr %s370, 2
      %s372 = smul.addr %s368, 224
      %s373 = sadd.s32 %s371, %s372
      %s374 = smul.addr %s373, 4
      %s375 = scalar_lea.vmem %s3, %s374
      // Predicated region
      $region40: #{id_loss_forward.10} parent=31 // pred_check
        %p376 = pneg %p114
      $region41: #{id_loss_forward.10} parent=31 // pred_check_branch
        %378 = sbr.rel (%p376) target = $region43
      $region42: #{id_loss_forward.10} parent=31 // pred_region
        %s379 = smul.u32 28, %s19
      $region43: #{id_loss_forward.10} parent=31 // pred_fallthru
        _
    $region32: #{id_loss_forward.10} parent=5 // pred_fallthru
      _
    %p380 = scmp.le.s32.totalorder 2, %s9
    // Predicated region
    $region44: #{id_loss_forward.10} parent=5 // pred_check
      %p381 = pneg %p380
    $region45: #{id_loss_forward.10} parent=5 // pred_check_branch
      %383 = sbr.rel (%p381) target = $region47
    $region46: #{id_loss_forward.10} parent=5 // pred_region
      %s384 = ssub.s32 %s9, 2
      // Predicated region
      $region48: #{id_loss_forward.10} parent=46 // pred_check
        %p385 = pneg %p120
      $region49: #{id_loss_forward.10} parent=46 // pred_check_branch
        %387 = sbr.rel (%p385) target = $region51
      $region50: #{id_loss_forward.10} parent=46 // pred_region
        %s388 = smul.u32 28, %s21
        %p389 = scmp.lt.s32.totalorder %s20, 1
        %s390 = scalar_select %p389, %s20, 1
        %p391 = scmp.lt.s32.totalorder %s388, 111
        %s392 = scalar_select %p391, %s388, 111
        %s393 = smul.addr %s392, 2
        %s394 = smul.addr %s390, 224
        %s395 = sadd.s32 %s393, %s394
        %s396 = smul.addr %s395, 4
        %s397 = scalar_lea.vmem %s3, %s396
      $region51: #{id_loss_forward.10} parent=46 // pred_fallthru
        _
    $region47: #{id_loss_forward.10} parent=5 // pred_fallthru
      _
  $region6: #{id_loss_forward.10} parent=0 // loop_footer
    %s13 = sadd.s32 1, %s9
  $region7: #{id_loss_forward.10} parent=0 // loop_footer_branch
    %8 = sbr.rel target = $region3
  $region8: #{id_loss_forward.10} parent=0 // loop_exit
    _

// kernel: id_loss_forward.11
$region0: #{id_loss_forward.11}
  #allocation0 [shape = 'u32[]', space=smem, size = 0x4, offset = 0x4, fixed_abs, tag = 'smem constant byte address 0x4 - core index']
  #allocation1 [shape = 'u32[144,128]{1,0:T(1,128)}', space=vmem, size = 0x12000, scoped, tag = 'internal scratch']
  %s0 = inlined_call_operand.vmem [shape: bf16[2,114,16,114], index: 0, kind: input, shape index: {}]
  %s1 = inlined_call_operand.vmem [shape: bf16[16,144], index: 1, kind: input, shape index: {}]
  %s2 = inlined_call_operand.vmem [shape: f32[16,3], index: 2, kind: input, shape index: {}]
  %s3 = inlined_call_operand.vmem [shape: bf16[2,56,16,56], index: 3, kind: output, shape index: {}]
  %s4 = sld [smem:[#allocation0]]
  $region52: #{id_loss_forward.11} parent=0
    _
  %s6 = ssub.s32 1, %s4
  %s7 = scalar_select 0, %s6, %s4
  loop: start=0, step=1, limit=6
  $region2: #{id_loss_forward.11} parent=0 // loop_pre_header
    _
  $region3: #{id_loss_forward.11} parent=0 // loop_header
    %s9 = sphi 0, %s13
    %p10 = scmp.ge.s32.totalorder %s9, 6
    %s16 = sphi 0, %s28
    %s17 = sphi 0, %s24
    %s18 = sphi 0, %s16
    %s19 = sphi 0, %s17
    %s20 = sphi 0, %s18
    %s21 = sphi 0, %s19
    %s31 = sphi 0, %s33
    %s34 = sphi 0, %s31
    %s35 = sphi 0, %s34
    %s51 = sphi 0, %s35
    %s55 = sphi 0, %s55
    %s57 = sphi 0, %s55
    %s58 = sphi 0, %s57
    %s72 = sphi 0, %s58
    %s76 = sphi 0, %s76
    %s78 = sphi 0, %s76
    %s79 = sphi 0, %s78
    %s93 = sphi 0, %s79
    %s101 = sphi 0, %s103
    %s104 = sphi 0, %s101
    %s105 = sphi 0, %s104
    %s121 = sphi 0, %s105
  $region4: #{id_loss_forward.11} parent=0 // loop_header_branch
    %12 = sbr.rel (%p10) target = $region8
  $region5: #{id_loss_forward.11} parent=0 // loop_body
    %s14 = ssub.s32 %s9, 1
    %s15 = ssub.s32 %s9, 2
    %s22 = sadd.s32 1, %s17
    %p23 = scmp.ge.s32.totalorder %s22, 2
    %s24 = scalar_select %p23, 0, %s22
    %s25 = sadd.s32 1, %s16
    %s26 = scalar_select %p23, %s25, %s16
    %p27 = scmp.ge.s32.totalorder %s26, 2
    %s28 = scalar_select %p27, 0, %s26
    %s29 = ssub.s32 %s16, %s28
    %p30 = scmp.eq.s32.totalorder %s29, 0
    %s32 = sadd.s32 %s31, 1
    %s33 = scalar_select %p30, %s31, %s32
    %p36 = pneg %p30
    %p37 = scmp.eq.s32.totalorder %s9, 3
    %p38 = por %p36, %p37
    %p39 = scmp.ne.s32.totalorder %s31, %s34
    %p40 = scmp.eq.s32.totalorder %s9, 0
    %p41 = por %p39, %p40
    %p42 = scmp.ne.s32.totalorder %s31, %s34
    %p43 = scmp.eq.s32.totalorder %s14, 3
    %p44 = por %p42, %p43
    %p45 = scmp.ne.s32.totalorder %s34, %s35
    %p46 = scmp.eq.s32.totalorder %s14, 0
    %p47 = por %p45, %p46
    %p48 = scmp.ne.s32.totalorder %s34, %s35
    %p49 = scmp.eq.s32.totalorder %s15, 3
    %p50 = por %p48, %p49
    %p52 = scmp.ne.s32.totalorder %s35, %s51
    %p53 = scmp.eq.s32.totalorder %s15, 0
    %p54 = por %p52, %p53
    %s56 = sadd.s32 %s55, 1
    %p59 = scmp.eq.s32.totalorder %s9, 3
    %p60 = scmp.ne.s32.totalorder %s55, %s57
    %p61 = scmp.eq.s32.totalorder %s9, 0
    %p62 = por %p60, %p61
    %p63 = scmp.ne.s32.totalorder %s55, %s57
    %p64 = scmp.eq.s32.totalorder %s14, 3
    %p65 = por %p63, %p64
    %p66 = scmp.ne.s32.totalorder %s57, %s58
    %p67 = scmp.eq.s32.totalorder %s14, 0
    %p68 = por %p66, %p67
    %p69 = scmp.ne.s32.totalorder %s57, %s58
    %p70 = scmp.eq.s32.totalorder %s15, 3
    %p71 = por %p69, %p70
    %p73 = scmp.ne.s32.totalorder %s58, %s72
    %p74 = scmp.eq.s32.totalorder %s15, 0
    %p75 = por %p73, %p74
    %s77 = sadd.s32 %s76, 1
    %p80 = scmp.eq.s32.totalorder %s9, 3
    %p81 = scmp.ne.s32.totalorder %s76, %s78
    %p82 = scmp.eq.s32.totalorder %s9, 0
    %p83 = por %p81, %p82
    %p84 = scmp.ne.s32.totalorder %s76, %s78
    %p85 = scmp.eq.s32.totalorder %s14, 3
    %p86 = por %p84, %p85
    %p87 = scmp.ne.s32.totalorder %s78, %s79
    %p88 = scmp.eq.s32.totalorder %s14, 0
    %p89 = por %p87, %p88
    %p90 = scmp.ne.s32.totalorder %s78, %s79
    %p91 = scmp.eq.s32.totalorder %s15, 3
    %p92 = por %p90, %p91
    %p94 = scmp.ne.s32.totalorder %s79, %s93
    %p95 = scmp.eq.s32.totalorder %s15, 0
    %p96 = por %p94, %p95
    %s97 = ssub.s32 %s16, %s28
    %s98 = ssub.s32 %s17, %s24
    %s99 = sor.u32 %s97, %s98
    %p100 = scmp.eq.s32.totalorder %s99, 0
    %s102 = sadd.s32 %s101, 1
    %s103 = scalar_select %p100, %s101, %s102
    %p106 = pneg %p100
    %p107 = scmp.eq.s32.totalorder %s9, 3
    %p108 = por %p106, %p107
    %p109 = scmp.ne.s32.totalorder %s101, %s104
    %p110 = scmp.eq.s32.totalorder %s9, 0
    %p111 = por %p109, %p110
    %p112 = scmp.ne.s32.totalorder %s101, %s104
    %p113 = scmp.eq.s32.totalorder %s14, 3
    %p114 = por %p112, %p113
    %p115 = scmp.ne.s32.totalorder %s104, %s105
    %p116 = scmp.eq.s32.totalorder %s14, 0
    %p117 = por %p115, %p116
    %p118 = scmp.ne.s32.totalorder %s104, %s105
    %p119 = scmp.eq.s32.totalorder %s15, 3
    %p120 = por %p118, %p119
    %p122 = scmp.ne.s32.totalorder %s105, %s121
    %p123 = scmp.eq.s32.totalorder %s15, 0
    %p124 = por %p122, %p123
    %p125 = scmp.le.s32.totalorder 1, %s9
    %p126 = scmp.lt.s32.totalorder %s9, 5
    %p127 = pnand %p125, %p126
    %p128 = pneg %p127
    // Predicated region
    $region9: #{id_loss_forward.11} parent=5 // pred_check
      _
    $region10: #{id_loss_forward.11} parent=5 // pred_check_branch
      %130 = sbr.rel (%p127) target = $region12
    $region11: #{id_loss_forward.11} parent=5 // pred_region
      %s131 = ssub.s32 %s9, 1
      // Predicated region
      $region13: #{id_loss_forward.11} parent=11 // pred_check
        %p132 = pneg %p68
      $region14: #{id_loss_forward.11} parent=11 // pred_check_branch
        %134 = sbr.rel (%p132) target = $region16
      $region15: #{id_loss_forward.11} parent=11 // pred_region
        _
      $region16: #{id_loss_forward.11} parent=11 // pred_fallthru
        _
      // Predicated region
      $region17: #{id_loss_forward.11} parent=11 // pred_check
        %p135 = pneg %p89
      $region18: #{id_loss_forward.11} parent=11 // pred_check_branch
        %137 = sbr.rel (%p135) target = $region20
      $region19: #{id_loss_forward.11} parent=11 // pred_region
        _
      $region20: #{id_loss_forward.11} parent=11 // pred_fallthru
        _
    $region12: #{id_loss_forward.11} parent=5 // pred_fallthru
      _
    %p138 = scmp.lt.s32.totalorder %s9, 4
    // Predicated region
    $region21: #{id_loss_forward.11} parent=5 // pred_check
      %p139 = pneg %p138
    $region22: #{id_loss_forward.11} parent=5 // pred_check_branch
      %141 = sbr.rel (%p139) target = $region24
    $region23: #{id_loss_forward.11} parent=5 // pred_region
      // Predicated region
      $region25: #{id_loss_forward.11} parent=23 // pred_check
        %p142 = pneg %p41
      $region26: #{id_loss_forward.11} parent=23 // pred_check_branch
        %144 = sbr.rel (%p142) target = $region28
      $region27: #{id_loss_forward.11} parent=23 // pred_region
        %p145 = scmp.lt.s32.totalorder %s16, 1
        %s146 = scalar_select %p145, %s16, 1
        %s147 = smul.addr %s146, 228
        %s148 = smul.addr %s147, 4
        %s149 = scalar_lea.vmem %s0, %s148
      $region28: #{id_loss_forward.11} parent=23 // pred_fallthru
        _
    $region24: #{id_loss_forward.11} parent=5 // pred_fallthru
      _
    %p150 = scmp.le.s32.totalorder 1, %s9
    %p151 = scmp.lt.s32.totalorder %s9, 5
    %p152 = pnand %p150, %p151
    %p153 = pneg %p152
    // Predicated region
    $region29: #{id_loss_forward.11} parent=5 // pred_check
      _
    $region30: #{id_loss_forward.11} parent=5 // pred_check_branch
      %155 = sbr.rel (%p152) target = $region32
    $region31: #{id_loss_forward.11} parent=5 // pred_region
      %s156 = ssub.s32 %s9, 1
      %p157 = scmp.lt.s32.totalorder %s18, 1
      %s158 = scalar_select %p157, %s18, 1
      %s159 = smul.addr %s158, 228
      %s160 = smul.addr %s159, 4
      %s161 = scalar_lea.vmem %s0, %s160
      %p162 = pneg %p47
      %p163 = pneg %p44
      %p164 = pneg %p68
      %p165 = pneg %p65
      %p166 = pneg %p89
      %p167 = pneg %p86
      %p168 = pneg %p117
      %p169 = pneg %p114
      %s170 = smul.u32 28, %s19
      %p171 = scmp.lt.s32.totalorder %s18, 1
      %s172 = scalar_select %p171, %s18, 1
      %p173 = scmp.lt.s32.totalorder %s170, 55
      %s174 = scalar_select %p173, %s170, 55
      %s175 = smul.addr %s174, 2
      %s176 = smul.addr %s172, 112
      %s177 = sadd.s32 %s175, %s176
      %s178 = smul.addr %s177, 4
      %s179 = scalar_lea.vmem %s3, %s178
      %p180 = scmp.lt.s32.totalorder %s18, 1
      %s181 = scalar_select %p180, %s18, 1
      %s182 = smul.addr %s181, 228
      %s183 = smul.addr %s182, 4
      %s184 = scalar_lea.vmem %s0, %s183
      %s185 = smul.u32 28, %s19
      %p186 = scmp.lt.s32.totalorder %s18, 1
      %s187 = scalar_select %p186, %s18, 1
      %p188 = scmp.lt.s32.totalorder %s185, 55
      %s189 = scalar_select %p188, %s185, 55
      %s190 = smul.addr %s189, 2
      %s191 = smul.addr %s187, 112
      %s192 = sadd.s32 %s190, %s191
      %s193 = smul.addr %s192, 4
      %s194 = scalar_lea.vmem %s3, %s193
      %s195 = smul.u32 28, %s19
      %s197 = smul.u32 %s19, 28
      %v198 = vld [vmem:[%s2] sm:$0xff]
      %v199 = vld [vmem:[%s2 + $0x8] sm:$0xff]
      %v200 = vld [vmem:[%s1] sm:$0xff]
      %v201 = vld [vmem:[%s1 + $0x8] sm:$0xff]
      loop: start=0, step=1, limit=28
      $region33: #{id_loss_forward.11} parent=31 // loop_pre_header
        _
      $region34: #{id_loss_forward.11} parent=31 // loop_header
        %s203 = sphi 0, %s207
        %p204 = scmp.ge.s32.totalorder %s203, 28
      $region35: #{id_loss_forward.11} parent=31 // loop_header_branch
        %206 = sbr.rel (%p204) target = $region39
      $region36: #{id_loss_forward.11} parent=31 // loop_body
        %s208 = sadd.s32 %s197, %s203
        %s209 = smul.u32 %s208, 2
        %s210 = smul.addr %s209, 4
        %s211 = scalar_lea.vmem %s184, %s210
        %v212 = vld [vmem:[%s211] sm:$0xf]
        %v213 = vld [vmem:[%s211 + $0x4] sm:$0xf]
        %s214 = sadd.s32 %s208, 57
        %s215 = smul.u32 %s214, 2
        %s216 = smul.addr %s215, 4
        %s217 = scalar_lea.vmem %s184, %s216
        %v218 = vld [vmem:[%s217] sm:$0xf]
        %v219 = vld [vmem:[%s217 + $0x4] sm:$0xf]
        %s220 = sadd.s32 %s208, 1
        %s221 = smul.u32 %s220, 2
        %s222 = smul.addr %s221, 4
        %s223 = scalar_lea.vmem %s184, %s222
        %v224 = vld [vmem:[%s223] sm:$0xf]
        %v225 = vld [vmem:[%s223 + $0x4] sm:$0xf]
        %v228 = vunpack.c.l.b16 %v212
        %v229 = vunpack.c.l.b16 %v213
        %v230 = vpack.c.b16 %v229, %v228
        %232 = vrot.lane.b32.xlu0 %v230, 71
        %v233 = vpop.permute.xlu0 %232
        %235 = vrot.lane.b32.xlu0 %v230, 127
        %v236 = vpop.permute.xlu0 %235
        %v240 = vunpack.c.l.b16 %v218
        %v241 = vunpack.c.l.b16 %v219
        %v242 = vpack.c.b16 %v241, %v240
        %244 = vrot.lane.b32.xlu0 %v242, 71
        %v245 = vpop.permute.xlu0 %244
        %247 = vrot.lane.b32.xlu0 %v242, 127
        %v248 = vpop.permute.xlu0 %247
        %v252 = vunpack.c.l.b16 %v224
        %v253 = vunpack.c.l.b16 %v225
        %v254 = vpack.c.b16 %v253, %v252
        %256 = vrot.lane.b32.xlu0 %v254, 71
        %v257 = vpop.permute.xlu0 %256
        %259 = vrot.lane.b32.xlu0 %v254, 127
        %v260 = vpop.permute.xlu0 %259
        %v264 = vunpack.c.l.b16 %v200
        %v265 = vunpack.c.h.b16 %v200
        %v266 = vunpack.c.l.b16 %v201
        %v267 = vunpack.c.h.b16 %v201
        %v268 = vpack.c.b16 %v266, %v264
        %v269 = vpack.c.b16 %v267, %v265
        %vm271 = vcmask 130048
        %v273 = vsel %vm271, %v269, 0
        %275 = vmatprep.subr.bf16.mxu0 0
        %276 = vmatpush1.bf16.msra.mxu0 %v230
        %277 = vmatprep.subr.bf16.mxu0 0
        %278 = vmatpush1.bf16.msra.mxu0 %v233
        %279 = vmatprep.subr.bf16.mxu0 0
        %280 = vmatpush1.bf16.msra.mxu0 %v236
        %281 = vmatprep.subr.bf16.mxu0 0
        %282 = vmatpush1.bf16.msra.mxu0 %v242
        %283 = vmatprep.subr.bf16.mxu0 0
        %284 = vmatpush1.bf16.msra.mxu0 %v245
        %285 = vmatprep.subr.bf16.mxu0 0
        %286 = vmatpush1.bf16.msra.mxu0 %v248
        %287 = vmatprep.subr.bf16.mxu0 0
        %288 = vmatpush1.bf16.msra.mxu0 %v254
        %289 = vmatprep.subr.bf16.mxu0 0
        %290 = vmatpush1.bf16.msra.mxu0 %v257
        %291 = vmatprep.subr.bf16.mxu0 0
        %292 = vmatpush1.bf16.msra.mxu0 %v260
        %293 = vmatprep.subr.bf16.mxu0 0
        %294 = vmatpush1.bf16.msra.mxu0 0
        %295 = vmatprep.subr.bf16.mxu0 0
        %296 = vmatpush1.bf16.msra.mxu0 0
        %297 = vmatprep.subr.bf16.mxu0 0
        %298 = vmatpush1.bf16.msra.mxu0 0
        %299 = vmatprep.subr.bf16.mxu0 0
        %300 = vmatpush1.bf16.msra.mxu0 0
        %301 = vmatprep.subr.bf16.mxu0 0
        %302 = vmatpush1.bf16.msra.mxu0 0
        %303 = vmatprep.subr.bf16.mxu0 0
        %304 = vmatpush1.bf16.msra.mxu0 0
        %305 = vmatprep.subr.bf16.mxu0 0
        %306 = vmatpush1.bf16.msra.mxu0 0
        %307 = vmatprep.mubr.bf16.mxu0 %v273
        %308 = vmatmul.mubr.bf16.gmra.mrb[0].mxu0 %v268
        %v309 = vpop.f32.mrb[0].mxu0
        %v310 = vadd.f32 0.0, %v309
        %v311 = vpop.f32.mrb[0].mxu0
        %v312 = vpop.f32.mrb[0].mxu0
        %v313 = vadd.f32 0.0, %v312
        %v314 = vpop.f32.mrb[0].mxu0
        %315 = vdwg.mxu0
        %317 = vset.pattern.permute.xlu0 0
        %318 = vperm.xlu0 %317, %v198
        %v319 = vpop.permute.xlu0 %318
        %322 = vset.pattern.permute.xlu0 0
        %323 = vperm.xlu0 %322, %v199
        %v324 = vpop.permute.xlu0 %323
        %v326 = vmul.f32 %v310, %v319
        %v327 = vmul.f32 %v313, %v324
        %328 = vset.pattern.permute.xlu0 1
        %329 = vperm.xlu0 %328, %v198
        %v330 = vpop.permute.xlu0 %329
        %332 = vset.pattern.permute.xlu0 1
        %333 = vperm.xlu0 %332, %v199
        %v334 = vpop.permute.xlu0 %333
        %v336 = vadd.f32 %v326, %v330
        %v337 = vadd.f32 %v327, %v334
        %vm338 = vcmp.gt.f32.partialorder %v336, 0.0
        %vm339 = vcmp.gt.f32.partialorder %v337, 0.0
        %340 = vset.pattern.permute.xlu0 2
        %341 = vperm.xlu0 %340, %v198
        %v342 = vpop.permute.xlu0 %341
        %344 = vset.pattern.permute.xlu0 2
        %345 = vperm.xlu0 %344, %v199
        %v346 = vpop.permute.xlu0 %345
        %v348 = vmul.f32 %v342, %v336
        %v349 = vmul.f32 %v346, %v337
        %v350 = vsel %vm338, %v336, %v348
        %v351 = vsel %vm339, %v337, %v349
        %v352 = vpack.c.bf16 %v351, %v350
        %v354 = vunpack.c.l.b16 %v352
        %v355 = vunpack.c.h.b16 %v352
        %v356 = vpack.c.b16 %v354, %v354
        %v357 = vpack.c.b16 %v355, %v355
        %s360 = smul.u32 %s203, 2
        %s361 = smul.addr %s360, 4
        %s362 = scalar_lea.vmem %s194, %s361
        %vm363 = vcmask 453632
        %364 = vst.msk [vmem:[%s362] sm:$0xf] %vm363, %v356
        %365 = vst.msk [vmem:[%s362 + $0x4] sm:$0xf] %vm363, %v357
      $region37: #{id_loss_forward.11} parent=31 // loop_footer
        %s207 = sadd.s32 1, %s203
      $region38: #{id_loss_forward.11} parent=31 // loop_footer_branch
        %202 = sbr.rel target = $region34
      $region39: #{id_loss_forward.11} parent=31 // loop_exit
        _
      %s366 = smul.u32 28, %s19
      %p367 = scmp.lt.s32.totalorder %s18, 1
      %s368 = scalar_select %p367, %s18, 1
      %p369 = scmp.lt.s32.totalorder %s366, 55
      %s370 = scalar_select %p369, %s366, 55
      %s371 = smul.addr %s370, 2
      %s372 = smul.addr %s368, 112
      %s373 = sadd.s32 %s371, %s372
      %s374 = smul.addr %s373, 4
      %s375 = scalar_lea.vmem %s3, %s374
      // Predicated region
      $region40: #{id_loss_forward.11} parent=31 // pred_check
        %p376 = pneg %p114
      $region41: #{id_loss_forward.11} parent=31 // pred_check_branch
        %378 = sbr.rel (%p376) target = $region43
      $region42: #{id_loss_forward.11} parent=31 // pred_region
        %s379 = smul.u32 28, %s19
      $region43: #{id_loss_forward.11} parent=31 // pred_fallthru
        _
    $region32: #{id_loss_forward.11} parent=5 // pred_fallthru
      _
    %p380 = scmp.le.s32.totalorder 2, %s9
    // Predicated region
    $region44: #{id_loss_forward.11} parent=5 // pred_check
      %p381 = pneg %p380
    $region45: #{id_loss_forward.11} parent=5 // pred_check_branch
      %383 = sbr.rel (%p381) target = $region47
    $region46: #{id_loss_forward.11} parent=5 // pred_region
      %s384 = ssub.s32 %s9, 2
      // Predicated region
      $region48: #{id_loss_forward.11} parent=46 // pred_check
        %p385 = pneg %p120
      $region49: #{id_loss_forward.11} parent=46 // pred_check_branch
        %387 = sbr.rel (%p385) target = $region51
      $region50: #{id_loss_forward.11} parent=46 // pred_region
        %s388 = smul.u32 28, %s21
        %p389 = scmp.lt.s32.totalorder %s20, 1
        %s390 = scalar_select %p389, %s20, 1
        %p391 = scmp.lt.s32.totalorder %s388, 55
        %s392 = scalar_select %p391, %s388, 55
        %s393 = smul.addr %s392, 2
        %s394 = smul.addr %s390, 112
        %s395 = sadd.s32 %s393, %s394
        %s396 = smul.addr %s395, 4
        %s397 = scalar_lea.vmem %s3, %s396
      $region51: #{id_loss_forward.11} parent=46 // pred_fallthru
        _
    $region47: #{id_loss_forward.11} parent=5 // pred_fallthru
      _
  $region6: #{id_loss_forward.11} parent=0 // loop_footer
    %s13 = sadd.s32 1, %s9
  $region7: #{id_loss_forward.11} parent=0 // loop_footer_branch
    %8 = sbr.rel target = $region3
  $region8: #{id_loss_forward.11} parent=0 // loop_exit
    _

// kernel: id_loss_forward.12
$region0: #{id_loss_forward.12}
  #allocation0 [shape = 'u32[]', space=smem, size = 0x4, offset = 0x4, fixed_abs, tag = 'smem constant byte address 0x4 - core index']
  #allocation1 [shape = 'u32[144,128]{1,0:T(1,128)}', space=vmem, size = 0x12000, scoped, tag = 'internal scratch']
  %s0 = inlined_call_operand.vmem [shape: bf16[2,58,16,58], index: 0, kind: input, shape index: {}]
  %s1 = inlined_call_operand.vmem [shape: bf16[32,144], index: 1, kind: input, shape index: {}]
  %s2 = inlined_call_operand.vmem [shape: f32[32,3], index: 2, kind: input, shape index: {}]
  %s3 = inlined_call_operand.vmem [shape: bf16[2,56,32,56], index: 3, kind: output, shape index: {}]
  %s4 = sld [smem:[#allocation0]]
  $region52: #{id_loss_forward.12} parent=0
    _
  %s6 = ssub.s32 1, %s4
  %s7 = scalar_select 0, %s6, %s4
  loop: start=0, step=1, limit=6
  $region2: #{id_loss_forward.12} parent=0 // loop_pre_header
    _
  $region3: #{id_loss_forward.12} parent=0 // loop_header
    %s9 = sphi 0, %s13
    %p10 = scmp.ge.s32.totalorder %s9, 6
    %s16 = sphi 0, %s28
    %s17 = sphi 0, %s24
    %s18 = sphi 0, %s16
    %s19 = sphi 0, %s17
    %s20 = sphi 0, %s18
    %s21 = sphi 0, %s19
    %s31 = sphi 0, %s33
    %s34 = sphi 0, %s31
    %s35 = sphi 0, %s34
    %s51 = sphi 0, %s35
    %s55 = sphi 0, %s55
    %s57 = sphi 0, %s55
    %s58 = sphi 0, %s57
    %s72 = sphi 0, %s58
    %s76 = sphi 0, %s76
    %s78 = sphi 0, %s76
    %s79 = sphi 0, %s78
    %s93 = sphi 0, %s79
    %s101 = sphi 0, %s103
    %s104 = sphi 0, %s101
    %s105 = sphi 0, %s104
    %s121 = sphi 0, %s105
  $region4: #{id_loss_forward.12} parent=0 // loop_header_branch
    %12 = sbr.rel (%p10) target = $region8
  $region5: #{id_loss_forward.12} parent=0 // loop_body
    %s14 = ssub.s32 %s9, 1
    %s15 = ssub.s32 %s9, 2
    %s22 = sadd.s32 1, %s17
    %p23 = scmp.ge.s32.totalorder %s22, 2
    %s24 = scalar_select %p23, 0, %s22
    %s25 = sadd.s32 1, %s16
    %s26 = scalar_select %p23, %s25, %s16
    %p27 = scmp.ge.s32.totalorder %s26, 2
    %s28 = scalar_select %p27, 0, %s26
    %s29 = ssub.s32 %s16, %s28
    %p30 = scmp.eq.s32.totalorder %s29, 0
    %s32 = sadd.s32 %s31, 1
    %s33 = scalar_select %p30, %s31, %s32
    %p36 = pneg %p30
    %p37 = scmp.eq.s32.totalorder %s9, 3
    %p38 = por %p36, %p37
    %p39 = scmp.ne.s32.totalorder %s31, %s34
    %p40 = scmp.eq.s32.totalorder %s9, 0
    %p41 = por %p39, %p40
    %p42 = scmp.ne.s32.totalorder %s31, %s34
    %p43 = scmp.eq.s32.totalorder %s14, 3
    %p44 = por %p42, %p43
    %p45 = scmp.ne.s32.totalorder %s34, %s35
    %p46 = scmp.eq.s32.totalorder %s14, 0
    %p47 = por %p45, %p46
    %p48 = scmp.ne.s32.totalorder %s34, %s35
    %p49 = scmp.eq.s32.totalorder %s15, 3
    %p50 = por %p48, %p49
    %p52 = scmp.ne.s32.totalorder %s35, %s51
    %p53 = scmp.eq.s32.totalorder %s15, 0
    %p54 = por %p52, %p53
    %s56 = sadd.s32 %s55, 1
    %p59 = scmp.eq.s32.totalorder %s9, 3
    %p60 = scmp.ne.s32.totalorder %s55, %s57
    %p61 = scmp.eq.s32.totalorder %s9, 0
    %p62 = por %p60, %p61
    %p63 = scmp.ne.s32.totalorder %s55, %s57
    %p64 = scmp.eq.s32.totalorder %s14, 3
    %p65 = por %p63, %p64
    %p66 = scmp.ne.s32.totalorder %s57, %s58
    %p67 = scmp.eq.s32.totalorder %s14, 0
    %p68 = por %p66, %p67
    %p69 = scmp.ne.s32.totalorder %s57, %s58
    %p70 = scmp.eq.s32.totalorder %s15, 3
    %p71 = por %p69, %p70
    %p73 = scmp.ne.s32.totalorder %s58, %s72
    %p74 = scmp.eq.s32.totalorder %s15, 0
    %p75 = por %p73, %p74
    %s77 = sadd.s32 %s76, 1
    %p80 = scmp.eq.s32.totalorder %s9, 3
    %p81 = scmp.ne.s32.totalorder %s76, %s78
    %p82 = scmp.eq.s32.totalorder %s9, 0
    %p83 = por %p81, %p82
    %p84 = scmp.ne.s32.totalorder %s76, %s78
    %p85 = scmp.eq.s32.totalorder %s14, 3
    %p86 = por %p84, %p85
    %p87 = scmp.ne.s32.totalorder %s78, %s79
    %p88 = scmp.eq.s32.totalorder %s14, 0
    %p89 = por %p87, %p88
    %p90 = scmp.ne.s32.totalorder %s78, %s79
    %p91 = scmp.eq.s32.totalorder %s15, 3
    %p92 = por %p90, %p91
    %p94 = scmp.ne.s32.totalorder %s79, %s93
    %p95 = scmp.eq.s32.totalorder %s15, 0
    %p96 = por %p94, %p95
    %s97 = ssub.s32 %s16, %s28
    %s98 = ssub.s32 %s17, %s24
    %s99 = sor.u32 %s97, %s98
    %p100 = scmp.eq.s32.totalorder %s99, 0
    %s102 = sadd.s32 %s101, 1
    %s103 = scalar_select %p100, %s101, %s102
    %p106 = pneg %p100
    %p107 = scmp.eq.s32.totalorder %s9, 3
    %p108 = por %p106, %p107
    %p109 = scmp.ne.s32.totalorder %s101, %s104
    %p110 = scmp.eq.s32.totalorder %s9, 0
    %p111 = por %p109, %p110
    %p112 = scmp.ne.s32.totalorder %s101, %s104
    %p113 = scmp.eq.s32.totalorder %s14, 3
    %p114 = por %p112, %p113
    %p115 = scmp.ne.s32.totalorder %s104, %s105
    %p116 = scmp.eq.s32.totalorder %s14, 0
    %p117 = por %p115, %p116
    %p118 = scmp.ne.s32.totalorder %s104, %s105
    %p119 = scmp.eq.s32.totalorder %s15, 3
    %p120 = por %p118, %p119
    %p122 = scmp.ne.s32.totalorder %s105, %s121
    %p123 = scmp.eq.s32.totalorder %s15, 0
    %p124 = por %p122, %p123
    %p125 = scmp.le.s32.totalorder 1, %s9
    %p126 = scmp.lt.s32.totalorder %s9, 5
    %p127 = pnand %p125, %p126
    %p128 = pneg %p127
    // Predicated region
    $region9: #{id_loss_forward.12} parent=5 // pred_check
      _
    $region10: #{id_loss_forward.12} parent=5 // pred_check_branch
      %130 = sbr.rel (%p127) target = $region12
    $region11: #{id_loss_forward.12} parent=5 // pred_region
      %s131 = ssub.s32 %s9, 1
      // Predicated region
      $region13: #{id_loss_forward.12} parent=11 // pred_check
        %p132 = pneg %p68
      $region14: #{id_loss_forward.12} parent=11 // pred_check_branch
        %134 = sbr.rel (%p132) target = $region16
      $region15: #{id_loss_forward.12} parent=11 // pred_region
        _
      $region16: #{id_loss_forward.12} parent=11 // pred_fallthru
        _
      // Predicated region
      $region17: #{id_loss_forward.12} parent=11 // pred_check
        %p135 = pneg %p89
      $region18: #{id_loss_forward.12} parent=11 // pred_check_branch
        %137 = sbr.rel (%p135) target = $region20
      $region19: #{id_loss_forward.12} parent=11 // pred_region
        _
      $region20: #{id_loss_forward.12} parent=11 // pred_fallthru
        _
    $region12: #{id_loss_forward.12} parent=5 // pred_fallthru
      _
    %p138 = scmp.lt.s32.totalorder %s9, 4
    // Predicated region
    $region21: #{id_loss_forward.12} parent=5 // pred_check
      %p139 = pneg %p138
    $region22: #{id_loss_forward.12} parent=5 // pred_check_branch
      %141 = sbr.rel (%p139) target = $region24
    $region23: #{id_loss_forward.12} parent=5 // pred_region
      // Predicated region
      $region25: #{id_loss_forward.12} parent=23 // pred_check
        %p142 = pneg %p41
      $region26: #{id_loss_forward.12} parent=23 // pred_check_branch
        %144 = sbr.rel (%p142) target = $region28
      $region27: #{id_loss_forward.12} parent=23 // pred_region
        %p145 = scmp.lt.s32.totalorder %s16, 1
        %s146 = scalar_select %p145, %s16, 1
        %s147 = smul.addr %s146, 116
        %s148 = smul.addr %s147, 4
        %s149 = scalar_lea.vmem %s0, %s148
      $region28: #{id_loss_forward.12} parent=23 // pred_fallthru
        _
    $region24: #{id_loss_forward.12} parent=5 // pred_fallthru
      _
    %p150 = scmp.le.s32.totalorder 1, %s9
    %p151 = scmp.lt.s32.totalorder %s9, 5
    %p152 = pnand %p150, %p151
    %p153 = pneg %p152
    // Predicated region
    $region29: #{id_loss_forward.12} parent=5 // pred_check
      _
    $region30: #{id_loss_forward.12} parent=5 // pred_check_branch
      %155 = sbr.rel (%p152) target = $region32
    $region31: #{id_loss_forward.12} parent=5 // pred_region
      %s156 = ssub.s32 %s9, 1
      %p157 = scmp.lt.s32.totalorder %s18, 1
      %s158 = scalar_select %p157, %s18, 1
      %s159 = smul.addr %s158, 116
      %s160 = smul.addr %s159, 4
      %s161 = scalar_lea.vmem %s0, %s160
      %p162 = pneg %p47
      %p163 = pneg %p44
      %p164 = pneg %p68
      %p165 = pneg %p65
      %p166 = pneg %p89
      %p167 = pneg %p86
      %p168 = pneg %p117
      %p169 = pneg %p114
      %s170 = smul.u32 28, %s19
      %p171 = scmp.lt.s32.totalorder %s18, 1
      %s172 = scalar_select %p171, %s18, 1
      %p173 = scmp.lt.s32.totalorder %s170, 55
      %s174 = scalar_select %p173, %s170, 55
      %s175 = smul.addr %s174, 4
      %s176 = smul.addr %s172, 224
      %s177 = sadd.s32 %s175, %s176
      %s178 = smul.addr %s177, 4
      %s179 = scalar_lea.vmem %s3, %s178
      %p180 = scmp.lt.s32.totalorder %s18, 1
      %s181 = scalar_select %p180, %s18, 1
      %s182 = smul.addr %s181, 116
      %s183 = smul.addr %s182, 4
      %s184 = scalar_lea.vmem %s0, %s183
      %s185 = smul.u32 28, %s19
      %p186 = scmp.lt.s32.totalorder %s18, 1
      %s187 = scalar_select %p186, %s18, 1
      %p188 = scmp.lt.s32.totalorder %s185, 55
      %s189 = scalar_select %p188, %s185, 55
      %s190 = smul.addr %s189, 4
      %s191 = smul.addr %s187, 224
      %s192 = sadd.s32 %s190, %s191
      %s193 = smul.addr %s192, 4
      %s194 = scalar_lea.vmem %s3, %s193
      %s195 = smul.u32 28, %s19
      %s197 = smul.u32 %s19, 28
      %v198 = vld [vmem:[%s2] sm:$0xff]
      %v199 = vld [vmem:[%s2 + $0x8] sm:$0xff]
      %v200 = vld [vmem:[%s2 + $0x10] sm:$0xff]
      %v201 = vld [vmem:[%s2 + $0x18] sm:$0xff]
      %v202 = vld [vmem:[%s1] sm:$0xff]
      %v203 = vld [vmem:[%s1 + $0x8] sm:$0xff]
      %v204 = vld [vmem:[%s1 + $0x10] sm:$0xff]
      %v205 = vld [vmem:[%s1 + $0x18] sm:$0xff]
      loop: start=0, step=1, limit=28
      $region33: #{id_loss_forward.12} parent=31 // loop_pre_header
        _
      $region34: #{id_loss_forward.12} parent=31 // loop_header
        %s207 = sphi 0, %s211
        %p208 = scmp.ge.s32.totalorder %s207, 28
      $region35: #{id_loss_forward.12} parent=31 // loop_header_branch
        %210 = sbr.rel (%p208) target = $region39
      $region36: #{id_loss_forward.12} parent=31 // loop_body
        %s212 = sadd.s32 %s197, %s207
        %s213 = smul.u32 %s212, 2
        %s214 = smul.addr %s213, 4
        %s215 = scalar_lea.vmem %s184, %s214
        %v216 = vld [vmem:[%s215] sm:$0xf]
        %v217 = vld [vmem:[%s215 + $0x4] sm:$0xf]
        %s218 = sadd.s32 %s212, 1
        %s219 = smul.u32 %s218, 2
        %s220 = smul.addr %s219, 4
        %s221 = scalar_lea.vmem %s184, %s220
        %v222 = vld [vmem:[%s221] sm:$0xf]
        %v223 = vld [vmem:[%s221 + $0x4] sm:$0xf]
        %s224 = sadd.s32 %s212, 2
        %s225 = smul.u32 %s224, 2
        %s226 = smul.addr %s225, 4
        %s227 = scalar_lea.vmem %s184, %s226
        %v228 = vld [vmem:[%s227] sm:$0xf]
        %v229 = vld [vmem:[%s227 + $0x4] sm:$0xf]
        %v232 = vunpack.c.l.b16 %v216
        %v233 = vunpack.c.l.b16 %v217
        %v234 = vpack.c.b16 %v233, %v232
        %236 = vrot.lane.b32.xlu0 %v234, 127
        %v237 = vpop.permute.xlu0 %236
        %239 = vrot.lane.b32.xlu0 %v234, 126
        %v240 = vpop.permute.xlu0 %239
        %v244 = vunpack.c.l.b16 %v222
        %v245 = vunpack.c.l.b16 %v223
        %v246 = vpack.c.b16 %v245, %v244
        %248 = vrot.lane.b32.xlu0 %v246, 127
        %v249 = vpop.permute.xlu0 %248
        %251 = vrot.lane.b32.xlu0 %v246, 126
        %v252 = vpop.permute.xlu0 %251
        %v256 = vunpack.c.l.b16 %v228
        %v257 = vunpack.c.l.b16 %v229
        %v258 = vpack.c.b16 %v257, %v256
        %260 = vrot.lane.b32.xlu0 %v258, 127
        %v261 = vpop.permute.xlu0 %260
        %263 = vrot.lane.b32.xlu0 %v258, 126
        %v264 = vpop.permute.xlu0 %263
        %v270 = vunpack.c.l.b16 %v202
        %v271 = vunpack.c.h.b16 %v202
        %v272 = vunpack.c.l.b16 %v203
        %v273 = vunpack.c.h.b16 %v203
        %v274 = vunpack.c.l.b16 %v204
        %v275 = vunpack.c.h.b16 %v204
        %v276 = vunpack.c.l.b16 %v205
        %v277 = vunpack.c.h.b16 %v205
        %v278 = vpack.c.b16 %v272, %v270
        %v279 = vpack.c.b16 %v273, %v271
        %v280 = vpack.c.b16 %v276, %v274
        %v281 = vpack.c.b16 %v277, %v275
        %vm284 = vcmask 130048
        %v286 = vsel %vm284, %v279, 0
        %v289 = vsel %vm284, %v281, 0
        %291 = vmatprep.subr.bf16.mxu0 0
        %292 = vmatpush1.bf16.msra.mxu0 %v234
        %293 = vmatprep.subr.bf16.mxu0 0
        %294 = vmatpush1.bf16.msra.mxu0 %v237
        %295 = vmatprep.subr.bf16.mxu0 0
        %296 = vmatpush1.bf16.msra.mxu0 %v240
        %297 = vmatprep.subr.bf16.mxu0 0
        %298 = vmatpush1.bf16.msra.mxu0 %v246
        %299 = vmatprep.subr.bf16.mxu0 0
        %300 = vmatpush1.bf16.msra.mxu0 %v249
        %301 = vmatprep.subr.bf16.mxu0 0
        %302 = vmatpush1.bf16.msra.mxu0 %v252
        %303 = vmatprep.subr.bf16.mxu0 0
        %304 = vmatpush1.bf16.msra.mxu0 %v258
        %305 = vmatprep.subr.bf16.mxu0 0
        %306 = vmatpush1.bf16.msra.mxu0 %v261
        %307 = vmatprep.subr.bf16.mxu0 0
        %308 = vmatpush1.bf16.msra.mxu0 %v264
        %309 = vmatprep.subr.bf16.mxu0 0
        %310 = vmatpush1.bf16.msra.mxu0 0
        %311 = vmatprep.subr.bf16.mxu0 0
        %312 = vmatpush1.bf16.msra.mxu0 0
        %313 = vmatprep.subr.bf16.mxu0 0
        %314 = vmatpush1.bf16.msra.mxu0 0
        %315 = vmatprep.subr.bf16.mxu0 0
        %316 = vmatpush1.bf16.msra.mxu0 0
        %317 = vmatprep.subr.bf16.mxu0 0
        %318 = vmatpush1.bf16.msra.mxu0 0
        %319 = vmatprep.subr.bf16.mxu0 0
        %320 = vmatpush1.bf16.msra.mxu0 0
        %321 = vmatprep.subr.bf16.mxu0 0
        %322 = vmatpush1.bf16.msra.mxu0 0
        %323 = vmatprep.mubr.bf16.mxu0 %v286
        %324 = vmatmul.mubr.bf16.gmra.mrb[0].mxu0 %v278
        %v325 = vpop.f32.mrb[0].mxu0
        %v326 = vadd.f32 0.0, %v325
        %v327 = vpop.f32.mrb[0].mxu0
        %v328 = vpop.f32.mrb[0].mxu0
        %v329 = vadd.f32 0.0, %v328
        %v330 = vpop.f32.mrb[0].mxu0
        %331 = vmatprep.mubr.bf16.mxu0 %v289
        %332 = vmatmul.mubr.bf16.gmra.mrb[0].mxu0 %v280
        %v333 = vpop.f32.mrb[0].mxu0
        %v334 = vadd.f32 0.0, %v333
        %v335 = vpop.f32.mrb[0].mxu0
        %v336 = vpop.f32.mrb[0].mxu0
        %v337 = vadd.f32 0.0, %v336
        %v338 = vpop.f32.mrb[0].mxu0
        %339 = vdwg.mxu0
        %341 = vset.pattern.permute.xlu0 0
        %342 = vperm.xlu0 %341, %v198
        %v343 = vpop.permute.xlu0 %342
        %346 = vset.pattern.permute.xlu0 0
        %347 = vperm.xlu0 %346, %v199
        %v348 = vpop.permute.xlu0 %347
        %351 = vset.pattern.permute.xlu0 0
        %352 = vperm.xlu0 %351, %v200
        %v353 = vpop.permute.xlu0 %352
        %356 = vset.pattern.permute.xlu0 0
        %357 = vperm.xlu0 %356, %v201
        %v358 = vpop.permute.xlu0 %357
        %v360 = vmul.f32 %v326, %v343
        %v361 = vmul.f32 %v329, %v348
        %v362 = vmul.f32 %v334, %v353
        %v363 = vmul.f32 %v337, %v358
        %364 = vset.pattern.permute.xlu0 1
        %365 = vperm.xlu0 %364, %v198
        %v366 = vpop.permute.xlu0 %365
        %368 = vset.pattern.permute.xlu0 1
        %369 = vperm.xlu0 %368, %v199
        %v370 = vpop.permute.xlu0 %369
        %372 = vset.pattern.permute.xlu0 1
        %373 = vperm.xlu0 %372, %v200
        %v374 = vpop.permute.xlu0 %373
        %376 = vset.pattern.permute.xlu0 1
        %377 = vperm.xlu0 %376, %v201
        %v378 = vpop.permute.xlu0 %377
        %v380 = vadd.f32 %v360, %v366
        %v381 = vadd.f32 %v361, %v370
        %v382 = vadd.f32 %v362, %v374
        %v383 = vadd.f32 %v363, %v378
        %vm384 = vcmp.gt.f32.partialorder %v380, 0.0
        %vm385 = vcmp.gt.f32.partialorder %v381, 0.0
        %vm386 = vcmp.gt.f32.partialorder %v382, 0.0
        %vm387 = vcmp.gt.f32.partialorder %v383, 0.0
        %388 = vset.pattern.permute.xlu0 2
        %389 = vperm.xlu0 %388, %v198
        %v390 = vpop.permute.xlu0 %389
        %392 = vset.pattern.permute.xlu0 2
        %393 = vperm.xlu0 %392, %v199
        %v394 = vpop.permute.xlu0 %393
        %396 = vset.pattern.permute.xlu0 2
        %397 = vperm.xlu0 %396, %v200
        %v398 = vpop.permute.xlu0 %397
        %400 = vset.pattern.permute.xlu0 2
        %401 = vperm.xlu0 %400, %v201
        %v402 = vpop.permute.xlu0 %401
        %v404 = vmul.f32 %v390, %v380
        %v405 = vmul.f32 %v394, %v381
        %v406 = vmul.f32 %v398, %v382
        %v407 = vmul.f32 %v402, %v383
        %v408 = vsel %vm384, %v380, %v404
        %v409 = vsel %vm385, %v381, %v405
        %v410 = vsel %vm386, %v382, %v406
        %v411 = vsel %vm387, %v383, %v407
        %v412 = vpack.c.bf16 %v409, %v408
        %v413 = vpack.c.bf16 %v411, %v410
        %v416 = vunpack.c.l.b16 %v412
        %v417 = vunpack.c.h.b16 %v412
        %v418 = vunpack.c.l.b16 %v413
        %v419 = vunpack.c.h.b16 %v413
        %v420 = vpack.c.b16 %v416, %v416
        %v421 = vpack.c.b16 %v417, %v417
        %v422 = vpack.c.b16 %v418, %v418
        %v423 = vpack.c.b16 %v419, %v419
        %s428 = smul.u32 %s207, 4
        %s429 = smul.addr %s428, 4
        %s430 = scalar_lea.vmem %s194, %s429
        %vm431 = vcmask 453632
        %432 = vst.msk [vmem:[%s430] sm:$0xf] %vm431, %v420
        %433 = vst.msk [vmem:[%s430 + $0x4] sm:$0xf] %vm431, %v421
        %434 = vst.msk [vmem:[%s430 + $0x8] sm:$0xf] %vm431, %v422
        %435 = vst.msk [vmem:[%s430 + $0xc] sm:$0xf] %vm431, %v423
      $region37: #{id_loss_forward.12} parent=31 // loop_footer
        %s211 = sadd.s32 1, %s207
      $region38: #{id_loss_forward.12} parent=31 // loop_footer_branch
        %206 = sbr.rel target = $region34
      $region39: #{id_loss_forward.12} parent=31 // loop_exit
        _
      %s436 = smul.u32 28, %s19
      %p437 = scmp.lt.s32.totalorder %s18, 1
      %s438 = scalar_select %p437, %s18, 1
      %p439 = scmp.lt.s32.totalorder %s436, 55
      %s440 = scalar_select %p439, %s436, 55
      %s441 = smul.addr %s440, 4
      %s442 = smul.addr %s438, 224
      %s443 = sadd.s32 %s441, %s442
      %s444 = smul.addr %s443, 4
      %s445 = scalar_lea.vmem %s3, %s444
      // Predicated region
      $region40: #{id_loss_forward.12} parent=31 // pred_check
        %p446 = pneg %p114
      $region41: #{id_loss_forward.12} parent=31 // pred_check_branch
        %448 = sbr.rel (%p446) target = $region43
      $region42: #{id_loss_forward.12} parent=31 // pred_region
        %s449 = smul.u32 28, %s19
      $region43: #{id_loss_forward.12} parent=31 // pred_fallthru
        _
    $region32: #{id_loss_forward.12} parent=5 // pred_fallthru
      _
    %p450 = scmp.le.s32.totalorder 2, %s9
    // Predicated region
    $region44: #{id_loss_forward.12} parent=5 // pred_check
      %p451 = pneg %p450
    $region45: #{id_loss_forward.12} parent=5 // pred_check_branch
      %453 = sbr.rel (%p451) target = $region47
    $region46: #{id_loss_forward.12} parent=5 // pred_region
      %s454 = ssub.s32 %s9, 2
      // Predicated region
      $region48: #{id_loss_forward.12} parent=46 // pred_check
        %p455 = pneg %p120
      $region49: #{id_loss_forward.12} parent=46 // pred_check_branch
        %457 = sbr.rel (%p455) target = $region51
      $region50: #{id_loss_forward.12} parent=46 // pred_region
        %s458 = smul.u32 28, %s21
        %p459 = scmp.lt.s32.totalorder %s20, 1
        %s460 = scalar_select %p459, %s20, 1
        %p461 = scmp.lt.s32.totalorder %s458, 55
        %s462 = scalar_select %p461, %s458, 55
        %s463 = smul.addr %s462, 4
        %s464 = smul.addr %s460, 224
        %s465 = sadd.s32 %s463, %s464
        %s466 = smul.addr %s465, 4
        %s467 = scalar_lea.vmem %s3, %s466
      $region51: #{id_loss_forward.12} parent=46 // pred_fallthru
        _
    $region47: #{id_loss_forward.12} parent=5 // pred_fallthru
      _
  $region6: #{id_loss_forward.12} parent=0 // loop_footer
    %s13 = sadd.s32 1, %s9
  $region7: #{id_loss_forward.12} parent=0 // loop_footer_branch
    %8 = sbr.rel target = $region3
  $region8: #{id_loss_forward.12} parent=0 // loop_exit
    _

// kernel: id_loss_forward.13
$region0: #{id_loss_forward.13}
  #allocation0 [shape = 'u32[]', space=smem, size = 0x4, offset = 0x4, fixed_abs, tag = 'smem constant byte address 0x4 - core index']
  #allocation1 [shape = 'u32[144,128]{1,0:T(1,128)}', space=vmem, size = 0x12000, scoped, tag = 'internal scratch']
  %s0 = inlined_call_operand.vmem [shape: bf16[2,58,32,58], index: 0, kind: input, shape index: {}]
  %s1 = inlined_call_operand.vmem [shape: bf16[32,288], index: 1, kind: input, shape index: {}]
  %s2 = inlined_call_operand.vmem [shape: f32[32,3], index: 2, kind: input, shape index: {}]
  %s3 = inlined_call_operand.vmem [shape: bf16[2,28,32,28], index: 3, kind: output, shape index: {}]
  %s4 = sld [smem:[#allocation0]]
  $region52: #{id_loss_forward.13} parent=0
    _
  %s6 = ssub.s32 1, %s4
  %s7 = scalar_select 0, %s6, %s4
  loop: start=0, step=1, limit=4
  $region2: #{id_loss_forward.13} parent=0 // loop_pre_header
    _
  $region3: #{id_loss_forward.13} parent=0 // loop_header
    %s9 = sphi 0, %s13
    %p10 = scmp.ge.s32.totalorder %s9, 4
    %s16 = sphi 0, %s28
    %s17 = sphi 0, %s24
    %s18 = sphi 0, %s16
    %s19 = sphi 0, %s17
    %s20 = sphi 0, %s18
    %s21 = sphi 0, %s19
    %s31 = sphi 0, %s33
    %s34 = sphi 0, %s31
    %s35 = sphi 0, %s34
    %s51 = sphi 0, %s35
    %s55 = sphi 0, %s55
    %s57 = sphi 0, %s55
    %s58 = sphi 0, %s57
    %s72 = sphi 0, %s58
    %s76 = sphi 0, %s76
    %s78 = sphi 0, %s76
    %s79 = sphi 0, %s78
    %s93 = sphi 0, %s79
    %s101 = sphi 0, %s103
    %s104 = sphi 0, %s101
    %s105 = sphi 0, %s104
    %s121 = sphi 0, %s105
  $region4: #{id_loss_forward.13} parent=0 // loop_header_branch
    %12 = sbr.rel (%p10) target = $region8
  $region5: #{id_loss_forward.13} parent=0 // loop_body
    %s14 = ssub.s32 %s9, 1
    %s15 = ssub.s32 %s9, 2
    %s22 = sadd.s32 1, %s17
    %p23 = scmp.ge.s32.totalorder %s22, 1
    %s24 = scalar_select %p23, 0, %s22
    %s25 = sadd.s32 1, %s16
    %s26 = scalar_select %p23, %s25, %s16
    %p27 = scmp.ge.s32.totalorder %s26, 2
    %s28 = scalar_select %p27, 0, %s26
    %s29 = ssub.s32 %s16, %s28
    %p30 = scmp.eq.s32.totalorder %s29, 0
    %s32 = sadd.s32 %s31, 1
    %s33 = scalar_select %p30, %s31, %s32
    %p36 = pneg %p30
    %p37 = scmp.eq.s32.totalorder %s9, 1
    %p38 = por %p36, %p37
    %p39 = scmp.ne.s32.totalorder %s31, %s34
    %p40 = scmp.eq.s32.totalorder %s9, 0
    %p41 = por %p39, %p40
    %p42 = scmp.ne.s32.totalorder %s31, %s34
    %p43 = scmp.eq.s32.totalorder %s14, 1
    %p44 = por %p42, %p43
    %p45 = scmp.ne.s32.totalorder %s34, %s35
    %p46 = scmp.eq.s32.totalorder %s14, 0
    %p47 = por %p45, %p46
    %p48 = scmp.ne.s32.totalorder %s34, %s35
    %p49 = scmp.eq.s32.totalorder %s15, 1
    %p50 = por %p48, %p49
    %p52 = scmp.ne.s32.totalorder %s35, %s51
    %p53 = scmp.eq.s32.totalorder %s15, 0
    %p54 = por %p52, %p53
    %s56 = sadd.s32 %s55, 1
    %p59 = scmp.eq.s32.totalorder %s9, 1
    %p60 = scmp.ne.s32.totalorder %s55, %s57
    %p61 = scmp.eq.s32.totalorder %s9, 0
    %p62 = por %p60, %p61
    %p63 = scmp.ne.s32.totalorder %s55, %s57
    %p64 = scmp.eq.s32.totalorder %s14, 1
    %p65 = por %p63, %p64
    %p66 = scmp.ne.s32.totalorder %s57, %s58
    %p67 = scmp.eq.s32.totalorder %s14, 0
    %p68 = por %p66, %p67
    %p69 = scmp.ne.s32.totalorder %s57, %s58
    %p70 = scmp.eq.s32.totalorder %s15, 1
    %p71 = por %p69, %p70
    %p73 = scmp.ne.s32.totalorder %s58, %s72
    %p74 = scmp.eq.s32.totalorder %s15, 0
    %p75 = por %p73, %p74
    %s77 = sadd.s32 %s76, 1
    %p80 = scmp.eq.s32.totalorder %s9, 1
    %p81 = scmp.ne.s32.totalorder %s76, %s78
    %p82 = scmp.eq.s32.totalorder %s9, 0
    %p83 = por %p81, %p82
    %p84 = scmp.ne.s32.totalorder %s76, %s78
    %p85 = scmp.eq.s32.totalorder %s14, 1
    %p86 = por %p84, %p85
    %p87 = scmp.ne.s32.totalorder %s78, %s79
    %p88 = scmp.eq.s32.totalorder %s14, 0
    %p89 = por %p87, %p88
    %p90 = scmp.ne.s32.totalorder %s78, %s79
    %p91 = scmp.eq.s32.totalorder %s15, 1
    %p92 = por %p90, %p91
    %p94 = scmp.ne.s32.totalorder %s79, %s93
    %p95 = scmp.eq.s32.totalorder %s15, 0
    %p96 = por %p94, %p95
    %s97 = ssub.s32 %s16, %s28
    %s98 = ssub.s32 %s17, %s24
    %s99 = sor.u32 %s97, %s98
    %p100 = scmp.eq.s32.totalorder %s99, 0
    %s102 = sadd.s32 %s101, 1
    %s103 = scalar_select %p100, %s101, %s102
    %p106 = pneg %p100
    %p107 = scmp.eq.s32.totalorder %s9, 1
    %p108 = por %p106, %p107
    %p109 = scmp.ne.s32.totalorder %s101, %s104
    %p110 = scmp.eq.s32.totalorder %s9, 0
    %p111 = por %p109, %p110
    %p112 = scmp.ne.s32.totalorder %s101, %s104
    %p113 = scmp.eq.s32.totalorder %s14, 1
    %p114 = por %p112, %p113
    %p115 = scmp.ne.s32.totalorder %s104, %s105
    %p116 = scmp.eq.s32.totalorder %s14, 0
    %p117 = por %p115, %p116
    %p118 = scmp.ne.s32.totalorder %s104, %s105
    %p119 = scmp.eq.s32.totalorder %s15, 1
    %p120 = por %p118, %p119
    %p122 = scmp.ne.s32.totalorder %s105, %s121
    %p123 = scmp.eq.s32.totalorder %s15, 0
    %p124 = por %p122, %p123
    %p125 = scmp.le.s32.totalorder 1, %s9
    %p126 = scmp.lt.s32.totalorder %s9, 3
    %p127 = pnand %p125, %p126
    %p128 = pneg %p127
    // Predicated region
    $region9: #{id_loss_forward.13} parent=5 // pred_check
      _
    $region10: #{id_loss_forward.13} parent=5 // pred_check_branch
      %130 = sbr.rel (%p127) target = $region12
    $region11: #{id_loss_forward.13} parent=5 // pred_region
      %s131 = ssub.s32 %s9, 1
      // Predicated region
      $region13: #{id_loss_forward.13} parent=11 // pred_check
        %p132 = pneg %p68
      $region14: #{id_loss_forward.13} parent=11 // pred_check_branch
        %134 = sbr.rel (%p132) target = $region16
      $region15: #{id_loss_forward.13} parent=11 // pred_region
        _
      $region16: #{id_loss_forward.13} parent=11 // pred_fallthru
        _
      // Predicated region
      $region17: #{id_loss_forward.13} parent=11 // pred_check
        %p135 = pneg %p89
      $region18: #{id_loss_forward.13} parent=11 // pred_check_branch
        %137 = sbr.rel (%p135) target = $region20
      $region19: #{id_loss_forward.13} parent=11 // pred_region
        _
      $region20: #{id_loss_forward.13} parent=11 // pred_fallthru
        _
    $region12: #{id_loss_forward.13} parent=5 // pred_fallthru
      _
    %p138 = scmp.lt.s32.totalorder %s9, 2
    // Predicated region
    $region21: #{id_loss_forward.13} parent=5 // pred_check
      %p139 = pneg %p138
    $region22: #{id_loss_forward.13} parent=5 // pred_check_branch
      %141 = sbr.rel (%p139) target = $region24
    $region23: #{id_loss_forward.13} parent=5 // pred_region
      // Predicated region
      $region25: #{id_loss_forward.13} parent=23 // pred_check
        %p142 = pneg %p41
      $region26: #{id_loss_forward.13} parent=23 // pred_check_branch
        %144 = sbr.rel (%p142) target = $region28
      $region27: #{id_loss_forward.13} parent=23 // pred_region
        %p145 = scmp.lt.s32.totalorder %s16, 1
        %s146 = scalar_select %p145, %s16, 1
        %s147 = smul.addr %s146, 232
        %s148 = smul.addr %s147, 4
        %s149 = scalar_lea.vmem %s0, %s148
      $region28: #{id_loss_forward.13} parent=23 // pred_fallthru
        _
    $region24: #{id_loss_forward.13} parent=5 // pred_fallthru
      _
    %p150 = scmp.le.s32.totalorder 1, %s9
    %p151 = scmp.lt.s32.totalorder %s9, 3
    %p152 = pnand %p150, %p151
    %p153 = pneg %p152
    // Predicated region
    $region29: #{id_loss_forward.13} parent=5 // pred_check
      _
    $region30: #{id_loss_forward.13} parent=5 // pred_check_branch
      %155 = sbr.rel (%p152) target = $region32
    $region31: #{id_loss_forward.13} parent=5 // pred_region
      %s156 = ssub.s32 %s9, 1
      %p157 = scmp.lt.s32.totalorder %s18, 1
      %s158 = scalar_select %p157, %s18, 1
      %s159 = smul.addr %s158, 232
      %s160 = smul.addr %s159, 4
      %s161 = scalar_lea.vmem %s0, %s160
      %p162 = pneg %p47
      %p163 = pneg %p44
      %p164 = pneg %p68
      %p165 = pneg %p65
      %p166 = pneg %p89
      %p167 = pneg %p86
      %p168 = pneg %p117
      %p169 = pneg %p114
      %s170 = smul.u32 28, %s19
      %p171 = scmp.lt.s32.totalorder %s18, 1
      %s172 = scalar_select %p171, %s18, 1
      %p173 = scmp.lt.s32.totalorder %s170, 27
      %s174 = scalar_select %p173, %s170, 27
      %s175 = smul.addr %s174, 2
      %s176 = smul.addr %s172, 56
      %s177 = sadd.s32 %s175, %s176
      %s178 = smul.addr %s177, 8
      %s179 = scalar_lea.vmem %s3, %s178
      %p180 = scmp.lt.s32.totalorder %s18, 1
      %s181 = scalar_select %p180, %s18, 1
      %s182 = smul.addr %s181, 232
      %s183 = smul.addr %s182, 4
      %s184 = scalar_lea.vmem %s0, %s183
      %s185 = smul.u32 28, %s19
      %p186 = scmp.lt.s32.totalorder %s18, 1
      %s187 = scalar_select %p186, %s18, 1
      %p188 = scmp.lt.s32.totalorder %s185, 27
      %s189 = scalar_select %p188, %s185, 27
      %s190 = smul.addr %s189, 2
      %s191 = smul.addr %s187, 56
      %s192 = sadd.s32 %s190, %s191
      %s193 = smul.addr %s192, 8
      %s194 = scalar_lea.vmem %s3, %s193
      %s195 = smul.u32 28, %s19
      %s197 = smul.u32 %s19, 28
      %v198 = vld [vmem:[%s2] sm:$0xff]
      %v199 = vld [vmem:[%s2 + $0x8] sm:$0xff]
      %v200 = vld [vmem:[%s2 + $0x10] sm:$0xff]
      %v201 = vld [vmem:[%s2 + $0x18] sm:$0xff]
      %v202 = vld [vmem:[%s1] sm:$0xff]
      %v203 = vld [vmem:[%s1 + $0x8] sm:$0xf]
      %v204 = vld [vmem:[%s1 + $0xc] sm:$0xff]
      %v205 = vld [vmem:[%s1 + $0x14] sm:$0xf]
      %v206 = vld [vmem:[%s1 + $0x18] sm:$0xff]
      %v207 = vld [vmem:[%s1 + $0x20] sm:$0xf]
      %v208 = vld [vmem:[%s1 + $0x24] sm:$0xff]
      %v209 = vld [vmem:[%s1 + $0x2c] sm:$0xf]
      loop: start=0, step=1, limit=28
      $region33: #{id_loss_forward.13} parent=31 // loop_pre_header
        _
      $region34: #{id_loss_forward.13} parent=31 // loop_header
        %s211 = sphi 0, %s215
        %p212 = scmp.ge.s32.totalorder %s211, 28
      $region35: #{id_loss_forward.13} parent=31 // loop_header_branch
        %214 = sbr.rel (%p212) target = $region39
      $region36: #{id_loss_forward.13} parent=31 // loop_body
        %s216 = sadd.s32 %s197, %s211
        %s217 = smul.u32 %s216, 4
        %s218 = smul.addr %s217, 4
        %s219 = scalar_lea.vmem %s184, %s218
        %v220 = vld [vmem:[%s219] sm:$0xf]
        %v221 = vld [vmem:[%s219 + $0x4] sm:$0xf]
        %v222 = vld [vmem:[%s219 + $0x8] sm:$0xf]
        %v223 = vld [vmem:[%s219 + $0xc] sm:$0xf]
        %s224 = sadd.s32 %s216, 29
        %s225 = smul.u32 %s224, 4
        %s226 = smul.addr %s225, 4
        %s227 = scalar_lea.vmem %s184, %s226
        %v228 = vld [vmem:[%s227] sm:$0xf]
        %v229 = vld [vmem:[%s227 + $0x4] sm:$0xf]
        %v230 = vld [vmem:[%s227 + $0x8] sm:$0xf]
        %v231 = vld [vmem:[%s227 + $0xc] sm:$0xf]
        %s232 = sadd.s32 %s216, 1
        %s233 = smul.u32 %s232, 4
        %s234 = smul.addr %s233, 4
        %s235 = scalar_lea.vmem %s184, %s234
        %v236 = vld [vmem:[%s235] sm:$0xf]
        %v237 = vld [vmem:[%s235 + $0x4] sm:$0xf]
        %v238 = vld [vmem:[%s235 + $0x8] sm:$0xf]
        %v239 = vld [vmem:[%s235 + $0xc] sm:$0xf]
        %v244 = vunpack.c.l.b16 %v220
        %v245 = vunpack.c.l.b16 %v221
        %v246 = vunpack.c.l.b16 %v222
        %v247 = vunpack.c.l.b16 %v223
        %v248 = vpack.c.b16 %v245, %v244
        %v249 = vpack.c.b16 %v247, %v246
        %252 = vrot.lane.b32.xlu0 %v248, 99
        %v253 = vpop.permute.xlu0 %252
        %254 = vrot.lane.b32.xlu0 %v249, 99
        %v255 = vpop.permute.xlu0 %254
        %258 = vrot.lane.b32.xlu0 %v248, 127
        %v259 = vpop.permute.xlu0 %258
        %260 = vrot.lane.b32.xlu0 %v249, 127
        %v261 = vpop.permute.xlu0 %260
        %v268 = vunpack.c.l.b16 %v228
        %v269 = vunpack.c.l.b16 %v229
        %v270 = vunpack.c.l.b16 %v230
        %v271 = vunpack.c.l.b16 %v231
        %v272 = vpack.c.b16 %v269, %v268
        %v273 = vpack.c.b16 %v271, %v270
        %276 = vrot.lane.b32.xlu0 %v272, 99
        %v277 = vpop.permute.xlu0 %276
        %278 = vrot.lane.b32.xlu0 %v273, 99
        %v279 = vpop.permute.xlu0 %278
        %282 = vrot.lane.b32.xlu0 %v272, 127
        %v283 = vpop.permute.xlu0 %282
        %284 = vrot.lane.b32.xlu0 %v273, 127
        %v285 = vpop.permute.xlu0 %284
        %v292 = vunpack.c.l.b16 %v236
        %v293 = vunpack.c.l.b16 %v237
        %v294 = vunpack.c.l.b16 %v238
        %v295 = vunpack.c.l.b16 %v239
        %v296 = vpack.c.b16 %v293, %v292
        %v297 = vpack.c.b16 %v295, %v294
        %300 = vrot.lane.b32.xlu0 %v296, 99
        %v301 = vpop.permute.xlu0 %300
        %302 = vrot.lane.b32.xlu0 %v297, 99
        %v303 = vpop.permute.xlu0 %302
        %306 = vrot.lane.b32.xlu0 %v296, 127
        %v307 = vpop.permute.xlu0 %306
        %308 = vrot.lane.b32.xlu0 %v297, 127
        %v309 = vpop.permute.xlu0 %308
        %v320 = vunpack.c.l.b16 %v202
        %v321 = vunpack.c.h.b16 %v202
        %v322 = vunpack.c.l.b16 %v203
        %v323 = vunpack.c.l.b16 %v204
        %v324 = vunpack.c.h.b16 %v204
        %v325 = vunpack.c.l.b16 %v205
        %v326 = vunpack.c.l.b16 %v206
        %v327 = vunpack.c.h.b16 %v206
        %v328 = vunpack.c.l.b16 %v207
        %v329 = vunpack.c.l.b16 %v208
        %v330 = vunpack.c.h.b16 %v208
        %v331 = vunpack.c.l.b16 %v209
        %v332 = vpack.c.b16 %v323, %v320
        %v333 = vpack.c.b16 %v324, %v321
        %v334 = vpack.c.b16 %v325, %v322
        %v335 = vpack.c.b16 %v329, %v326
        %v336 = vpack.c.b16 %v330, %v327
        %v337 = vpack.c.b16 %v331, %v328
        %vm342 = vcmask 261120
        %v344 = vsel %vm342, %v334, 0
        %v347 = vsel %vm342, %v337, 0
        %349 = vmatprep.subr.bf16.mxu0 0
        %350 = vmatpush1.bf16.msra.mxu0 %v248
        %351 = vmatprep.subr.bf16.mxu0 0
        %352 = vmatpush1.bf16.msra.mxu0 %v249
        %353 = vmatprep.subr.bf16.mxu0 0
        %354 = vmatpush1.bf16.msra.mxu0 %v253
        %355 = vmatprep.subr.bf16.mxu0 0
        %356 = vmatpush1.bf16.msra.mxu0 %v255
        %357 = vmatprep.subr.bf16.mxu0 0
        %358 = vmatpush1.bf16.msra.mxu0 %v259
        %359 = vmatprep.subr.bf16.mxu0 0
        %360 = vmatpush1.bf16.msra.mxu0 %v261
        %361 = vmatprep.subr.bf16.mxu0 0
        %362 = vmatpush1.bf16.msra.mxu0 %v272
        %363 = vmatprep.subr.bf16.mxu0 0
        %364 = vmatpush1.bf16.msra.mxu0 %v273
        %365 = vmatprep.subr.bf16.mxu0 0
        %366 = vmatpush1.bf16.msra.mxu0 %v277
        %367 = vmatprep.subr.bf16.mxu0 0
        %368 = vmatpush1.bf16.msra.mxu0 %v279
        %369 = vmatprep.subr.bf16.mxu0 0
        %370 = vmatpush1.bf16.msra.mxu0 %v283
        %371 = vmatprep.subr.bf16.mxu0 0
        %372 = vmatpush1.bf16.msra.mxu0 %v285
        %373 = vmatprep.subr.bf16.mxu0 0
        %374 = vmatpush1.bf16.msra.mxu0 %v296
        %375 = vmatprep.subr.bf16.mxu0 0
        %376 = vmatpush1.bf16.msra.mxu0 %v297
        %377 = vmatprep.subr.bf16.mxu0 0
        %378 = vmatpush1.bf16.msra.mxu0 %v301
        %379 = vmatprep.subr.bf16.mxu0 0
        %380 = vmatpush1.bf16.msra.mxu0 %v303
        %381 = vmatprep.mubr.bf16.mxu0 %v333
        %382 = vmatmul.mubr.bf16.gmra.mrb[0].mxu0 %v332
        %v383 = vpop.f32.mrb[0].mxu0
        %v384 = vadd.f32 0.0, %v383
        %v385 = vpop.f32.mrb[0].mxu0
        %v386 = vpop.f32.mrb[0].mxu0
        %v387 = vadd.f32 0.0, %v386
        %v388 = vpop.f32.mrb[0].mxu0
        %389 = vmatprep.mubr.bf16.mxu0 %v336
        %390 = vmatmul.mubr.bf16.gmra.mrb[0].mxu0 %v335
        %v391 = vpop.f32.mrb[0].mxu0
        %v392 = vadd.f32 0.0, %v391
        %v393 = vpop.f32.mrb[0].mxu0
        %v394 = vpop.f32.mrb[0].mxu0
        %v395 = vadd.f32 0.0, %v394
        %v396 = vpop.f32.mrb[0].mxu0
        %397 = vdwg.mxu0
        %398 = vmatprep.subr.bf16.mxu0 0
        %399 = vmatpush1.bf16.msra.mxu0 %v307
        %400 = vmatprep.subr.bf16.mxu0 0
        %401 = vmatpush1.bf16.msra.mxu0 %v309
        %402 = vmatprep.subr.bf16.mxu0 0
        %403 = vmatpush1.bf16.msra.mxu0 0
        %404 = vmatprep.subr.bf16.mxu0 0
        %405 = vmatpush1.bf16.msra.mxu0 0
        %406 = vmatprep.subr.bf16.mxu0 0
        %407 = vmatpush1.bf16.msra.mxu0 0
        %408 = vmatprep.subr.bf16.mxu0 0
        %409 = vmatpush1.bf16.msra.mxu0 0
        %410 = vmatprep.subr.bf16.mxu0 0
        %411 = vmatpush1.bf16.msra.mxu0 0
        %412 = vmatprep.subr.bf16.mxu0 0
        %413 = vmatpush1.bf16.msra.mxu0 0
        %414 = vmatprep.subr.bf16.mxu0 0
        %415 = vmatpush1.bf16.msra.mxu0 0
        %416 = vmatprep.subr.bf16.mxu0 0
        %417 = vmatpush1.bf16.msra.mxu0 0
        %418 = vmatprep.subr.bf16.mxu0 0
        %419 = vmatpush1.bf16.msra.mxu0 0
        %420 = vmatprep.subr.bf16.mxu0 0
        %421 = vmatpush1.bf16.msra.mxu0 0
        %422 = vmatprep.subr.bf16.mxu0 0
        %423 = vmatpush1.bf16.msra.mxu0 0
        %424 = vmatprep.subr.bf16.mxu0 0
        %425 = vmatpush1.bf16.msra.mxu0 0
        %426 = vmatprep.subr.bf16.mxu0 0
        %427 = vmatpush1.bf16.msra.mxu0 0
        %428 = vmatprep.subr.bf16.mxu0 0
        %429 = vmatpush1.bf16.msra.mxu0 0
        %430 = vmatprep.mubr.bf16.mxu0 0
        %431 = vmatmul.mubr.bf16.gmra.mrb[0].mxu0 %v344
        %v432 = vpop.f32.mrb[0].mxu0
        %v433 = vadd.f32 %v384, %v432
        %v434 = vpop.f32.mrb[0].mxu0
        %v435 = vpop.f32.mrb[0].mxu0
        %v436 = vadd.f32 %v387, %v435
        %v437 = vpop.f32.mrb[0].mxu0
        %438 = vmatprep.mubr.bf16.mxu0 0
        %439 = vmatmul.mubr.bf16.gmra.mrb[0].mxu0 %v347
        %v440 = vpop.f32.mrb[0].mxu0
        %v441 = vadd.f32 %v392, %v440
        %v442 = vpop.f32.mrb[0].mxu0
        %v443 = vpop.f32.mrb[0].mxu0
        %v444 = vadd.f32 %v395, %v443
        %v445 = vpop.f32.mrb[0].mxu0
        %446 = vdwg.mxu0
        %448 = vset.pattern.permute.xlu0 0
        %449 = vperm.xlu0 %448, %v198
        %v450 = vpop.permute.xlu0 %449
        %453 = vset.pattern.permute.xlu0 0
        %454 = vperm.xlu0 %453, %v199
        %v455 = vpop.permute.xlu0 %454
        %458 = vset.pattern.permute.xlu0 0
        %459 = vperm.xlu0 %458, %v200
        %v460 = vpop.permute.xlu0 %459
        %463 = vset.pattern.permute.xlu0 0
        %464 = vperm.xlu0 %463, %v201
        %v465 = vpop.permute.xlu0 %464
        %v467 = vmul.f32 %v433, %v450
        %v468 = vmul.f32 %v436, %v455
        %v469 = vmul.f32 %v441, %v460
        %v470 = vmul.f32 %v444, %v465
        %471 = vset.pattern.permute.xlu0 1
        %472 = vperm.xlu0 %471, %v198
        %v473 = vpop.permute.xlu0 %472
        %475 = vset.pattern.permute.xlu0 1
        %476 = vperm.xlu0 %475, %v199
        %v477 = vpop.permute.xlu0 %476
        %479 = vset.pattern.permute.xlu0 1
        %480 = vperm.xlu0 %479, %v200
        %v481 = vpop.permute.xlu0 %480
        %483 = vset.pattern.permute.xlu0 1
        %484 = vperm.xlu0 %483, %v201
        %v485 = vpop.permute.xlu0 %484
        %v487 = vadd.f32 %v467, %v473
        %v488 = vadd.f32 %v468, %v477
        %v489 = vadd.f32 %v469, %v481
        %v490 = vadd.f32 %v470, %v485
        %vm491 = vcmp.gt.f32.partialorder %v487, 0.0
        %vm492 = vcmp.gt.f32.partialorder %v488, 0.0
        %vm493 = vcmp.gt.f32.partialorder %v489, 0.0
        %vm494 = vcmp.gt.f32.partialorder %v490, 0.0
        %495 = vset.pattern.permute.xlu0 2
        %496 = vperm.xlu0 %495, %v198
        %v497 = vpop.permute.xlu0 %496
        %499 = vset.pattern.permute.xlu0 2
        %500 = vperm.xlu0 %499, %v199
        %v501 = vpop.permute.xlu0 %500
        %503 = vset.pattern.permute.xlu0 2
        %504 = vperm.xlu0 %503, %v200
        %v505 = vpop.permute.xlu0 %504
        %507 = vset.pattern.permute.xlu0 2
        %508 = vperm.xlu0 %507, %v201
        %v509 = vpop.permute.xlu0 %508
        %v511 = vmul.f32 %v497, %v487
        %v512 = vmul.f32 %v501, %v488
        %v513 = vmul.f32 %v505, %v489
        %v514 = vmul.f32 %v509, %v490
        %v515 = vsel %vm491, %v487, %v511
        %v516 = vsel %vm492, %v488, %v512
        %v517 = vsel %vm493, %v489, %v513
        %v518 = vsel %vm494, %v490, %v514
        %v519 = vpack.c.bf16 %v516, %v515
        %v520 = vpack.c.bf16 %v518, %v517
        %s521 = smul.u32 %s211, 2
        %s522 = smul.addr %s521, 8
        %s523 = scalar_lea.vmem %s194, %s522
        %vm524 = vcmask 228352
        %525 = vst.msk [vmem:[%s523] sm:$0xff] %vm524, %v519
        %526 = vst.msk [vmem:[%s523 + $0x8] sm:$0xff] %vm524, %v520
      $region37: #{id_loss_forward.13} parent=31 // loop_footer
        %s215 = sadd.s32 1, %s211
      $region38: #{id_loss_forward.13} parent=31 // loop_footer_branch
        %210 = sbr.rel target = $region34
      $region39: #{id_loss_forward.13} parent=31 // loop_exit
        _
      %s527 = smul.u32 28, %s19
      %p528 = scmp.lt.s32.totalorder %s18, 1
      %s529 = scalar_select %p528, %s18, 1
      %p530 = scmp.lt.s32.totalorder %s527, 27
      %s531 = scalar_select %p530, %s527, 27
      %s532 = smul.addr %s531, 2
      %s533 = smul.addr %s529, 56
      %s534 = sadd.s32 %s532, %s533
      %s535 = smul.addr %s534, 8
      %s536 = scalar_lea.vmem %s3, %s535
      // Predicated region
      $region40: #{id_loss_forward.13} parent=31 // pred_check
        %p537 = pneg %p114
      $region41: #{id_loss_forward.13} parent=31 // pred_check_branch
        %539 = sbr.rel (%p537) target = $region43
      $region42: #{id_loss_forward.13} parent=31 // pred_region
        %s540 = smul.u32 28, %s19
      $region43: #{id_loss_forward.13} parent=31 // pred_fallthru
        _
    $region32: #{id_loss_forward.13} parent=5 // pred_fallthru
      _
    %p541 = scmp.le.s32.totalorder 2, %s9
    // Predicated region
    $region44: #{id_loss_forward.13} parent=5 // pred_check
      %p542 = pneg %p541
    $region45: #{id_loss_forward.13} parent=5 // pred_check_branch
      %544 = sbr.rel (%p542) target = $region47
    $region46: #{id_loss_forward.13} parent=5 // pred_region
      %s545 = ssub.s32 %s9, 2
      // Predicated region
      $region48: #{id_loss_forward.13} parent=46 // pred_check
        %p546 = pneg %p120
      $region49: #{id_loss_forward.13} parent=46 // pred_check_branch
        %548 = sbr.rel (%p546) target = $region51
      $region50: #{id_loss_forward.13} parent=46 // pred_region
        %s549 = smul.u32 28, %s21
        %p550 = scmp.lt.s32.totalorder %s20, 1
        %s551 = scalar_select %p550, %s20, 1
        %p552 = scmp.lt.s32.totalorder %s549, 27
        %s553 = scalar_select %p552, %s549, 27
        %s554 = smul.addr %s553, 2
        %s555 = smul.addr %s551, 56
        %s556 = sadd.s32 %s554, %s555
        %s557 = smul.addr %s556, 8
        %s558 = scalar_lea.vmem %s3, %s557
      $region51: #{id_loss_forward.13} parent=46 // pred_fallthru
        _
    $region47: #{id_loss_forward.13} parent=5 // pred_fallthru
      _
  $region6: #{id_loss_forward.13} parent=0 // loop_footer
    %s13 = sadd.s32 1, %s9
  $region7: #{id_loss_forward.13} parent=0 // loop_footer_branch
    %8 = sbr.rel target = $region3
  $region8: #{id_loss_forward.13} parent=0 // loop_exit
    _

// kernel: id_loss_forward.14
$region0: #{id_loss_forward.14}
  #allocation0 [shape = 'u32[]', space=smem, size = 0x4, offset = 0x4, fixed_abs, tag = 'smem constant byte address 0x4 - core index']
  #allocation1 [shape = 'u32[144,128]{1,0:T(1,128)}', space=vmem, size = 0x12000, scoped, tag = 'internal scratch']
  %s0 = inlined_call_operand.vmem [shape: bf16[2,30,32,30], index: 0, kind: input, shape index: {}]
  %s1 = inlined_call_operand.vmem [shape: bf16[32,288], index: 1, kind: input, shape index: {}]
  %s2 = inlined_call_operand.vmem [shape: f32[32,3], index: 2, kind: input, shape index: {}]
  %s3 = inlined_call_operand.vmem [shape: bf16[2,28,32,28], index: 3, kind: output, shape index: {}]
  %s4 = sld [smem:[#allocation0]]
  $region52: #{id_loss_forward.14} parent=0
    _
  %s6 = ssub.s32 1, %s4
  %s7 = scalar_select 0, %s6, %s4
  loop: start=0, step=1, limit=4
  $region2: #{id_loss_forward.14} parent=0 // loop_pre_header
    _
  $region3: #{id_loss_forward.14} parent=0 // loop_header
    %s9 = sphi 0, %s13
    %p10 = scmp.ge.s32.totalorder %s9, 4
    %s16 = sphi 0, %s28
    %s17 = sphi 0, %s24
    %s18 = sphi 0, %s16
    %s19 = sphi 0, %s17
    %s20 = sphi 0, %s18
    %s21 = sphi 0, %s19
    %s31 = sphi 0, %s33
    %s34 = sphi 0, %s31
    %s35 = sphi 0, %s34
    %s51 = sphi 0, %s35
    %s55 = sphi 0, %s55
    %s57 = sphi 0, %s55
    %s58 = sphi 0, %s57
    %s72 = sphi 0, %s58
    %s76 = sphi 0, %s76
    %s78 = sphi 0, %s76
    %s79 = sphi 0, %s78
    %s93 = sphi 0, %s79
    %s101 = sphi 0, %s103
    %s104 = sphi 0, %s101
    %s105 = sphi 0, %s104
    %s121 = sphi 0, %s105
  $region4: #{id_loss_forward.14} parent=0 // loop_header_branch
    %12 = sbr.rel (%p10) target = $region8
  $region5: #{id_loss_forward.14} parent=0 // loop_body
    %s14 = ssub.s32 %s9, 1
    %s15 = ssub.s32 %s9, 2
    %s22 = sadd.s32 1, %s17
    %p23 = scmp.ge.s32.totalorder %s22, 1
    %s24 = scalar_select %p23, 0, %s22
    %s25 = sadd.s32 1, %s16
    %s26 = scalar_select %p23, %s25, %s16
    %p27 = scmp.ge.s32.totalorder %s26, 2
    %s28 = scalar_select %p27, 0, %s26
    %s29 = ssub.s32 %s16, %s28
    %p30 = scmp.eq.s32.totalorder %s29, 0
    %s32 = sadd.s32 %s31, 1
    %s33 = scalar_select %p30, %s31, %s32
    %p36 = pneg %p30
    %p37 = scmp.eq.s32.totalorder %s9, 1
    %p38 = por %p36, %p37
    %p39 = scmp.ne.s32.totalorder %s31, %s34
    %p40 = scmp.eq.s32.totalorder %s9, 0
    %p41 = por %p39, %p40
    %p42 = scmp.ne.s32.totalorder %s31, %s34
    %p43 = scmp.eq.s32.totalorder %s14, 1
    %p44 = por %p42, %p43
    %p45 = scmp.ne.s32.totalorder %s34, %s35
    %p46 = scmp.eq.s32.totalorder %s14, 0
    %p47 = por %p45, %p46
    %p48 = scmp.ne.s32.totalorder %s34, %s35
    %p49 = scmp.eq.s32.totalorder %s15, 1
    %p50 = por %p48, %p49
    %p52 = scmp.ne.s32.totalorder %s35, %s51
    %p53 = scmp.eq.s32.totalorder %s15, 0
    %p54 = por %p52, %p53
    %s56 = sadd.s32 %s55, 1
    %p59 = scmp.eq.s32.totalorder %s9, 1
    %p60 = scmp.ne.s32.totalorder %s55, %s57
    %p61 = scmp.eq.s32.totalorder %s9, 0
    %p62 = por %p60, %p61
    %p63 = scmp.ne.s32.totalorder %s55, %s57
    %p64 = scmp.eq.s32.totalorder %s14, 1
    %p65 = por %p63, %p64
    %p66 = scmp.ne.s32.totalorder %s57, %s58
    %p67 = scmp.eq.s32.totalorder %s14, 0
    %p68 = por %p66, %p67
    %p69 = scmp.ne.s32.totalorder %s57, %s58
    %p70 = scmp.eq.s32.totalorder %s15, 1
    %p71 = por %p69, %p70
    %p73 = scmp.ne.s32.totalorder %s58, %s72
    %p74 = scmp.eq.s32.totalorder %s15, 0
    %p75 = por %p73, %p74
    %s77 = sadd.s32 %s76, 1
    %p80 = scmp.eq.s32.totalorder %s9, 1
    %p81 = scmp.ne.s32.totalorder %s76, %s78
    %p82 = scmp.eq.s32.totalorder %s9, 0
    %p83 = por %p81, %p82
    %p84 = scmp.ne.s32.totalorder %s76, %s78
    %p85 = scmp.eq.s32.totalorder %s14, 1
    %p86 = por %p84, %p85
    %p87 = scmp.ne.s32.totalorder %s78, %s79
    %p88 = scmp.eq.s32.totalorder %s14, 0
    %p89 = por %p87, %p88
    %p90 = scmp.ne.s32.totalorder %s78, %s79
    %p91 = scmp.eq.s32.totalorder %s15, 1
    %p92 = por %p90, %p91
    %p94 = scmp.ne.s32.totalorder %s79, %s93
    %p95 = scmp.eq.s32.totalorder %s15, 0
    %p96 = por %p94, %p95
    %s97 = ssub.s32 %s16, %s28
    %s98 = ssub.s32 %s17, %s24
    %s99 = sor.u32 %s97, %s98
    %p100 = scmp.eq.s32.totalorder %s99, 0
    %s102 = sadd.s32 %s101, 1
    %s103 = scalar_select %p100, %s101, %s102
    %p106 = pneg %p100
    %p107 = scmp.eq.s32.totalorder %s9, 1
    %p108 = por %p106, %p107
    %p109 = scmp.ne.s32.totalorder %s101, %s104
    %p110 = scmp.eq.s32.totalorder %s9, 0
    %p111 = por %p109, %p110
    %p112 = scmp.ne.s32.totalorder %s101, %s104
    %p113 = scmp.eq.s32.totalorder %s14, 1
    %p114 = por %p112, %p113
    %p115 = scmp.ne.s32.totalorder %s104, %s105
    %p116 = scmp.eq.s32.totalorder %s14, 0
    %p117 = por %p115, %p116
    %p118 = scmp.ne.s32.totalorder %s104, %s105
    %p119 = scmp.eq.s32.totalorder %s15, 1
    %p120 = por %p118, %p119
    %p122 = scmp.ne.s32.totalorder %s105, %s121
    %p123 = scmp.eq.s32.totalorder %s15, 0
    %p124 = por %p122, %p123
    %p125 = scmp.le.s32.totalorder 1, %s9
    %p126 = scmp.lt.s32.totalorder %s9, 3
    %p127 = pnand %p125, %p126
    %p128 = pneg %p127
    // Predicated region
    $region9: #{id_loss_forward.14} parent=5 // pred_check
      _
    $region10: #{id_loss_forward.14} parent=5 // pred_check_branch
      %130 = sbr.rel (%p127) target = $region12
    $region11: #{id_loss_forward.14} parent=5 // pred_region
      %s131 = ssub.s32 %s9, 1
      // Predicated region
      $region13: #{id_loss_forward.14} parent=11 // pred_check
        %p132 = pneg %p68
      $region14: #{id_loss_forward.14} parent=11 // pred_check_branch
        %134 = sbr.rel (%p132) target = $region16
      $region15: #{id_loss_forward.14} parent=11 // pred_region
        _
      $region16: #{id_loss_forward.14} parent=11 // pred_fallthru
        _
      // Predicated region
      $region17: #{id_loss_forward.14} parent=11 // pred_check
        %p135 = pneg %p89
      $region18: #{id_loss_forward.14} parent=11 // pred_check_branch
        %137 = sbr.rel (%p135) target = $region20
      $region19: #{id_loss_forward.14} parent=11 // pred_region
        _
      $region20: #{id_loss_forward.14} parent=11 // pred_fallthru
        _
    $region12: #{id_loss_forward.14} parent=5 // pred_fallthru
      _
    %p138 = scmp.lt.s32.totalorder %s9, 2
    // Predicated region
    $region21: #{id_loss_forward.14} parent=5 // pred_check
      %p139 = pneg %p138
    $region22: #{id_loss_forward.14} parent=5 // pred_check_branch
      %141 = sbr.rel (%p139) target = $region24
    $region23: #{id_loss_forward.14} parent=5 // pred_region
      // Predicated region
      $region25: #{id_loss_forward.14} parent=23 // pred_check
        %p142 = pneg %p41
      $region26: #{id_loss_forward.14} parent=23 // pred_check_branch
        %144 = sbr.rel (%p142) target = $region28
      $region27: #{id_loss_forward.14} parent=23 // pred_region
        %p145 = scmp.lt.s32.totalorder %s16, 1
        %s146 = scalar_select %p145, %s16, 1
        %s147 = smul.addr %s146, 120
        %s148 = smul.addr %s147, 4
        %s149 = scalar_lea.vmem %s0, %s148
      $region28: #{id_loss_forward.14} parent=23 // pred_fallthru
        _
    $region24: #{id_loss_forward.14} parent=5 // pred_fallthru
      _
    %p150 = scmp.le.s32.totalorder 1, %s9
    %p151 = scmp.lt.s32.totalorder %s9, 3
    %p152 = pnand %p150, %p151
    %p153 = pneg %p152
    // Predicated region
    $region29: #{id_loss_forward.14} parent=5 // pred_check
      _
    $region30: #{id_loss_forward.14} parent=5 // pred_check_branch
      %155 = sbr.rel (%p152) target = $region32
    $region31: #{id_loss_forward.14} parent=5 // pred_region
      %s156 = ssub.s32 %s9, 1
      %p157 = scmp.lt.s32.totalorder %s18, 1
      %s158 = scalar_select %p157, %s18, 1
      %s159 = smul.addr %s158, 120
      %s160 = smul.addr %s159, 4
      %s161 = scalar_lea.vmem %s0, %s160
      %p162 = pneg %p47
      %p163 = pneg %p44
      %p164 = pneg %p68
      %p165 = pneg %p65
      %p166 = pneg %p89
      %p167 = pneg %p86
      %p168 = pneg %p117
      %p169 = pneg %p114
      %s170 = smul.u32 28, %s19
      %p171 = scmp.lt.s32.totalorder %s18, 1
      %s172 = scalar_select %p171, %s18, 1
      %p173 = scmp.lt.s32.totalorder %s170, 27
      %s174 = scalar_select %p173, %s170, 27
      %s175 = smul.addr %s174, 4
      %s176 = smul.addr %s172, 112
      %s177 = sadd.s32 %s175, %s176
      %s178 = smul.addr %s177, 4
      %s179 = scalar_lea.vmem %s3, %s178
      %p180 = scmp.lt.s32.totalorder %s18, 1
      %s181 = scalar_select %p180, %s18, 1
      %s182 = smul.addr %s181, 120
      %s183 = smul.addr %s182, 4
      %s184 = scalar_lea.vmem %s0, %s183
      %s185 = smul.u32 28, %s19
      %p186 = scmp.lt.s32.totalorder %s18, 1
      %s187 = scalar_select %p186, %s18, 1
      %p188 = scmp.lt.s32.totalorder %s185, 27
      %s189 = scalar_select %p188, %s185, 27
      %s190 = smul.addr %s189, 4
      %s191 = smul.addr %s187, 112
      %s192 = sadd.s32 %s190, %s191
      %s193 = smul.addr %s192, 4
      %s194 = scalar_lea.vmem %s3, %s193
      %s195 = smul.u32 28, %s19
      %s197 = smul.u32 %s19, 28
      %v198 = vld [vmem:[%s2] sm:$0xff]
      %v199 = vld [vmem:[%s2 + $0x8] sm:$0xff]
      %v200 = vld [vmem:[%s2 + $0x10] sm:$0xff]
      %v201 = vld [vmem:[%s2 + $0x18] sm:$0xff]
      %v202 = vld [vmem:[%s1] sm:$0xff]
      %v203 = vld [vmem:[%s1 + $0x8] sm:$0xf]
      %v204 = vld [vmem:[%s1 + $0xc] sm:$0xff]
      %v205 = vld [vmem:[%s1 + $0x14] sm:$0xf]
      %v206 = vld [vmem:[%s1 + $0x18] sm:$0xff]
      %v207 = vld [vmem:[%s1 + $0x20] sm:$0xf]
      %v208 = vld [vmem:[%s1 + $0x24] sm:$0xff]
      %v209 = vld [vmem:[%s1 + $0x2c] sm:$0xf]
      loop: start=0, step=1, limit=28
      $region33: #{id_loss_forward.14} parent=31 // loop_pre_header
        _
      $region34: #{id_loss_forward.14} parent=31 // loop_header
        %s211 = sphi 0, %s215
        %p212 = scmp.ge.s32.totalorder %s211, 28
      $region35: #{id_loss_forward.14} parent=31 // loop_header_branch
        %214 = sbr.rel (%p212) target = $region39
      $region36: #{id_loss_forward.14} parent=31 // loop_body
        %s216 = sadd.s32 %s197, %s211
        %s217 = smul.u32 %s216, 4
        %s218 = smul.addr %s217, 4
        %s219 = scalar_lea.vmem %s184, %s218
        %v220 = vld [vmem:[%s219] sm:$0xf]
        %v221 = vld [vmem:[%s219 + $0x4] sm:$0xf]
        %v222 = vld [vmem:[%s219 + $0x8] sm:$0xf]
        %v223 = vld [vmem:[%s219 + $0xc] sm:$0xf]
        %s224 = sadd.s32 %s216, 1
        %s225 = smul.u32 %s224, 4
        %s226 = smul.addr %s225, 4
        %s227 = scalar_lea.vmem %s184, %s226
        %v228 = vld [vmem:[%s227] sm:$0xf]
        %v229 = vld [vmem:[%s227 + $0x4] sm:$0xf]
        %v230 = vld [vmem:[%s227 + $0x8] sm:$0xf]
        %v231 = vld [vmem:[%s227 + $0xc] sm:$0xf]
        %s232 = sadd.s32 %s216, 2
        %s233 = smul.u32 %s232, 4
        %s234 = smul.addr %s233, 4
        %s235 = scalar_lea.vmem %s184, %s234
        %v236 = vld [vmem:[%s235] sm:$0xf]
        %v237 = vld [vmem:[%s235 + $0x4] sm:$0xf]
        %v238 = vld [vmem:[%s235 + $0x8] sm:$0xf]
        %v239 = vld [vmem:[%s235 + $0xc] sm:$0xf]
        %v244 = vunpack.c.l.b16 %v220
        %v245 = vunpack.c.l.b16 %v221
        %v246 = vunpack.c.l.b16 %v222
        %v247 = vunpack.c.l.b16 %v223
        %v248 = vpack.c.b16 %v245, %v244
        %v249 = vpack.c.b16 %v247, %v246
        %252 = vrot.lane.b32.xlu0 %v248, 127
        %v253 = vpop.permute.xlu0 %252
        %254 = vrot.lane.b32.xlu0 %v249, 127
        %v255 = vpop.permute.xlu0 %254
        %258 = vrot.lane.b32.xlu0 %v248, 126
        %v259 = vpop.permute.xlu0 %258
        %260 = vrot.lane.b32.xlu0 %v249, 126
        %v261 = vpop.permute.xlu0 %260
        %v268 = vunpack.c.l.b16 %v228
        %v269 = vunpack.c.l.b16 %v229
        %v270 = vunpack.c.l.b16 %v230
        %v271 = vunpack.c.l.b16 %v231
        %v272 = vpack.c.b16 %v269, %v268
        %v273 = vpack.c.b16 %v271, %v270
        %276 = vrot.lane.b32.xlu0 %v272, 127
        %v277 = vpop.permute.xlu0 %276
        %278 = vrot.lane.b32.xlu0 %v273, 127
        %v279 = vpop.permute.xlu0 %278
        %282 = vrot.lane.b32.xlu0 %v272, 126
        %v283 = vpop.permute.xlu0 %282
        %284 = vrot.lane.b32.xlu0 %v273, 126
        %v285 = vpop.permute.xlu0 %284
        %v292 = vunpack.c.l.b16 %v236
        %v293 = vunpack.c.l.b16 %v237
        %v294 = vunpack.c.l.b16 %v238
        %v295 = vunpack.c.l.b16 %v239
        %v296 = vpack.c.b16 %v293, %v292
        %v297 = vpack.c.b16 %v295, %v294
        %300 = vrot.lane.b32.xlu0 %v296, 127
        %v301 = vpop.permute.xlu0 %300
        %302 = vrot.lane.b32.xlu0 %v297, 127
        %v303 = vpop.permute.xlu0 %302
        %306 = vrot.lane.b32.xlu0 %v296, 126
        %v307 = vpop.permute.xlu0 %306
        %308 = vrot.lane.b32.xlu0 %v297, 126
        %v309 = vpop.permute.xlu0 %308
        %v320 = vunpack.c.l.b16 %v202
        %v321 = vunpack.c.h.b16 %v202
        %v322 = vunpack.c.l.b16 %v203
        %v323 = vunpack.c.l.b16 %v204
        %v324 = vunpack.c.h.b16 %v204
        %v325 = vunpack.c.l.b16 %v205
        %v326 = vunpack.c.l.b16 %v206
        %v327 = vunpack.c.h.b16 %v206
        %v328 = vunpack.c.l.b16 %v207
        %v329 = vunpack.c.l.b16 %v208
        %v330 = vunpack.c.h.b16 %v208
        %v331 = vunpack.c.l.b16 %v209
        %v332 = vpack.c.b16 %v323, %v320
        %v333 = vpack.c.b16 %v324, %v321
        %v334 = vpack.c.b16 %v325, %v322
        %v335 = vpack.c.b16 %v329, %v326
        %v336 = vpack.c.b16 %v330, %v327
        %v337 = vpack.c.b16 %v331, %v328
        %vm342 = vcmask 261120
        %v344 = vsel %vm342, %v334, 0
        %v347 = vsel %vm342, %v337, 0
        %349 = vmatprep.subr.bf16.mxu0 0
        %350 = vmatpush1.bf16.msra.mxu0 %v248
        %351 = vmatprep.subr.bf16.mxu0 0
        %352 = vmatpush1.bf16.msra.mxu0 %v249
        %353 = vmatprep.subr.bf16.mxu0 0
        %354 = vmatpush1.bf16.msra.mxu0 %v253
        %355 = vmatprep.subr.bf16.mxu0 0
        %356 = vmatpush1.bf16.msra.mxu0 %v255
        %357 = vmatprep.subr.bf16.mxu0 0
        %358 = vmatpush1.bf16.msra.mxu0 %v259
        %359 = vmatprep.subr.bf16.mxu0 0
        %360 = vmatpush1.bf16.msra.mxu0 %v261
        %361 = vmatprep.subr.bf16.mxu0 0
        %362 = vmatpush1.bf16.msra.mxu0 %v272
        %363 = vmatprep.subr.bf16.mxu0 0
        %364 = vmatpush1.bf16.msra.mxu0 %v273
        %365 = vmatprep.subr.bf16.mxu0 0
        %366 = vmatpush1.bf16.msra.mxu0 %v277
        %367 = vmatprep.subr.bf16.mxu0 0
        %368 = vmatpush1.bf16.msra.mxu0 %v279
        %369 = vmatprep.subr.bf16.mxu0 0
        %370 = vmatpush1.bf16.msra.mxu0 %v283
        %371 = vmatprep.subr.bf16.mxu0 0
        %372 = vmatpush1.bf16.msra.mxu0 %v285
        %373 = vmatprep.subr.bf16.mxu0 0
        %374 = vmatpush1.bf16.msra.mxu0 %v296
        %375 = vmatprep.subr.bf16.mxu0 0
        %376 = vmatpush1.bf16.msra.mxu0 %v297
        %377 = vmatprep.subr.bf16.mxu0 0
        %378 = vmatpush1.bf16.msra.mxu0 %v301
        %379 = vmatprep.subr.bf16.mxu0 0
        %380 = vmatpush1.bf16.msra.mxu0 %v303
        %381 = vmatprep.mubr.bf16.mxu0 %v333
        %382 = vmatmul.mubr.bf16.gmra.mrb[0].mxu0 %v332
        %v383 = vpop.f32.mrb[0].mxu0
        %v384 = vadd.f32 0.0, %v383
        %v385 = vpop.f32.mrb[0].mxu0
        %v386 = vpop.f32.mrb[0].mxu0
        %v387 = vadd.f32 0.0, %v386
        %v388 = vpop.f32.mrb[0].mxu0
        %389 = vmatprep.mubr.bf16.mxu0 %v336
        %390 = vmatmul.mubr.bf16.gmra.mrb[0].mxu0 %v335
        %v391 = vpop.f32.mrb[0].mxu0
        %v392 = vadd.f32 0.0, %v391
        %v393 = vpop.f32.mrb[0].mxu0
        %v394 = vpop.f32.mrb[0].mxu0
        %v395 = vadd.f32 0.0, %v394
        %v396 = vpop.f32.mrb[0].mxu0
        %397 = vdwg.mxu0
        %398 = vmatprep.subr.bf16.mxu0 0
        %399 = vmatpush1.bf16.msra.mxu0 %v307
        %400 = vmatprep.subr.bf16.mxu0 0
        %401 = vmatpush1.bf16.msra.mxu0 %v309
        %402 = vmatprep.subr.bf16.mxu0 0
        %403 = vmatpush1.bf16.msra.mxu0 0
        %404 = vmatprep.subr.bf16.mxu0 0
        %405 = vmatpush1.bf16.msra.mxu0 0
        %406 = vmatprep.subr.bf16.mxu0 0
        %407 = vmatpush1.bf16.msra.mxu0 0
        %408 = vmatprep.subr.bf16.mxu0 0
        %409 = vmatpush1.bf16.msra.mxu0 0
        %410 = vmatprep.subr.bf16.mxu0 0
        %411 = vmatpush1.bf16.msra.mxu0 0
        %412 = vmatprep.subr.bf16.mxu0 0
        %413 = vmatpush1.bf16.msra.mxu0 0
        %414 = vmatprep.subr.bf16.mxu0 0
        %415 = vmatpush1.bf16.msra.mxu0 0
        %416 = vmatprep.subr.bf16.mxu0 0
        %417 = vmatpush1.bf16.msra.mxu0 0
        %418 = vmatprep.subr.bf16.mxu0 0
        %419 = vmatpush1.bf16.msra.mxu0 0
        %420 = vmatprep.subr.bf16.mxu0 0
        %421 = vmatpush1.bf16.msra.mxu0 0
        %422 = vmatprep.subr.bf16.mxu0 0
        %423 = vmatpush1.bf16.msra.mxu0 0
        %424 = vmatprep.subr.bf16.mxu0 0
        %425 = vmatpush1.bf16.msra.mxu0 0
        %426 = vmatprep.subr.bf16.mxu0 0
        %427 = vmatpush1.bf16.msra.mxu0 0
        %428 = vmatprep.subr.bf16.mxu0 0
        %429 = vmatpush1.bf16.msra.mxu0 0
        %430 = vmatprep.mubr.bf16.mxu0 0
        %431 = vmatmul.mubr.bf16.gmra.mrb[0].mxu0 %v344
        %v432 = vpop.f32.mrb[0].mxu0
        %v433 = vadd.f32 %v384, %v432
        %v434 = vpop.f32.mrb[0].mxu0
        %v435 = vpop.f32.mrb[0].mxu0
        %v436 = vadd.f32 %v387, %v435
        %v437 = vpop.f32.mrb[0].mxu0
        %438 = vmatprep.mubr.bf16.mxu0 0
        %439 = vmatmul.mubr.bf16.gmra.mrb[0].mxu0 %v347
        %v440 = vpop.f32.mrb[0].mxu0
        %v441 = vadd.f32 %v392, %v440
        %v442 = vpop.f32.mrb[0].mxu0
        %v443 = vpop.f32.mrb[0].mxu0
        %v444 = vadd.f32 %v395, %v443
        %v445 = vpop.f32.mrb[0].mxu0
        %446 = vdwg.mxu0
        %448 = vset.pattern.permute.xlu0 0
        %449 = vperm.xlu0 %448, %v198
        %v450 = vpop.permute.xlu0 %449
        %453 = vset.pattern.permute.xlu0 0
        %454 = vperm.xlu0 %453, %v199
        %v455 = vpop.permute.xlu0 %454
        %458 = vset.pattern.permute.xlu0 0
        %459 = vperm.xlu0 %458, %v200
        %v460 = vpop.permute.xlu0 %459
        %463 = vset.pattern.permute.xlu0 0
        %464 = vperm.xlu0 %463, %v201
        %v465 = vpop.permute.xlu0 %464
        %v467 = vmul.f32 %v433, %v450
        %v468 = vmul.f32 %v436, %v455
        %v469 = vmul.f32 %v441, %v460
        %v470 = vmul.f32 %v444, %v465
        %471 = vset.pattern.permute.xlu0 1
        %472 = vperm.xlu0 %471, %v198
        %v473 = vpop.permute.xlu0 %472
        %475 = vset.pattern.permute.xlu0 1
        %476 = vperm.xlu0 %475, %v199
        %v477 = vpop.permute.xlu0 %476
        %479 = vset.pattern.permute.xlu0 1
        %480 = vperm.xlu0 %479, %v200
        %v481 = vpop.permute.xlu0 %480
        %483 = vset.pattern.permute.xlu0 1
        %484 = vperm.xlu0 %483, %v201
        %v485 = vpop.permute.xlu0 %484
        %v487 = vadd.f32 %v467, %v473
        %v488 = vadd.f32 %v468, %v477
        %v489 = vadd.f32 %v469, %v481
        %v490 = vadd.f32 %v470, %v485
        %vm491 = vcmp.gt.f32.partialorder %v487, 0.0
        %vm492 = vcmp.gt.f32.partialorder %v488, 0.0
        %vm493 = vcmp.gt.f32.partialorder %v489, 0.0
        %vm494 = vcmp.gt.f32.partialorder %v490, 0.0
        %495 = vset.pattern.permute.xlu0 2
        %496 = vperm.xlu0 %495, %v198
        %v497 = vpop.permute.xlu0 %496
        %499 = vset.pattern.permute.xlu0 2
        %500 = vperm.xlu0 %499, %v199
        %v501 = vpop.permute.xlu0 %500
        %503 = vset.pattern.permute.xlu0 2
        %504 = vperm.xlu0 %503, %v200
        %v505 = vpop.permute.xlu0 %504
        %507 = vset.pattern.permute.xlu0 2
        %508 = vperm.xlu0 %507, %v201
        %v509 = vpop.permute.xlu0 %508
        %v511 = vmul.f32 %v497, %v487
        %v512 = vmul.f32 %v501, %v488
        %v513 = vmul.f32 %v505, %v489
        %v514 = vmul.f32 %v509, %v490
        %v515 = vsel %vm491, %v487, %v511
        %v516 = vsel %vm492, %v488, %v512
        %v517 = vsel %vm493, %v489, %v513
        %v518 = vsel %vm494, %v490, %v514
        %v519 = vpack.c.bf16 %v516, %v515
        %v520 = vpack.c.bf16 %v518, %v517
        %v523 = vunpack.c.l.b16 %v519
        %v524 = vunpack.c.h.b16 %v519
        %v525 = vunpack.c.l.b16 %v520
        %v526 = vunpack.c.h.b16 %v520
        %v527 = vpack.c.b16 %v523, %v523
        %v528 = vpack.c.b16 %v524, %v524
        %v529 = vpack.c.b16 %v525, %v525
        %v530 = vpack.c.b16 %v526, %v526
        %s535 = smul.u32 %s211, 4
        %s536 = smul.addr %s535, 4
        %s537 = scalar_lea.vmem %s194, %s536
        %vm538 = vcmask 224256
        %539 = vst.msk [vmem:[%s537] sm:$0xf] %vm538, %v527
        %540 = vst.msk [vmem:[%s537 + $0x4] sm:$0xf] %vm538, %v528
        %541 = vst.msk [vmem:[%s537 + $0x8] sm:$0xf] %vm538, %v529
        %542 = vst.msk [vmem:[%s537 + $0xc] sm:$0xf] %vm538, %v530
      $region37: #{id_loss_forward.14} parent=31 // loop_footer
        %s215 = sadd.s32 1, %s211
      $region38: #{id_loss_forward.14} parent=31 // loop_footer_branch
        %210 = sbr.rel target = $region34
      $region39: #{id_loss_forward.14} parent=31 // loop_exit
        _
      %s543 = smul.u32 28, %s19
      %p544 = scmp.lt.s32.totalorder %s18, 1
      %s545 = scalar_select %p544, %s18, 1
      %p546 = scmp.lt.s32.totalorder %s543, 27
      %s547 = scalar_select %p546, %s543, 27
      %s548 = smul.addr %s547, 4
      %s549 = smul.addr %s545, 112
      %s550 = sadd.s32 %s548, %s549
      %s551 = smul.addr %s550, 4
      %s552 = scalar_lea.vmem %s3, %s551
      // Predicated region
      $region40: #{id_loss_forward.14} parent=31 // pred_check
        %p553 = pneg %p114
      $region41: #{id_loss_forward.14} parent=31 // pred_check_branch
        %555 = sbr.rel (%p553) target = $region43
      $region42: #{id_loss_forward.14} parent=31 // pred_region
        %s556 = smul.u32 28, %s19
      $region43: #{id_loss_forward.14} parent=31 // pred_fallthru
        _
    $region32: #{id_loss_forward.14} parent=5 // pred_fallthru
      _
    %p557 = scmp.le.s32.totalorder 2, %s9
    // Predicated region
    $region44: #{id_loss_forward.14} parent=5 // pred_check
      %p558 = pneg %p557
    $region45: #{id_loss_forward.14} parent=5 // pred_check_branch
      %560 = sbr.rel (%p558) target = $region47
    $region46: #{id_loss_forward.14} parent=5 // pred_region
      %s561 = ssub.s32 %s9, 2
      // Predicated region
      $region48: #{id_loss_forward.14} parent=46 // pred_check
        %p562 = pneg %p120
      $region49: #{id_loss_forward.14} parent=46 // pred_check_branch
        %564 = sbr.rel (%p562) target = $region51
      $region50: #{id_loss_forward.14} parent=46 // pred_region
        %s565 = smul.u32 28, %s21
        %p566 = scmp.lt.s32.totalorder %s20, 1
        %s567 = scalar_select %p566, %s20, 1
        %p568 = scmp.lt.s32.totalorder %s565, 27
        %s569 = scalar_select %p568, %s565, 27
        %s570 = smul.addr %s569, 4
        %s571 = smul.addr %s567, 112
        %s572 = sadd.s32 %s570, %s571
        %s573 = smul.addr %s572, 4
        %s574 = scalar_lea.vmem %s3, %s573
      $region51: #{id_loss_forward.14} parent=46 // pred_fallthru
        _
    $region47: #{id_loss_forward.14} parent=5 // pred_fallthru
      _
  $region6: #{id_loss_forward.14} parent=0 // loop_footer
    %s13 = sadd.s32 1, %s9
  $region7: #{id_loss_forward.14} parent=0 // loop_footer_branch
    %8 = sbr.rel target = $region3
  $region8: #{id_loss_forward.14} parent=0 // loop_exit
    _

// kernel: id_loss_forward.15
$region0: #{id_loss_forward.15}
  #allocation0 [shape = 'u32[]', space=smem, size = 0x4, offset = 0x4, fixed_abs, tag = 'smem constant byte address 0x4 - core index']
  #allocation1 [shape = 'u32[144,128]{1,0:T(1,128)}', space=vmem, size = 0x12000, scoped, tag = 'internal scratch']
  %s0 = inlined_call_operand.vmem [shape: bf16[2,30,32,30], index: 0, kind: input, shape index: {}]
  %s1 = inlined_call_operand.vmem [shape: bf16[32,288], index: 1, kind: input, shape index: {}]
  %s2 = inlined_call_operand.vmem [shape: f32[32,3], index: 2, kind: input, shape index: {}]
  %s3 = inlined_call_operand.vmem [shape: bf16[2,14,32,14], index: 3, kind: output, shape index: {}]
  %s4 = sld [smem:[#allocation0]]
  $region52: #{id_loss_forward.15} parent=0
    _
  %s6 = ssub.s32 1, %s4
  %s7 = scalar_select 0, %s6, %s4
  loop: start=0, step=1, limit=4
  $region2: #{id_loss_forward.15} parent=0 // loop_pre_header
    _
  $region3: #{id_loss_forward.15} parent=0 // loop_header
    %s9 = sphi 0, %s13
    %p10 = scmp.ge.s32.totalorder %s9, 4
    %s16 = sphi 0, %s28
    %s17 = sphi 0, %s24
    %s18 = sphi 0, %s16
    %s19 = sphi 0, %s17
    %s20 = sphi 0, %s18
    %s21 = sphi 0, %s19
    %s31 = sphi 0, %s33
    %s34 = sphi 0, %s31
    %s35 = sphi 0, %s34
    %s51 = sphi 0, %s35
    %s55 = sphi 0, %s55
    %s57 = sphi 0, %s55
    %s58 = sphi 0, %s57
    %s72 = sphi 0, %s58
    %s76 = sphi 0, %s76
    %s78 = sphi 0, %s76
    %s79 = sphi 0, %s78
    %s93 = sphi 0, %s79
    %s101 = sphi 0, %s103
    %s104 = sphi 0, %s101
    %s105 = sphi 0, %s104
    %s121 = sphi 0, %s105
  $region4: #{id_loss_forward.15} parent=0 // loop_header_branch
    %12 = sbr.rel (%p10) target = $region8
  $region5: #{id_loss_forward.15} parent=0 // loop_body
    %s14 = ssub.s32 %s9, 1
    %s15 = ssub.s32 %s9, 2
    %s22 = sadd.s32 1, %s17
    %p23 = scmp.ge.s32.totalorder %s22, 1
    %s24 = scalar_select %p23, 0, %s22
    %s25 = sadd.s32 1, %s16
    %s26 = scalar_select %p23, %s25, %s16
    %p27 = scmp.ge.s32.totalorder %s26, 2
    %s28 = scalar_select %p27, 0, %s26
    %s29 = ssub.s32 %s16, %s28
    %p30 = scmp.eq.s32.totalorder %s29, 0
    %s32 = sadd.s32 %s31, 1
    %s33 = scalar_select %p30, %s31, %s32
    %p36 = pneg %p30
    %p37 = scmp.eq.s32.totalorder %s9, 1
    %p38 = por %p36, %p37
    %p39 = scmp.ne.s32.totalorder %s31, %s34
    %p40 = scmp.eq.s32.totalorder %s9, 0
    %p41 = por %p39, %p40
    %p42 = scmp.ne.s32.totalorder %s31, %s34
    %p43 = scmp.eq.s32.totalorder %s14, 1
    %p44 = por %p42, %p43
    %p45 = scmp.ne.s32.totalorder %s34, %s35
    %p46 = scmp.eq.s32.totalorder %s14, 0
    %p47 = por %p45, %p46
    %p48 = scmp.ne.s32.totalorder %s34, %s35
    %p49 = scmp.eq.s32.totalorder %s15, 1
    %p50 = por %p48, %p49
    %p52 = scmp.ne.s32.totalorder %s35, %s51
    %p53 = scmp.eq.s32.totalorder %s15, 0
    %p54 = por %p52, %p53
    %s56 = sadd.s32 %s55, 1
    %p59 = scmp.eq.s32.totalorder %s9, 1
    %p60 = scmp.ne.s32.totalorder %s55, %s57
    %p61 = scmp.eq.s32.totalorder %s9, 0
    %p62 = por %p60, %p61
    %p63 = scmp.ne.s32.totalorder %s55, %s57
    %p64 = scmp.eq.s32.totalorder %s14, 1
    %p65 = por %p63, %p64
    %p66 = scmp.ne.s32.totalorder %s57, %s58
    %p67 = scmp.eq.s32.totalorder %s14, 0
    %p68 = por %p66, %p67
    %p69 = scmp.ne.s32.totalorder %s57, %s58
    %p70 = scmp.eq.s32.totalorder %s15, 1
    %p71 = por %p69, %p70
    %p73 = scmp.ne.s32.totalorder %s58, %s72
    %p74 = scmp.eq.s32.totalorder %s15, 0
    %p75 = por %p73, %p74
    %s77 = sadd.s32 %s76, 1
    %p80 = scmp.eq.s32.totalorder %s9, 1
    %p81 = scmp.ne.s32.totalorder %s76, %s78
    %p82 = scmp.eq.s32.totalorder %s9, 0
    %p83 = por %p81, %p82
    %p84 = scmp.ne.s32.totalorder %s76, %s78
    %p85 = scmp.eq.s32.totalorder %s14, 1
    %p86 = por %p84, %p85
    %p87 = scmp.ne.s32.totalorder %s78, %s79
    %p88 = scmp.eq.s32.totalorder %s14, 0
    %p89 = por %p87, %p88
    %p90 = scmp.ne.s32.totalorder %s78, %s79
    %p91 = scmp.eq.s32.totalorder %s15, 1
    %p92 = por %p90, %p91
    %p94 = scmp.ne.s32.totalorder %s79, %s93
    %p95 = scmp.eq.s32.totalorder %s15, 0
    %p96 = por %p94, %p95
    %s97 = ssub.s32 %s16, %s28
    %s98 = ssub.s32 %s17, %s24
    %s99 = sor.u32 %s97, %s98
    %p100 = scmp.eq.s32.totalorder %s99, 0
    %s102 = sadd.s32 %s101, 1
    %s103 = scalar_select %p100, %s101, %s102
    %p106 = pneg %p100
    %p107 = scmp.eq.s32.totalorder %s9, 1
    %p108 = por %p106, %p107
    %p109 = scmp.ne.s32.totalorder %s101, %s104
    %p110 = scmp.eq.s32.totalorder %s9, 0
    %p111 = por %p109, %p110
    %p112 = scmp.ne.s32.totalorder %s101, %s104
    %p113 = scmp.eq.s32.totalorder %s14, 1
    %p114 = por %p112, %p113
    %p115 = scmp.ne.s32.totalorder %s104, %s105
    %p116 = scmp.eq.s32.totalorder %s14, 0
    %p117 = por %p115, %p116
    %p118 = scmp.ne.s32.totalorder %s104, %s105
    %p119 = scmp.eq.s32.totalorder %s15, 1
    %p120 = por %p118, %p119
    %p122 = scmp.ne.s32.totalorder %s105, %s121
    %p123 = scmp.eq.s32.totalorder %s15, 0
    %p124 = por %p122, %p123
    %p125 = scmp.le.s32.totalorder 1, %s9
    %p126 = scmp.lt.s32.totalorder %s9, 3
    %p127 = pnand %p125, %p126
    %p128 = pneg %p127
    // Predicated region
    $region9: #{id_loss_forward.15} parent=5 // pred_check
      _
    $region10: #{id_loss_forward.15} parent=5 // pred_check_branch
      %130 = sbr.rel (%p127) target = $region12
    $region11: #{id_loss_forward.15} parent=5 // pred_region
      %s131 = ssub.s32 %s9, 1
      // Predicated region
      $region13: #{id_loss_forward.15} parent=11 // pred_check
        %p132 = pneg %p68
      $region14: #{id_loss_forward.15} parent=11 // pred_check_branch
        %134 = sbr.rel (%p132) target = $region16
      $region15: #{id_loss_forward.15} parent=11 // pred_region
        _
      $region16: #{id_loss_forward.15} parent=11 // pred_fallthru
        _
      // Predicated region
      $region17: #{id_loss_forward.15} parent=11 // pred_check
        %p135 = pneg %p89
      $region18: #{id_loss_forward.15} parent=11 // pred_check_branch
        %137 = sbr.rel (%p135) target = $region20
      $region19: #{id_loss_forward.15} parent=11 // pred_region
        _
      $region20: #{id_loss_forward.15} parent=11 // pred_fallthru
        _
    $region12: #{id_loss_forward.15} parent=5 // pred_fallthru
      _
    %p138 = scmp.lt.s32.totalorder %s9, 2
    // Predicated region
    $region21: #{id_loss_forward.15} parent=5 // pred_check
      %p139 = pneg %p138
    $region22: #{id_loss_forward.15} parent=5 // pred_check_branch
      %141 = sbr.rel (%p139) target = $region24
    $region23: #{id_loss_forward.15} parent=5 // pred_region
      // Predicated region
      $region25: #{id_loss_forward.15} parent=23 // pred_check
        %p142 = pneg %p41
      $region26: #{id_loss_forward.15} parent=23 // pred_check_branch
        %144 = sbr.rel (%p142) target = $region28
      $region27: #{id_loss_forward.15} parent=23 // pred_region
        %p145 = scmp.lt.s32.totalorder %s16, 1
        %s146 = scalar_select %p145, %s16, 1
        %s147 = smul.addr %s146, 120
        %s148 = smul.addr %s147, 4
        %s149 = scalar_lea.vmem %s0, %s148
      $region28: #{id_loss_forward.15} parent=23 // pred_fallthru
        _
    $region24: #{id_loss_forward.15} parent=5 // pred_fallthru
      _
    %p150 = scmp.le.s32.totalorder 1, %s9
    %p151 = scmp.lt.s32.totalorder %s9, 3
    %p152 = pnand %p150, %p151
    %p153 = pneg %p152
    // Predicated region
    $region29: #{id_loss_forward.15} parent=5 // pred_check
      _
    $region30: #{id_loss_forward.15} parent=5 // pred_check_branch
      %155 = sbr.rel (%p152) target = $region32
    $region31: #{id_loss_forward.15} parent=5 // pred_region
      %s156 = ssub.s32 %s9, 1
      %p157 = scmp.lt.s32.totalorder %s18, 1
      %s158 = scalar_select %p157, %s18, 1
      %s159 = smul.addr %s158, 120
      %s160 = smul.addr %s159, 4
      %s161 = scalar_lea.vmem %s0, %s160
      %p162 = pneg %p47
      %p163 = pneg %p44
      %p164 = pneg %p68
      %p165 = pneg %p65
      %p166 = pneg %p89
      %p167 = pneg %p86
      %p168 = pneg %p117
      %p169 = pneg %p114
      %s170 = smul.u32 14, %s19
      %p171 = scmp.lt.s32.totalorder %s18, 1
      %s172 = scalar_select %p171, %s18, 1
      %p173 = scmp.lt.s32.totalorder %s170, 13
      %s174 = scalar_select %p173, %s170, 13
      %s175 = smul.addr %s174, 4
      %s176 = smul.addr %s172, 56
      %s177 = sadd.s32 %s175, %s176
      %s178 = smul.addr %s177, 4
      %s179 = scalar_lea.vmem %s3, %s178
      %p180 = scmp.lt.s32.totalorder %s18, 1
      %s181 = scalar_select %p180, %s18, 1
      %s182 = smul.addr %s181, 120
      %s183 = smul.addr %s182, 4
      %s184 = scalar_lea.vmem %s0, %s183
      %s185 = smul.u32 14, %s19
      %p186 = scmp.lt.s32.totalorder %s18, 1
      %s187 = scalar_select %p186, %s18, 1
      %p188 = scmp.lt.s32.totalorder %s185, 13
      %s189 = scalar_select %p188, %s185, 13
      %s190 = smul.addr %s189, 4
      %s191 = smul.addr %s187, 56
      %s192 = sadd.s32 %s190, %s191
      %s193 = smul.addr %s192, 4
      %s194 = scalar_lea.vmem %s3, %s193
      %s195 = smul.u32 14, %s19
      %s197 = smul.u32 %s19, 14
      %v198 = vld [vmem:[%s2] sm:$0xff]
      %v199 = vld [vmem:[%s2 + $0x8] sm:$0xff]
      %v200 = vld [vmem:[%s2 + $0x10] sm:$0xff]
      %v201 = vld [vmem:[%s2 + $0x18] sm:$0xff]
      %v202 = vld [vmem:[%s1] sm:$0xff]
      %v203 = vld [vmem:[%s1 + $0x8] sm:$0xf]
      %v204 = vld [vmem:[%s1 + $0xc] sm:$0xff]
      %v205 = vld [vmem:[%s1 + $0x14] sm:$0xf]
      %v206 = vld [vmem:[%s1 + $0x18] sm:$0xff]
      %v207 = vld [vmem:[%s1 + $0x20] sm:$0xf]
      %v208 = vld [vmem:[%s1 + $0x24] sm:$0xff]
      %v209 = vld [vmem:[%s1 + $0x2c] sm:$0xf]
      loop: start=0, step=1, limit=14
      $region33: #{id_loss_forward.15} parent=31 // loop_pre_header
        _
      $region34: #{id_loss_forward.15} parent=31 // loop_header
        %s211 = sphi 0, %s215
        %p212 = scmp.ge.s32.totalorder %s211, 14
      $region35: #{id_loss_forward.15} parent=31 // loop_header_branch
        %214 = sbr.rel (%p212) target = $region39
      $region36: #{id_loss_forward.15} parent=31 // loop_body
        %s216 = sadd.s32 %s197, %s211
        %s217 = smul.u32 %s216, 4
        %s218 = smul.addr %s217, 4
        %s219 = scalar_lea.vmem %s184, %s218
        %v220 = vld [vmem:[%s219] sm:$0xf]
        %v221 = vld [vmem:[%s219 + $0x4] sm:$0xf]
        %v222 = vld [vmem:[%s219 + $0x8] sm:$0xf]
        %v223 = vld [vmem:[%s219 + $0xc] sm:$0xf]
        %s224 = sadd.s32 %s216, 15
        %s225 = smul.u32 %s224, 4
        %s226 = smul.addr %s225, 4
        %s227 = scalar_lea.vmem %s184, %s226
        %v228 = vld [vmem:[%s227] sm:$0xf]
        %v229 = vld [vmem:[%s227 + $0x4] sm:$0xf]
        %v230 = vld [vmem:[%s227 + $0x8] sm:$0xf]
        %v231 = vld [vmem:[%s227 + $0xc] sm:$0xf]
        %s232 = sadd.s32 %s216, 1
        %s233 = smul.u32 %s232, 4
        %s234 = smul.addr %s233, 4
        %s235 = scalar_lea.vmem %s184, %s234
        %v236 = vld [vmem:[%s235] sm:$0xf]
        %v237 = vld [vmem:[%s235 + $0x4] sm:$0xf]
        %v238 = vld [vmem:[%s235 + $0x8] sm:$0xf]
        %v239 = vld [vmem:[%s235 + $0xc] sm:$0xf]
        %v244 = vunpack.c.l.b16 %v220
        %v245 = vunpack.c.l.b16 %v221
        %v246 = vunpack.c.l.b16 %v222
        %v247 = vunpack.c.l.b16 %v223
        %v248 = vpack.c.b16 %v245, %v244
        %v249 = vpack.c.b16 %v247, %v246
        %252 = vrot.lane.b32.xlu0 %v248, 113
        %v253 = vpop.permute.xlu0 %252
        %254 = vrot.lane.b32.xlu0 %v249, 113
        %v255 = vpop.permute.xlu0 %254
        %258 = vrot.lane.b32.xlu0 %v248, 127
        %v259 = vpop.permute.xlu0 %258
        %260 = vrot.lane.b32.xlu0 %v249, 127
        %v261 = vpop.permute.xlu0 %260
        %v268 = vunpack.c.l.b16 %v228
        %v269 = vunpack.c.l.b16 %v229
        %v270 = vunpack.c.l.b16 %v230
        %v271 = vunpack.c.l.b16 %v231
        %v272 = vpack.c.b16 %v269, %v268
        %v273 = vpack.c.b16 %v271, %v270
        %276 = vrot.lane.b32.xlu0 %v272, 113
        %v277 = vpop.permute.xlu0 %276
        %278 = vrot.lane.b32.xlu0 %v273, 113
        %v279 = vpop.permute.xlu0 %278
        %282 = vrot.lane.b32.xlu0 %v272, 127
        %v283 = vpop.permute.xlu0 %282
        %284 = vrot.lane.b32.xlu0 %v273, 127
        %v285 = vpop.permute.xlu0 %284
        %v292 = vunpack.c.l.b16 %v236
        %v293 = vunpack.c.l.b16 %v237
        %v294 = vunpack.c.l.b16 %v238
        %v295 = vunpack.c.l.b16 %v239
        %v296 = vpack.c.b16 %v293, %v292
        %v297 = vpack.c.b16 %v295, %v294
        %300 = vrot.lane.b32.xlu0 %v296, 113
        %v301 = vpop.permute.xlu0 %300
        %302 = vrot.lane.b32.xlu0 %v297, 113
        %v303 = vpop.permute.xlu0 %302
        %306 = vrot.lane.b32.xlu0 %v296, 127
        %v307 = vpop.permute.xlu0 %306
        %308 = vrot.lane.b32.xlu0 %v297, 127
        %v309 = vpop.permute.xlu0 %308
        %v320 = vunpack.c.l.b16 %v202
        %v321 = vunpack.c.h.b16 %v202
        %v322 = vunpack.c.l.b16 %v203
        %v323 = vunpack.c.l.b16 %v204
        %v324 = vunpack.c.h.b16 %v204
        %v325 = vunpack.c.l.b16 %v205
        %v326 = vunpack.c.l.b16 %v206
        %v327 = vunpack.c.h.b16 %v206
        %v328 = vunpack.c.l.b16 %v207
        %v329 = vunpack.c.l.b16 %v208
        %v330 = vunpack.c.h.b16 %v208
        %v331 = vunpack.c.l.b16 %v209
        %v332 = vpack.c.b16 %v323, %v320
        %v333 = vpack.c.b16 %v324, %v321
        %v334 = vpack.c.b16 %v325, %v322
        %v335 = vpack.c.b16 %v329, %v326
        %v336 = vpack.c.b16 %v330, %v327
        %v337 = vpack.c.b16 %v331, %v328
        %vm342 = vcmask 261120
        %v344 = vsel %vm342, %v334, 0
        %v347 = vsel %vm342, %v337, 0
        %349 = vmatprep.subr.bf16.mxu0 0
        %350 = vmatpush1.bf16.msra.mxu0 %v248
        %351 = vmatprep.subr.bf16.mxu0 0
        %352 = vmatpush1.bf16.msra.mxu0 %v249
        %353 = vmatprep.subr.bf16.mxu0 0
        %354 = vmatpush1.bf16.msra.mxu0 %v253
        %355 = vmatprep.subr.bf16.mxu0 0
        %356 = vmatpush1.bf16.msra.mxu0 %v255
        %357 = vmatprep.subr.bf16.mxu0 0
        %358 = vmatpush1.bf16.msra.mxu0 %v259
        %359 = vmatprep.subr.bf16.mxu0 0
        %360 = vmatpush1.bf16.msra.mxu0 %v261
        %361 = vmatprep.subr.bf16.mxu0 0
        %362 = vmatpush1.bf16.msra.mxu0 %v272
        %363 = vmatprep.subr.bf16.mxu0 0
        %364 = vmatpush1.bf16.msra.mxu0 %v273
        %365 = vmatprep.subr.bf16.mxu0 0
        %366 = vmatpush1.bf16.msra.mxu0 %v277
        %367 = vmatprep.subr.bf16.mxu0 0
        %368 = vmatpush1.bf16.msra.mxu0 %v279
        %369 = vmatprep.subr.bf16.mxu0 0
        %370 = vmatpush1.bf16.msra.mxu0 %v283
        %371 = vmatprep.subr.bf16.mxu0 0
        %372 = vmatpush1.bf16.msra.mxu0 %v285
        %373 = vmatprep.subr.bf16.mxu0 0
        %374 = vmatpush1.bf16.msra.mxu0 %v296
        %375 = vmatprep.subr.bf16.mxu0 0
        %376 = vmatpush1.bf16.msra.mxu0 %v297
        %377 = vmatprep.subr.bf16.mxu0 0
        %378 = vmatpush1.bf16.msra.mxu0 %v301
        %379 = vmatprep.subr.bf16.mxu0 0
        %380 = vmatpush1.bf16.msra.mxu0 %v303
        %381 = vmatprep.mubr.bf16.mxu0 %v333
        %382 = vmatmul.mubr.bf16.gmra.mrb[0].mxu0 %v332
        %v383 = vpop.f32.mrb[0].mxu0
        %v384 = vadd.f32 0.0, %v383
        %v385 = vpop.f32.mrb[0].mxu0
        %v386 = vpop.f32.mrb[0].mxu0
        %v387 = vadd.f32 0.0, %v386
        %v388 = vpop.f32.mrb[0].mxu0
        %389 = vmatprep.mubr.bf16.mxu0 %v336
        %390 = vmatmul.mubr.bf16.gmra.mrb[0].mxu0 %v335
        %v391 = vpop.f32.mrb[0].mxu0
        %v392 = vadd.f32 0.0, %v391
        %v393 = vpop.f32.mrb[0].mxu0
        %v394 = vpop.f32.mrb[0].mxu0
        %v395 = vadd.f32 0.0, %v394
        %v396 = vpop.f32.mrb[0].mxu0
        %397 = vdwg.mxu0
        %398 = vmatprep.subr.bf16.mxu0 0
        %399 = vmatpush1.bf16.msra.mxu0 %v307
        %400 = vmatprep.subr.bf16.mxu0 0
        %401 = vmatpush1.bf16.msra.mxu0 %v309
        %402 = vmatprep.subr.bf16.mxu0 0
        %403 = vmatpush1.bf16.msra.mxu0 0
        %404 = vmatprep.subr.bf16.mxu0 0
        %405 = vmatpush1.bf16.msra.mxu0 0
        %406 = vmatprep.subr.bf16.mxu0 0
        %407 = vmatpush1.bf16.msra.mxu0 0
        %408 = vmatprep.subr.bf16.mxu0 0
        %409 = vmatpush1.bf16.msra.mxu0 0
        %410 = vmatprep.subr.bf16.mxu0 0
        %411 = vmatpush1.bf16.msra.mxu0 0
        %412 = vmatprep.subr.bf16.mxu0 0
        %413 = vmatpush1.bf16.msra.mxu0 0
        %414 = vmatprep.subr.bf16.mxu0 0
        %415 = vmatpush1.bf16.msra.mxu0 0
        %416 = vmatprep.subr.bf16.mxu0 0
        %417 = vmatpush1.bf16.msra.mxu0 0
        %418 = vmatprep.subr.bf16.mxu0 0
        %419 = vmatpush1.bf16.msra.mxu0 0
        %420 = vmatprep.subr.bf16.mxu0 0
        %421 = vmatpush1.bf16.msra.mxu0 0
        %422 = vmatprep.subr.bf16.mxu0 0
        %423 = vmatpush1.bf16.msra.mxu0 0
        %424 = vmatprep.subr.bf16.mxu0 0
        %425 = vmatpush1.bf16.msra.mxu0 0
        %426 = vmatprep.subr.bf16.mxu0 0
        %427 = vmatpush1.bf16.msra.mxu0 0
        %428 = vmatprep.subr.bf16.mxu0 0
        %429 = vmatpush1.bf16.msra.mxu0 0
        %430 = vmatprep.mubr.bf16.mxu0 0
        %431 = vmatmul.mubr.bf16.gmra.mrb[0].mxu0 %v344
        %v432 = vpop.f32.mrb[0].mxu0
        %v433 = vadd.f32 %v384, %v432
        %v434 = vpop.f32.mrb[0].mxu0
        %v435 = vpop.f32.mrb[0].mxu0
        %v436 = vadd.f32 %v387, %v435
        %v437 = vpop.f32.mrb[0].mxu0
        %438 = vmatprep.mubr.bf16.mxu0 0
        %439 = vmatmul.mubr.bf16.gmra.mrb[0].mxu0 %v347
        %v440 = vpop.f32.mrb[0].mxu0
        %v441 = vadd.f32 %v392, %v440
        %v442 = vpop.f32.mrb[0].mxu0
        %v443 = vpop.f32.mrb[0].mxu0
        %v444 = vadd.f32 %v395, %v443
        %v445 = vpop.f32.mrb[0].mxu0
        %446 = vdwg.mxu0
        %448 = vset.pattern.permute.xlu0 0
        %449 = vperm.xlu0 %448, %v198
        %v450 = vpop.permute.xlu0 %449
        %453 = vset.pattern.permute.xlu0 0
        %454 = vperm.xlu0 %453, %v199
        %v455 = vpop.permute.xlu0 %454
        %458 = vset.pattern.permute.xlu0 0
        %459 = vperm.xlu0 %458, %v200
        %v460 = vpop.permute.xlu0 %459
        %463 = vset.pattern.permute.xlu0 0
        %464 = vperm.xlu0 %463, %v201
        %v465 = vpop.permute.xlu0 %464
        %v467 = vmul.f32 %v433, %v450
        %v468 = vmul.f32 %v436, %v455
        %v469 = vmul.f32 %v441, %v460
        %v470 = vmul.f32 %v444, %v465
        %471 = vset.pattern.permute.xlu0 1
        %472 = vperm.xlu0 %471, %v198
        %v473 = vpop.permute.xlu0 %472
        %475 = vset.pattern.permute.xlu0 1
        %476 = vperm.xlu0 %475, %v199
        %v477 = vpop.permute.xlu0 %476
        %479 = vset.pattern.permute.xlu0 1
        %480 = vperm.xlu0 %479, %v200
        %v481 = vpop.permute.xlu0 %480
        %483 = vset.pattern.permute.xlu0 1
        %484 = vperm.xlu0 %483, %v201
        %v485 = vpop.permute.xlu0 %484
        %v487 = vadd.f32 %v467, %v473
        %v488 = vadd.f32 %v468, %v477
        %v489 = vadd.f32 %v469, %v481
        %v490 = vadd.f32 %v470, %v485
        %vm491 = vcmp.gt.f32.partialorder %v487, 0.0
        %vm492 = vcmp.gt.f32.partialorder %v488, 0.0
        %vm493 = vcmp.gt.f32.partialorder %v489, 0.0
        %vm494 = vcmp.gt.f32.partialorder %v490, 0.0
        %495 = vset.pattern.permute.xlu0 2
        %496 = vperm.xlu0 %495, %v198
        %v497 = vpop.permute.xlu0 %496
        %499 = vset.pattern.permute.xlu0 2
        %500 = vperm.xlu0 %499, %v199
        %v501 = vpop.permute.xlu0 %500
        %503 = vset.pattern.permute.xlu0 2
        %504 = vperm.xlu0 %503, %v200
        %v505 = vpop.permute.xlu0 %504
        %507 = vset.pattern.permute.xlu0 2
        %508 = vperm.xlu0 %507, %v201
        %v509 = vpop.permute.xlu0 %508
        %v511 = vmul.f32 %v497, %v487
        %v512 = vmul.f32 %v501, %v488
        %v513 = vmul.f32 %v505, %v489
        %v514 = vmul.f32 %v509, %v490
        %v515 = vsel %vm491, %v487, %v511
        %v516 = vsel %vm492, %v488, %v512
        %v517 = vsel %vm493, %v489, %v513
        %v518 = vsel %vm494, %v490, %v514
        %v519 = vpack.c.bf16 %v516, %v515
        %v520 = vpack.c.bf16 %v518, %v517
        %v523 = vunpack.c.l.b16 %v519
        %v524 = vunpack.c.h.b16 %v519
        %v525 = vunpack.c.l.b16 %v520
        %v526 = vunpack.c.h.b16 %v520
        %v527 = vpack.c.b16 %v523, %v523
        %v528 = vpack.c.b16 %v524, %v524
        %v529 = vpack.c.b16 %v525, %v525
        %v530 = vpack.c.b16 %v526, %v526
        %s535 = smul.u32 %s211, 4
        %s536 = smul.addr %s535, 4
        %s537 = scalar_lea.vmem %s194, %s536
        %vm538 = vcmask 109568
        %539 = vst.msk [vmem:[%s537] sm:$0xf] %vm538, %v527
        %540 = vst.msk [vmem:[%s537 + $0x4] sm:$0xf] %vm538, %v528
        %541 = vst.msk [vmem:[%s537 + $0x8] sm:$0xf] %vm538, %v529
        %542 = vst.msk [vmem:[%s537 + $0xc] sm:$0xf] %vm538, %v530
      $region37: #{id_loss_forward.15} parent=31 // loop_footer
        %s215 = sadd.s32 1, %s211
      $region38: #{id_loss_forward.15} parent=31 // loop_footer_branch
        %210 = sbr.rel target = $region34
      $region39: #{id_loss_forward.15} parent=31 // loop_exit
        _
      %s543 = smul.u32 14, %s19
      %p544 = scmp.lt.s32.totalorder %s18, 1
      %s545 = scalar_select %p544, %s18, 1
      %p546 = scmp.lt.s32.totalorder %s543, 13
      %s547 = scalar_select %p546, %s543, 13
      %s548 = smul.addr %s547, 4
      %s549 = smul.addr %s545, 56
      %s550 = sadd.s32 %s548, %s549
      %s551 = smul.addr %s550, 4
      %s552 = scalar_lea.vmem %s3, %s551
      // Predicated region
      $region40: #{id_loss_forward.15} parent=31 // pred_check
        %p553 = pneg %p114
      $region41: #{id_loss_forward.15} parent=31 // pred_check_branch
        %555 = sbr.rel (%p553) target = $region43
      $region42: #{id_loss_forward.15} parent=31 // pred_region
        %s556 = smul.u32 14, %s19
      $region43: #{id_loss_forward.15} parent=31 // pred_fallthru
        _
    $region32: #{id_loss_forward.15} parent=5 // pred_fallthru
      _
    %p557 = scmp.le.s32.totalorder 2, %s9
    // Predicated region
    $region44: #{id_loss_forward.15} parent=5 // pred_check
      %p558 = pneg %p557
    $region45: #{id_loss_forward.15} parent=5 // pred_check_branch
      %560 = sbr.rel (%p558) target = $region47
    $region46: #{id_loss_forward.15} parent=5 // pred_region
      %s561 = ssub.s32 %s9, 2
      // Predicated region
      $region48: #{id_loss_forward.15} parent=46 // pred_check
        %p562 = pneg %p120
      $region49: #{id_loss_forward.15} parent=46 // pred_check_branch
        %564 = sbr.rel (%p562) target = $region51
      $region50: #{id_loss_forward.15} parent=46 // pred_region
        %s565 = smul.u32 14, %s21
        %p566 = scmp.lt.s32.totalorder %s20, 1
        %s567 = scalar_select %p566, %s20, 1
        %p568 = scmp.lt.s32.totalorder %s565, 13
        %s569 = scalar_select %p568, %s565, 13
        %s570 = smul.addr %s569, 4
        %s571 = smul.addr %s567, 56
        %s572 = sadd.s32 %s570, %s571
        %s573 = smul.addr %s572, 4
        %s574 = scalar_lea.vmem %s3, %s573
      $region51: #{id_loss_forward.15} parent=46 // pred_fallthru
        _
    $region47: #{id_loss_forward.15} parent=5 // pred_fallthru
      _
  $region6: #{id_loss_forward.15} parent=0 // loop_footer
    %s13 = sadd.s32 1, %s9
  $region7: #{id_loss_forward.15} parent=0 // loop_footer_branch
    %8 = sbr.rel target = $region3
  $region8: #{id_loss_forward.15} parent=0 // loop_exit
    _

// kernel: id_loss_forward.16
$region0: #{id_loss_forward.16}
  #allocation0 [shape = 'u32[]', space=smem, size = 0x4, offset = 0x4, fixed_abs, tag = 'smem constant byte address 0x4 - core index']
  #allocation1 [shape = 'u32[144,128]{1,0:T(1,128)}', space=vmem, size = 0x12000, scoped, tag = 'internal scratch']
  %s0 = inlined_call_operand.vmem [shape: bf16[2,16,32,16], index: 0, kind: input, shape index: {}]
  %s1 = inlined_call_operand.vmem [shape: bf16[64,288], index: 1, kind: input, shape index: {}]
  %s2 = inlined_call_operand.vmem [shape: f32[64,3], index: 2, kind: input, shape index: {}]
  %s3 = inlined_call_operand.vmem [shape: bf16[2,14,64,14], index: 3, kind: output, shape index: {}]
  %s4 = sld [smem:[#allocation0]]
  $region52: #{id_loss_forward.16} parent=0
    _
  %s6 = ssub.s32 1, %s4
  %s7 = scalar_select 0, %s6, %s4
  loop: start=0, step=1, limit=4
  $region2: #{id_loss_forward.16} parent=0 // loop_pre_header
    _
  $region3: #{id_loss_forward.16} parent=0 // loop_header
    %s9 = sphi 0, %s13
    %p10 = scmp.ge.s32.totalorder %s9, 4
    %s16 = sphi 0, %s28
    %s17 = sphi 0, %s24
    %s18 = sphi 0, %s16
    %s19 = sphi 0, %s17
    %s20 = sphi 0, %s18
    %s21 = sphi 0, %s19
    %s31 = sphi 0, %s33
    %s34 = sphi 0, %s31
    %s35 = sphi 0, %s34
    %s51 = sphi 0, %s35
    %s55 = sphi 0, %s55
    %s57 = sphi 0, %s55
    %s58 = sphi 0, %s57
    %s72 = sphi 0, %s58
    %s76 = sphi 0, %s76
    %s78 = sphi 0, %s76
    %s79 = sphi 0, %s78
    %s93 = sphi 0, %s79
    %s101 = sphi 0, %s103
    %s104 = sphi 0, %s101
    %s105 = sphi 0, %s104
    %s121 = sphi 0, %s105
  $region4: #{id_loss_forward.16} parent=0 // loop_header_branch
    %12 = sbr.rel (%p10) target = $region8
  $region5: #{id_loss_forward.16} parent=0 // loop_body
    %s14 = ssub.s32 %s9, 1
    %s15 = ssub.s32 %s9, 2
    %s22 = sadd.s32 1, %s17
    %p23 = scmp.ge.s32.totalorder %s22, 1
    %s24 = scalar_select %p23, 0, %s22
    %s25 = sadd.s32 1, %s16
    %s26 = scalar_select %p23, %s25, %s16
    %p27 = scmp.ge.s32.totalorder %s26, 2
    %s28 = scalar_select %p27, 0, %s26
    %s29 = ssub.s32 %s16, %s28
    %p30 = scmp.eq.s32.totalorder %s29, 0
    %s32 = sadd.s32 %s31, 1
    %s33 = scalar_select %p30, %s31, %s32
    %p36 = pneg %p30
    %p37 = scmp.eq.s32.totalorder %s9, 1
    %p38 = por %p36, %p37
    %p39 = scmp.ne.s32.totalorder %s31, %s34
    %p40 = scmp.eq.s32.totalorder %s9, 0
    %p41 = por %p39, %p40
    %p42 = scmp.ne.s32.totalorder %s31, %s34
    %p43 = scmp.eq.s32.totalorder %s14, 1
    %p44 = por %p42, %p43
    %p45 = scmp.ne.s32.totalorder %s34, %s35
    %p46 = scmp.eq.s32.totalorder %s14, 0
    %p47 = por %p45, %p46
    %p48 = scmp.ne.s32.totalorder %s34, %s35
    %p49 = scmp.eq.s32.totalorder %s15, 1
    %p50 = por %p48, %p49
    %p52 = scmp.ne.s32.totalorder %s35, %s51
    %p53 = scmp.eq.s32.totalorder %s15, 0
    %p54 = por %p52, %p53
    %s56 = sadd.s32 %s55, 1
    %p59 = scmp.eq.s32.totalorder %s9, 1
    %p60 = scmp.ne.s32.totalorder %s55, %s57
    %p61 = scmp.eq.s32.totalorder %s9, 0
    %p62 = por %p60, %p61
    %p63 = scmp.ne.s32.totalorder %s55, %s57
    %p64 = scmp.eq.s32.totalorder %s14, 1
    %p65 = por %p63, %p64
    %p66 = scmp.ne.s32.totalorder %s57, %s58
    %p67 = scmp.eq.s32.totalorder %s14, 0
    %p68 = por %p66, %p67
    %p69 = scmp.ne.s32.totalorder %s57, %s58
    %p70 = scmp.eq.s32.totalorder %s15, 1
    %p71 = por %p69, %p70
    %p73 = scmp.ne.s32.totalorder %s58, %s72
    %p74 = scmp.eq.s32.totalorder %s15, 0
    %p75 = por %p73, %p74
    %s77 = sadd.s32 %s76, 1
    %p80 = scmp.eq.s32.totalorder %s9, 1
    %p81 = scmp.ne.s32.totalorder %s76, %s78
    %p82 = scmp.eq.s32.totalorder %s9, 0
    %p83 = por %p81, %p82
    %p84 = scmp.ne.s32.totalorder %s76, %s78
    %p85 = scmp.eq.s32.totalorder %s14, 1
    %p86 = por %p84, %p85
    %p87 = scmp.ne.s32.totalorder %s78, %s79
    %p88 = scmp.eq.s32.totalorder %s14, 0
    %p89 = por %p87, %p88
    %p90 = scmp.ne.s32.totalorder %s78, %s79
    %p91 = scmp.eq.s32.totalorder %s15, 1
    %p92 = por %p90, %p91
    %p94 = scmp.ne.s32.totalorder %s79, %s93
    %p95 = scmp.eq.s32.totalorder %s15, 0
    %p96 = por %p94, %p95
    %s97 = ssub.s32 %s16, %s28
    %s98 = ssub.s32 %s17, %s24
    %s99 = sor.u32 %s97, %s98
    %p100 = scmp.eq.s32.totalorder %s99, 0
    %s102 = sadd.s32 %s101, 1
    %s103 = scalar_select %p100, %s101, %s102
    %p106 = pneg %p100
    %p107 = scmp.eq.s32.totalorder %s9, 1
    %p108 = por %p106, %p107
    %p109 = scmp.ne.s32.totalorder %s101, %s104
    %p110 = scmp.eq.s32.totalorder %s9, 0
    %p111 = por %p109, %p110
    %p112 = scmp.ne.s32.totalorder %s101, %s104
    %p113 = scmp.eq.s32.totalorder %s14, 1
    %p114 = por %p112, %p113
    %p115 = scmp.ne.s32.totalorder %s104, %s105
    %p116 = scmp.eq.s32.totalorder %s14, 0
    %p117 = por %p115, %p116
    %p118 = scmp.ne.s32.totalorder %s104, %s105
    %p119 = scmp.eq.s32.totalorder %s15, 1
    %p120 = por %p118, %p119
    %p122 = scmp.ne.s32.totalorder %s105, %s121
    %p123 = scmp.eq.s32.totalorder %s15, 0
    %p124 = por %p122, %p123
    %p125 = scmp.le.s32.totalorder 1, %s9
    %p126 = scmp.lt.s32.totalorder %s9, 3
    %p127 = pnand %p125, %p126
    %p128 = pneg %p127
    // Predicated region
    $region9: #{id_loss_forward.16} parent=5 // pred_check
      _
    $region10: #{id_loss_forward.16} parent=5 // pred_check_branch
      %130 = sbr.rel (%p127) target = $region12
    $region11: #{id_loss_forward.16} parent=5 // pred_region
      %s131 = ssub.s32 %s9, 1
      // Predicated region
      $region13: #{id_loss_forward.16} parent=11 // pred_check
        %p132 = pneg %p68
      $region14: #{id_loss_forward.16} parent=11 // pred_check_branch
        %134 = sbr.rel (%p132) target = $region16
      $region15: #{id_loss_forward.16} parent=11 // pred_region
        _
      $region16: #{id_loss_forward.16} parent=11 // pred_fallthru
        _
      // Predicated region
      $region17: #{id_loss_forward.16} parent=11 // pred_check
        %p135 = pneg %p89
      $region18: #{id_loss_forward.16} parent=11 // pred_check_branch
        %137 = sbr.rel (%p135) target = $region20
      $region19: #{id_loss_forward.16} parent=11 // pred_region
        _
      $region20: #{id_loss_forward.16} parent=11 // pred_fallthru
        _
    $region12: #{id_loss_forward.16} parent=5 // pred_fallthru
      _
    %p138 = scmp.lt.s32.totalorder %s9, 2
    // Predicated region
    $region21: #{id_loss_forward.16} parent=5 // pred_check
      %p139 = pneg %p138
    $region22: #{id_loss_forward.16} parent=5 // pred_check_branch
      %141 = sbr.rel (%p139) target = $region24
    $region23: #{id_loss_forward.16} parent=5 // pred_region
      // Predicated region
      $region25: #{id_loss_forward.16} parent=23 // pred_check
        %p142 = pneg %p41
      $region26: #{id_loss_forward.16} parent=23 // pred_check_branch
        %144 = sbr.rel (%p142) target = $region28
      $region27: #{id_loss_forward.16} parent=23 // pred_region
        %p145 = scmp.lt.s32.totalorder %s16, 1
        %s146 = scalar_select %p145, %s16, 1
        %s147 = smul.addr %s146, 64
        %s148 = smul.addr %s147, 4
        %s149 = scalar_lea.vmem %s0, %s148
      $region28: #{id_loss_forward.16} parent=23 // pred_fallthru
        _
    $region24: #{id_loss_forward.16} parent=5 // pred_fallthru
      _
    %p150 = scmp.le.s32.totalorder 1, %s9
    %p151 = scmp.lt.s32.totalorder %s9, 3
    %p152 = pnand %p150, %p151
    %p153 = pneg %p152
    // Predicated region
    $region29: #{id_loss_forward.16} parent=5 // pred_check
      _
    $region30: #{id_loss_forward.16} parent=5 // pred_check_branch
      %155 = sbr.rel (%p152) target = $region32
    $region31: #{id_loss_forward.16} parent=5 // pred_region
      %s156 = ssub.s32 %s9, 1
      %p157 = scmp.lt.s32.totalorder %s18, 1
      %s158 = scalar_select %p157, %s18, 1
      %s159 = smul.addr %s158, 64
      %s160 = smul.addr %s159, 4
      %s161 = scalar_lea.vmem %s0, %s160
      %p162 = pneg %p47
      %p163 = pneg %p44
      %p164 = pneg %p68
      %p165 = pneg %p65
      %p166 = pneg %p89
      %p167 = pneg %p86
      %p168 = pneg %p117
      %p169 = pneg %p114
      %s170 = smul.u32 14, %s19
      %p171 = scmp.lt.s32.totalorder %s18, 1
      %s172 = scalar_select %p171, %s18, 1
      %p173 = scmp.lt.s32.totalorder %s170, 13
      %s174 = scalar_select %p173, %s170, 13
      %s175 = smul.addr %s174, 8
      %s176 = smul.addr %s172, 112
      %s177 = sadd.s32 %s175, %s176
      %s178 = smul.addr %s177, 4
      %s179 = scalar_lea.vmem %s3, %s178
      %p180 = scmp.lt.s32.totalorder %s18, 1
      %s181 = scalar_select %p180, %s18, 1
      %s182 = smul.addr %s181, 64
      %s183 = smul.addr %s182, 4
      %s184 = scalar_lea.vmem %s0, %s183
      %s185 = smul.u32 14, %s19
      %p186 = scmp.lt.s32.totalorder %s18, 1
      %s187 = scalar_select %p186, %s18, 1
      %p188 = scmp.lt.s32.totalorder %s185, 13
      %s189 = scalar_select %p188, %s185, 13
      %s190 = smul.addr %s189, 8
      %s191 = smul.addr %s187, 112
      %s192 = sadd.s32 %s190, %s191
      %s193 = smul.addr %s192, 4
      %s194 = scalar_lea.vmem %s3, %s193
      %s195 = smul.u32 14, %s19
      %s197 = smul.u32 %s19, 14
      %v198 = vld [vmem:[%s2] sm:$0xff]
      %v199 = vld [vmem:[%s2 + $0x8] sm:$0xff]
      %v200 = vld [vmem:[%s2 + $0x10] sm:$0xff]
      %v201 = vld [vmem:[%s2 + $0x18] sm:$0xff]
      %v202 = vld [vmem:[%s2 + $0x20] sm:$0xff]
      %v203 = vld [vmem:[%s2 + $0x28] sm:$0xff]
      %v204 = vld [vmem:[%s2 + $0x30] sm:$0xff]
      %v205 = vld [vmem:[%s2 + $0x38] sm:$0xff]
      %v206 = vld [vmem:[%s1] sm:$0xff]
      %v207 = vld [vmem:[%s1 + $0x8] sm:$0xf]
      %v208 = vld [vmem:[%s1 + $0xc] sm:$0xff]
      %v209 = vld [vmem:[%s1 + $0x14] sm:$0xf]
      %v210 = vld [vmem:[%s1 + $0x18] sm:$0xff]
      %v211 = vld [vmem:[%s1 + $0x20] sm:$0xf]
      %v212 = vld [vmem:[%s1 + $0x24] sm:$0xff]
      %v213 = vld [vmem:[%s1 + $0x2c] sm:$0xf]
      %v214 = vld [vmem:[%s1 + $0x30] sm:$0xff]
      %v215 = vld [vmem:[%s1 + $0x38] sm:$0xf]
      %v216 = vld [vmem:[%s1 + $0x3c] sm:$0xff]
      %v217 = vld [vmem:[%s1 + $0x44] sm:$0xf]
      %v218 = vld [vmem:[%s1 + $0x48] sm:$0xff]
      %v219 = vld [vmem:[%s1 + $0x50] sm:$0xf]
      %v220 = vld [vmem:[%s1 + $0x54] sm:$0xff]
      %v221 = vld [vmem:[%s1 + $0x5c] sm:$0xf]
      loop: start=0, step=1, limit=14
      $region33: #{id_loss_forward.16} parent=31 // loop_pre_header
        _
      $region34: #{id_loss_forward.16} parent=31 // loop_header
        %s223 = sphi 0, %s227
        %p224 = scmp.ge.s32.totalorder %s223, 14
      $region35: #{id_loss_forward.16} parent=31 // loop_header_branch
        %226 = sbr.rel (%p224) target = $region39
      $region36: #{id_loss_forward.16} parent=31 // loop_body
        %s228 = sadd.s32 %s197, %s223
        %s229 = smul.u32 %s228, 4
        %s230 = smul.addr %s229, 4
        %s231 = scalar_lea.vmem %s184, %s230
        %v232 = vld [vmem:[%s231] sm:$0xf]
        %v233 = vld [vmem:[%s231 + $0x4] sm:$0xf]
        %v234 = vld [vmem:[%s231 + $0x8] sm:$0xf]
        %v235 = vld [vmem:[%s231 + $0xc] sm:$0xf]
        %s236 = sadd.s32 %s228, 1
        %s237 = smul.u32 %s236, 4
        %s238 = smul.addr %s237, 4
        %s239 = scalar_lea.vmem %s184, %s238
        %v240 = vld [vmem:[%s239] sm:$0xf]
        %v241 = vld [vmem:[%s239 + $0x4] sm:$0xf]
        %v242 = vld [vmem:[%s239 + $0x8] sm:$0xf]
        %v243 = vld [vmem:[%s239 + $0xc] sm:$0xf]
        %s244 = sadd.s32 %s228, 2
        %s245 = smul.u32 %s244, 4
        %s246 = smul.addr %s245, 4
        %s247 = scalar_lea.vmem %s184, %s246
        %v248 = vld [vmem:[%s247] sm:$0xf]
        %v249 = vld [vmem:[%s247 + $0x4] sm:$0xf]
        %v250 = vld [vmem:[%s247 + $0x8] sm:$0xf]
        %v251 = vld [vmem:[%s247 + $0xc] sm:$0xf]
        %v256 = vunpack.c.l.b16 %v232
        %v257 = vunpack.c.l.b16 %v233
        %v258 = vunpack.c.l.b16 %v234
        %v259 = vunpack.c.l.b16 %v235
        %v260 = vpack.c.b16 %v257, %v256
        %v261 = vpack.c.b16 %v259, %v258
        %264 = vrot.lane.b32.xlu0 %v260, 127
        %v265 = vpop.permute.xlu0 %264
        %266 = vrot.lane.b32.xlu0 %v261, 127
        %v267 = vpop.permute.xlu0 %266
        %270 = vrot.lane.b32.xlu0 %v260, 126
        %v271 = vpop.permute.xlu0 %270
        %272 = vrot.lane.b32.xlu0 %v261, 126
        %v273 = vpop.permute.xlu0 %272
        %v280 = vunpack.c.l.b16 %v240
        %v281 = vunpack.c.l.b16 %v241
        %v282 = vunpack.c.l.b16 %v242
        %v283 = vunpack.c.l.b16 %v243
        %v284 = vpack.c.b16 %v281, %v280
        %v285 = vpack.c.b16 %v283, %v282
        %288 = vrot.lane.b32.xlu0 %v284, 127
        %v289 = vpop.permute.xlu0 %288
        %290 = vrot.lane.b32.xlu0 %v285, 127
        %v291 = vpop.permute.xlu0 %290
        %294 = vrot.lane.b32.xlu0 %v284, 126
        %v295 = vpop.permute.xlu0 %294
        %296 = vrot.lane.b32.xlu0 %v285, 126
        %v297 = vpop.permute.xlu0 %296
        %v304 = vunpack.c.l.b16 %v248
        %v305 = vunpack.c.l.b16 %v249
        %v306 = vunpack.c.l.b16 %v250
        %v307 = vunpack.c.l.b16 %v251
        %v308 = vpack.c.b16 %v305, %v304
        %v309 = vpack.c.b16 %v307, %v306
        %312 = vrot.lane.b32.xlu0 %v308, 127
        %v313 = vpop.permute.xlu0 %312
        %314 = vrot.lane.b32.xlu0 %v309, 127
        %v315 = vpop.permute.xlu0 %314
        %318 = vrot.lane.b32.xlu0 %v308, 126
        %v319 = vpop.permute.xlu0 %318
        %320 = vrot.lane.b32.xlu0 %v309, 126
        %v321 = vpop.permute.xlu0 %320
        %v340 = vunpack.c.l.b16 %v206
        %v341 = vunpack.c.h.b16 %v206
        %v342 = vunpack.c.l.b16 %v207
        %v343 = vunpack.c.l.b16 %v208
        %v344 = vunpack.c.h.b16 %v208
        %v345 = vunpack.c.l.b16 %v209
        %v346 = vunpack.c.l.b16 %v210
        %v347 = vunpack.c.h.b16 %v210
        %v348 = vunpack.c.l.b16 %v211
        %v349 = vunpack.c.l.b16 %v212
        %v350 = vunpack.c.h.b16 %v212
        %v351 = vunpack.c.l.b16 %v213
        %v352 = vunpack.c.l.b16 %v214
        %v353 = vunpack.c.h.b16 %v214
        %v354 = vunpack.c.l.b16 %v215
        %v355 = vunpack.c.l.b16 %v216
        %v356 = vunpack.c.h.b16 %v216
        %v357 = vunpack.c.l.b16 %v217
        %v358 = vunpack.c.l.b16 %v218
        %v359 = vunpack.c.h.b16 %v218
        %v360 = vunpack.c.l.b16 %v219
        %v361 = vunpack.c.l.b16 %v220
        %v362 = vunpack.c.h.b16 %v220
        %v363 = vunpack.c.l.b16 %v221
        %v364 = vpack.c.b16 %v343, %v340
        %v365 = vpack.c.b16 %v344, %v341
        %v366 = vpack.c.b16 %v345, %v342
        %v367 = vpack.c.b16 %v349, %v346
        %v368 = vpack.c.b16 %v350, %v347
        %v369 = vpack.c.b16 %v351, %v348
        %v370 = vpack.c.b16 %v355, %v352
        %v371 = vpack.c.b16 %v356, %v353
        %v372 = vpack.c.b16 %v357, %v354
        %v373 = vpack.c.b16 %v361, %v358
        %v374 = vpack.c.b16 %v362, %v359
        %v375 = vpack.c.b16 %v363, %v360
        %vm384 = vcmask 261120
        %v386 = vsel %vm384, %v366, 0
        %v389 = vsel %vm384, %v369, 0
        %v392 = vsel %vm384, %v372, 0
        %v395 = vsel %vm384, %v375, 0
        %397 = vmatprep.subr.bf16.mxu0 0
        %398 = vmatpush1.bf16.msra.mxu0 %v260
        %399 = vmatprep.subr.bf16.mxu0 0
        %400 = vmatpush1.bf16.msra.mxu0 %v261
        %401 = vmatprep.subr.bf16.mxu0 0
        %402 = vmatpush1.bf16.msra.mxu0 %v265
        %403 = vmatprep.subr.bf16.mxu0 0
        %404 = vmatpush1.bf16.msra.mxu0 %v267
        %405 = vmatprep.subr.bf16.mxu0 0
        %406 = vmatpush1.bf16.msra.mxu0 %v271
        %407 = vmatprep.subr.bf16.mxu0 0
        %408 = vmatpush1.bf16.msra.mxu0 %v273
        %409 = vmatprep.subr.bf16.mxu0 0
        %410 = vmatpush1.bf16.msra.mxu0 %v284
        %411 = vmatprep.subr.bf16.mxu0 0
        %412 = vmatpush1.bf16.msra.mxu0 %v285
        %413 = vmatprep.subr.bf16.mxu0 0
        %414 = vmatpush1.bf16.msra.mxu0 %v289
        %415 = vmatprep.subr.bf16.mxu0 0
        %416 = vmatpush1.bf16.msra.mxu0 %v291
        %417 = vmatprep.subr.bf16.mxu0 0
        %418 = vmatpush1.bf16.msra.mxu0 %v295
        %419 = vmatprep.subr.bf16.mxu0 0
        %420 = vmatpush1.bf16.msra.mxu0 %v297
        %421 = vmatprep.subr.bf16.mxu0 0
        %422 = vmatpush1.bf16.msra.mxu0 %v308
        %423 = vmatprep.subr.bf16.mxu0 0
        %424 = vmatpush1.bf16.msra.mxu0 %v309
        %425 = vmatprep.subr.bf16.mxu0 0
        %426 = vmatpush1.bf16.msra.mxu0 %v313
        %427 = vmatprep.subr.bf16.mxu0 0
        %428 = vmatpush1.bf16.msra.mxu0 %v315
        %429 = vmatprep.mubr.bf16.mxu0 %v365
        %430 = vmatmul.mubr.bf16.gmra.mrb[0].mxu0 %v364
        %v431 = vpop.f32.mrb[0].mxu0
        %v432 = vadd.f32 0.0, %v431
        %v433 = vpop.f32.mrb[0].mxu0
        %v434 = vpop.f32.mrb[0].mxu0
        %v435 = vadd.f32 0.0, %v434
        %v436 = vpop.f32.mrb[0].mxu0
        %437 = vmatprep.mubr.bf16.mxu0 %v368
        %438 = vmatmul.mubr.bf16.gmra.mrb[0].mxu0 %v367
        %v439 = vpop.f32.mrb[0].mxu0
        %v440 = vadd.f32 0.0, %v439
        %v441 = vpop.f32.mrb[0].mxu0
        %v442 = vpop.f32.mrb[0].mxu0
        %v443 = vadd.f32 0.0, %v442
        %v444 = vpop.f32.mrb[0].mxu0
        %445 = vmatprep.mubr.bf16.mxu0 %v371
        %446 = vmatmul.mubr.bf16.gmra.mrb[0].mxu0 %v370
        %v447 = vpop.f32.mrb[0].mxu0
        %v448 = vadd.f32 0.0, %v447
        %v449 = vpop.f32.mrb[0].mxu0
        %v450 = vpop.f32.mrb[0].mxu0
        %v451 = vadd.f32 0.0, %v450
        %v452 = vpop.f32.mrb[0].mxu0
        %453 = vmatprep.mubr.bf16.mxu0 %v374
        %454 = vmatmul.mubr.bf16.gmra.mrb[0].mxu0 %v373
        %v455 = vpop.f32.mrb[0].mxu0
        %v456 = vadd.f32 0.0, %v455
        %v457 = vpop.f32.mrb[0].mxu0
        %v458 = vpop.f32.mrb[0].mxu0
        %v459 = vadd.f32 0.0, %v458
        %v460 = vpop.f32.mrb[0].mxu0
        %461 = vdwg.mxu0
        %462 = vmatprep.subr.bf16.mxu0 0
        %463 = vmatpush1.bf16.msra.mxu0 %v319
        %464 = vmatprep.subr.bf16.mxu0 0
        %465 = vmatpush1.bf16.msra.mxu0 %v321
        %466 = vmatprep.subr.bf16.mxu0 0
        %467 = vmatpush1.bf16.msra.mxu0 0
        %468 = vmatprep.subr.bf16.mxu0 0
        %469 = vmatpush1.bf16.msra.mxu0 0
        %470 = vmatprep.subr.bf16.mxu0 0
        %471 = vmatpush1.bf16.msra.mxu0 0
        %472 = vmatprep.subr.bf16.mxu0 0
        %473 = vmatpush1.bf16.msra.mxu0 0
        %474 = vmatprep.subr.bf16.mxu0 0
        %475 = vmatpush1.bf16.msra.mxu0 0
        %476 = vmatprep.subr.bf16.mxu0 0
        %477 = vmatpush1.bf16.msra.mxu0 0
        %478 = vmatprep.subr.bf16.mxu0 0
        %479 = vmatpush1.bf16.msra.mxu0 0
        %480 = vmatprep.subr.bf16.mxu0 0
        %481 = vmatpush1.bf16.msra.mxu0 0
        %482 = vmatprep.subr.bf16.mxu0 0
        %483 = vmatpush1.bf16.msra.mxu0 0
        %484 = vmatprep.subr.bf16.mxu0 0
        %485 = vmatpush1.bf16.msra.mxu0 0
        %486 = vmatprep.subr.bf16.mxu0 0
        %487 = vmatpush1.bf16.msra.mxu0 0
        %488 = vmatprep.subr.bf16.mxu0 0
        %489 = vmatpush1.bf16.msra.mxu0 0
        %490 = vmatprep.subr.bf16.mxu0 0
        %491 = vmatpush1.bf16.msra.mxu0 0
        %492 = vmatprep.subr.bf16.mxu0 0
        %493 = vmatpush1.bf16.msra.mxu0 0
        %494 = vmatprep.mubr.bf16.mxu0 0
        %495 = vmatmul.mubr.bf16.gmra.mrb[0].mxu0 %v386
        %v496 = vpop.f32.mrb[0].mxu0
        %v497 = vadd.f32 %v432, %v496
        %v498 = vpop.f32.mrb[0].mxu0
        %v499 = vpop.f32.mrb[0].mxu0
        %v500 = vadd.f32 %v435, %v499
        %v501 = vpop.f32.mrb[0].mxu0
        %502 = vmatprep.mubr.bf16.mxu0 0
        %503 = vmatmul.mubr.bf16.gmra.mrb[0].mxu0 %v389
        %v504 = vpop.f32.mrb[0].mxu0
        %v505 = vadd.f32 %v440, %v504
        %v506 = vpop.f32.mrb[0].mxu0
        %v507 = vpop.f32.mrb[0].mxu0
        %v508 = vadd.f32 %v443, %v507
        %v509 = vpop.f32.mrb[0].mxu0
        %510 = vmatprep.mubr.bf16.mxu0 0
        %511 = vmatmul.mubr.bf16.gmra.mrb[0].mxu0 %v392
        %v512 = vpop.f32.mrb[0].mxu0
        %v513 = vadd.f32 %v448, %v512
        %v514 = vpop.f32.mrb[0].mxu0
        %v515 = vpop.f32.mrb[0].mxu0
        %v516 = vadd.f32 %v451, %v515
        %v517 = vpop.f32.mrb[0].mxu0
        %518 = vmatprep.mubr.bf16.mxu0 0
        %519 = vmatmul.mubr.bf16.gmra.mrb[0].mxu0 %v395
        %v520 = vpop.f32.mrb[0].mxu0
        %v521 = vadd.f32 %v456, %v520
        %v522 = vpop.f32.mrb[0].mxu0
        %v523 = vpop.f32.mrb[0].mxu0
        %v524 = vadd.f32 %v459, %v523
        %v525 = vpop.f32.mrb[0].mxu0
        %526 = vdwg.mxu0
        %528 = vset.pattern.permute.xlu0 0
        %529 = vperm.xlu0 %528, %v198
        %v530 = vpop.permute.xlu0 %529
        %533 = vset.pattern.permute.xlu0 0
        %534 = vperm.xlu0 %533, %v199
        %v535 = vpop.permute.xlu0 %534
        %538 = vset.pattern.permute.xlu0 0
        %539 = vperm.xlu0 %538, %v200
        %v540 = vpop.permute.xlu0 %539
        %543 = vset.pattern.permute.xlu0 0
        %544 = vperm.xlu0 %543, %v201
        %v545 = vpop.permute.xlu0 %544
        %548 = vset.pattern.permute.xlu0 0
        %549 = vperm.xlu0 %548, %v202
        %v550 = vpop.permute.xlu0 %549
        %553 = vset.pattern.permute.xlu0 0
        %554 = vperm.xlu0 %553, %v203
        %v555 = vpop.permute.xlu0 %554
        %558 = vset.pattern.permute.xlu0 0
        %559 = vperm.xlu0 %558, %v204
        %v560 = vpop.permute.xlu0 %559
        %563 = vset.pattern.permute.xlu0 0
        %564 = vperm.xlu0 %563, %v205
        %v565 = vpop.permute.xlu0 %564
        %v567 = vmul.f32 %v497, %v530
        %v568 = vmul.f32 %v500, %v535
        %v569 = vmul.f32 %v505, %v540
        %v570 = vmul.f32 %v508, %v545
        %v571 = vmul.f32 %v513, %v550
        %v572 = vmul.f32 %v516, %v555
        %v573 = vmul.f32 %v521, %v560
        %v574 = vmul.f32 %v524, %v565
        %575 = vset.pattern.permute.xlu0 1
        %576 = vperm.xlu0 %575, %v198
        %v577 = vpop.permute.xlu0 %576
        %579 = vset.pattern.permute.xlu0 1
        %580 = vperm.xlu0 %579, %v199
        %v581 = vpop.permute.xlu0 %580
        %583 = vset.pattern.permute.xlu0 1
        %584 = vperm.xlu0 %583, %v200
        %v585 = vpop.permute.xlu0 %584
        %587 = vset.pattern.permute.xlu0 1
        %588 = vperm.xlu0 %587, %v201
        %v589 = vpop.permute.xlu0 %588
        %591 = vset.pattern.permute.xlu0 1
        %592 = vperm.xlu0 %591, %v202
        %v593 = vpop.permute.xlu0 %592
        %595 = vset.pattern.permute.xlu0 1
        %596 = vperm.xlu0 %595, %v203
        %v597 = vpop.permute.xlu0 %596
        %599 = vset.pattern.permute.xlu0 1
        %600 = vperm.xlu0 %599, %v204
        %v601 = vpop.permute.xlu0 %600
        %603 = vset.pattern.permute.xlu0 1
        %604 = vperm.xlu0 %603, %v205
        %v605 = vpop.permute.xlu0 %604
        %v607 = vadd.f32 %v567, %v577
        %v608 = vadd.f32 %v568, %v581
        %v609 = vadd.f32 %v569, %v585
        %v610 = vadd.f32 %v570, %v589
        %v611 = vadd.f32 %v571, %v593
        %v612 = vadd.f32 %v572, %v597
        %v613 = vadd.f32 %v573, %v601
        %v614 = vadd.f32 %v574, %v605
        %vm615 = vcmp.gt.f32.partialorder %v607, 0.0
        %vm616 = vcmp.gt.f32.partialorder %v608, 0.0
        %vm617 = vcmp.gt.f32.partialorder %v609, 0.0
        %vm618 = vcmp.gt.f32.partialorder %v610, 0.0
        %vm619 = vcmp.gt.f32.partialorder %v611, 0.0
        %vm620 = vcmp.gt.f32.partialorder %v612, 0.0
        %vm621 = vcmp.gt.f32.partialorder %v613, 0.0
        %vm622 = vcmp.gt.f32.partialorder %v614, 0.0
        %623 = vset.pattern.permute.xlu0 2
        %624 = vperm.xlu0 %623, %v198
        %v625 = vpop.permute.xlu0 %624
        %627 = vset.pattern.permute.xlu0 2
        %628 = vperm.xlu0 %627, %v199
        %v629 = vpop.permute.xlu0 %628
        %631 = vset.pattern.permute.xlu0 2
        %632 = vperm.xlu0 %631, %v200
        %v633 = vpop.permute.xlu0 %632
        %635 = vset.pattern.permute.xlu0 2
        %636 = vperm.xlu0 %635, %v201
        %v637 = vpop.permute.xlu0 %636
        %639 = vset.pattern.permute.xlu0 2
        %640 = vperm.xlu0 %639, %v202
        %v641 = vpop.permute.xlu0 %640
        %643 = vset.pattern.permute.xlu0 2
        %644 = vperm.xlu0 %643, %v203
        %v645 = vpop.permute.xlu0 %644
        %647 = vset.pattern.permute.xlu0 2
        %648 = vperm.xlu0 %647, %v204
        %v649 = vpop.permute.xlu0 %648
        %651 = vset.pattern.permute.xlu0 2
        %652 = vperm.xlu0 %651, %v205
        %v653 = vpop.permute.xlu0 %652
        %v655 = vmul.f32 %v625, %v607
        %v656 = vmul.f32 %v629, %v608
        %v657 = vmul.f32 %v633, %v609
        %v658 = vmul.f32 %v637, %v610
        %v659 = vmul.f32 %v641, %v611
        %v660 = vmul.f32 %v645, %v612
        %v661 = vmul.f32 %v649, %v613
        %v662 = vmul.f32 %v653, %v614
        %v663 = vsel %vm615, %v607, %v655
        %v664 = vsel %vm616, %v608, %v656
        %v665 = vsel %vm617, %v609, %v657
        %v666 = vsel %vm618, %v610, %v658
        %v667 = vsel %vm619, %v611, %v659
        %v668 = vsel %vm620, %v612, %v660
        %v669 = vsel %vm621, %v613, %v661
        %v670 = vsel %vm622, %v614, %v662
        %v671 = vpack.c.bf16 %v664, %v663
        %v672 = vpack.c.bf16 %v666, %v665
        %v673 = vpack.c.bf16 %v668, %v667
        %v674 = vpack.c.bf16 %v670, %v669
        %v679 = vunpack.c.l.b16 %v671
        %v680 = vunpack.c.h.b16 %v671
        %v681 = vunpack.c.l.b16 %v672
        %v682 = vunpack.c.h.b16 %v672
        %v683 = vunpack.c.l.b16 %v673
        %v684 = vunpack.c.h.b16 %v673
        %v685 = vunpack.c.l.b16 %v674
        %v686 = vunpack.c.h.b16 %v674
        %v687 = vpack.c.b16 %v679, %v679
        %v688 = vpack.c.b16 %v680, %v680
        %v689 = vpack.c.b16 %v681, %v681
        %v690 = vpack.c.b16 %v682, %v682
        %v691 = vpack.c.b16 %v683, %v683
        %v692 = vpack.c.b16 %v684, %v684
        %v693 = vpack.c.b16 %v685, %v685
        %v694 = vpack.c.b16 %v686, %v686
        %s703 = smul.u32 %s223, 8
        %s704 = smul.addr %s703, 4
        %s705 = scalar_lea.vmem %s194, %s704
        %vm706 = vcmask 109568
        %707 = vst.msk [vmem:[%s705] sm:$0xf] %vm706, %v687
        %708 = vst.msk [vmem:[%s705 + $0x4] sm:$0xf] %vm706, %v688
        %709 = vst.msk [vmem:[%s705 + $0x8] sm:$0xf] %vm706, %v689
        %710 = vst.msk [vmem:[%s705 + $0xc] sm:$0xf] %vm706, %v690
        %711 = vst.msk [vmem:[%s705 + $0x10] sm:$0xf] %vm706, %v691
        %712 = vst.msk [vmem:[%s705 + $0x14] sm:$0xf] %vm706, %v692
        %713 = vst.msk [vmem:[%s705 + $0x18] sm:$0xf] %vm706, %v693
        %714 = vst.msk [vmem:[%s705 + $0x1c] sm:$0xf] %vm706, %v694
      $region37: #{id_loss_forward.16} parent=31 // loop_footer
        %s227 = sadd.s32 1, %s223
      $region38: #{id_loss_forward.16} parent=31 // loop_footer_branch
        %222 = sbr.rel target = $region34
      $region39: #{id_loss_forward.16} parent=31 // loop_exit
        _
      %s715 = smul.u32 14, %s19
      %p716 = scmp.lt.s32.totalorder %s18, 1
      %s717 = scalar_select %p716, %s18, 1
      %p718 = scmp.lt.s32.totalorder %s715, 13
      %s719 = scalar_select %p718, %s715, 13
      %s720 = smul.addr %s719, 8
      %s721 = smul.addr %s717, 112
      %s722 = sadd.s32 %s720, %s721
      %s723 = smul.addr %s722, 4
      %s724 = scalar_lea.vmem %s3, %s723
      // Predicated region
      $region40: #{id_loss_forward.16} parent=31 // pred_check
        %p725 = pneg %p114
      $region41: #{id_loss_forward.16} parent=31 // pred_check_branch
        %727 = sbr.rel (%p725) target = $region43
      $region42: #{id_loss_forward.16} parent=31 // pred_region
        %s728 = smul.u32 14, %s19
      $region43: #{id_loss_forward.16} parent=31 // pred_fallthru
        _
    $region32: #{id_loss_forward.16} parent=5 // pred_fallthru
      _
    %p729 = scmp.le.s32.totalorder 2, %s9
    // Predicated region
    $region44: #{id_loss_forward.16} parent=5 // pred_check
      %p730 = pneg %p729
    $region45: #{id_loss_forward.16} parent=5 // pred_check_branch
      %732 = sbr.rel (%p730) target = $region47
    $region46: #{id_loss_forward.16} parent=5 // pred_region
      %s733 = ssub.s32 %s9, 2
      // Predicated region
      $region48: #{id_loss_forward.16} parent=46 // pred_check
        %p734 = pneg %p120
      $region49: #{id_loss_forward.16} parent=46 // pred_check_branch
        %736 = sbr.rel (%p734) target = $region51
      $region50: #{id_loss_forward.16} parent=46 // pred_region
        %s737 = smul.u32 14, %s21
        %p738 = scmp.lt.s32.totalorder %s20, 1
        %s739 = scalar_select %p738, %s20, 1
        %p740 = scmp.lt.s32.totalorder %s737, 13
        %s741 = scalar_select %p740, %s737, 13
        %s742 = smul.addr %s741, 8
        %s743 = smul.addr %s739, 112
        %s744 = sadd.s32 %s742, %s743
        %s745 = smul.addr %s744, 4
        %s746 = scalar_lea.vmem %s3, %s745
      $region51: #{id_loss_forward.16} parent=46 // pred_fallthru
        _
    $region47: #{id_loss_forward.16} parent=5 // pred_fallthru
      _
  $region6: #{id_loss_forward.16} parent=0 // loop_footer
    %s13 = sadd.s32 1, %s9
  $region7: #{id_loss_forward.16} parent=0 // loop_footer_branch
    %8 = sbr.rel target = $region3
  $region8: #{id_loss_forward.16} parent=0 // loop_exit
    _

// kernel: id_loss_forward.17
$region0: #{id_loss_forward.17}
  #allocation0 [shape = 'u32[]', space=smem, size = 0x4, offset = 0x4, fixed_abs, tag = 'smem constant byte address 0x4 - core index']
  #allocation1 [shape = 'u32[144,128]{1,0:T(1,128)}', space=vmem, size = 0x12000, scoped, tag = 'internal scratch']
  %s0 = inlined_call_operand.vmem [shape: bf16[2,16,64,16], index: 0, kind: input, shape index: {}]
  %s1 = inlined_call_operand.vmem [shape: bf16[64,576], index: 1, kind: input, shape index: {}]
  %s2 = inlined_call_operand.vmem [shape: f32[64,3], index: 2, kind: input, shape index: {}]
  %s3 = inlined_call_operand.vmem [shape: bf16[2,7,64,7], index: 3, kind: output, shape index: {}]
  %s4 = sld [smem:[#allocation0]]
  $region52: #{id_loss_forward.17} parent=0
    _
  %s6 = ssub.s32 1, %s4
  %s7 = scalar_select 0, %s6, %s4
  loop: start=0, step=1, limit=4
  $region2: #{id_loss_forward.17} parent=0 // loop_pre_header
    _
  $region3: #{id_loss_forward.17} parent=0 // loop_header
    %s9 = sphi 0, %s13
    %p10 = scmp.ge.s32.totalorder %s9, 4
    %s16 = sphi 0, %s28
    %s17 = sphi 0, %s24
    %s18 = sphi 0, %s16
    %s19 = sphi 0, %s17
    %s20 = sphi 0, %s18
    %s21 = sphi 0, %s19
    %s31 = sphi 0, %s33
    %s34 = sphi 0, %s31
    %s35 = sphi 0, %s34
    %s51 = sphi 0, %s35
    %s55 = sphi 0, %s55
    %s57 = sphi 0, %s55
    %s58 = sphi 0, %s57
    %s72 = sphi 0, %s58
    %s76 = sphi 0, %s76
    %s78 = sphi 0, %s76
    %s79 = sphi 0, %s78
    %s93 = sphi 0, %s79
    %s101 = sphi 0, %s103
    %s104 = sphi 0, %s101
    %s105 = sphi 0, %s104
    %s121 = sphi 0, %s105
  $region4: #{id_loss_forward.17} parent=0 // loop_header_branch
    %12 = sbr.rel (%p10) target = $region8
  $region5: #{id_loss_forward.17} parent=0 // loop_body
    %s14 = ssub.s32 %s9, 1
    %s15 = ssub.s32 %s9, 2
    %s22 = sadd.s32 1, %s17
    %p23 = scmp.ge.s32.totalorder %s22, 1
    %s24 = scalar_select %p23, 0, %s22
    %s25 = sadd.s32 1, %s16
    %s26 = scalar_select %p23, %s25, %s16
    %p27 = scmp.ge.s32.totalorder %s26, 2
    %s28 = scalar_select %p27, 0, %s26
    %s29 = ssub.s32 %s16, %s28
    %p30 = scmp.eq.s32.totalorder %s29, 0
    %s32 = sadd.s32 %s31, 1
    %s33 = scalar_select %p30, %s31, %s32
    %p36 = pneg %p30
    %p37 = scmp.eq.s32.totalorder %s9, 1
    %p38 = por %p36, %p37
    %p39 = scmp.ne.s32.totalorder %s31, %s34
    %p40 = scmp.eq.s32.totalorder %s9, 0
    %p41 = por %p39, %p40
    %p42 = scmp.ne.s32.totalorder %s31, %s34
    %p43 = scmp.eq.s32.totalorder %s14, 1
    %p44 = por %p42, %p43
    %p45 = scmp.ne.s32.totalorder %s34, %s35
    %p46 = scmp.eq.s32.totalorder %s14, 0
    %p47 = por %p45, %p46
    %p48 = scmp.ne.s32.totalorder %s34, %s35
    %p49 = scmp.eq.s32.totalorder %s15, 1
    %p50 = por %p48, %p49
    %p52 = scmp.ne.s32.totalorder %s35, %s51
    %p53 = scmp.eq.s32.totalorder %s15, 0
    %p54 = por %p52, %p53
    %s56 = sadd.s32 %s55, 1
    %p59 = scmp.eq.s32.totalorder %s9, 1
    %p60 = scmp.ne.s32.totalorder %s55, %s57
    %p61 = scmp.eq.s32.totalorder %s9, 0
    %p62 = por %p60, %p61
    %p63 = scmp.ne.s32.totalorder %s55, %s57
    %p64 = scmp.eq.s32.totalorder %s14, 1
    %p65 = por %p63, %p64
    %p66 = scmp.ne.s32.totalorder %s57, %s58
    %p67 = scmp.eq.s32.totalorder %s14, 0
    %p68 = por %p66, %p67
    %p69 = scmp.ne.s32.totalorder %s57, %s58
    %p70 = scmp.eq.s32.totalorder %s15, 1
    %p71 = por %p69, %p70
    %p73 = scmp.ne.s32.totalorder %s58, %s72
    %p74 = scmp.eq.s32.totalorder %s15, 0
    %p75 = por %p73, %p74
    %s77 = sadd.s32 %s76, 1
    %p80 = scmp.eq.s32.totalorder %s9, 1
    %p81 = scmp.ne.s32.totalorder %s76, %s78
    %p82 = scmp.eq.s32.totalorder %s9, 0
    %p83 = por %p81, %p82
    %p84 = scmp.ne.s32.totalorder %s76, %s78
    %p85 = scmp.eq.s32.totalorder %s14, 1
    %p86 = por %p84, %p85
    %p87 = scmp.ne.s32.totalorder %s78, %s79
    %p88 = scmp.eq.s32.totalorder %s14, 0
    %p89 = por %p87, %p88
    %p90 = scmp.ne.s32.totalorder %s78, %s79
    %p91 = scmp.eq.s32.totalorder %s15, 1
    %p92 = por %p90, %p91
    %p94 = scmp.ne.s32.totalorder %s79, %s93
    %p95 = scmp.eq.s32.totalorder %s15, 0
    %p96 = por %p94, %p95
    %s97 = ssub.s32 %s16, %s28
    %s98 = ssub.s32 %s17, %s24
    %s99 = sor.u32 %s97, %s98
    %p100 = scmp.eq.s32.totalorder %s99, 0
    %s102 = sadd.s32 %s101, 1
    %s103 = scalar_select %p100, %s101, %s102
    %p106 = pneg %p100
    %p107 = scmp.eq.s32.totalorder %s9, 1
    %p108 = por %p106, %p107
    %p109 = scmp.ne.s32.totalorder %s101, %s104
    %p110 = scmp.eq.s32.totalorder %s9, 0
    %p111 = por %p109, %p110
    %p112 = scmp.ne.s32.totalorder %s101, %s104
    %p113 = scmp.eq.s32.totalorder %s14, 1
    %p114 = por %p112, %p113
    %p115 = scmp.ne.s32.totalorder %s104, %s105
    %p116 = scmp.eq.s32.totalorder %s14, 0
    %p117 = por %p115, %p116
    %p118 = scmp.ne.s32.totalorder %s104, %s105
    %p119 = scmp.eq.s32.totalorder %s15, 1
    %p120 = por %p118, %p119
    %p122 = scmp.ne.s32.totalorder %s105, %s121
    %p123 = scmp.eq.s32.totalorder %s15, 0
    %p124 = por %p122, %p123
    %p125 = scmp.le.s32.totalorder 1, %s9
    %p126 = scmp.lt.s32.totalorder %s9, 3
    %p127 = pnand %p125, %p126
    %p128 = pneg %p127
    // Predicated region
    $region9: #{id_loss_forward.17} parent=5 // pred_check
      _
    $region10: #{id_loss_forward.17} parent=5 // pred_check_branch
      %130 = sbr.rel (%p127) target = $region12
    $region11: #{id_loss_forward.17} parent=5 // pred_region
      %s131 = ssub.s32 %s9, 1
      // Predicated region
      $region13: #{id_loss_forward.17} parent=11 // pred_check
        %p132 = pneg %p68
      $region14: #{id_loss_forward.17} parent=11 // pred_check_branch
        %134 = sbr.rel (%p132) target = $region16
      $region15: #{id_loss_forward.17} parent=11 // pred_region
        _
      $region16: #{id_loss_forward.17} parent=11 // pred_fallthru
        _
      // Predicated region
      $region17: #{id_loss_forward.17} parent=11 // pred_check
        %p135 = pneg %p89
      $region18: #{id_loss_forward.17} parent=11 // pred_check_branch
        %137 = sbr.rel (%p135) target = $region20
      $region19: #{id_loss_forward.17} parent=11 // pred_region
        _
      $region20: #{id_loss_forward.17} parent=11 // pred_fallthru
        _
    $region12: #{id_loss_forward.17} parent=5 // pred_fallthru
      _
    %p138 = scmp.lt.s32.totalorder %s9, 2
    // Predicated region
    $region21: #{id_loss_forward.17} parent=5 // pred_check
      %p139 = pneg %p138
    $region22: #{id_loss_forward.17} parent=5 // pred_check_branch
      %141 = sbr.rel (%p139) target = $region24
    $region23: #{id_loss_forward.17} parent=5 // pred_region
      // Predicated region
      $region25: #{id_loss_forward.17} parent=23 // pred_check
        %p142 = pneg %p41
      $region26: #{id_loss_forward.17} parent=23 // pred_check_branch
        %144 = sbr.rel (%p142) target = $region28
      $region27: #{id_loss_forward.17} parent=23 // pred_region
        %p145 = scmp.lt.s32.totalorder %s16, 1
        %s146 = scalar_select %p145, %s16, 1
        %s147 = smul.addr %s146, 128
        %s148 = smul.addr %s147, 4
        %s149 = scalar_lea.vmem %s0, %s148
      $region28: #{id_loss_forward.17} parent=23 // pred_fallthru
        _
    $region24: #{id_loss_forward.17} parent=5 // pred_fallthru
      _
    %p150 = scmp.le.s32.totalorder 1, %s9
    %p151 = scmp.lt.s32.totalorder %s9, 3
    %p152 = pnand %p150, %p151
    %p153 = pneg %p152
    // Predicated region
    $region29: #{id_loss_forward.17} parent=5 // pred_check
      _
    $region30: #{id_loss_forward.17} parent=5 // pred_check_branch
      %155 = sbr.rel (%p152) target = $region32
    $region31: #{id_loss_forward.17} parent=5 // pred_region
      %s156 = ssub.s32 %s9, 1
      %p157 = scmp.lt.s32.totalorder %s18, 1
      %s158 = scalar_select %p157, %s18, 1
      %s159 = smul.addr %s158, 128
      %s160 = smul.addr %s159, 4
      %s161 = scalar_lea.vmem %s0, %s160
      %p162 = pneg %p47
      %p163 = pneg %p44
      %p164 = pneg %p68
      %p165 = pneg %p65
      %p166 = pneg %p89
      %p167 = pneg %p86
      %p168 = pneg %p117
      %p169 = pneg %p114
      %s170 = smul.u32 7, %s19
      %p171 = scmp.lt.s32.totalorder %s18, 1
      %s172 = scalar_select %p171, %s18, 1
      %p173 = scmp.lt.s32.totalorder %s170, 6
      %s174 = scalar_select %p173, %s170, 6
      %s175 = smul.addr %s174, 4
      %s176 = smul.addr %s172, 28
      %s177 = sadd.s32 %s175, %s176
      %s178 = smul.addr %s177, 8
      %s179 = scalar_lea.vmem %s3, %s178
      %p180 = scmp.lt.s32.totalorder %s18, 1
      %s181 = scalar_select %p180, %s18, 1
      %s182 = smul.addr %s181, 128
      %s183 = smul.addr %s182, 4
      %s184 = scalar_lea.vmem %s0, %s183
      %s185 = smul.u32 7, %s19
      %p186 = scmp.lt.s32.totalorder %s18, 1
      %s187 = scalar_select %p186, %s18, 1
      %p188 = scmp.lt.s32.totalorder %s185, 6
      %s189 = scalar_select %p188, %s185, 6
      %s190 = smul.addr %s189, 4
      %s191 = smul.addr %s187, 28
      %s192 = sadd.s32 %s190, %s191
      %s193 = smul.addr %s192, 8
      %s194 = scalar_lea.vmem %s3, %s193
      %s195 = smul.u32 7, %s19
      %s197 = smul.u32 %s19, 7
      %v198 = vld [vmem:[%s2] sm:$0xff]
      %v199 = vld [vmem:[%s2 + $0x8] sm:$0xff]
      %v200 = vld [vmem:[%s2 + $0x10] sm:$0xff]
      %v201 = vld [vmem:[%s2 + $0x18] sm:$0xff]
      %v202 = vld [vmem:[%s2 + $0x20] sm:$0xff]
      %v203 = vld [vmem:[%s2 + $0x28] sm:$0xff]
      %v204 = vld [vmem:[%s2 + $0x30] sm:$0xff]
      %v205 = vld [vmem:[%s2 + $0x38] sm:$0xff]
      %v206 = vld [vmem:[%s1] sm:$0xff]
      %v207 = vld [vmem:[%s1 + $0x8] sm:$0xff]
      %v208 = vld [vmem:[%s1 + $0x10] sm:$0xf]
      %v209 = vld [vmem:[%s1 + $0x14] sm:$0xff]
      %v210 = vld [vmem:[%s1 + $0x1c] sm:$0xff]
      %v211 = vld [vmem:[%s1 + $0x24] sm:$0xf]
      %v212 = vld [vmem:[%s1 + $0x28] sm:$0xff]
      %v213 = vld [vmem:[%s1 + $0x30] sm:$0xff]
      %v214 = vld [vmem:[%s1 + $0x38] sm:$0xf]
      %v215 = vld [vmem:[%s1 + $0x3c] sm:$0xff]
      %v216 = vld [vmem:[%s1 + $0x44] sm:$0xff]
      %v217 = vld [vmem:[%s1 + $0x4c] sm:$0xf]
      %v218 = vld [vmem:[%s1 + $0x50] sm:$0xff]
      %v219 = vld [vmem:[%s1 + $0x58] sm:$0xff]
      %v220 = vld [vmem:[%s1 + $0x60] sm:$0xf]
      %v221 = vld [vmem:[%s1 + $0x64] sm:$0xff]
      %v222 = vld [vmem:[%s1 + $0x6c] sm:$0xff]
      %v223 = vld [vmem:[%s1 + $0x74] sm:$0xf]
      %v224 = vld [vmem:[%s1 + $0x78] sm:$0xff]
      %v225 = vld [vmem:[%s1 + $0x80] sm:$0xff]
      %v226 = vld [vmem:[%s1 + $0x88] sm:$0xf]
      %v227 = vld [vmem:[%s1 + $0x8c] sm:$0xff]
      %v228 = vld [vmem:[%s1 + $0x94] sm:$0xff]
      %v229 = vld [vmem:[%s1 + $0x9c] sm:$0xf]
      loop: start=0, step=1, limit=7
      $region33: #{id_loss_forward.17} parent=31 // loop_pre_header
        _
      $region34: #{id_loss_forward.17} parent=31 // loop_header
        %s231 = sphi 0, %s235
        %p232 = scmp.ge.s32.totalorder %s231, 7
      $region35: #{id_loss_forward.17} parent=31 // loop_header_branch
        %234 = sbr.rel (%p232) target = $region39
      $region36: #{id_loss_forward.17} parent=31 // loop_body
        %s236 = sadd.s32 %s197, %s231
        %s237 = smul.u32 %s236, 8
        %s238 = smul.addr %s237, 4
        %s239 = scalar_lea.vmem %s184, %s238
        %v240 = vld [vmem:[%s239] sm:$0xf]
        %v241 = vld [vmem:[%s239 + $0x4] sm:$0xf]
        %v242 = vld [vmem:[%s239 + $0x8] sm:$0xf]
        %v243 = vld [vmem:[%s239 + $0xc] sm:$0xf]
        %v244 = vld [vmem:[%s239 + $0x10] sm:$0xf]
        %v245 = vld [vmem:[%s239 + $0x14] sm:$0xf]
        %v246 = vld [vmem:[%s239 + $0x18] sm:$0xf]
        %v247 = vld [vmem:[%s239 + $0x1c] sm:$0xf]
        %s248 = sadd.s32 %s236, 8
        %s249 = smul.u32 %s248, 8
        %s250 = smul.addr %s249, 4
        %s251 = scalar_lea.vmem %s184, %s250
        %v252 = vld [vmem:[%s251] sm:$0xf]
        %v253 = vld [vmem:[%s251 + $0x4] sm:$0xf]
        %v254 = vld [vmem:[%s251 + $0x8] sm:$0xf]
        %v255 = vld [vmem:[%s251 + $0xc] sm:$0xf]
        %v256 = vld [vmem:[%s251 + $0x10] sm:$0xf]
        %v257 = vld [vmem:[%s251 + $0x14] sm:$0xf]
        %v258 = vld [vmem:[%s251 + $0x18] sm:$0xf]
        %v259 = vld [vmem:[%s251 + $0x1c] sm:$0xf]
        %s260 = sadd.s32 %s236, 1
        %s261 = smul.u32 %s260, 8
        %s262 = smul.addr %s261, 4
        %s263 = scalar_lea.vmem %s184, %s262
        %v264 = vld [vmem:[%s263] sm:$0xf]
        %v265 = vld [vmem:[%s263 + $0x4] sm:$0xf]
        %v266 = vld [vmem:[%s263 + $0x8] sm:$0xf]
        %v267 = vld [vmem:[%s263 + $0xc] sm:$0xf]
        %v268 = vld [vmem:[%s263 + $0x10] sm:$0xf]
        %v269 = vld [vmem:[%s263 + $0x14] sm:$0xf]
        %v270 = vld [vmem:[%s263 + $0x18] sm:$0xf]
        %v271 = vld [vmem:[%s263 + $0x1c] sm:$0xf]
        %v280 = vunpack.c.l.b16 %v240
        %v281 = vunpack.c.l.b16 %v241
        %v282 = vunpack.c.l.b16 %v242
        %v283 = vunpack.c.l.b16 %v243
        %v284 = vunpack.c.l.b16 %v244
        %v285 = vunpack.c.l.b16 %v245
        %v286 = vunpack.c.l.b16 %v246
        %v287 = vunpack.c.l.b16 %v247
        %v288 = vpack.c.b16 %v281, %v280
        %v289 = vpack.c.b16 %v283, %v282
        %v290 = vpack.c.b16 %v285, %v284
        %v291 = vpack.c.b16 %v287, %v286
        %296 = vrot.lane.b32.xlu0 %v288, 120
        %v297 = vpop.permute.xlu0 %296
        %298 = vrot.lane.b32.xlu0 %v289, 120
        %v299 = vpop.permute.xlu0 %298
        %300 = vrot.lane.b32.xlu0 %v290, 120
        %v301 = vpop.permute.xlu0 %300
        %302 = vrot.lane.b32.xlu0 %v291, 120
        %v303 = vpop.permute.xlu0 %302
        %308 = vrot.lane.b32.xlu0 %v288, 127
        %v309 = vpop.permute.xlu0 %308
        %310 = vrot.lane.b32.xlu0 %v289, 127
        %v311 = vpop.permute.xlu0 %310
        %312 = vrot.lane.b32.xlu0 %v290, 127
        %v313 = vpop.permute.xlu0 %312
        %314 = vrot.lane.b32.xlu0 %v291, 127
        %v315 = vpop.permute.xlu0 %314
        %v328 = vunpack.c.l.b16 %v252
        %v329 = vunpack.c.l.b16 %v253
        %v330 = vunpack.c.l.b16 %v254
        %v331 = vunpack.c.l.b16 %v255
        %v332 = vunpack.c.l.b16 %v256
        %v333 = vunpack.c.l.b16 %v257
        %v334 = vunpack.c.l.b16 %v258
        %v335 = vunpack.c.l.b16 %v259
        %v336 = vpack.c.b16 %v329, %v328
        %v337 = vpack.c.b16 %v331, %v330
        %v338 = vpack.c.b16 %v333, %v332
        %v339 = vpack.c.b16 %v335, %v334
        %344 = vrot.lane.b32.xlu0 %v336, 120
        %v345 = vpop.permute.xlu0 %344
        %346 = vrot.lane.b32.xlu0 %v337, 120
        %v347 = vpop.permute.xlu0 %346
        %348 = vrot.lane.b32.xlu0 %v338, 120
        %v349 = vpop.permute.xlu0 %348
        %350 = vrot.lane.b32.xlu0 %v339, 120
        %v351 = vpop.permute.xlu0 %350
        %356 = vrot.lane.b32.xlu0 %v336, 127
        %v357 = vpop.permute.xlu0 %356
        %358 = vrot.lane.b32.xlu0 %v337, 127
        %v359 = vpop.permute.xlu0 %358
        %360 = vrot.lane.b32.xlu0 %v338, 127
        %v361 = vpop.permute.xlu0 %360
        %362 = vrot.lane.b32.xlu0 %v339, 127
        %v363 = vpop.permute.xlu0 %362
        %v376 = vunpack.c.l.b16 %v264
        %v377 = vunpack.c.l.b16 %v265
        %v378 = vunpack.c.l.b16 %v266
        %v379 = vunpack.c.l.b16 %v267
        %v380 = vunpack.c.l.b16 %v268
        %v381 = vunpack.c.l.b16 %v269
        %v382 = vunpack.c.l.b16 %v270
        %v383 = vunpack.c.l.b16 %v271
        %v384 = vpack.c.b16 %v377, %v376
        %v385 = vpack.c.b16 %v379, %v378
        %v386 = vpack.c.b16 %v381, %v380
        %v387 = vpack.c.b16 %v383, %v382
        %392 = vrot.lane.b32.xlu0 %v384, 120
        %v393 = vpop.permute.xlu0 %392
        %394 = vrot.lane.b32.xlu0 %v385, 120
        %v395 = vpop.permute.xlu0 %394
        %396 = vrot.lane.b32.xlu0 %v386, 120
        %v397 = vpop.permute.xlu0 %396
        %398 = vrot.lane.b32.xlu0 %v387, 120
        %v399 = vpop.permute.xlu0 %398
        %404 = vrot.lane.b32.xlu0 %v384, 127
        %v405 = vpop.permute.xlu0 %404
        %406 = vrot.lane.b32.xlu0 %v385, 127
        %v407 = vpop.permute.xlu0 %406
        %408 = vrot.lane.b32.xlu0 %v386, 127
        %v409 = vpop.permute.xlu0 %408
        %410 = vrot.lane.b32.xlu0 %v387, 127
        %v411 = vpop.permute.xlu0 %410
        %v440 = vunpack.c.l.b16 %v206
        %v441 = vunpack.c.h.b16 %v206
        %v442 = vunpack.c.l.b16 %v207
        %v443 = vunpack.c.h.b16 %v207
        %v444 = vunpack.c.l.b16 %v208
        %v445 = vunpack.c.l.b16 %v209
        %v446 = vunpack.c.h.b16 %v209
        %v447 = vunpack.c.l.b16 %v210
        %v448 = vunpack.c.h.b16 %v210
        %v449 = vunpack.c.l.b16 %v211
        %v450 = vunpack.c.l.b16 %v212
        %v451 = vunpack.c.h.b16 %v212
        %v452 = vunpack.c.l.b16 %v213
        %v453 = vunpack.c.h.b16 %v213
        %v454 = vunpack.c.l.b16 %v214
        %v455 = vunpack.c.l.b16 %v215
        %v456 = vunpack.c.h.b16 %v215
        %v457 = vunpack.c.l.b16 %v216
        %v458 = vunpack.c.h.b16 %v216
        %v459 = vunpack.c.l.b16 %v217
        %v460 = vunpack.c.l.b16 %v218
        %v461 = vunpack.c.h.b16 %v218
        %v462 = vunpack.c.l.b16 %v219
        %v463 = vunpack.c.h.b16 %v219
        %v464 = vunpack.c.l.b16 %v220
        %v465 = vunpack.c.l.b16 %v221
        %v466 = vunpack.c.h.b16 %v221
        %v467 = vunpack.c.l.b16 %v222
        %v468 = vunpack.c.h.b16 %v222
        %v469 = vunpack.c.l.b16 %v223
        %v470 = vunpack.c.l.b16 %v224
        %v471 = vunpack.c.h.b16 %v224
        %v472 = vunpack.c.l.b16 %v225
        %v473 = vunpack.c.h.b16 %v225
        %v474 = vunpack.c.l.b16 %v226
        %v475 = vunpack.c.l.b16 %v227
        %v476 = vunpack.c.h.b16 %v227
        %v477 = vunpack.c.l.b16 %v228
        %v478 = vunpack.c.h.b16 %v228
        %v479 = vunpack.c.l.b16 %v229
        %v480 = vpack.c.b16 %v445, %v440
        %v481 = vpack.c.b16 %v446, %v441
        %v482 = vpack.c.b16 %v447, %v442
        %v483 = vpack.c.b16 %v448, %v443
        %v484 = vpack.c.b16 %v449, %v444
        %v485 = vpack.c.b16 %v455, %v450
        %v486 = vpack.c.b16 %v456, %v451
        %v487 = vpack.c.b16 %v457, %v452
        %v488 = vpack.c.b16 %v458, %v453
        %v489 = vpack.c.b16 %v459, %v454
        %v490 = vpack.c.b16 %v465, %v460
        %v491 = vpack.c.b16 %v466, %v461
        %v492 = vpack.c.b16 %v467, %v462
        %v493 = vpack.c.b16 %v468, %v463
        %v494 = vpack.c.b16 %v469, %v464
        %v495 = vpack.c.b16 %v475, %v470
        %v496 = vpack.c.b16 %v476, %v471
        %v497 = vpack.c.b16 %v477, %v472
        %v498 = vpack.c.b16 %v478, %v473
        %v499 = vpack.c.b16 %v479, %v474
        %vm516 = vcmask 523264
        %v518 = vsel %vm516, %v484, 0
        %v521 = vsel %vm516, %v489, 0
        %v524 = vsel %vm516, %v494, 0
        %v527 = vsel %vm516, %v499, 0
        %529 = vmatprep.subr.bf16.mxu0 0
        %530 = vmatpush1.bf16.msra.mxu0 %v288
        %531 = vmatprep.subr.bf16.mxu0 0
        %532 = vmatpush1.bf16.msra.mxu0 %v289
        %533 = vmatprep.subr.bf16.mxu0 0
        %534 = vmatpush1.bf16.msra.mxu0 %v290
        %535 = vmatprep.subr.bf16.mxu0 0
        %536 = vmatpush1.bf16.msra.mxu0 %v291
        %537 = vmatprep.subr.bf16.mxu0 0
        %538 = vmatpush1.bf16.msra.mxu0 %v297
        %539 = vmatprep.subr.bf16.mxu0 0
        %540 = vmatpush1.bf16.msra.mxu0 %v299
        %541 = vmatprep.subr.bf16.mxu0 0
        %542 = vmatpush1.bf16.msra.mxu0 %v301
        %543 = vmatprep.subr.bf16.mxu0 0
        %544 = vmatpush1.bf16.msra.mxu0 %v303
        %545 = vmatprep.subr.bf16.mxu0 0
        %546 = vmatpush1.bf16.msra.mxu0 %v309
        %547 = vmatprep.subr.bf16.mxu0 0
        %548 = vmatpush1.bf16.msra.mxu0 %v311
        %549 = vmatprep.subr.bf16.mxu0 0
        %550 = vmatpush1.bf16.msra.mxu0 %v313
        %551 = vmatprep.subr.bf16.mxu0 0
        %552 = vmatpush1.bf16.msra.mxu0 %v315
        %553 = vmatprep.subr.bf16.mxu0 0
        %554 = vmatpush1.bf16.msra.mxu0 %v336
        %555 = vmatprep.subr.bf16.mxu0 0
        %556 = vmatpush1.bf16.msra.mxu0 %v337
        %557 = vmatprep.subr.bf16.mxu0 0
        %558 = vmatpush1.bf16.msra.mxu0 %v338
        %559 = vmatprep.subr.bf16.mxu0 0
        %560 = vmatpush1.bf16.msra.mxu0 %v339
        %561 = vmatprep.mubr.bf16.mxu0 %v481
        %562 = vmatmul.mubr.bf16.gmra.mrb[0].mxu0 %v480
        %v563 = vpop.f32.mrb[0].mxu0
        %v564 = vadd.f32 0.0, %v563
        %v565 = vpop.f32.mrb[0].mxu0
        %v566 = vpop.f32.mrb[0].mxu0
        %v567 = vadd.f32 0.0, %v566
        %v568 = vpop.f32.mrb[0].mxu0
        %569 = vmatprep.mubr.bf16.mxu0 %v486
        %570 = vmatmul.mubr.bf16.gmra.mrb[0].mxu0 %v485
        %v571 = vpop.f32.mrb[0].mxu0
        %v572 = vadd.f32 0.0, %v571
        %v573 = vpop.f32.mrb[0].mxu0
        %v574 = vpop.f32.mrb[0].mxu0
        %v575 = vadd.f32 0.0, %v574
        %v576 = vpop.f32.mrb[0].mxu0
        %577 = vmatprep.mubr.bf16.mxu0 %v491
        %578 = vmatmul.mubr.bf16.gmra.mrb[0].mxu0 %v490
        %v579 = vpop.f32.mrb[0].mxu0
        %v580 = vadd.f32 0.0, %v579
        %v581 = vpop.f32.mrb[0].mxu0
        %v582 = vpop.f32.mrb[0].mxu0
        %v583 = vadd.f32 0.0, %v582
        %v584 = vpop.f32.mrb[0].mxu0
        %585 = vmatprep.mubr.bf16.mxu0 %v496
        %586 = vmatmul.mubr.bf16.gmra.mrb[0].mxu0 %v495
        %v587 = vpop.f32.mrb[0].mxu0
        %v588 = vadd.f32 0.0, %v587
        %v589 = vpop.f32.mrb[0].mxu0
        %v590 = vpop.f32.mrb[0].mxu0
        %v591 = vadd.f32 0.0, %v590
        %v592 = vpop.f32.mrb[0].mxu0
        %593 = vdwg.mxu0
        %594 = vmatprep.subr.bf16.mxu0 0
        %595 = vmatpush1.bf16.msra.mxu0 %v345
        %596 = vmatprep.subr.bf16.mxu0 0
        %597 = vmatpush1.bf16.msra.mxu0 %v347
        %598 = vmatprep.subr.bf16.mxu0 0
        %599 = vmatpush1.bf16.msra.mxu0 %v349
        %600 = vmatprep.subr.bf16.mxu0 0
        %601 = vmatpush1.bf16.msra.mxu0 %v351
        %602 = vmatprep.subr.bf16.mxu0 0
        %603 = vmatpush1.bf16.msra.mxu0 %v357
        %604 = vmatprep.subr.bf16.mxu0 0
        %605 = vmatpush1.bf16.msra.mxu0 %v359
        %606 = vmatprep.subr.bf16.mxu0 0
        %607 = vmatpush1.bf16.msra.mxu0 %v361
        %608 = vmatprep.subr.bf16.mxu0 0
        %609 = vmatpush1.bf16.msra.mxu0 %v363
        %610 = vmatprep.subr.bf16.mxu0 0
        %611 = vmatpush1.bf16.msra.mxu0 %v384
        %612 = vmatprep.subr.bf16.mxu0 0
        %613 = vmatpush1.bf16.msra.mxu0 %v385
        %614 = vmatprep.subr.bf16.mxu0 0
        %615 = vmatpush1.bf16.msra.mxu0 %v386
        %616 = vmatprep.subr.bf16.mxu0 0
        %617 = vmatpush1.bf16.msra.mxu0 %v387
        %618 = vmatprep.subr.bf16.mxu0 0
        %619 = vmatpush1.bf16.msra.mxu0 %v393
        %620 = vmatprep.subr.bf16.mxu0 0
        %621 = vmatpush1.bf16.msra.mxu0 %v395
        %622 = vmatprep.subr.bf16.mxu0 0
        %623 = vmatpush1.bf16.msra.mxu0 %v397
        %624 = vmatprep.subr.bf16.mxu0 0
        %625 = vmatpush1.bf16.msra.mxu0 %v399
        %626 = vmatprep.mubr.bf16.mxu0 %v483
        %627 = vmatmul.mubr.bf16.gmra.mrb[0].mxu0 %v482
        %v628 = vpop.f32.mrb[0].mxu0
        %v629 = vadd.f32 %v564, %v628
        %v630 = vpop.f32.mrb[0].mxu0
        %v631 = vpop.f32.mrb[0].mxu0
        %v632 = vadd.f32 %v567, %v631
        %v633 = vpop.f32.mrb[0].mxu0
        %634 = vmatprep.mubr.bf16.mxu0 %v488
        %635 = vmatmul.mubr.bf16.gmra.mrb[0].mxu0 %v487
        %v636 = vpop.f32.mrb[0].mxu0
        %v637 = vadd.f32 %v572, %v636
        %v638 = vpop.f32.mrb[0].mxu0
        %v639 = vpop.f32.mrb[0].mxu0
        %v640 = vadd.f32 %v575, %v639
        %v641 = vpop.f32.mrb[0].mxu0
        %642 = vmatprep.mubr.bf16.mxu0 %v493
        %643 = vmatmul.mubr.bf16.gmra.mrb[0].mxu0 %v492
        %v644 = vpop.f32.mrb[0].mxu0
        %v645 = vadd.f32 %v580, %v644
        %v646 = vpop.f32.mrb[0].mxu0
        %v647 = vpop.f32.mrb[0].mxu0
        %v648 = vadd.f32 %v583, %v647
        %v649 = vpop.f32.mrb[0].mxu0
        %650 = vmatprep.mubr.bf16.mxu0 %v498
        %651 = vmatmul.mubr.bf16.gmra.mrb[0].mxu0 %v497
        %v652 = vpop.f32.mrb[0].mxu0
        %v653 = vadd.f32 %v588, %v652
        %v654 = vpop.f32.mrb[0].mxu0
        %v655 = vpop.f32.mrb[0].mxu0
        %v656 = vadd.f32 %v591, %v655
        %v657 = vpop.f32.mrb[0].mxu0
        %658 = vdwg.mxu0
        %659 = vmatprep.subr.bf16.mxu0 0
        %660 = vmatpush1.bf16.msra.mxu0 %v405
        %661 = vmatprep.subr.bf16.mxu0 0
        %662 = vmatpush1.bf16.msra.mxu0 %v407
        %663 = vmatprep.subr.bf16.mxu0 0
        %664 = vmatpush1.bf16.msra.mxu0 %v409
        %665 = vmatprep.subr.bf16.mxu0 0
        %666 = vmatpush1.bf16.msra.mxu0 %v411
        %667 = vmatprep.subr.bf16.mxu0 0
        %668 = vmatpush1.bf16.msra.mxu0 0
        %669 = vmatprep.subr.bf16.mxu0 0
        %670 = vmatpush1.bf16.msra.mxu0 0
        %671 = vmatprep.subr.bf16.mxu0 0
        %672 = vmatpush1.bf16.msra.mxu0 0
        %673 = vmatprep.subr.bf16.mxu0 0
        %674 = vmatpush1.bf16.msra.mxu0 0
        %675 = vmatprep.subr.bf16.mxu0 0
        %676 = vmatpush1.bf16.msra.mxu0 0
        %677 = vmatprep.subr.bf16.mxu0 0
        %678 = vmatpush1.bf16.msra.mxu0 0
        %679 = vmatprep.subr.bf16.mxu0 0
        %680 = vmatpush1.bf16.msra.mxu0 0
        %681 = vmatprep.subr.bf16.mxu0 0
        %682 = vmatpush1.bf16.msra.mxu0 0
        %683 = vmatprep.subr.bf16.mxu0 0
        %684 = vmatpush1.bf16.msra.mxu0 0
        %685 = vmatprep.subr.bf16.mxu0 0
        %686 = vmatpush1.bf16.msra.mxu0 0
        %687 = vmatprep.subr.bf16.mxu0 0
        %688 = vmatpush1.bf16.msra.mxu0 0
        %689 = vmatprep.subr.bf16.mxu0 0
        %690 = vmatpush1.bf16.msra.mxu0 0
        %691 = vmatprep.mubr.bf16.mxu0 0
        %692 = vmatmul.mubr.bf16.gmra.mrb[0].mxu0 %v518
        %v693 = vpop.f32.mrb[0].mxu0
        %v694 = vadd.f32 %v629, %v693
        %v695 = vpop.f32.mrb[0].mxu0
        %v696 = vpop.f32.mrb[0].mxu0
        %v697 = vadd.f32 %v632, %v696
        %v698 = vpop.f32.mrb[0].mxu0
        %699 = vmatprep.mubr.bf16.mxu0 0
        %700 = vmatmul.mubr.bf16.gmra.mrb[0].mxu0 %v521
        %v701 = vpop.f32.mrb[0].mxu0
        %v702 = vadd.f32 %v637, %v701
        %v703 = vpop.f32.mrb[0].mxu0
        %v704 = vpop.f32.mrb[0].mxu0
        %v705 = vadd.f32 %v640, %v704
        %v706 = vpop.f32.mrb[0].mxu0
        %707 = vmatprep.mubr.bf16.mxu0 0
        %708 = vmatmul.mubr.bf16.gmra.mrb[0].mxu0 %v524
        %v709 = vpop.f32.mrb[0].mxu0
        %v710 = vadd.f32 %v645, %v709
        %v711 = vpop.f32.mrb[0].mxu0
        %v712 = vpop.f32.mrb[0].mxu0
        %v713 = vadd.f32 %v648, %v712
        %v714 = vpop.f32.mrb[0].mxu0
        %715 = vmatprep.mubr.bf16.mxu0 0
        %716 = vmatmul.mubr.bf16.gmra.mrb[0].mxu0 %v527
        %v717 = vpop.f32.mrb[0].mxu0
        %v718 = vadd.f32 %v653, %v717
        %v719 = vpop.f32.mrb[0].mxu0
        %v720 = vpop.f32.mrb[0].mxu0
        %v721 = vadd.f32 %v656, %v720
        %v722 = vpop.f32.mrb[0].mxu0
        %723 = vdwg.mxu0
        %725 = vset.pattern.permute.xlu0 0
        %726 = vperm.xlu0 %725, %v198
        %v727 = vpop.permute.xlu0 %726
        %730 = vset.pattern.permute.xlu0 0
        %731 = vperm.xlu0 %730, %v199
        %v732 = vpop.permute.xlu0 %731
        %735 = vset.pattern.permute.xlu0 0
        %736 = vperm.xlu0 %735, %v200
        %v737 = vpop.permute.xlu0 %736
        %740 = vset.pattern.permute.xlu0 0
        %741 = vperm.xlu0 %740, %v201
        %v742 = vpop.permute.xlu0 %741
        %745 = vset.pattern.permute.xlu0 0
        %746 = vperm.xlu0 %745, %v202
        %v747 = vpop.permute.xlu0 %746
        %750 = vset.pattern.permute.xlu0 0
        %751 = vperm.xlu0 %750, %v203
        %v752 = vpop.permute.xlu0 %751
        %755 = vset.pattern.permute.xlu0 0
        %756 = vperm.xlu0 %755, %v204
        %v757 = vpop.permute.xlu0 %756
        %760 = vset.pattern.permute.xlu0 0
        %761 = vperm.xlu0 %760, %v205
        %v762 = vpop.permute.xlu0 %761
        %v764 = vmul.f32 %v694, %v727
        %v765 = vmul.f32 %v697, %v732
        %v766 = vmul.f32 %v702, %v737
        %v767 = vmul.f32 %v705, %v742
        %v768 = vmul.f32 %v710, %v747
        %v769 = vmul.f32 %v713, %v752
        %v770 = vmul.f32 %v718, %v757
        %v771 = vmul.f32 %v721, %v762
        %772 = vset.pattern.permute.xlu0 1
        %773 = vperm.xlu0 %772, %v198
        %v774 = vpop.permute.xlu0 %773
        %776 = vset.pattern.permute.xlu0 1
        %777 = vperm.xlu0 %776, %v199
        %v778 = vpop.permute.xlu0 %777
        %780 = vset.pattern.permute.xlu0 1
        %781 = vperm.xlu0 %780, %v200
        %v782 = vpop.permute.xlu0 %781
        %784 = vset.pattern.permute.xlu0 1
        %785 = vperm.xlu0 %784, %v201
        %v786 = vpop.permute.xlu0 %785
        %788 = vset.pattern.permute.xlu0 1
        %789 = vperm.xlu0 %788, %v202
        %v790 = vpop.permute.xlu0 %789
        %792 = vset.pattern.permute.xlu0 1
        %793 = vperm.xlu0 %792, %v203
        %v794 = vpop.permute.xlu0 %793
        %796 = vset.pattern.permute.xlu0 1
        %797 = vperm.xlu0 %796, %v204
        %v798 = vpop.permute.xlu0 %797
        %800 = vset.pattern.permute.xlu0 1
        %801 = vperm.xlu0 %800, %v205
        %v802 = vpop.permute.xlu0 %801
        %v804 = vadd.f32 %v764, %v774
        %v805 = vadd.f32 %v765, %v778
        %v806 = vadd.f32 %v766, %v782
        %v807 = vadd.f32 %v767, %v786
        %v808 = vadd.f32 %v768, %v790
        %v809 = vadd.f32 %v769, %v794
        %v810 = vadd.f32 %v770, %v798
        %v811 = vadd.f32 %v771, %v802
        %vm812 = vcmp.gt.f32.partialorder %v804, 0.0
        %vm813 = vcmp.gt.f32.partialorder %v805, 0.0
        %vm814 = vcmp.gt.f32.partialorder %v806, 0.0
        %vm815 = vcmp.gt.f32.partialorder %v807, 0.0
        %vm816 = vcmp.gt.f32.partialorder %v808, 0.0
        %vm817 = vcmp.gt.f32.partialorder %v809, 0.0
        %vm818 = vcmp.gt.f32.partialorder %v810, 0.0
        %vm819 = vcmp.gt.f32.partialorder %v811, 0.0
        %820 = vset.pattern.permute.xlu0 2
        %821 = vperm.xlu0 %820, %v198
        %v822 = vpop.permute.xlu0 %821
        %824 = vset.pattern.permute.xlu0 2
        %825 = vperm.xlu0 %824, %v199
        %v826 = vpop.permute.xlu0 %825
        %828 = vset.pattern.permute.xlu0 2
        %829 = vperm.xlu0 %828, %v200
        %v830 = vpop.permute.xlu0 %829
        %832 = vset.pattern.permute.xlu0 2
        %833 = vperm.xlu0 %832, %v201
        %v834 = vpop.permute.xlu0 %833
        %836 = vset.pattern.permute.xlu0 2
        %837 = vperm.xlu0 %836, %v202
        %v838 = vpop.permute.xlu0 %837
        %840 = vset.pattern.permute.xlu0 2
        %841 = vperm.xlu0 %840, %v203
        %v842 = vpop.permute.xlu0 %841
        %844 = vset.pattern.permute.xlu0 2
        %845 = vperm.xlu0 %844, %v204
        %v846 = vpop.permute.xlu0 %845
        %848 = vset.pattern.permute.xlu0 2
        %849 = vperm.xlu0 %848, %v205
        %v850 = vpop.permute.xlu0 %849
        %v852 = vmul.f32 %v822, %v804
        %v853 = vmul.f32 %v826, %v805
        %v854 = vmul.f32 %v830, %v806
        %v855 = vmul.f32 %v834, %v807
        %v856 = vmul.f32 %v838, %v808
        %v857 = vmul.f32 %v842, %v809
        %v858 = vmul.f32 %v846, %v810
        %v859 = vmul.f32 %v850, %v811
        %v860 = vsel %vm812, %v804, %v852
        %v861 = vsel %vm813, %v805, %v853
        %v862 = vsel %vm814, %v806, %v854
        %v863 = vsel %vm815, %v807, %v855
        %v864 = vsel %vm816, %v808, %v856
        %v865 = vsel %vm817, %v809, %v857
        %v866 = vsel %vm818, %v810, %v858
        %v867 = vsel %vm819, %v811, %v859
        %v868 = vpack.c.bf16 %v861, %v860
        %v869 = vpack.c.bf16 %v863, %v862
        %v870 = vpack.c.bf16 %v865, %v864
        %v871 = vpack.c.bf16 %v867, %v866
        %s872 = smul.u32 %s231, 4
        %s873 = smul.addr %s872, 8
        %s874 = scalar_lea.vmem %s194, %s873
        %vm875 = vcmask 56320
        %876 = vst.msk [vmem:[%s874] sm:$0xff] %vm875, %v868
        %877 = vst.msk [vmem:[%s874 + $0x8] sm:$0xff] %vm875, %v869
        %878 = vst.msk [vmem:[%s874 + $0x10] sm:$0xff] %vm875, %v870
        %879 = vst.msk [vmem:[%s874 + $0x18] sm:$0xff] %vm875, %v871
      $region37: #{id_loss_forward.17} parent=31 // loop_footer
        %s235 = sadd.s32 1, %s231
      $region38: #{id_loss_forward.17} parent=31 // loop_footer_branch
        %230 = sbr.rel target = $region34
      $region39: #{id_loss_forward.17} parent=31 // loop_exit
        _
      %s880 = smul.u32 7, %s19
      %p881 = scmp.lt.s32.totalorder %s18, 1
      %s882 = scalar_select %p881, %s18, 1
      %p883 = scmp.lt.s32.totalorder %s880, 6
      %s884 = scalar_select %p883, %s880, 6
      %s885 = smul.addr %s884, 4
      %s886 = smul.addr %s882, 28
      %s887 = sadd.s32 %s885, %s886
      %s888 = smul.addr %s887, 8
      %s889 = scalar_lea.vmem %s3, %s888
      // Predicated region
      $region40: #{id_loss_forward.17} parent=31 // pred_check
        %p890 = pneg %p114
      $region41: #{id_loss_forward.17} parent=31 // pred_check_branch
        %892 = sbr.rel (%p890) target = $region43
      $region42: #{id_loss_forward.17} parent=31 // pred_region
        %s893 = smul.u32 7, %s19
      $region43: #{id_loss_forward.17} parent=31 // pred_fallthru
        _
    $region32: #{id_loss_forward.17} parent=5 // pred_fallthru
      _
    %p894 = scmp.le.s32.totalorder 2, %s9
    // Predicated region
    $region44: #{id_loss_forward.17} parent=5 // pred_check
      %p895 = pneg %p894
    $region45: #{id_loss_forward.17} parent=5 // pred_check_branch
      %897 = sbr.rel (%p895) target = $region47
    $region46: #{id_loss_forward.17} parent=5 // pred_region
      %s898 = ssub.s32 %s9, 2
      // Predicated region
      $region48: #{id_loss_forward.17} parent=46 // pred_check
        %p899 = pneg %p120
      $region49: #{id_loss_forward.17} parent=46 // pred_check_branch
        %901 = sbr.rel (%p899) target = $region51
      $region50: #{id_loss_forward.17} parent=46 // pred_region
        %s902 = smul.u32 7, %s21
        %p903 = scmp.lt.s32.totalorder %s20, 1
        %s904 = scalar_select %p903, %s20, 1
        %p905 = scmp.lt.s32.totalorder %s902, 6
        %s906 = scalar_select %p905, %s902, 6
        %s907 = smul.addr %s906, 4
        %s908 = smul.addr %s904, 28
        %s909 = sadd.s32 %s907, %s908
        %s910 = smul.addr %s909, 8
        %s911 = scalar_lea.vmem %s3, %s910
      $region51: #{id_loss_forward.17} parent=46 // pred_fallthru
        _
    $region47: #{id_loss_forward.17} parent=5 // pred_fallthru
      _
  $region6: #{id_loss_forward.17} parent=0 // loop_footer
    %s13 = sadd.s32 1, %s9
  $region7: #{id_loss_forward.17} parent=0 // loop_footer_branch
    %8 = sbr.rel target = $region3
  $region8: #{id_loss_forward.17} parent=0 // loop_exit
    _

</llo_original>
